<compile_context>
chip_gen: v7x
topology: tpu7x:2x2x1
jax: 0.10.0
libtpu: 0.0.40
codegen_flags: <defaults>
</compile_context>

<pallas_src>
import functools

import jax
import jax.numpy as jnp
from jax.experimental import pallas as pl
from jax.experimental.pallas import tpu as pltpu

VMEM_LIMIT = 32 * 1024 * 1024  # safe on v5e/v6e (128 MiB phys) and v7x (64 MiB phys)


def _round_up(x, m):
    return ((x + m - 1) // m) * m


# -----------------------------------------------------------------------------
# Pallas kernels
# -----------------------------------------------------------------------------
def _linear_kernel(x_ref, w_ref, b_ref, o_ref, *, relu):
    """One M-tile of  o = (x @ w + b) [+ ReLU].  f32 accumulation on the MXU."""
    y = jnp.dot(x_ref[...], w_ref[...], preferred_element_type=jnp.float32)
    y = y + b_ref[...]
    if relu:
        y = jnp.maximum(y, 0.0)
    o_ref[...] = y.astype(o_ref.dtype)


def linear(x, w, b, relu=False, out_dtype=jnp.float32, tile_m=512):
    """y = relu?(x @ w + b); tiled over M (parallel), K/N whole, bf16-friendly."""
    M, K = x.shape
    Kw, N = w.shape
    assert K == Kw
    x = x.astype(w.dtype)
    tm = min(tile_m, _round_up(M, 16))         # multiple of 16 (safe for bf16 blocks)
    Mp = _round_up(M, tm)
    if Mp != M:
        x = jnp.pad(x, ((0, Mp - M), (0, 0)))
    out = pl.pallas_call(
        functools.partial(_linear_kernel, relu=relu),
        out_shape=jax.ShapeDtypeStruct((Mp, N), out_dtype),
        grid=(Mp // tm,),
        in_specs=[
            pl.BlockSpec((tm, K), lambda i: (i, 0)),
            pl.BlockSpec((K, N), lambda i: (0, 0)),
            pl.BlockSpec((1, N), lambda i: (0, 0)),
        ],
        out_specs=pl.BlockSpec((tm, N), lambda i: (i, 0)),
        compiler_params=pltpu.CompilerParams(
            dimension_semantics=("parallel",),
            vmem_limit_bytes=VMEM_LIMIT),
    )(x, w, b.reshape(1, N).astype(jnp.float32))
    return out[:M] if Mp != M else out


def _mlp2_kernel(x_ref, w1_ref, b1_ref, w2_ref, b2_ref, o_ref):
    """Fused  relu(x @ w1 + b1) @ w2 + b2  (the linear_stack)."""
    h = jnp.dot(x_ref[...], w1_ref[...], preferred_element_type=jnp.float32)
    h = jnp.maximum(h + b1_ref[...], 0.0)
    y = jnp.dot(h.astype(w2_ref.dtype), w2_ref[...],
                preferred_element_type=jnp.float32)
    o_ref[...] = (y + b2_ref[...]).astype(o_ref.dtype)


def mlp2(x, w1, b1, w2, b2, tile_m=256):
    M, K = x.shape
    H1 = w1.shape[1]
    N = w2.shape[1]
    x = x.astype(w1.dtype)
    tm = min(tile_m, _round_up(M, 16))
    Mp = _round_up(M, tm)
    if Mp != M:
        x = jnp.pad(x, ((0, Mp - M), (0, 0)))
    out = pl.pallas_call(
        _mlp2_kernel,
        out_shape=jax.ShapeDtypeStruct((Mp, N), jnp.float32),
        grid=(Mp // tm,),
        in_specs=[
            pl.BlockSpec((tm, K), lambda i: (i, 0)),
            pl.BlockSpec((K, H1), lambda i: (0, 0)),
            pl.BlockSpec((1, H1), lambda i: (0, 0)),
            pl.BlockSpec((H1, N), lambda i: (0, 0)),
            pl.BlockSpec((1, N), lambda i: (0, 0)),
        ],
        out_specs=pl.BlockSpec((tm, N), lambda i: (i, 0)),
        compiler_params=pltpu.CompilerParams(
            dimension_semantics=("parallel",),
            vmem_limit_bytes=VMEM_LIMIT),
    )(x, w1, b1.reshape(1, H1).astype(jnp.float32),
      w2, b2.reshape(1, N).astype(jnp.float32))
    return out[:M] if Mp != M else out


def _rnn_head_kernel(xs_ref, xr_ref,
                     s_wih0, s_whh0, s_b0, s_wih1, s_whh1, s_b1,
                     r_wih0, r_whh0, r_b0, r_wih1, r_whh1, r_b1,
                     fc1_w, fc1_b, fc2_w, fc2_b,
                     o_ref, *, T, Hp):
    """Two stacked 2-layer LSTMs (rnn_s then rnn, state carried over) + fc head.

    Gate order i,f,g,o (PyTorch).  Hidden dim is padded to Hp=128 (zero-padded
    gate blocks keep padded lanes exactly zero).  The x@Wih projection is hoisted
    out of the recurrence; the time loop is fully unrolled (T static, small).
    """
    Bp = xs_ref.shape[1]

    def gates_all(x_seq, wih, b):
        Tn, Bn, _ = x_seq.shape
        g = jnp.dot(x_seq.reshape(Tn * Bn, -1), wih,
                    preferred_element_type=jnp.float32) + b
        return g.reshape(Tn, Bn, 4 * Hp)

    def cell(g_pre, h, c, whh):
        g = g_pre + jnp.dot(h, whh, preferred_element_type=jnp.float32)
        i = jax.nn.sigmoid(g[:, 0 * Hp:1 * Hp])
        f = jax.nn.sigmoid(g[:, 1 * Hp:2 * Hp])
        gg = jnp.tanh(g[:, 2 * Hp:3 * Hp])
        o = jax.nn.sigmoid(g[:, 3 * Hp:4 * Hp])
        c = f * c + i * gg
        h = o * jnp.tanh(c)
        return h, c

    def run_lstm2(x_seq, wih0, whh0, b0, wih1, whh1, b1, h0s, c0s):
        h_l0, c_l0 = h0s[0], c0s[0]
        h_l1, c_l1 = h0s[1], c0s[1]
        g0_all = gates_all(x_seq, wih0, b0)                # (T, Bp, 4Hp), hoisted
        h0_seq = []
        for t in range(T):                                 # unrolled, static T
            h_l0, c_l0 = cell(g0_all[t], h_l0, c_l0, whh0)
            h0_seq.append(h_l0)
        g1_all = gates_all(jnp.stack(h0_seq, axis=0), wih1, b1)
        for t in range(T):
            h_l1, c_l1 = cell(g1_all[t], h_l1, c_l1, whh1)
        return h_l0, c_l0, h_l1, c_l1

    z = jnp.zeros((Bp, Hp), jnp.float32)
    # rnn_s with zero initial state
    h_s0, c_s0, h_s1, c_s1 = run_lstm2(
        xs_ref[...], s_wih0[...], s_whh0[...], s_b0[...],
        s_wih1[...], s_whh1[...], s_b1[...], (z, z), (z, z))
    # rnn initialized with rnn_s final (hn, cn)
    _, _, h_r1, _ = run_lstm2(
        xr_ref[...], r_wih0[...], r_whh0[...], r_b0[...],
        r_wih1[...], r_whh1[...], r_b1[...], (h_s0, h_s1), (c_s0, c_s1))

    # fc head: cat([out[:, -1, :], out_s[:, -1, :]]) -> relu(fc1) -> fc2
    out_in = jnp.concatenate([h_r1, h_s1], axis=-1)        # (Bp, 2*Hp), pads are 0
    y = jnp.dot(out_in, fc1_w[...], preferred_element_type=jnp.float32) + fc1_b[...]
    y = jnp.maximum(y, 0.0)
    y = jnp.dot(y, fc2_w[...], preferred_element_type=jnp.float32) + fc2_b[...]
    o_ref[...] = y.astype(o_ref.dtype)


def rnn_head(x_s, x_r, params):
    """x_s/x_r: (T, Bp, Din) time-major, batch padded to Bp.  Returns (Bp, out)."""
    T, Bp, _ = x_s.shape
    Hp = params["rnn_s"]["whh0"].shape[0]
    out_dim = params["fc2_w"].shape[1]
    ws, wr = params["rnn_s"], params["rnn"]
    args = (x_s, x_r,
            ws["wih0"], ws["whh0"], ws["b0"], ws["wih1"], ws["whh1"], ws["b1"],
            wr["wih0"], wr["whh0"], wr["b0"], wr["wih1"], wr["whh1"], wr["b1"],
            params["fc1_w"], params["fc1_b"].reshape(1, -1),
            params["fc2_w"], params["fc2_b"].reshape(1, -1))

    def full(shape):
        nd = len(shape)
        return pl.BlockSpec(shape, lambda i, nd=nd: (0,) * nd)

    return pl.pallas_call(
        functools.partial(_rnn_head_kernel, T=T, Hp=Hp),
        out_shape=jax.ShapeDtypeStruct((Bp, out_dim), jnp.float32),
        grid=(1,),
        in_specs=[full(a.shape) for a in args],
        out_specs=full((Bp, out_dim)),
        compiler_params=pltpu.CompilerParams(
            dimension_semantics=("arbitrary",),
            vmem_limit_bytes=VMEM_LIMIT),
    )(*args)


# -----------------------------------------------------------------------------
# Conv as NHWC im2col + Pallas matmul (patch order (kh,kw,C) matches packed weight)
# -----------------------------------------------------------------------------
def conv_relu(x_nhwc, w_mat, b, k, s, out_dtype):
    N, H, W, C = x_nhwc.shape
    OH = (H - k) // s + 1
    OW = (W - k) // s + 1
    cols = []
    for i in range(k):                      # static python loops, small kernels
        for j in range(k):
            cols.append(x_nhwc[:, i:i + s * OH:s, j:j + s * OW:s, :])  # (N,OH,OW,C)
    patches = jnp.concatenate(cols, axis=-1)            # (N, OH, OW, k*k*C)
    patches = patches.reshape(N * OH * OW, k * k * C)
    y = linear(patches, w_mat, b, relu=True, out_dtype=out_dtype)
    return y.reshape(N, OH, OW, w_mat.shape[1])


# -----------------------------------------------------------------------------
# NatureCNN forward
# -----------------------------------------------------------------------------
def nature_cnn_forward(params, observations, data, slice_index, len_batch):
    N = observations.shape[0]

    # --- self.cnn (NHWC end-to-end, bf16 activations, last layer emits f32) ---
    x = jnp.transpose(observations, (0, 2, 3, 1)).astype(jnp.bfloat16)  # NCHW->NHWC once
    x = conv_relu(x, params["c1_w"], params["c1_b"], 8, 4, jnp.bfloat16)
    x = conv_relu(x, params["c2_w"], params["c2_b"], 4, 2, jnp.bfloat16)
    x = conv_relu(x, params["c3_w"], params["c3_b"], 3, 1, jnp.float32)
    # PyTorch Flatten is channel-major (C,H,W): transpose the (tiny) final map back.
    c_out = jnp.transpose(x, (0, 3, 1, 2)).reshape(N, -1)

    # --- self.linear_stack (fused l1+ReLU+l2) ---
    data_out = mlp2(data, params["l1_w"], params["l1_b"],
                    params["l2_w"], params["l2_b"])                    # (N, 512)

    # --- split by slice_index (int => equal-length segments, rnn_s first) ---
    r_in = jnp.concatenate([c_out, data_out], axis=-1)                 # (N, Din)
    T, B = slice_index, len_batch
    Din = r_in.shape[-1]
    segs = r_in.reshape(2 * B, T, Din)
    x_s = jnp.transpose(segs[:B], (1, 0, 2))                           # (T, B, Din)
    x_r = jnp.transpose(segs[B:], (1, 0, 2))                           # (T, B, Din)

    # pad batch to a multiple of 8 (full sublanes); padded rows sliced off below
    Bp = max(8, _round_up(B, 8))
    if Bp != B:
        pad = ((0, 0), (0, Bp - B), (0, 0))
        x_s = jnp.pad(x_s, pad)
        x_r = jnp.pad(x_r, pad)

    # --- both LSTMs + fc head in one Pallas kernel ---
    y = rnn_head(x_s, x_r, params)                                     # (Bp, out_dim)
    return y[:B]


# -----------------------------------------------------------------------------
# Deterministic parameter init: PyTorch-native layouts, packed/padded once here.
# -----------------------------------------------------------------------------
def init_params(key, in_ch, data_dim, n_flatten, hidden_dim, output_dim, hp=128):
    keys = iter(jax.random.split(key, 64))

    def w(shape, scale=0.05):
        return jax.random.normal(next(keys), shape, jnp.float32) * scale

    p = {}

    # conv: PyTorch (out, in, kh, kw) -> (kh*kw*in, out) bf16 matmul matrix
    def pack_conv(wc):
        o, c, kh, kw = wc.shape
        return jnp.transpose(wc, (2, 3, 1, 0)).reshape(kh * kw * c, o).astype(jnp.bfloat16)

    p["c1_w"], p["c1_b"] = pack_conv(w((32, in_ch, 8, 8))), w((32,))
    p["c2_w"], p["c2_b"] = pack_conv(w((64, 32, 4, 4))), w((64,))
    p["c3_w"], p["c3_b"] = pack_conv(w((64, 64, 3, 3))), w((64,))

    # linear_stack: stored transposed (in, out), bf16 weights, f32 biases
    p["l1_w"], p["l1_b"] = w((data_dim, 1024)).astype(jnp.bfloat16), w((1024,))
    p["l2_w"], p["l2_b"] = w((1024, 512)).astype(jnp.bfloat16), w((512,))

    # LSTMs: generated in PyTorch layout (w_ih (4H,in), w_hh (4H,H), b_ih, b_hh;
    # gate order i,f,g,o), then per-gate zero-padded H->hp and transposed.
    # NOTE: bias is stored combined (b_ih + b_hh) — sum real checkpoint biases too.
    H = hidden_dim
    din = n_flatten + 512

    def pack_lstm_layer(w_ih, w_hh, b_ih, b_hh, pad_input):
        def pad_gates(m):                      # (4H, X) -> (4hp, X), zero pad per gate
            m = m.reshape(4, H, m.shape[-1])
            m = jnp.pad(m, ((0, 0), (0, hp - H), (0, 0)))
            return m.reshape(4 * hp, -1)
        wih = pad_gates(w_ih)                                   # (4hp, in)
        if pad_input:
            wih = jnp.pad(wih, ((0, 0), (0, hp - H)))           # input is padded h
        whh = jnp.pad(pad_gates(w_hh), ((0, 0), (0, hp - H)))   # (4hp, hp)
        b = pad_gates((b_ih + b_hh)[:, None])[:, 0].reshape(1, 4 * hp)
        return wih.T, whh.T, b                 # (in, 4hp), (hp, 4hp), (1, 4hp)

    for name in ("rnn_s", "rnn"):
        wih0, whh0, b0 = pack_lstm_layer(w((4 * H, din)), w((4 * H, H)),
                                         w((4 * H,)), w((4 * H,)), pad_input=False)
        wih1, whh1, b1 = pack_lstm_layer(w((4 * H, H)), w((4 * H, H)),
                                         w((4 * H,)), w((4 * H,)), pad_input=True)
        p[name] = {"wih0": wih0, "whh0": whh0, "b0": b0,
                   "wih1": wih1, "whh1": whh1, "b1": b1}

    # fc head: fc1 stored transposed (2H, 512), re-laid out for the padded
    # [h_rnn(hp) | h_rnn_s(hp)] concatenation used inside the kernel.
    fc1 = w((2 * H, 512))
    fc1p = jnp.zeros((2 * hp, 512), jnp.float32)
    fc1p = fc1p.at[:H].set(fc1[:H]).at[hp:hp + H].set(fc1[H:])
    p["fc1_w"], p["fc1_b"] = fc1p, w((512,))
    p["fc2_w"], p["fc2_b"] = w((512, output_dim)), w((output_dim,))
    return p


# -----------------------------------------------------------------------------
if __name__ == "__main__":
    key = jax.random.PRNGKey(0)

    # small synthetic config
    IN_CH, IMG_H, IMG_W = 3, 36, 36            # 36 -> 8 -> 3 -> 1 spatially
    MAX_ACTION_TOP, MAX_LAST_ACTION = 8, 4     # synthetic stand-ins for the globals
    DATA_DIM = MAX_ACTION_TOP * MAX_LAST_ACTION
    HIDDEN_DIM = 100                           # fixed in the module (padded to 128 internally)
    OUTPUT_DIM = 16
    LEN_BATCH = 2
    SLICE_INDEX = 4                            # segment length T
    N_TOTAL = 2 * LEN_BATCH * SLICE_INDEX      # rnn_s segments + rnn segments

    n_flatten = 64 * 1 * 1                     # CNN output features for 36x36 input

    k_obs, k_data, k_par = jax.random.split(key, 3)
    observations = jax.random.normal(k_obs, (N_TOTAL, IN_CH, IMG_H, IMG_W), jnp.float32)
    data = jax.random.normal(k_data, (N_TOTAL, DATA_DIM), jnp.float32)

    params = init_params(k_par, IN_CH, DATA_DIM, n_flatten, HIDDEN_DIM, OUTPUT_DIM)

    forward = jax.jit(nature_cnn_forward, static_argnums=(3, 4))
    out = forward(params, observations, data, SLICE_INDEX, LEN_BATCH)
    out = jax.block_until_ready(out)
    assert out.shape == (LEN_BATCH, OUTPUT_DIM), out.shape
    assert bool(jnp.all(jnp.isfinite(out)))
    print("KERNEL_OK")
</pallas_src>

<mosaic_0001>
module attributes {stable_mosaic.version = 11 : i64} {
  func.func @_linear_kernel(%arg0: i32, %arg1: memref<512x192xbf16, #tpu.memory_space<vmem>>, %arg2: memref<192x32xbf16, #tpu.memory_space<vmem>>, %arg3: memref<1x32xf32, #tpu.memory_space<vmem>>, %arg4: memref<512x32xbf16, #tpu.memory_space<vmem>>) attributes {dimension_semantics = [#tpu.dimension_semantics<parallel>], iteration_bounds = array<i64: 2>, scalar_prefetch = 0 : i64, scratch_operands = 0 : i64, tpu.core_type = #tpu.core_type<tc>, window_params = [{transform_indices = @transform_0, window_bounds = array<i64: 512, 192>}, {pipeline_mode = #tpu.pipeline_mode<synchronous>, transform_indices = @transform_1, window_bounds = array<i64: 192, 32>}, {pipeline_mode = #tpu.pipeline_mode<synchronous>, transform_indices = @transform_2, window_bounds = array<i64: 1, 32>}, {transform_indices = @transform_3, window_bounds = array<i64: 512, 32>}]} {
    %c0 = arith.constant 0 : index
    %c0_0 = arith.constant 0 : index
    %0 = vector.load %arg1[%c0, %c0_0] : memref<512x192xbf16, #tpu.memory_space<vmem>>, vector<512x192xbf16>
    %c0_1 = arith.constant 0 : index
    %c0_2 = arith.constant 0 : index
    %1 = vector.load %arg2[%c0_1, %c0_2] : memref<192x32xbf16, #tpu.memory_space<vmem>>, vector<192x32xbf16>
    %cst = arith.constant dense<0.000000e+00> : vector<512x32xf32>
    %2 = tpu.matmul %0, %1, %cst {dimension_numbers = #tpu.dot_dimension_numbers<[1], [0], [0], [1], [0, 0, 1, 1], [], []>} : vector<512x192xbf16>, vector<192x32xbf16>, vector<512x32xf32> -> vector<512x32xf32>
    %c0_3 = arith.constant 0 : index
    %c0_4 = arith.constant 0 : index
    %3 = vector.load %arg3[%c0_3, %c0_4] : memref<1x32xf32, #tpu.memory_space<vmem>>, vector<1x32xf32>
    %4 = vector.broadcast %3 : vector<1x32xf32> to vector<512x32xf32>
    %5 = arith.addf %2, %4 : vector<512x32xf32>
    %cst_5 = arith.constant 0.000000e+00 : f32
    %6 = vector.broadcast %cst_5 : f32 to vector<512x32xf32>
    %7 = arith.maximumf %5, %6 : vector<512x32xf32>
    %8 = arith.truncf %7 : vector<512x32xf32> to vector<512x32xbf16>
    %c0_6 = arith.constant 0 : index
    %c0_7 = arith.constant 0 : index
    %9 = vector.load %arg4[%c0_6, %c0_7] : memref<512x32xbf16, #tpu.memory_space<vmem>>, vector<512x32xbf16>
    tpu.vector_store %arg4[%c0_6, %c0_7], %8 {strides = array<i32>} : memref<512x32xbf16, #tpu.memory_space<vmem>>, vector<512x32xbf16>,
    return
  }
  func.func @transform_0(%arg0: i32) -> (i32, i32) {
    %c0_i32 = arith.constant 0 : i32
    %c0_i32_0 = arith.constant 0 : i32
    return %arg0, %c0_i32 : i32, i32
  }
  func.func @transform_1(%arg0: i32) -> (i32, i32) {
    %c0_i32 = arith.constant 0 : i32
    %c0_i32_0 = arith.constant 0 : i32
    %c0_i32_1 = arith.constant 0 : i32
    return %c0_i32, %c0_i32_0 : i32, i32
  }
  func.func @transform_2(%arg0: i32) -> (i32, i32) {
    %c0_i32 = arith.constant 0 : i32
    %c0_i32_0 = arith.constant 0 : i32
    %c0_i32_1 = arith.constant 0 : i32
    return %c0_i32, %c0_i32_0 : i32, i32
  }
  func.func @transform_3(%arg0: i32) -> (i32, i32) {
    %c0_i32 = arith.constant 0 : i32
    %c0_i32_0 = arith.constant 0 : i32
    return %arg0, %c0_i32 : i32, i32
  }
}

module attributes {stable_mosaic.version = 11 : i64} {
  func.func @_linear_kernel(%arg0: i32, %arg1: memref<144x512xbf16, #tpu.memory_space<vmem>>, %arg2: memref<512x64xbf16, #tpu.memory_space<vmem>>, %arg3: memref<1x64xf32, #tpu.memory_space<vmem>>, %arg4: memref<144x64xbf16, #tpu.memory_space<vmem>>) attributes {dimension_semantics = [#tpu.dimension_semantics<parallel>], iteration_bounds = array<i64: 1>, scalar_prefetch = 0 : i64, scratch_operands = 0 : i64, tpu.core_type = #tpu.core_type<tc>, window_params = [{transform_indices = @transform_0, window_bounds = array<i64: 144, 512>}, {pipeline_mode = #tpu.pipeline_mode<synchronous>, transform_indices = @transform_1, window_bounds = array<i64: 512, 64>}, {pipeline_mode = #tpu.pipeline_mode<synchronous>, transform_indices = @transform_2, window_bounds = array<i64: 1, 64>}, {transform_indices = @transform_3, window_bounds = array<i64: 144, 64>}]} {
    %c0 = arith.constant 0 : index
    %c0_0 = arith.constant 0 : index
    %0 = vector.load %arg1[%c0, %c0_0] : memref<144x512xbf16, #tpu.memory_space<vmem>>, vector<144x512xbf16>
    %c0_1 = arith.constant 0 : index
    %c0_2 = arith.constant 0 : index
    %1 = vector.load %arg2[%c0_1, %c0_2] : memref<512x64xbf16, #tpu.memory_space<vmem>>, vector<512x64xbf16>
    %cst = arith.constant dense<0.000000e+00> : vector<144x64xf32>
    %2 = tpu.matmul %0, %1, %cst {dimension_numbers = #tpu.dot_dimension_numbers<[1], [0], [0], [1], [0, 0, 1, 1], [], []>} : vector<144x512xbf16>, vector<512x64xbf16>, vector<144x64xf32> -> vector<144x64xf32>
    %c0_3 = arith.constant 0 : index
    %c0_4 = arith.constant 0 : index
    %3 = vector.load %arg3[%c0_3, %c0_4] : memref<1x64xf32, #tpu.memory_space<vmem>>, vector<1x64xf32>
    %4 = vector.broadcast %3 : vector<1x64xf32> to vector<144x64xf32>
    %5 = arith.addf %2, %4 : vector<144x64xf32>
    %cst_5 = arith.constant 0.000000e+00 : f32
    %6 = vector.broadcast %cst_5 : f32 to vector<144x64xf32>
    %7 = arith.maximumf %5, %6 : vector<144x64xf32>
    %8 = arith.truncf %7 : vector<144x64xf32> to vector<144x64xbf16>
    %c0_6 = arith.constant 0 : index
    %c0_7 = arith.constant 0 : index
    %9 = vector.load %arg4[%c0_6, %c0_7] : memref<144x64xbf16, #tpu.memory_space<vmem>>, vector<144x64xbf16>
    tpu.vector_store %arg4[%c0_6, %c0_7], %8 {strides = array<i32>} : memref<144x64xbf16, #tpu.memory_space<vmem>>, vector<144x64xbf16>,
    return
  }
  func.func @transform_0(%arg0: i32) -> (i32, i32) {
    %c0_i32 = arith.constant 0 : i32
    %c0_i32_0 = arith.constant 0 : i32
    return %arg0, %c0_i32 : i32, i32
  }
  func.func @transform_1(%arg0: i32) -> (i32, i32) {
    %c0_i32 = arith.constant 0 : i32
    %c0_i32_0 = arith.constant 0 : i32
    %c0_i32_1 = arith.constant 0 : i32
    return %c0_i32, %c0_i32_0 : i32, i32
  }
  func.func @transform_2(%arg0: i32) -> (i32, i32) {
    %c0_i32 = arith.constant 0 : i32
    %c0_i32_0 = arith.constant 0 : i32
    %c0_i32_1 = arith.constant 0 : i32
    return %c0_i32, %c0_i32_0 : i32, i32
  }
  func.func @transform_3(%arg0: i32) -> (i32, i32) {
    %c0_i32 = arith.constant 0 : i32
    %c0_i32_0 = arith.constant 0 : i32
    return %arg0, %c0_i32 : i32, i32
  }
}

module attributes {stable_mosaic.version = 11 : i64} {
  func.func @_linear_kernel(%arg0: i32, %arg1: memref<16x576xbf16, #tpu.memory_space<vmem>>, %arg2: memref<576x64xbf16, #tpu.memory_space<vmem>>, %arg3: memref<1x64xf32, #tpu.memory_space<vmem>>, %arg4: memref<16x64xf32, #tpu.memory_space<vmem>>) attributes {dimension_semantics = [#tpu.dimension_semantics<parallel>], iteration_bounds = array<i64: 1>, scalar_prefetch = 0 : i64, scratch_operands = 0 : i64, tpu.core_type = #tpu.core_type<tc>, window_params = [{transform_indices = @transform_0, window_bounds = array<i64: 16, 576>}, {pipeline_mode = #tpu.pipeline_mode<synchronous>, transform_indices = @transform_1, window_bounds = array<i64: 576, 64>}, {pipeline_mode = #tpu.pipeline_mode<synchronous>, transform_indices = @transform_2, window_bounds = array<i64: 1, 64>}, {transform_indices = @transform_3, window_bounds = array<i64: 16, 64>}]} {
    %c0 = arith.constant 0 : index
    %c0_0 = arith.constant 0 : index
    %0 = vector.load %arg1[%c0, %c0_0] : memref<16x576xbf16, #tpu.memory_space<vmem>>, vector<16x576xbf16>
    %c0_1 = arith.constant 0 : index
    %c0_2 = arith.constant 0 : index
    %1 = vector.load %arg2[%c0_1, %c0_2] : memref<576x64xbf16, #tpu.memory_space<vmem>>, vector<576x64xbf16>
    %cst = arith.constant dense<0.000000e+00> : vector<16x64xf32>
    %2 = tpu.matmul %0, %1, %cst {dimension_numbers = #tpu.dot_dimension_numbers<[1], [0], [0], [1], [0, 0, 1, 1], [], []>} : vector<16x576xbf16>, vector<576x64xbf16>, vector<16x64xf32> -> vector<16x64xf32>
    %c0_3 = arith.constant 0 : index
    %c0_4 = arith.constant 0 : index
    %3 = vector.load %arg3[%c0_3, %c0_4] : memref<1x64xf32, #tpu.memory_space<vmem>>, vector<1x64xf32>
    %4 = vector.broadcast %3 : vector<1x64xf32> to vector<16x64xf32>
    %5 = arith.addf %2, %4 : vector<16x64xf32>
    %cst_5 = arith.constant 0.000000e+00 : f32
    %6 = vector.broadcast %cst_5 : f32 to vector<16x64xf32>
    %7 = arith.maximumf %5, %6 : vector<16x64xf32>
    %c0_6 = arith.constant 0 : index
    %c0_7 = arith.constant 0 : index
    %8 = vector.load %arg4[%c0_6, %c0_7] : memref<16x64xf32, #tpu.memory_space<vmem>>, vector<16x64xf32>
    tpu.vector_store %arg4[%c0_6, %c0_7], %7 {strides = array<i32>} : memref<16x64xf32, #tpu.memory_space<vmem>>, vector<16x64xf32>,
    return
  }
  func.func @transform_0(%arg0: i32) -> (i32, i32) {
    %c0_i32 = arith.constant 0 : i32
    %c0_i32_0 = arith.constant 0 : i32
    return %arg0, %c0_i32 : i32, i32
  }
  func.func @transform_1(%arg0: i32) -> (i32, i32) {
    %c0_i32 = arith.constant 0 : i32
    %c0_i32_0 = arith.constant 0 : i32
    %c0_i32_1 = arith.constant 0 : i32
    return %c0_i32, %c0_i32_0 : i32, i32
  }
  func.func @transform_2(%arg0: i32) -> (i32, i32) {
    %c0_i32 = arith.constant 0 : i32
    %c0_i32_0 = arith.constant 0 : i32
    %c0_i32_1 = arith.constant 0 : i32
    return %c0_i32, %c0_i32_0 : i32, i32
  }
  func.func @transform_3(%arg0: i32) -> (i32, i32) {
    %c0_i32 = arith.constant 0 : i32
    %c0_i32_0 = arith.constant 0 : i32
    return %arg0, %c0_i32 : i32, i32
  }
}

module attributes {stable_mosaic.version = 11 : i64} {
  func.func @_mlp2_kernel(%arg0: i32, %arg1: memref<16x32xbf16, #tpu.memory_space<vmem>>, %arg2: memref<32x1024xbf16, #tpu.memory_space<vmem>>, %arg3: memref<1x1024xf32, #tpu.memory_space<vmem>>, %arg4: memref<1024x512xbf16, #tpu.memory_space<vmem>>, %arg5: memref<1x512xf32, #tpu.memory_space<vmem>>, %arg6: memref<16x512xf32, #tpu.memory_space<vmem>>) attributes {dimension_semantics = [#tpu.dimension_semantics<parallel>], iteration_bounds = array<i64: 1>, scalar_prefetch = 0 : i64, scratch_operands = 0 : i64, tpu.core_type = #tpu.core_type<tc>, window_params = [{transform_indices = @transform_0, window_bounds = array<i64: 16, 32>}, {pipeline_mode = #tpu.pipeline_mode<synchronous>, transform_indices = @transform_1, window_bounds = array<i64: 32, 1024>}, {pipeline_mode = #tpu.pipeline_mode<synchronous>, transform_indices = @transform_2, window_bounds = array<i64: 1, 1024>}, {pipeline_mode = #tpu.pipeline_mode<synchronous>, transform_indices = @transform_3, window_bounds = array<i64: 1024, 512>}, {pipeline_mode = #tpu.pipeline_mode<synchronous>, transform_indices = @transform_4, window_bounds = array<i64: 1, 512>}, {transform_indices = @transform_5, window_bounds = array<i64: 16, 512>}]} {
    %c0 = arith.constant 0 : index
    %c0_0 = arith.constant 0 : index
    %0 = vector.load %arg1[%c0, %c0_0] : memref<16x32xbf16, #tpu.memory_space<vmem>>, vector<16x32xbf16>
    %c0_1 = arith.constant 0 : index
    %c0_2 = arith.constant 0 : index
    %1 = vector.load %arg2[%c0_1, %c0_2] : memref<32x1024xbf16, #tpu.memory_space<vmem>>, vector<32x1024xbf16>
    %cst = arith.constant dense<0.000000e+00> : vector<16x1024xf32>
    %2 = tpu.matmul %0, %1, %cst {dimension_numbers = #tpu.dot_dimension_numbers<[1], [0], [0], [1], [0, 0, 1, 1], [], []>} : vector<16x32xbf16>, vector<32x1024xbf16>, vector<16x1024xf32> -> vector<16x1024xf32>
    %c0_3 = arith.constant 0 : index
    %c0_4 = arith.constant 0 : index
    %3 = vector.load %arg3[%c0_3, %c0_4] : memref<1x1024xf32, #tpu.memory_space<vmem>>, vector<1x1024xf32>
    %4 = vector.broadcast %3 : vector<1x1024xf32> to vector<16x1024xf32>
    %5 = arith.addf %2, %4 : vector<16x1024xf32>
    %cst_5 = arith.constant 0.000000e+00 : f32
    %6 = vector.broadcast %cst_5 : f32 to vector<16x1024xf32>
    %7 = arith.maximumf %5, %6 : vector<16x1024xf32>
    %8 = arith.truncf %7 : vector<16x1024xf32> to vector<16x1024xbf16>
    %c0_6 = arith.constant 0 : index
    %c0_7 = arith.constant 0 : index
    %9 = vector.load %arg4[%c0_6, %c0_7] : memref<1024x512xbf16, #tpu.memory_space<vmem>>, vector<1024x512xbf16>
    %cst_8 = arith.constant dense<0.000000e+00> : vector<16x512xf32>
    %10 = tpu.matmul %8, %9, %cst_8 {dimension_numbers = #tpu.dot_dimension_numbers<[1], [0], [0], [1], [0, 0, 1, 1], [], []>} : vector<16x1024xbf16>, vector<1024x512xbf16>, vector<16x512xf32> -> vector<16x512xf32>
    %c0_9 = arith.constant 0 : index
    %c0_10 = arith.constant 0 : index
    %11 = vector.load %arg5[%c0_9, %c0_10] : memref<1x512xf32, #tpu.memory_space<vmem>>, vector<1x512xf32>
    %12 = vector.broadcast %11 : vector<1x512xf32> to vector<16x512xf32>
    %13 = arith.addf %10, %12 : vector<16x512xf32>
    %c0_11 = arith.constant 0 : index
    %c0_12 = arith.constant 0 : index
    %14 = vector.load %arg6[%c0_11, %c0_12] : memref<16x512xf32, #tpu.memory_space<vmem>>, vector<16x512xf32>
    tpu.vector_store %arg6[%c0_11, %c0_12], %13 {strides = array<i32>} : memref<16x512xf32, #tpu.memory_space<vmem>>, vector<16x512xf32>,
    return
  }
  func.func @transform_0(%arg0: i32) -> (i32, i32) {
    %c0_i32 = arith.constant 0 : i32
    %c0_i32_0 = arith.constant 0 : i32
    return %arg0, %c0_i32 : i32, i32
  }
  func.func @transform_1(%arg0: i32) -> (i32, i32) {
    %c0_i32 = arith.constant 0 : i32
    %c0_i32_0 = arith.constant 0 : i32
    %c0_i32_1 = arith.constant 0 : i32
    return %c0_i32, %c0_i32_0 : i32, i32
  }
  func.func @transform_2(%arg0: i32) -> (i32, i32) {
    %c0_i32 = arith.constant 0 : i32
    %c0_i32_0 = arith.constant 0 : i32
    %c0_i32_1 = arith.constant 0 : i32
    return %c0_i32, %c0_i32_0 : i32, i32
  }
  func.func @transform_3(%arg0: i32) -> (i32, i32) {
    %c0_i32 = arith.constant 0 : i32
    %c0_i32_0 = arith.constant 0 : i32
    %c0_i32_1 = arith.constant 0 : i32
    return %c0_i32, %c0_i32_0 : i32, i32
  }
  func.func @transform_4(%arg0: i32) -> (i32, i32) {
    %c0_i32 = arith.constant 0 : i32
    %c0_i32_0 = arith.constant 0 : i32
    %c0_i32_1 = arith.constant 0 : i32
    return %c0_i32, %c0_i32_0 : i32, i32
  }
  func.func @transform_5(%arg0: i32) -> (i32, i32) {
    %c0_i32 = arith.constant 0 : i32
    %c0_i32_0 = arith.constant 0 : i32
    return %arg0, %c0_i32 : i32, i32
  }
}

module attributes {stable_mosaic.version = 11 : i64} {
  func.func @_rnn_head_kernel(%arg0: i32, %arg1: memref<4x8x576xf32, #tpu.memory_space<vmem>>, %arg2: memref<4x8x576xf32, #tpu.memory_space<vmem>>, %arg3: memref<576x512xf32, #tpu.memory_space<vmem>>, %arg4: memref<128x512xf32, #tpu.memory_space<vmem>>, %arg5: memref<1x512xf32, #tpu.memory_space<vmem>>, %arg6: memref<128x512xf32, #tpu.memory_space<vmem>>, %arg7: memref<128x512xf32, #tpu.memory_space<vmem>>, %arg8: memref<1x512xf32, #tpu.memory_space<vmem>>, %arg9: memref<576x512xf32, #tpu.memory_space<vmem>>, %arg10: memref<128x512xf32, #tpu.memory_space<vmem>>, %arg11: memref<1x512xf32, #tpu.memory_space<vmem>>, %arg12: memref<128x512xf32, #tpu.memory_space<vmem>>, %arg13: memref<128x512xf32, #tpu.memory_space<vmem>>, %arg14: memref<1x512xf32, #tpu.memory_space<vmem>>, %arg15: memref<256x512xf32, #tpu.memory_space<vmem>>, %arg16: memref<1x512xf32, #tpu.memory_space<vmem>>, %arg17: memref<512x16xf32, #tpu.memory_space<vmem>>, %arg18: memref<1x16xf32, #tpu.memory_space<vmem>>, %arg19: memref<8x16xf32, #tpu.memory_space<vmem>>) attributes {dimension_semantics = [#tpu.dimension_semantics<arbitrary>], iteration_bounds = array<i64: 1>, scalar_prefetch = 0 : i64, scratch_operands = 0 : i64, tpu.core_type = #tpu.core_type<tc>, window_params = [{pipeline_mode = #tpu.pipeline_mode<synchronous>, transform_indices = @transform_0, window_bounds = array<i64: 4, 8, 576>}, {pipeline_mode = #tpu.pipeline_mode<synchronous>, transform_indices = @transform_1, window_bounds = array<i64: 4, 8, 576>}, {pipeline_mode = #tpu.pipeline_mode<synchronous>, transform_indices = @transform_2, window_bounds = array<i64: 576, 512>}, {pipeline_mode = #tpu.pipeline_mode<synchronous>, transform_indices = @transform_3, window_bounds = array<i64: 128, 512>}, {pipeline_mode = #tpu.pipeline_mode<synchronous>, transform_indices = @transform_4, window_bounds = array<i64: 1, 512>}, {pipeline_mode = #tpu.pipeline_mode<synchronous>, transform_indices = @transform_5, window_bounds = array<i64: 128, 512>}, {pipeline_mode = #tpu.pipeline_mode<synchronous>, transform_indices = @transform_6, window_bounds = array<i64: 128, 512>}, {pipeline_mode = #tpu.pipeline_mode<synchronous>, transform_indices = @transform_7, window_bounds = array<i64: 1, 512>}, {pipeline_mode = #tpu.pipeline_mode<synchronous>, transform_indices = @transform_8, window_bounds = array<i64: 576, 512>}, {pipeline_mode = #tpu.pipeline_mode<synchronous>, transform_indices = @transform_9, window_bounds = array<i64: 128, 512>}, {pipeline_mode = #tpu.pipeline_mode<synchronous>, transform_indices = @transform_10, window_bounds = array<i64: 1, 512>}, {pipeline_mode = #tpu.pipeline_mode<synchronous>, transform_indices = @transform_11, window_bounds = array<i64: 128, 512>}, {pipeline_mode = #tpu.pipeline_mode<synchronous>, transform_indices = @transform_12, window_bounds = array<i64: 128, 512>}, {pipeline_mode = #tpu.pipeline_mode<synchronous>, transform_indices = @transform_13, window_bounds = array<i64: 1, 512>}, {pipeline_mode = #tpu.pipeline_mode<synchronous>, transform_indices = @transform_14, window_bounds = array<i64: 256, 512>}, {pipeline_mode = #tpu.pipeline_mode<synchronous>, transform_indices = @transform_15, window_bounds = array<i64: 1, 512>}, {pipeline_mode = #tpu.pipeline_mode<synchronous>, transform_indices = @transform_16, window_bounds = array<i64: 512, 16>}, {pipeline_mode = #tpu.pipeline_mode<synchronous>, transform_indices = @transform_17, window_bounds = array<i64: 1, 16>}, {pipeline_mode = #tpu.pipeline_mode<synchronous>, transform_indices = @transform_18, window_bounds = array<i64: 8, 16>}]} {
    %cst = arith.constant 0.000000e+00 : f32
    %0 = vector.broadcast %cst : f32 to vector<8x128xf32>
    %c0 = arith.constant 0 : index
    %c0_0 = arith.constant 0 : index
    %c0_1 = arith.constant 0 : index
    %1 = vector.load %arg1[%c0, %c0_0, %c0_1] : memref<4x8x576xf32, #tpu.memory_space<vmem>>, vector<4x8x576xf32>
    %c0_2 = arith.constant 0 : index
    %c0_3 = arith.constant 0 : index
    %2 = vector.load %arg3[%c0_2, %c0_3] : memref<576x512xf32, #tpu.memory_space<vmem>>, vector<576x512xf32>
    %c0_4 = arith.constant 0 : index
    %c0_5 = arith.constant 0 : index
    %3 = vector.load %arg4[%c0_4, %c0_5] : memref<128x512xf32, #tpu.memory_space<vmem>>, vector<128x512xf32>
    %c0_6 = arith.constant 0 : index
    %c0_7 = arith.constant 0 : index
    %4 = vector.load %arg5[%c0_6, %c0_7] : memref<1x512xf32, #tpu.memory_space<vmem>>, vector<1x512xf32>
    %c0_8 = arith.constant 0 : index
    %c0_9 = arith.constant 0 : index
    %5 = vector.load %arg6[%c0_8, %c0_9] : memref<128x512xf32, #tpu.memory_space<vmem>>, vector<128x512xf32>
    %c0_10 = arith.constant 0 : index
    %c0_11 = arith.constant 0 : index
    %6 = vector.load %arg7[%c0_10, %c0_11] : memref<128x512xf32, #tpu.memory_space<vmem>>, vector<128x512xf32>
    %c0_12 = arith.constant 0 : index
    %c0_13 = arith.constant 0 : index
    %7 = vector.load %arg8[%c0_12, %c0_13] : memref<1x512xf32, #tpu.memory_space<vmem>>, vector<1x512xf32>
    %8 = vector.shape_cast %1 : vector<4x8x576xf32> to vector<32x576xf32>
    %cst_14 = arith.constant dense<0.000000e+00> : vector<32x512xf32>
    %9 = tpu.matmul %8, %2, %cst_14 {dimension_numbers = #tpu.dot_dimension_numbers<[1], [0], [0], [1], [0, 0, 1, 1], [], []>} : vector<32x576xf32>, vector<576x512xf32>, vector<32x512xf32> -> vector<32x512xf32>
    %10 = vector.broadcast %4 : vector<1x512xf32> to vector<32x512xf32>
    %11 = arith.addf %9, %10 : vector<32x512xf32>
    %12 = vector.shape_cast %11 : vector<32x512xf32> to vector<4x8x512xf32>
    %13 = vector.extract_strided_slice %12 {offsets = [0, 0, 0], sizes = [1, 8, 512], strides = [1, 1, 1]} : vector<4x8x512xf32> to vector<1x8x512xf32>
    %14 = vector.shape_cast %13 : vector<1x8x512xf32> to vector<8x512xf32>
    %cst_15 = arith.constant dense<0.000000e+00> : vector<8x512xf32>
    %15 = tpu.matmul %0, %3, %cst_15 {dimension_numbers = #tpu.dot_dimension_numbers<[1], [0], [0], [1], [0, 0, 1, 1], [], []>} : vector<8x128xf32>, vector<128x512xf32>, vector<8x512xf32> -> vector<8x512xf32>
    %16 = arith.addf %14, %15 : vector<8x512xf32>
    %17 = vector.extract_strided_slice %16 {offsets = [0, 0], sizes = [8, 128], strides = [1, 1]} : vector<8x512xf32> to vector<8x128xf32>
    %18 = arith.negf %17 : vector<8x128xf32>
    %19 = math.exp %18 : vector<8x128xf32>
    %cst_16 = arith.constant 1.000000e+00 : f32
    %20 = vector.broadcast %cst_16 : f32 to vector<8x128xf32>
    %21 = arith.addf %20, %19 : vector<8x128xf32>
    %22 = arith.divf %20, %21 : vector<8x128xf32>
    %23 = vector.extract_strided_slice %16 {offsets = [0, 128], sizes = [8, 128], strides = [1, 1]} : vector<8x512xf32> to vector<8x128xf32>
    %24 = arith.negf %23 : vector<8x128xf32>
    %25 = math.exp %24 : vector<8x128xf32>
    %cst_17 = arith.constant 1.000000e+00 : f32
    %26 = vector.broadcast %cst_17 : f32 to vector<8x128xf32>
    %27 = arith.addf %26, %25 : vector<8x128xf32>
    %28 = arith.divf %26, %27 : vector<8x128xf32>
    %29 = vector.extract_strided_slice %16 {offsets = [0, 256], sizes = [8, 128], strides = [1, 1]} : vector<8x512xf32> to vector<8x128xf32>
    %30 = math.tanh %29 : vector<8x128xf32>
    %31 = vector.extract_strided_slice %16 {offsets = [0, 384], sizes = [8, 128], strides = [1, 1]} : vector<8x512xf32> to vector<8x128xf32>
    %32 = arith.negf %31 : vector<8x128xf32>
    %33 = math.exp %32 : vector<8x128xf32>
    %cst_18 = arith.constant 1.000000e+00 : f32
    %34 = vector.broadcast %cst_18 : f32 to vector<8x128xf32>
    %35 = arith.addf %34, %33 : vector<8x128xf32>
    %36 = arith.divf %34, %35 : vector<8x128xf32>
    %37 = arith.mulf %28, %0 : vector<8x128xf32>
    %38 = arith.mulf %22, %30 : vector<8x128xf32>
    %39 = arith.addf %37, %38 : vector<8x128xf32>
    %40 = math.tanh %39 : vector<8x128xf32>
    %41 = arith.mulf %36, %40 : vector<8x128xf32>
    %42 = vector.extract_strided_slice %12 {offsets = [1, 0, 0], sizes = [1, 8, 512], strides = [1, 1, 1]} : vector<4x8x512xf32> to vector<1x8x512xf32>
    %43 = vector.shape_cast %42 : vector<1x8x512xf32> to vector<8x512xf32>
    %cst_19 = arith.constant dense<0.000000e+00> : vector<8x512xf32>
    %44 = tpu.matmul %41, %3, %cst_19 {dimension_numbers = #tpu.dot_dimension_numbers<[1], [0], [0], [1], [0, 0, 1, 1], [], []>} : vector<8x128xf32>, vector<128x512xf32>, vector<8x512xf32> -> vector<8x512xf32>
    %45 = arith.addf %43, %44 : vector<8x512xf32>
    %46 = vector.extract_strided_slice %45 {offsets = [0, 0], sizes = [8, 128], strides = [1, 1]} : vector<8x512xf32> to vector<8x128xf32>
    %47 = arith.negf %46 : vector<8x128xf32>
    %48 = math.exp %47 : vector<8x128xf32>
    %cst_20 = arith.constant 1.000000e+00 : f32
    %49 = vector.broadcast %cst_20 : f32 to vector<8x128xf32>
    %50 = arith.addf %49, %48 : vector<8x128xf32>
    %51 = arith.divf %49, %50 : vector<8x128xf32>
    %52 = vector.extract_strided_slice %45 {offsets = [0, 128], sizes = [8, 128], strides = [1, 1]} : vector<8x512xf32> to vector<8x128xf32>
    %53 = arith.negf %52 : vector<8x128xf32>
    %54 = math.exp %53 : vector<8x128xf32>
    %cst_21 = arith.constant 1.000000e+00 : f32
    %55 = vector.broadcast %cst_21 : f32 to vector<8x128xf32>
    %56 = arith.addf %55, %54 : vector<8x128xf32>
    %57 = arith.divf %55, %56 : vector<8x128xf32>
    %58 = vector.extract_strided_slice %45 {offsets = [0, 256], sizes = [8, 128], strides = [1, 1]} : vector<8x512xf32> to vector<8x128xf32>
    %59 = math.tanh %58 : vector<8x128xf32>
    %60 = vector.extract_strided_slice %45 {offsets = [0, 384], sizes = [8, 128], strides = [1, 1]} : vector<8x512xf32> to vector<8x128xf32>
    %61 = arith.negf %60 : vector<8x128xf32>
    %62 = math.exp %61 : vector<8x128xf32>
    %cst_22 = arith.constant 1.000000e+00 : f32
    %63 = vector.broadcast %cst_22 : f32 to vector<8x128xf32>
    %64 = arith.addf %63, %62 : vector<8x128xf32>
    %65 = arith.divf %63, %64 : vector<8x128xf32>
    %66 = arith.mulf %57, %39 : vector<8x128xf32>
    %67 = arith.mulf %51, %59 : vector<8x128xf32>
    %68 = arith.addf %66, %67 : vector<8x128xf32>
    %69 = math.tanh %68 : vector<8x128xf32>
    %70 = arith.mulf %65, %69 : vector<8x128xf32>
    %71 = vector.extract_strided_slice %12 {offsets = [2, 0, 0], sizes = [1, 8, 512], strides = [1, 1, 1]} : vector<4x8x512xf32> to vector<1x8x512xf32>
    %72 = vector.shape_cast %71 : vector<1x8x512xf32> to vector<8x512xf32>
    %cst_23 = arith.constant dense<0.000000e+00> : vector<8x512xf32>
    %73 = tpu.matmul %70, %3, %cst_23 {dimension_numbers = #tpu.dot_dimension_numbers<[1], [0], [0], [1], [0, 0, 1, 1], [], []>} : vector<8x128xf32>, vector<128x512xf32>, vector<8x512xf32> -> vector<8x512xf32>
    %74 = arith.addf %72, %73 : vector<8x512xf32>
    %75 = vector.extract_strided_slice %74 {offsets = [0, 0], sizes = [8, 128], strides = [1, 1]} : vector<8x512xf32> to vector<8x128xf32>
    %76 = arith.negf %75 : vector<8x128xf32>
    %77 = math.exp %76 : vector<8x128xf32>
    %cst_24 = arith.constant 1.000000e+00 : f32
    %78 = vector.broadcast %cst_24 : f32 to vector<8x128xf32>
    %79 = arith.addf %78, %77 : vector<8x128xf32>
    %80 = arith.divf %78, %79 : vector<8x128xf32>
    %81 = vector.extract_strided_slice %74 {offsets = [0, 128], sizes = [8, 128], strides = [1, 1]} : vector<8x512xf32> to vector<8x128xf32>
    %82 = arith.negf %81 : vector<8x128xf32>
    %83 = math.exp %82 : vector<8x128xf32>
    %cst_25 = arith.constant 1.000000e+00 : f32
    %84 = vector.broadcast %cst_25 : f32 to vector<8x128xf32>
    %85 = arith.addf %84, %83 : vector<8x128xf32>
    %86 = arith.divf %84, %85 : vector<8x128xf32>
    %87 = vector.extract_strided_slice %74 {offsets = [0, 256], sizes = [8, 128], strides = [1, 1]} : vector<8x512xf32> to vector<8x128xf32>
    %88 = math.tanh %87 : vector<8x128xf32>
    %89 = vector.extract_strided_slice %74 {offsets = [0, 384], sizes = [8, 128], strides = [1, 1]} : vector<8x512xf32> to vector<8x128xf32>
    %90 = arith.negf %89 : vector<8x128xf32>
    %91 = math.exp %90 : vector<8x128xf32>
    %cst_26 = arith.constant 1.000000e+00 : f32
    %92 = vector.broadcast %cst_26 : f32 to vector<8x128xf32>
    %93 = arith.addf %92, %91 : vector<8x128xf32>
    %94 = arith.divf %92, %93 : vector<8x128xf32>
    %95 = arith.mulf %86, %68 : vector<8x128xf32>
    %96 = arith.mulf %80, %88 : vector<8x128xf32>
    %97 = arith.addf %95, %96 : vector<8x128xf32>
    %98 = math.tanh %97 : vector<8x128xf32>
    %99 = arith.mulf %94, %98 : vector<8x128xf32>
    %100 = vector.extract_strided_slice %12 {offsets = [3, 0, 0], sizes = [1, 8, 512], strides = [1, 1, 1]} : vector<4x8x512xf32> to vector<1x8x512xf32>
    %101 = vector.shape_cast %100 : vector<1x8x512xf32> to vector<8x512xf32>
    %cst_27 = arith.constant dense<0.000000e+00> : vector<8x512xf32>
    %102 = tpu.matmul %99, %3, %cst_27 {dimension_numbers = #tpu.dot_dimension_numbers<[1], [0], [0], [1], [0, 0, 1, 1], [], []>} : vector<8x128xf32>, vector<128x512xf32>, vector<8x512xf32> -> vector<8x512xf32>
    %103 = arith.addf %101, %102 : vector<8x512xf32>
    %104 = vector.extract_strided_slice %103 {offsets = [0, 0], sizes = [8, 128], strides = [1, 1]} : vector<8x512xf32> to vector<8x128xf32>
    %105 = arith.negf %104 : vector<8x128xf32>
    %106 = math.exp %105 : vector<8x128xf32>
    %cst_28 = arith.constant 1.000000e+00 : f32
    %107 = vector.broadcast %cst_28 : f32 to vector<8x128xf32>
    %108 = arith.addf %107, %106 : vector<8x128xf32>
    %109 = arith.divf %107, %108 : vector<8x128xf32>
    %110 = vector.extract_strided_slice %103 {offsets = [0, 128], sizes = [8, 128], strides = [1, 1]} : vector<8x512xf32> to vector<8x128xf32>
    %111 = arith.negf %110 : vector<8x128xf32>
    %112 = math.exp %111 : vector<8x128xf32>
    %cst_29 = arith.constant 1.000000e+00 : f32
    %113 = vector.broadcast %cst_29 : f32 to vector<8x128xf32>
    %114 = arith.addf %113, %112 : vector<8x128xf32>
    %115 = arith.divf %113, %114 : vector<8x128xf32>
    %116 = vector.extract_strided_slice %103 {offsets = [0, 256], sizes = [8, 128], strides = [1, 1]} : vector<8x512xf32> to vector<8x128xf32>
    %117 = math.tanh %116 : vector<8x128xf32>
    %118 = vector.extract_strided_slice %103 {offsets = [0, 384], sizes = [8, 128], strides = [1, 1]} : vector<8x512xf32> to vector<8x128xf32>
    %119 = arith.negf %118 : vector<8x128xf32>
    %120 = math.exp %119 : vector<8x128xf32>
    %cst_30 = arith.constant 1.000000e+00 : f32
    %121 = vector.broadcast %cst_30 : f32 to vector<8x128xf32>
    %122 = arith.addf %121, %120 : vector<8x128xf32>
    %123 = arith.divf %121, %122 : vector<8x128xf32>
    %124 = arith.mulf %115, %97 : vector<8x128xf32>
    %125 = arith.mulf %109, %117 : vector<8x128xf32>
    %126 = arith.addf %124, %125 : vector<8x128xf32>
    %127 = math.tanh %126 : vector<8x128xf32>
    %128 = arith.mulf %123, %127 : vector<8x128xf32>
    %129 = vector.shape_cast %41 : vector<8x128xf32> to vector<1x8x128xf32>
    %130 = vector.shape_cast %70 : vector<8x128xf32> to vector<1x8x128xf32>
    %131 = vector.shape_cast %99 : vector<8x128xf32> to vector<1x8x128xf32>
    %132 = vector.shape_cast %128 : vector<8x128xf32> to vector<1x8x128xf32>
    %133 = tpu.concatenate %129, %130, %131, %132 in 0 : vector<1x8x128xf32>, vector<1x8x128xf32>, vector<1x8x128xf32>, vector<1x8x128xf32> -> vector<4x8x128xf32>
    %134 = vector.shape_cast %133 : vector<4x8x128xf32> to vector<32x128xf32>
    %cst_31 = arith.constant dense<0.000000e+00> : vector<32x512xf32>
    %135 = tpu.matmul %134, %5, %cst_31 {dimension_numbers = #tpu.dot_dimension_numbers<[1], [0], [0], [1], [0, 0, 1, 1], [], []>} : vector<32x128xf32>, vector<128x512xf32>, vector<32x512xf32> -> vector<32x512xf32>
    %136 = vector.broadcast %7 : vector<1x512xf32> to vector<32x512xf32>
    %137 = arith.addf %135, %136 : vector<32x512xf32>
    %138 = vector.shape_cast %137 : vector<32x512xf32> to vector<4x8x512xf32>
    %139 = vector.extract_strided_slice %138 {offsets = [0, 0, 0], sizes = [1, 8, 512], strides = [1, 1, 1]} : vector<4x8x512xf32> to vector<1x8x512xf32>
    %140 = vector.shape_cast %139 : vector<1x8x512xf32> to vector<8x512xf32>
    %cst_32 = arith.constant dense<0.000000e+00> : vector<8x512xf32>
    %141 = tpu.matmul %0, %6, %cst_32 {dimension_numbers = #tpu.dot_dimension_numbers<[1], [0], [0], [1], [0, 0, 1, 1], [], []>} : vector<8x128xf32>, vector<128x512xf32>, vector<8x512xf32> -> vector<8x512xf32>
    %142 = arith.addf %140, %141 : vector<8x512xf32>
    %143 = vector.extract_strided_slice %142 {offsets = [0, 0], sizes = [8, 128], strides = [1, 1]} : vector<8x512xf32> to vector<8x128xf32>
    %144 = arith.negf %143 : vector<8x128xf32>
    %145 = math.exp %144 : vector<8x128xf32>
    %cst_33 = arith.constant 1.000000e+00 : f32
    %146 = vector.broadcast %cst_33 : f32 to vector<8x128xf32>
    %147 = arith.addf %146, %145 : vector<8x128xf32>
    %148 = arith.divf %146, %147 : vector<8x128xf32>
    %149 = vector.extract_strided_slice %142 {offsets = [0, 128], sizes = [8, 128], strides = [1, 1]} : vector<8x512xf32> to vector<8x128xf32>
    %150 = arith.negf %149 : vector<8x128xf32>
    %151 = math.exp %150 : vector<8x128xf32>
    %cst_34 = arith.constant 1.000000e+00 : f32
    %152 = vector.broadcast %cst_34 : f32 to vector<8x128xf32>
    %153 = arith.addf %152, %151 : vector<8x128xf32>
    %154 = arith.divf %152, %153 : vector<8x128xf32>
    %155 = vector.extract_strided_slice %142 {offsets = [0, 256], sizes = [8, 128], strides = [1, 1]} : vector<8x512xf32> to vector<8x128xf32>
    %156 = math.tanh %155 : vector<8x128xf32>
    %157 = vector.extract_strided_slice %142 {offsets = [0, 384], sizes = [8, 128], strides = [1, 1]} : vector<8x512xf32> to vector<8x128xf32>
    %158 = arith.negf %157 : vector<8x128xf32>
    %159 = math.exp %158 : vector<8x128xf32>
    %cst_35 = arith.constant 1.000000e+00 : f32
    %160 = vector.broadcast %cst_35 : f32 to vector<8x128xf32>
    %161 = arith.addf %160, %159 : vector<8x128xf32>
    %162 = arith.divf %160, %161 : vector<8x128xf32>
    %163 = arith.mulf %154, %0 : vector<8x128xf32>
    %164 = arith.mulf %148, %156 : vector<8x128xf32>
    %165 = arith.addf %163, %164 : vector<8x128xf32>
    %166 = math.tanh %165 : vector<8x128xf32>
    %167 = arith.mulf %162, %166 : vector<8x128xf32>
    %168 = vector.extract_strided_slice %138 {offsets = [1, 0, 0], sizes = [1, 8, 512], strides = [1, 1, 1]} : vector<4x8x512xf32> to vector<1x8x512xf32>
    %169 = vector.shape_cast %168 : vector<1x8x512xf32> to vector<8x512xf32>
    %cst_36 = arith.constant dense<0.000000e+00> : vector<8x512xf32>
    %170 = tpu.matmul %167, %6, %cst_36 {dimension_numbers = #tpu.dot_dimension_numbers<[1], [0], [0], [1], [0, 0, 1, 1], [], []>} : vector<8x128xf32>, vector<128x512xf32>, vector<8x512xf32> -> vector<8x512xf32>
    %171 = arith.addf %169, %170 : vector<8x512xf32>
    %172 = vector.extract_strided_slice %171 {offsets = [0, 0], sizes = [8, 128], strides = [1, 1]} : vector<8x512xf32> to vector<8x128xf32>
    %173 = arith.negf %172 : vector<8x128xf32>
    %174 = math.exp %173 : vector<8x128xf32>
    %cst_37 = arith.constant 1.000000e+00 : f32
    %175 = vector.broadcast %cst_37 : f32 to vector<8x128xf32>
    %176 = arith.addf %175, %174 : vector<8x128xf32>
    %177 = arith.divf %175, %176 : vector<8x128xf32>
    %178 = vector.extract_strided_slice %171 {offsets = [0, 128], sizes = [8, 128], strides = [1, 1]} : vector<8x512xf32> to vector<8x128xf32>
    %179 = arith.negf %178 : vector<8x128xf32>
    %180 = math.exp %179 : vector<8x128xf32>
    %cst_38 = arith.constant 1.000000e+00 : f32
    %181 = vector.broadcast %cst_38 : f32 to vector<8x128xf32>
    %182 = arith.addf %181, %180 : vector<8x128xf32>
    %183 = arith.divf %181, %182 : vector<8x128xf32>
    %184 = vector.extract_strided_slice %171 {offsets = [0, 256], sizes = [8, 128], strides = [1, 1]} : vector<8x512xf32> to vector<8x128xf32>
    %185 = math.tanh %184 : vector<8x128xf32>
    %186 = vector.extract_strided_slice %171 {offsets = [0, 384], sizes = [8, 128], strides = [1, 1]} : vector<8x512xf32> to vector<8x128xf32>
    %187 = arith.negf %186 : vector<8x128xf32>
    %188 = math.exp %187 : vector<8x128xf32>
    %cst_39 = arith.constant 1.000000e+00 : f32
    %189 = vector.broadcast %cst_39 : f32 to vector<8x128xf32>
    %190 = arith.addf %189, %188 : vector<8x128xf32>
    %191 = arith.divf %189, %190 : vector<8x128xf32>
    %192 = arith.mulf %183, %165 : vector<8x128xf32>
    %193 = arith.mulf %177, %185 : vector<8x128xf32>
    %194 = arith.addf %192, %193 : vector<8x128xf32>
    %195 = math.tanh %194 : vector<8x128xf32>
    %196 = arith.mulf %191, %195 : vector<8x128xf32>
    %197 = vector.extract_strided_slice %138 {offsets = [2, 0, 0], sizes = [1, 8, 512], strides = [1, 1, 1]} : vector<4x8x512xf32> to vector<1x8x512xf32>
    %198 = vector.shape_cast %197 : vector<1x8x512xf32> to vector<8x512xf32>
    %cst_40 = arith.constant dense<0.000000e+00> : vector<8x512xf32>
    %199 = tpu.matmul %196, %6, %cst_40 {dimension_numbers = #tpu.dot_dimension_numbers<[1], [0], [0], [1], [0, 0, 1, 1], [], []>} : vector<8x128xf32>, vector<128x512xf32>, vector<8x512xf32> -> vector<8x512xf32>
    %200 = arith.addf %198, %199 : vector<8x512xf32>
    %201 = vector.extract_strided_slice %200 {offsets = [0, 0], sizes = [8, 128], strides = [1, 1]} : vector<8x512xf32> to vector<8x128xf32>
    %202 = arith.negf %201 : vector<8x128xf32>
    %203 = math.exp %202 : vector<8x128xf32>
    %cst_41 = arith.constant 1.000000e+00 : f32
    %204 = vector.broadcast %cst_41 : f32 to vector<8x128xf32>
    %205 = arith.addf %204, %203 : vector<8x128xf32>
    %206 = arith.divf %204, %205 : vector<8x128xf32>
    %207 = vector.extract_strided_slice %200 {offsets = [0, 128], sizes = [8, 128], strides = [1, 1]} : vector<8x512xf32> to vector<8x128xf32>
    %208 = arith.negf %207 : vector<8x128xf32>
    %209 = math.exp %208 : vector<8x128xf32>
    %cst_42 = arith.constant 1.000000e+00 : f32
    %210 = vector.broadcast %cst_42 : f32 to vector<8x128xf32>
    %211 = arith.addf %210, %209 : vector<8x128xf32>
    %212 = arith.divf %210, %211 : vector<8x128xf32>
    %213 = vector.extract_strided_slice %200 {offsets = [0, 256], sizes = [8, 128], strides = [1, 1]} : vector<8x512xf32> to vector<8x128xf32>
    %214 = math.tanh %213 : vector<8x128xf32>
    %215 = vector.extract_strided_slice %200 {offsets = [0, 384], sizes = [8, 128], strides = [1, 1]} : vector<8x512xf32> to vector<8x128xf32>
    %216 = arith.negf %215 : vector<8x128xf32>
    %217 = math.exp %216 : vector<8x128xf32>
    %cst_43 = arith.constant 1.000000e+00 : f32
    %218 = vector.broadcast %cst_43 : f32 to vector<8x128xf32>
    %219 = arith.addf %218, %217 : vector<8x128xf32>
    %220 = arith.divf %218, %219 : vector<8x128xf32>
    %221 = arith.mulf %212, %194 : vector<8x128xf32>
    %222 = arith.mulf %206, %214 : vector<8x128xf32>
    %223 = arith.addf %221, %222 : vector<8x128xf32>
    %224 = math.tanh %223 : vector<8x128xf32>
    %225 = arith.mulf %220, %224 : vector<8x128xf32>
    %226 = vector.extract_strided_slice %138 {offsets = [3, 0, 0], sizes = [1, 8, 512], strides = [1, 1, 1]} : vector<4x8x512xf32> to vector<1x8x512xf32>
    %227 = vector.shape_cast %226 : vector<1x8x512xf32> to vector<8x512xf32>
    %cst_44 = arith.constant dense<0.000000e+00> : vector<8x512xf32>
    %228 = tpu.matmul %225, %6, %cst_44 {dimension_numbers = #tpu.dot_dimension_numbers<[1], [0], [0], [1], [0, 0, 1, 1], [], []>} : vector<8x128xf32>, vector<128x512xf32>, vector<8x512xf32> -> vector<8x512xf32>
    %229 = arith.addf %227, %228 : vector<8x512xf32>
    %230 = vector.extract_strided_slice %229 {offsets = [0, 0], sizes = [8, 128], strides = [1, 1]} : vector<8x512xf32> to vector<8x128xf32>
    %231 = arith.negf %230 : vector<8x128xf32>
    %232 = math.exp %231 : vector<8x128xf32>
    %cst_45 = arith.constant 1.000000e+00 : f32
    %233 = vector.broadcast %cst_45 : f32 to vector<8x128xf32>
    %234 = arith.addf %233, %232 : vector<8x128xf32>
    %235 = arith.divf %233, %234 : vector<8x128xf32>
    %236 = vector.extract_strided_slice %229 {offsets = [0, 128], sizes = [8, 128], strides = [1, 1]} : vector<8x512xf32> to vector<8x128xf32>
    %237 = arith.negf %236 : vector<8x128xf32>
    %238 = math.exp %237 : vector<8x128xf32>
    %cst_46 = arith.constant 1.000000e+00 : f32
    %239 = vector.broadcast %cst_46 : f32 to vector<8x128xf32>
    %240 = arith.addf %239, %238 : vector<8x128xf32>
    %241 = arith.divf %239, %240 : vector<8x128xf32>
    %242 = vector.extract_strided_slice %229 {offsets = [0, 256], sizes = [8, 128], strides = [1, 1]} : vector<8x512xf32> to vector<8x128xf32>
    %243 = math.tanh %242 : vector<8x128xf32>
    %244 = vector.extract_strided_slice %229 {offsets = [0, 384], sizes = [8, 128], strides = [1, 1]} : vector<8x512xf32> to vector<8x128xf32>
    %245 = arith.negf %244 : vector<8x128xf32>
    %246 = math.exp %245 : vector<8x128xf32>
    %cst_47 = arith.constant 1.000000e+00 : f32
    %247 = vector.broadcast %cst_47 : f32 to vector<8x128xf32>
    %248 = arith.addf %247, %246 : vector<8x128xf32>
    %249 = arith.divf %247, %248 : vector<8x128xf32>
    %250 = arith.mulf %241, %223 : vector<8x128xf32>
    %251 = arith.mulf %235, %243 : vector<8x128xf32>
    %252 = arith.addf %250, %251 : vector<8x128xf32>
    %253 = math.tanh %252 : vector<8x128xf32>
    %254 = arith.mulf %249, %253 : vector<8x128xf32>
    %c0_48 = arith.constant 0 : index
    %c0_49 = arith.constant 0 : index
    %c0_50 = arith.constant 0 : index
    %255 = vector.load %arg2[%c0_48, %c0_49, %c0_50] : memref<4x8x576xf32, #tpu.memory_space<vmem>>, vector<4x8x576xf32>
    %c0_51 = arith.constant 0 : index
    %c0_52 = arith.constant 0 : index
    %256 = vector.load %arg9[%c0_51, %c0_52] : memref<576x512xf32, #tpu.memory_space<vmem>>, vector<576x512xf32>
    %c0_53 = arith.constant 0 : index
    %c0_54 = arith.constant 0 : index
    %257 = vector.load %arg10[%c0_53, %c0_54] : memref<128x512xf32, #tpu.memory_space<vmem>>, vector<128x512xf32>
    %c0_55 = arith.constant 0 : index
    %c0_56 = arith.constant 0 : index
    %258 = vector.load %arg11[%c0_55, %c0_56] : memref<1x512xf32, #tpu.memory_space<vmem>>, vector<1x512xf32>
    %c0_57 = arith.constant 0 : index
    %c0_58 = arith.constant 0 : index
    %259 = vector.load %arg12[%c0_57, %c0_58] : memref<128x512xf32, #tpu.memory_space<vmem>>, vector<128x512xf32>
    %c0_59 = arith.constant 0 : index
    %c0_60 = arith.constant 0 : index
    %260 = vector.load %arg13[%c0_59, %c0_60] : memref<128x512xf32, #tpu.memory_space<vmem>>, vector<128x512xf32>
    %c0_61 = arith.constant 0 : index
    %c0_62 = arith.constant 0 : index
    %261 = vector.load %arg14[%c0_61, %c0_62] : memref<1x512xf32, #tpu.memory_space<vmem>>, vector<1x512xf32>
    %262 = vector.shape_cast %255 : vector<4x8x576xf32> to vector<32x576xf32>
    %cst_63 = arith.constant dense<0.000000e+00> : vector<32x512xf32>
    %263 = tpu.matmul %262, %256, %cst_63 {dimension_numbers = #tpu.dot_dimension_numbers<[1], [0], [0], [1], [0, 0, 1, 1], [], []>} : vector<32x576xf32>, vector<576x512xf32>, vector<32x512xf32> -> vector<32x512xf32>
    %264 = vector.broadcast %258 : vector<1x512xf32> to vector<32x512xf32>
    %265 = arith.addf %263, %264 : vector<32x512xf32>
    %266 = vector.shape_cast %265 : vector<32x512xf32> to vector<4x8x512xf32>
    %267 = vector.extract_strided_slice %266 {offsets = [0, 0, 0], sizes = [1, 8, 512], strides = [1, 1, 1]} : vector<4x8x512xf32> to vector<1x8x512xf32>
    %268 = vector.shape_cast %267 : vector<1x8x512xf32> to vector<8x512xf32>
    %cst_64 = arith.constant dense<0.000000e+00> : vector<8x512xf32>
    %269 = tpu.matmul %128, %257, %cst_64 {dimension_numbers = #tpu.dot_dimension_numbers<[1], [0], [0], [1], [0, 0, 1, 1], [], []>} : vector<8x128xf32>, vector<128x512xf32>, vector<8x512xf32> -> vector<8x512xf32>
    %270 = arith.addf %268, %269 : vector<8x512xf32>
    %271 = vector.extract_strided_slice %270 {offsets = [0, 0], sizes = [8, 128], strides = [1, 1]} : vector<8x512xf32> to vector<8x128xf32>
    %272 = arith.negf %271 : vector<8x128xf32>
    %273 = math.exp %272 : vector<8x128xf32>
    %cst_65 = arith.constant 1.000000e+00 : f32
    %274 = vector.broadcast %cst_65 : f32 to vector<8x128xf32>
    %275 = arith.addf %274, %273 : vector<8x128xf32>
    %276 = arith.divf %274, %275 : vector<8x128xf32>
    %277 = vector.extract_strided_slice %270 {offsets = [0, 128], sizes = [8, 128], strides = [1, 1]} : vector<8x512xf32> to vector<8x128xf32>
    %278 = arith.negf %277 : vector<8x128xf32>
    %279 = math.exp %278 : vector<8x128xf32>
    %cst_66 = arith.constant 1.000000e+00 : f32
    %280 = vector.broadcast %cst_66 : f32 to vector<8x128xf32>
    %281 = arith.addf %280, %279 : vector<8x128xf32>
    %282 = arith.divf %280, %281 : vector<8x128xf32>
    %283 = vector.extract_strided_slice %270 {offsets = [0, 256], sizes = [8, 128], strides = [1, 1]} : vector<8x512xf32> to vector<8x128xf32>
    %284 = math.tanh %283 : vector<8x128xf32>
    %285 = vector.extract_strided_slice %270 {offsets = [0, 384], sizes = [8, 128], strides = [1, 1]} : vector<8x512xf32> to vector<8x128xf32>
    %286 = arith.negf %285 : vector<8x128xf32>
    %287 = math.exp %286 : vector<8x128xf32>
    %cst_67 = arith.constant 1.000000e+00 : f32
    %288 = vector.broadcast %cst_67 : f32 to vector<8x128xf32>
    %289 = arith.addf %288, %287 : vector<8x128xf32>
    %290 = arith.divf %288, %289 : vector<8x128xf32>
    %291 = arith.mulf %282, %126 : vector<8x128xf32>
    %292 = arith.mulf %276, %284 : vector<8x128xf32>
    %293 = arith.addf %291, %292 : vector<8x128xf32>
    %294 = math.tanh %293 : vector<8x128xf32>
    %295 = arith.mulf %290, %294 : vector<8x128xf32>
    %296 = vector.extract_strided_slice %266 {offsets = [1, 0, 0], sizes = [1, 8, 512], strides = [1, 1, 1]} : vector<4x8x512xf32> to vector<1x8x512xf32>
    %297 = vector.shape_cast %296 : vector<1x8x512xf32> to vector<8x512xf32>
    %cst_68 = arith.constant dense<0.000000e+00> : vector<8x512xf32>
    %298 = tpu.matmul %295, %257, %cst_68 {dimension_numbers = #tpu.dot_dimension_numbers<[1], [0], [0], [1], [0, 0, 1, 1], [], []>} : vector<8x128xf32>, vector<128x512xf32>, vector<8x512xf32> -> vector<8x512xf32>
    %299 = arith.addf %297, %298 : vector<8x512xf32>
    %300 = vector.extract_strided_slice %299 {offsets = [0, 0], sizes = [8, 128], strides = [1, 1]} : vector<8x512xf32> to vector<8x128xf32>
    %301 = arith.negf %300 : vector<8x128xf32>
    %302 = math.exp %301 : vector<8x128xf32>
    %cst_69 = arith.constant 1.000000e+00 : f32
    %303 = vector.broadcast %cst_69 : f32 to vector<8x128xf32>
    %304 = arith.addf %303, %302 : vector<8x128xf32>
    %305 = arith.divf %303, %304 : vector<8x128xf32>
    %306 = vector.extract_strided_slice %299 {offsets = [0, 128], sizes = [8, 128], strides = [1, 1]} : vector<8x512xf32> to vector<8x128xf32>
    %307 = arith.negf %306 : vector<8x128xf32>
    %308 = math.exp %307 : vector<8x128xf32>
    %cst_70 = arith.constant 1.000000e+00 : f32
    %309 = vector.broadcast %cst_70 : f32 to vector<8x128xf32>
    %310 = arith.addf %309, %308 : vector<8x128xf32>
    %311 = arith.divf %309, %310 : vector<8x128xf32>
    %312 = vector.extract_strided_slice %299 {offsets = [0, 256], sizes = [8, 128], strides = [1, 1]} : vector<8x512xf32> to vector<8x128xf32>
    %313 = math.tanh %312 : vector<8x128xf32>
    %314 = vector.extract_strided_slice %299 {offsets = [0, 384], sizes = [8, 128], strides = [1, 1]} : vector<8x512xf32> to vector<8x128xf32>
    %315 = arith.negf %314 : vector<8x128xf32>
    %316 = math.exp %315 : vector<8x128xf32>
    %cst_71 = arith.constant 1.000000e+00 : f32
    %317 = vector.broadcast %cst_71 : f32 to vector<8x128xf32>
    %318 = arith.addf %317, %316 : vector<8x128xf32>
    %319 = arith.divf %317, %318 : vector<8x128xf32>
    %320 = arith.mulf %311, %293 : vector<8x128xf32>
    %321 = arith.mulf %305, %313 : vector<8x128xf32>
    %322 = arith.addf %320, %321 : vector<8x128xf32>
    %323 = math.tanh %322 : vector<8x128xf32>
    %324 = arith.mulf %319, %323 : vector<8x128xf32>
    %325 = vector.extract_strided_slice %266 {offsets = [2, 0, 0], sizes = [1, 8, 512], strides = [1, 1, 1]} : vector<4x8x512xf32> to vector<1x8x512xf32>
    %326 = vector.shape_cast %325 : vector<1x8x512xf32> to vector<8x512xf32>
    %cst_72 = arith.constant dense<0.000000e+00> : vector<8x512xf32>
    %327 = tpu.matmul %324, %257, %cst_72 {dimension_numbers = #tpu.dot_dimension_numbers<[1], [0], [0], [1], [0, 0, 1, 1], [], []>} : vector<8x128xf32>, vector<128x512xf32>, vector<8x512xf32> -> vector<8x512xf32>
    %328 = arith.addf %326, %327 : vector<8x512xf32>
    %329 = vector.extract_strided_slice %328 {offsets = [0, 0], sizes = [8, 128], strides = [1, 1]} : vector<8x512xf32> to vector<8x128xf32>
    %330 = arith.negf %329 : vector<8x128xf32>
    %331 = math.exp %330 : vector<8x128xf32>
    %cst_73 = arith.constant 1.000000e+00 : f32
    %332 = vector.broadcast %cst_73 : f32 to vector<8x128xf32>
    %333 = arith.addf %332, %331 : vector<8x128xf32>
    %334 = arith.divf %332, %333 : vector<8x128xf32>
    %335 = vector.extract_strided_slice %328 {offsets = [0, 128], sizes = [8, 128], strides = [1, 1]} : vector<8x512xf32> to vector<8x128xf32>
    %336 = arith.negf %335 : vector<8x128xf32>
    %337 = math.exp %336 : vector<8x128xf32>
    %cst_74 = arith.constant 1.000000e+00 : f32
    %338 = vector.broadcast %cst_74 : f32 to vector<8x128xf32>
    %339 = arith.addf %338, %337 : vector<8x128xf32>
    %340 = arith.divf %338, %339 : vector<8x128xf32>
    %341 = vector.extract_strided_slice %328 {offsets = [0, 256], sizes = [8, 128], strides = [1, 1]} : vector<8x512xf32> to vector<8x128xf32>
    %342 = math.tanh %341 : vector<8x128xf32>
    %343 = vector.extract_strided_slice %328 {offsets = [0, 384], sizes = [8, 128], strides = [1, 1]} : vector<8x512xf32> to vector<8x128xf32>
    %344 = arith.negf %343 : vector<8x128xf32>
    %345 = math.exp %344 : vector<8x128xf32>
    %cst_75 = arith.constant 1.000000e+00 : f32
    %346 = vector.broadcast %cst_75 : f32 to vector<8x128xf32>
    %347 = arith.addf %346, %345 : vector<8x128xf32>
    %348 = arith.divf %346, %347 : vector<8x128xf32>
    %349 = arith.mulf %340, %322 : vector<8x128xf32>
    %350 = arith.mulf %334, %342 : vector<8x128xf32>
    %351 = arith.addf %349, %350 : vector<8x128xf32>
    %352 = math.tanh %351 : vector<8x128xf32>
    %353 = arith.mulf %348, %352 : vector<8x128xf32>
    %354 = vector.extract_strided_slice %266 {offsets = [3, 0, 0], sizes = [1, 8, 512], strides = [1, 1, 1]} : vector<4x8x512xf32> to vector<1x8x512xf32>
    %355 = vector.shape_cast %354 : vector<1x8x512xf32> to vector<8x512xf32>
    %cst_76 = arith.constant dense<0.000000e+00> : vector<8x512xf32>
    %356 = tpu.matmul %353, %257, %cst_76 {dimension_numbers = #tpu.dot_dimension_numbers<[1], [0], [0], [1], [0, 0, 1, 1], [], []>} : vector<8x128xf32>, vector<128x512xf32>, vector<8x512xf32> -> vector<8x512xf32>
    %357 = arith.addf %355, %356 : vector<8x512xf32>
    %358 = vector.extract_strided_slice %357 {offsets = [0, 0], sizes = [8, 128], strides = [1, 1]} : vector<8x512xf32> to vector<8x128xf32>
    %359 = arith.negf %358 : vector<8x128xf32>
    %360 = math.exp %359 : vector<8x128xf32>
    %cst_77 = arith.constant 1.000000e+00 : f32
    %361 = vector.broadcast %cst_77 : f32 to vector<8x128xf32>
    %362 = arith.addf %361, %360 : vector<8x128xf32>
    %363 = arith.divf %361, %362 : vector<8x128xf32>
    %364 = vector.extract_strided_slice %357 {offsets = [0, 128], sizes = [8, 128], strides = [1, 1]} : vector<8x512xf32> to vector<8x128xf32>
    %365 = arith.negf %364 : vector<8x128xf32>
    %366 = math.exp %365 : vector<8x128xf32>
    %cst_78 = arith.constant 1.000000e+00 : f32
    %367 = vector.broadcast %cst_78 : f32 to vector<8x128xf32>
    %368 = arith.addf %367, %366 : vector<8x128xf32>
    %369 = arith.divf %367, %368 : vector<8x128xf32>
    %370 = vector.extract_strided_slice %357 {offsets = [0, 256], sizes = [8, 128], strides = [1, 1]} : vector<8x512xf32> to vector<8x128xf32>
    %371 = math.tanh %370 : vector<8x128xf32>
    %372 = vector.extract_strided_slice %357 {offsets = [0, 384], sizes = [8, 128], strides = [1, 1]} : vector<8x512xf32> to vector<8x128xf32>
    %373 = arith.negf %372 : vector<8x128xf32>
    %374 = math.exp %373 : vector<8x128xf32>
    %cst_79 = arith.constant 1.000000e+00 : f32
    %375 = vector.broadcast %cst_79 : f32 to vector<8x128xf32>
    %376 = arith.addf %375, %374 : vector<8x128xf32>
    %377 = arith.divf %375, %376 : vector<8x128xf32>
    %378 = arith.mulf %369, %351 : vector<8x128xf32>
    %379 = arith.mulf %363, %371 : vector<8x128xf32>
    %380 = arith.addf %378, %379 : vector<8x128xf32>
    %381 = math.tanh %380 : vector<8x128xf32>
    %382 = arith.mulf %377, %381 : vector<8x128xf32>
    %383 = vector.shape_cast %295 : vector<8x128xf32> to vector<1x8x128xf32>
    %384 = vector.shape_cast %324 : vector<8x128xf32> to vector<1x8x128xf32>
    %385 = vector.shape_cast %353 : vector<8x128xf32> to vector<1x8x128xf32>
    %386 = vector.shape_cast %382 : vector<8x128xf32> to vector<1x8x128xf32>
    %387 = tpu.concatenate %383, %384, %385, %386 in 0 : vector<1x8x128xf32>, vector<1x8x128xf32>, vector<1x8x128xf32>, vector<1x8x128xf32> -> vector<4x8x128xf32>
    %388 = vector.shape_cast %387 : vector<4x8x128xf32> to vector<32x128xf32>
    %cst_80 = arith.constant dense<0.000000e+00> : vector<32x512xf32>
    %389 = tpu.matmul %388, %259, %cst_80 {dimension_numbers = #tpu.dot_dimension_numbers<[1], [0], [0], [1], [0, 0, 1, 1], [], []>} : vector<32x128xf32>, vector<128x512xf32>, vector<32x512xf32> -> vector<32x512xf32>
    %390 = vector.broadcast %261 : vector<1x512xf32> to vector<32x512xf32>
    %391 = arith.addf %389, %390 : vector<32x512xf32>
    %392 = vector.shape_cast %391 : vector<32x512xf32> to vector<4x8x512xf32>
    %393 = vector.extract_strided_slice %392 {offsets = [0, 0, 0], sizes = [1, 8, 512], strides = [1, 1, 1]} : vector<4x8x512xf32> to vector<1x8x512xf32>
    %394 = vector.shape_cast %393 : vector<1x8x512xf32> to vector<8x512xf32>
    %cst_81 = arith.constant dense<0.000000e+00> : vector<8x512xf32>
    %395 = tpu.matmul %254, %260, %cst_81 {dimension_numbers = #tpu.dot_dimension_numbers<[1], [0], [0], [1], [0, 0, 1, 1], [], []>} : vector<8x128xf32>, vector<128x512xf32>, vector<8x512xf32> -> vector<8x512xf32>
    %396 = arith.addf %394, %395 : vector<8x512xf32>
    %397 = vector.extract_strided_slice %396 {offsets = [0, 0], sizes = [8, 128], strides = [1, 1]} : vector<8x512xf32> to vector<8x128xf32>
    %398 = arith.negf %397 : vector<8x128xf32>
    %399 = math.exp %398 : vector<8x128xf32>
    %cst_82 = arith.constant 1.000000e+00 : f32
    %400 = vector.broadcast %cst_82 : f32 to vector<8x128xf32>
    %401 = arith.addf %400, %399 : vector<8x128xf32>
    %402 = arith.divf %400, %401 : vector<8x128xf32>
    %403 = vector.extract_strided_slice %396 {offsets = [0, 128], sizes = [8, 128], strides = [1, 1]} : vector<8x512xf32> to vector<8x128xf32>
    %404 = arith.negf %403 : vector<8x128xf32>
    %405 = math.exp %404 : vector<8x128xf32>
    %cst_83 = arith.constant 1.000000e+00 : f32
    %406 = vector.broadcast %cst_83 : f32 to vector<8x128xf32>
    %407 = arith.addf %406, %405 : vector<8x128xf32>
    %408 = arith.divf %406, %407 : vector<8x128xf32>
    %409 = vector.extract_strided_slice %396 {offsets = [0, 256], sizes = [8, 128], strides = [1, 1]} : vector<8x512xf32> to vector<8x128xf32>
    %410 = math.tanh %409 : vector<8x128xf32>
    %411 = vector.extract_strided_slice %396 {offsets = [0, 384], sizes = [8, 128], strides = [1, 1]} : vector<8x512xf32> to vector<8x128xf32>
    %412 = arith.negf %411 : vector<8x128xf32>
    %413 = math.exp %412 : vector<8x128xf32>
    %cst_84 = arith.constant 1.000000e+00 : f32
    %414 = vector.broadcast %cst_84 : f32 to vector<8x128xf32>
    %415 = arith.addf %414, %413 : vector<8x128xf32>
    %416 = arith.divf %414, %415 : vector<8x128xf32>
    %417 = arith.mulf %408, %252 : vector<8x128xf32>
    %418 = arith.mulf %402, %410 : vector<8x128xf32>
    %419 = arith.addf %417, %418 : vector<8x128xf32>
    %420 = math.tanh %419 : vector<8x128xf32>
    %421 = arith.mulf %416, %420 : vector<8x128xf32>
    %422 = vector.extract_strided_slice %392 {offsets = [1, 0, 0], sizes = [1, 8, 512], strides = [1, 1, 1]} : vector<4x8x512xf32> to vector<1x8x512xf32>
    %423 = vector.shape_cast %422 : vector<1x8x512xf32> to vector<8x512xf32>
    %cst_85 = arith.constant dense<0.000000e+00> : vector<8x512xf32>
    %424 = tpu.matmul %421, %260, %cst_85 {dimension_numbers = #tpu.dot_dimension_numbers<[1], [0], [0], [1], [0, 0, 1, 1], [], []>} : vector<8x128xf32>, vector<128x512xf32>, vector<8x512xf32> -> vector<8x512xf32>
    %425 = arith.addf %423, %424 : vector<8x512xf32>
    %426 = vector.extract_strided_slice %425 {offsets = [0, 0], sizes = [8, 128], strides = [1, 1]} : vector<8x512xf32> to vector<8x128xf32>
    %427 = arith.negf %426 : vector<8x128xf32>
    %428 = math.exp %427 : vector<8x128xf32>
    %cst_86 = arith.constant 1.000000e+00 : f32
    %429 = vector.broadcast %cst_86 : f32 to vector<8x128xf32>
    %430 = arith.addf %429, %428 : vector<8x128xf32>
    %431 = arith.divf %429, %430 : vector<8x128xf32>
    %432 = vector.extract_strided_slice %425 {offsets = [0, 128], sizes = [8, 128], strides = [1, 1]} : vector<8x512xf32> to vector<8x128xf32>
    %433 = arith.negf %432 : vector<8x128xf32>
    %434 = math.exp %433 : vector<8x128xf32>
    %cst_87 = arith.constant 1.000000e+00 : f32
    %435 = vector.broadcast %cst_87 : f32 to vector<8x128xf32>
    %436 = arith.addf %435, %434 : vector<8x128xf32>
    %437 = arith.divf %435, %436 : vector<8x128xf32>
    %438 = vector.extract_strided_slice %425 {offsets = [0, 256], sizes = [8, 128], strides = [1, 1]} : vector<8x512xf32> to vector<8x128xf32>
    %439 = math.tanh %438 : vector<8x128xf32>
    %440 = vector.extract_strided_slice %425 {offsets = [0, 384], sizes = [8, 128], strides = [1, 1]} : vector<8x512xf32> to vector<8x128xf32>
    %441 = arith.negf %440 : vector<8x128xf32>
    %442 = math.exp %441 : vector<8x128xf32>
    %cst_88 = arith.constant 1.000000e+00 : f32
    %443 = vector.broadcast %cst_88 : f32 to vector<8x128xf32>
    %444 = arith.addf %443, %442 : vector<8x128xf32>
    %445 = arith.divf %443, %444 : vector<8x128xf32>
    %446 = arith.mulf %437, %419 : vector<8x128xf32>
    %447 = arith.mulf %431, %439 : vector<8x128xf32>
    %448 = arith.addf %446, %447 : vector<8x128xf32>
    %449 = math.tanh %448 : vector<8x128xf32>
    %450 = arith.mulf %445, %449 : vector<8x128xf32>
    %451 = vector.extract_strided_slice %392 {offsets = [2, 0, 0], sizes = [1, 8, 512], strides = [1, 1, 1]} : vector<4x8x512xf32> to vector<1x8x512xf32>
    %452 = vector.shape_cast %451 : vector<1x8x512xf32> to vector<8x512xf32>
    %cst_89 = arith.constant dense<0.000000e+00> : vector<8x512xf32>
    %453 = tpu.matmul %450, %260, %cst_89 {dimension_numbers = #tpu.dot_dimension_numbers<[1], [0], [0], [1], [0, 0, 1, 1], [], []>} : vector<8x128xf32>, vector<128x512xf32>, vector<8x512xf32> -> vector<8x512xf32>
    %454 = arith.addf %452, %453 : vector<8x512xf32>
    %455 = vector.extract_strided_slice %454 {offsets = [0, 0], sizes = [8, 128], strides = [1, 1]} : vector<8x512xf32> to vector<8x128xf32>
    %456 = arith.negf %455 : vector<8x128xf32>
    %457 = math.exp %456 : vector<8x128xf32>
    %cst_90 = arith.constant 1.000000e+00 : f32
    %458 = vector.broadcast %cst_90 : f32 to vector<8x128xf32>
    %459 = arith.addf %458, %457 : vector<8x128xf32>
    %460 = arith.divf %458, %459 : vector<8x128xf32>
    %461 = vector.extract_strided_slice %454 {offsets = [0, 128], sizes = [8, 128], strides = [1, 1]} : vector<8x512xf32> to vector<8x128xf32>
    %462 = arith.negf %461 : vector<8x128xf32>
    %463 = math.exp %462 : vector<8x128xf32>
    %cst_91 = arith.constant 1.000000e+00 : f32
    %464 = vector.broadcast %cst_91 : f32 to vector<8x128xf32>
    %465 = arith.addf %464, %463 : vector<8x128xf32>
    %466 = arith.divf %464, %465 : vector<8x128xf32>
    %467 = vector.extract_strided_slice %454 {offsets = [0, 256], sizes = [8, 128], strides = [1, 1]} : vector<8x512xf32> to vector<8x128xf32>
    %468 = math.tanh %467 : vector<8x128xf32>
    %469 = vector.extract_strided_slice %454 {offsets = [0, 384], sizes = [8, 128], strides = [1, 1]} : vector<8x512xf32> to vector<8x128xf32>
    %470 = arith.negf %469 : vector<8x128xf32>
    %471 = math.exp %470 : vector<8x128xf32>
    %cst_92 = arith.constant 1.000000e+00 : f32
    %472 = vector.broadcast %cst_92 : f32 to vector<8x128xf32>
    %473 = arith.addf %472, %471 : vector<8x128xf32>
    %474 = arith.divf %472, %473 : vector<8x128xf32>
    %475 = arith.mulf %466, %448 : vector<8x128xf32>
    %476 = arith.mulf %460, %468 : vector<8x128xf32>
    %477 = arith.addf %475, %476 : vector<8x128xf32>
    %478 = math.tanh %477 : vector<8x128xf32>
    %479 = arith.mulf %474, %478 : vector<8x128xf32>
    %480 = vector.extract_strided_slice %392 {offsets = [3, 0, 0], sizes = [1, 8, 512], strides = [1, 1, 1]} : vector<4x8x512xf32> to vector<1x8x512xf32>
    %481 = vector.shape_cast %480 : vector<1x8x512xf32> to vector<8x512xf32>
    %cst_93 = arith.constant dense<0.000000e+00> : vector<8x512xf32>
    %482 = tpu.matmul %479, %260, %cst_93 {dimension_numbers = #tpu.dot_dimension_numbers<[1], [0], [0], [1], [0, 0, 1, 1], [], []>} : vector<8x128xf32>, vector<128x512xf32>, vector<8x512xf32> -> vector<8x512xf32>
    %483 = arith.addf %481, %482 : vector<8x512xf32>
    %484 = vector.extract_strided_slice %483 {offsets = [0, 0], sizes = [8, 128], strides = [1, 1]} : vector<8x512xf32> to vector<8x128xf32>
    %485 = arith.negf %484 : vector<8x128xf32>
    %486 = math.exp %485 : vector<8x128xf32>
    %cst_94 = arith.constant 1.000000e+00 : f32
    %487 = vector.broadcast %cst_94 : f32 to vector<8x128xf32>
    %488 = arith.addf %487, %486 : vector<8x128xf32>
    %489 = arith.divf %487, %488 : vector<8x128xf32>
    %490 = vector.extract_strided_slice %483 {offsets = [0, 128], sizes = [8, 128], strides = [1, 1]} : vector<8x512xf32> to vector<8x128xf32>
    %491 = arith.negf %490 : vector<8x128xf32>
    %492 = math.exp %491 : vector<8x128xf32>
    %cst_95 = arith.constant 1.000000e+00 : f32
    %493 = vector.broadcast %cst_95 : f32 to vector<8x128xf32>
    %494 = arith.addf %493, %492 : vector<8x128xf32>
    %495 = arith.divf %493, %494 : vector<8x128xf32>
    %496 = vector.extract_strided_slice %483 {offsets = [0, 256], sizes = [8, 128], strides = [1, 1]} : vector<8x512xf32> to vector<8x128xf32>
    %497 = math.tanh %496 : vector<8x128xf32>
    %498 = vector.extract_strided_slice %483 {offsets = [0, 384], sizes = [8, 128], strides = [1, 1]} : vector<8x512xf32> to vector<8x128xf32>
    %499 = arith.negf %498 : vector<8x128xf32>
    %500 = math.exp %499 : vector<8x128xf32>
    %cst_96 = arith.constant 1.000000e+00 : f32
    %501 = vector.broadcast %cst_96 : f32 to vector<8x128xf32>
    %502 = arith.addf %501, %500 : vector<8x128xf32>
    %503 = arith.divf %501, %502 : vector<8x128xf32>
    %504 = arith.mulf %495, %477 : vector<8x128xf32>
    %505 = arith.mulf %489, %497 : vector<8x128xf32>
    %506 = arith.addf %504, %505 : vector<8x128xf32>
    %507 = math.tanh %506 : vector<8x128xf32>
    %508 = arith.mulf %503, %507 : vector<8x128xf32>
    %509 = tpu.concatenate %508, %254 in 1 : vector<8x128xf32>, vector<8x128xf32> -> vector<8x256xf32>
    %c0_97 = arith.constant 0 : index
    %c0_98 = arith.constant 0 : index
    %510 = vector.load %arg15[%c0_97, %c0_98] : memref<256x512xf32, #tpu.memory_space<vmem>>, vector<256x512xf32>
    %cst_99 = arith.constant dense<0.000000e+00> : vector<8x512xf32>
    %511 = tpu.matmul %509, %510, %cst_99 {dimension_numbers = #tpu.dot_dimension_numbers<[1], [0], [0], [1], [0, 0, 1, 1], [], []>} : vector<8x256xf32>, vector<256x512xf32>, vector<8x512xf32> -> vector<8x512xf32>
    %c0_100 = arith.constant 0 : index
    %c0_101 = arith.constant 0 : index
    %512 = vector.load %arg16[%c0_100, %c0_101] : memref<1x512xf32, #tpu.memory_space<vmem>>, vector<1x512xf32>
    %513 = vector.broadcast %512 : vector<1x512xf32> to vector<8x512xf32>
    %514 = arith.addf %511, %513 : vector<8x512xf32>
    %cst_102 = arith.constant 0.000000e+00 : f32
    %515 = vector.broadcast %cst_102 : f32 to vector<8x512xf32>
    %516 = arith.maximumf %514, %515 : vector<8x512xf32>
    %c0_103 = arith.constant 0 : index
    %c0_104 = arith.constant 0 : index
    %517 = vector.load %arg17[%c0_103, %c0_104] : memref<512x16xf32, #tpu.memory_space<vmem>>, vector<512x16xf32>
    %cst_105 = arith.constant dense<0.000000e+00> : vector<8x16xf32>
    %518 = tpu.matmul %516, %517, %cst_105 {dimension_numbers = #tpu.dot_dimension_numbers<[1], [0], [0], [1], [0, 0, 1, 1], [], []>} : vector<8x512xf32>, vector<512x16xf32>, vector<8x16xf32> -> vector<8x16xf32>
    %c0_106 = arith.constant 0 : index
    %c0_107 = arith.constant 0 : index
    %519 = vector.load %arg18[%c0_106, %c0_107] : memref<1x16xf32, #tpu.memory_space<vmem>>, vector<1x16xf32>
    %520 = vector.broadcast %519 : vector<1x16xf32> to vector<8x16xf32>
    %521 = arith.addf %518, %520 : vector<8x16xf32>
    %c0_108 = arith.constant 0 : index
    %c0_109 = arith.constant 0 : index
    %522 = vector.load %arg19[%c0_108, %c0_109] : memref<8x16xf32, #tpu.memory_space<vmem>>, vector<8x16xf32>
    tpu.vector_store %arg19[%c0_108, %c0_109], %521 {strides = array<i32>} : memref<8x16xf32, #tpu.memory_space<vmem>>, vector<8x16xf32>,
    return
  }
  func.func @transform_0(%arg0: i32) -> (i32, i32, i32) {
    %c0_i32 = arith.constant 0 : i32
    %c0_i32_0 = arith.constant 0 : i32
    %c0_i32_1 = arith.constant 0 : i32
    %c0_i32_2 = arith.constant 0 : i32
    return %c0_i32, %c0_i32_0, %c0_i32_1 : i32, i32, i32
  }
  func.func @transform_1(%arg0: i32) -> (i32, i32, i32) {
    %c0_i32 = arith.constant 0 : i32
    %c0_i32_0 = arith.constant 0 : i32
    %c0_i32_1 = arith.constant 0 : i32
    %c0_i32_2 = arith.constant 0 : i32
    return %c0_i32, %c0_i32_0, %c0_i32_1 : i32, i32, i32
  }
  func.func @transform_2(%arg0: i32) -> (i32, i32) {
    %c0_i32 = arith.constant 0 : i32
    %c0_i32_0 = arith.constant 0 : i32
    %c0_i32_1 = arith.constant 0 : i32
    return %c0_i32, %c0_i32_0 : i32, i32
  }
  func.func @transform_3(%arg0: i32) -> (i32, i32) {
    %c0_i32 = arith.constant 0 : i32
    %c0_i32_0 = arith.constant 0 : i32
    %c0_i32_1 = arith.constant 0 : i32
    return %c0_i32, %c0_i32_0 : i32, i32
  }
  func.func @transform_4(%arg0: i32) -> (i32, i32) {
    %c0_i32 = arith.constant 0 : i32
    %c0_i32_0 = arith.constant 0 : i32
    %c0_i32_1 = arith.constant 0 : i32
    return %c0_i32, %c0_i32_0 : i32, i32
  }
  func.func @transform_5(%arg0: i32) -> (i32, i32) {
    %c0_i32 = arith.constant 0 : i32
    %c0_i32_0 = arith.constant 0 : i32
    %c0_i32_1 = arith.constant 0 : i32
    return %c0_i32, %c0_i32_0 : i32, i32
  }
  func.func @transform_6(%arg0: i32) -> (i32, i32) {
    %c0_i32 = arith.constant 0 : i32
    %c0_i32_0 = arith.constant 0 : i32
    %c0_i32_1 = arith.constant 0 : i32
    return %c0_i32, %c0_i32_0 : i32, i32
  }
  func.func @transform_7(%arg0: i32) -> (i32, i32) {
    %c0_i32 = arith.constant 0 : i32
    %c0_i32_0 = arith.constant 0 : i32
    %c0_i32_1 = arith.constant 0 : i32
    return %c0_i32, %c0_i32_0 : i32, i32
  }
  func.func @transform_8(%arg0: i32) -> (i32, i32) {
    %c0_i32 = arith.constant 0 : i32
    %c0_i32_0 = arith.constant 0 : i32
    %c0_i32_1 = arith.constant 0 : i32
    return %c0_i32, %c0_i32_0 : i32, i32
  }
  func.func @transform_9(%arg0: i32) -> (i32, i32) {
    %c0_i32 = arith.constant 0 : i32
    %c0_i32_0 = arith.constant 0 : i32
    %c0_i32_1 = arith.constant 0 : i32
    return %c0_i32, %c0_i32_0 : i32, i32
  }
  func.func @transform_10(%arg0: i32) -> (i32, i32) {
    %c0_i32 = arith.constant 0 : i32
    %c0_i32_0 = arith.constant 0 : i32
    %c0_i32_1 = arith.constant 0 : i32
    return %c0_i32, %c0_i32_0 : i32, i32
  }
  func.func @transform_11(%arg0: i32) -> (i32, i32) {
    %c0_i32 = arith.constant 0 : i32
    %c0_i32_0 = arith.constant 0 : i32
    %c0_i32_1 = arith.constant 0 : i32
    return %c0_i32, %c0_i32_0 : i32, i32
  }
  func.func @transform_12(%arg0: i32) -> (i32, i32) {
    %c0_i32 = arith.constant 0 : i32
    %c0_i32_0 = arith.constant 0 : i32
    %c0_i32_1 = arith.constant 0 : i32
    return %c0_i32, %c0_i32_0 : i32, i32
  }
  func.func @transform_13(%arg0: i32) -> (i32, i32) {
    %c0_i32 = arith.constant 0 : i32
    %c0_i32_0 = arith.constant 0 : i32
    %c0_i32_1 = arith.constant 0 : i32
    return %c0_i32, %c0_i32_0 : i32, i32
  }
  func.func @transform_14(%arg0: i32) -> (i32, i32) {
    %c0_i32 = arith.constant 0 : i32
    %c0_i32_0 = arith.constant 0 : i32
    %c0_i32_1 = arith.constant 0 : i32
    return %c0_i32, %c0_i32_0 : i32, i32
  }
  func.func @transform_15(%arg0: i32) -> (i32, i32) {
    %c0_i32 = arith.constant 0 : i32
    %c0_i32_0 = arith.constant 0 : i32
    %c0_i32_1 = arith.constant 0 : i32
    return %c0_i32, %c0_i32_0 : i32, i32
  }
  func.func @transform_16(%arg0: i32) -> (i32, i32) {
    %c0_i32 = arith.constant 0 : i32
    %c0_i32_0 = arith.constant 0 : i32
    %c0_i32_1 = arith.constant 0 : i32
    return %c0_i32, %c0_i32_0 : i32, i32
  }
  func.func @transform_17(%arg0: i32) -> (i32, i32) {
    %c0_i32 = arith.constant 0 : i32
    %c0_i32_0 = arith.constant 0 : i32
    %c0_i32_1 = arith.constant 0 : i32
    return %c0_i32, %c0_i32_0 : i32, i32
  }
  func.func @transform_18(%arg0: i32) -> (i32, i32) {
    %c0_i32 = arith.constant 0 : i32
    %c0_i32_0 = arith.constant 0 : i32
    %c0_i32_1 = arith.constant 0 : i32
    return %c0_i32, %c0_i32_0 : i32, i32
  }
}

</mosaic_0001>

<llo_original>
// kernel: nature_cnn_forward.5
$region0: #{nature_cnn_forward.5}
  #allocation0 [shape = 'u32[]', space=smem, size = 0x4, offset = 0x4, fixed_abs, tag = 'smem constant byte address 0x4 - core index']
  #allocation1 [shape = 'u32[144,128]{1,0:T(1,128)}', space=vmem, size = 0x12000, scoped, tag = 'internal scratch']
  %s0 = inlined_call_operand.vmem [shape: bf16[1024,192], index: 0, kind: input, shape index: {}]
  %s1 = inlined_call_operand.vmem [shape: bf16[192,32], index: 1, kind: input, shape index: {}]
  %s2 = inlined_call_operand.vmem [shape: f32[1,32], index: 2, kind: input, shape index: {}]
  %s3 = inlined_call_operand.vmem [shape: bf16[1024,32], index: 3, kind: output, shape index: {}]
  %s4 = sld [smem:[#allocation0]]
  $region45: #{nature_cnn_forward.5} parent=0
    _
  %s6 = ssub.s32 1, %s4
  %s7 = scalar_select 0, %s6, %s4
  loop: start=0, step=1, limit=4
  $region2: #{nature_cnn_forward.5} parent=0 // loop_pre_header
    _
  $region3: #{nature_cnn_forward.5} parent=0 // loop_header
    %s9 = sphi 0, %s13
    %p10 = scmp.ge.s32.totalorder %s9, 4
    %s19 = sphi 0, %s21
    %s22 = sphi 0, %s19
    %s23 = sphi 0, %s22
    %s39 = sphi 0, %s23
    %s43 = sphi 0, %s43
    %s45 = sphi 0, %s43
    %s46 = sphi 0, %s45
    %s60 = sphi 0, %s46
    %s64 = sphi 0, %s64
    %s66 = sphi 0, %s64
    %s67 = sphi 0, %s66
    %s81 = sphi 0, %s67
    %s87 = sphi 0, %s89
    %s90 = sphi 0, %s87
    %s91 = sphi 0, %s90
    %s107 = sphi 0, %s91
  $region4: #{nature_cnn_forward.5} parent=0 // loop_header_branch
    %12 = sbr.rel (%p10) target = $region8
  $region5: #{nature_cnn_forward.5} parent=0 // loop_body
    %s14 = ssub.s32 %s9, 1
    %s15 = ssub.s32 %s9, 2
    %s16 = sadd.s32 %s9, 1
    %s17 = ssub.s32 %s9, %s16
    %p18 = scmp.eq.s32.totalorder %s17, 0
    %s20 = sadd.s32 %s19, 1
    %s21 = scalar_select %p18, %s19, %s20
    %p24 = pneg %p18
    %p25 = scmp.eq.s32.totalorder %s9, 1
    %p26 = por %p24, %p25
    %p27 = scmp.ne.s32.totalorder %s19, %s22
    %p28 = scmp.eq.s32.totalorder %s9, 0
    %p29 = por %p27, %p28
    %p30 = scmp.ne.s32.totalorder %s19, %s22
    %p31 = scmp.eq.s32.totalorder %s14, 1
    %p32 = por %p30, %p31
    %p33 = scmp.ne.s32.totalorder %s22, %s23
    %p34 = scmp.eq.s32.totalorder %s14, 0
    %p35 = por %p33, %p34
    %p36 = scmp.ne.s32.totalorder %s22, %s23
    %p37 = scmp.eq.s32.totalorder %s15, 1
    %p38 = por %p36, %p37
    %p40 = scmp.ne.s32.totalorder %s23, %s39
    %p41 = scmp.eq.s32.totalorder %s15, 0
    %p42 = por %p40, %p41
    %s44 = sadd.s32 %s43, 1
    %p47 = scmp.eq.s32.totalorder %s9, 1
    %p48 = scmp.ne.s32.totalorder %s43, %s45
    %p49 = scmp.eq.s32.totalorder %s9, 0
    %p50 = por %p48, %p49
    %p51 = scmp.ne.s32.totalorder %s43, %s45
    %p52 = scmp.eq.s32.totalorder %s14, 1
    %p53 = por %p51, %p52
    %p54 = scmp.ne.s32.totalorder %s45, %s46
    %p55 = scmp.eq.s32.totalorder %s14, 0
    %p56 = por %p54, %p55
    %p57 = scmp.ne.s32.totalorder %s45, %s46
    %p58 = scmp.eq.s32.totalorder %s15, 1
    %p59 = por %p57, %p58
    %p61 = scmp.ne.s32.totalorder %s46, %s60
    %p62 = scmp.eq.s32.totalorder %s15, 0
    %p63 = por %p61, %p62
    %s65 = sadd.s32 %s64, 1
    %p68 = scmp.eq.s32.totalorder %s9, 1
    %p69 = scmp.ne.s32.totalorder %s64, %s66
    %p70 = scmp.eq.s32.totalorder %s9, 0
    %p71 = por %p69, %p70
    %p72 = scmp.ne.s32.totalorder %s64, %s66
    %p73 = scmp.eq.s32.totalorder %s14, 1
    %p74 = por %p72, %p73
    %p75 = scmp.ne.s32.totalorder %s66, %s67
    %p76 = scmp.eq.s32.totalorder %s14, 0
    %p77 = por %p75, %p76
    %p78 = scmp.ne.s32.totalorder %s66, %s67
    %p79 = scmp.eq.s32.totalorder %s15, 1
    %p80 = por %p78, %p79
    %p82 = scmp.ne.s32.totalorder %s67, %s81
    %p83 = scmp.eq.s32.totalorder %s15, 0
    %p84 = por %p82, %p83
    %s85 = ssub.s32 %s9, %s16
    %p86 = scmp.eq.s32.totalorder %s85, 0
    %s88 = sadd.s32 %s87, 1
    %s89 = scalar_select %p86, %s87, %s88
    %p92 = pneg %p86
    %p93 = scmp.eq.s32.totalorder %s9, 1
    %p94 = por %p92, %p93
    %p95 = scmp.ne.s32.totalorder %s87, %s90
    %p96 = scmp.eq.s32.totalorder %s9, 0
    %p97 = por %p95, %p96
    %p98 = scmp.ne.s32.totalorder %s87, %s90
    %p99 = scmp.eq.s32.totalorder %s14, 1
    %p100 = por %p98, %p99
    %p101 = scmp.ne.s32.totalorder %s90, %s91
    %p102 = scmp.eq.s32.totalorder %s14, 0
    %p103 = por %p101, %p102
    %p104 = scmp.ne.s32.totalorder %s90, %s91
    %p105 = scmp.eq.s32.totalorder %s15, 1
    %p106 = por %p104, %p105
    %p108 = scmp.ne.s32.totalorder %s91, %s107
    %p109 = scmp.eq.s32.totalorder %s15, 0
    %p110 = por %p108, %p109
    %p111 = scmp.le.s32.totalorder 1, %s9
    %p112 = scmp.lt.s32.totalorder %s9, 3
    %p113 = pnand %p111, %p112
    %p114 = pneg %p113
    // Predicated region
    $region9: #{nature_cnn_forward.5} parent=5 // pred_check
      _
    $region10: #{nature_cnn_forward.5} parent=5 // pred_check_branch
      %116 = sbr.rel (%p113) target = $region12
    $region11: #{nature_cnn_forward.5} parent=5 // pred_region
      %s117 = ssub.s32 %s9, 1
      // Predicated region
      $region13: #{nature_cnn_forward.5} parent=11 // pred_check
        %p118 = pneg %p56
      $region14: #{nature_cnn_forward.5} parent=11 // pred_check_branch
        %120 = sbr.rel (%p118) target = $region16
      $region15: #{nature_cnn_forward.5} parent=11 // pred_region
        _
      $region16: #{nature_cnn_forward.5} parent=11 // pred_fallthru
        _
      // Predicated region
      $region17: #{nature_cnn_forward.5} parent=11 // pred_check
        %p121 = pneg %p77
      $region18: #{nature_cnn_forward.5} parent=11 // pred_check_branch
        %123 = sbr.rel (%p121) target = $region20
      $region19: #{nature_cnn_forward.5} parent=11 // pred_region
        _
      $region20: #{nature_cnn_forward.5} parent=11 // pred_fallthru
        _
    $region12: #{nature_cnn_forward.5} parent=5 // pred_fallthru
      _
    %p124 = scmp.lt.s32.totalorder %s9, 2
    // Predicated region
    $region21: #{nature_cnn_forward.5} parent=5 // pred_check
      %p125 = pneg %p124
    $region22: #{nature_cnn_forward.5} parent=5 // pred_check_branch
      %127 = sbr.rel (%p125) target = $region24
    $region23: #{nature_cnn_forward.5} parent=5 // pred_region
      // Predicated region
      $region25: #{nature_cnn_forward.5} parent=23 // pred_check
        %p128 = pneg %p29
      $region26: #{nature_cnn_forward.5} parent=23 // pred_check_branch
        %130 = sbr.rel (%p128) target = $region28
      $region27: #{nature_cnn_forward.5} parent=23 // pred_region
        %s131 = smul.u32 64, %s9
        %p132 = scmp.lt.s32.totalorder %s131, 127
        %s133 = scalar_select %p132, %s131, 127
        %s134 = smul.addr %s133, 2
        %s135 = smul.addr %s134, 4
        %s136 = scalar_lea.vmem %s0, %s135
        %s137 = smul.u32 64, %s9
      $region28: #{nature_cnn_forward.5} parent=23 // pred_fallthru
        _
    $region24: #{nature_cnn_forward.5} parent=5 // pred_fallthru
      _
    %p138 = scmp.le.s32.totalorder 1, %s9
    %p139 = scmp.lt.s32.totalorder %s9, 3
    %p140 = pnand %p138, %p139
    %p141 = pneg %p140
    // Predicated region
    $region29: #{nature_cnn_forward.5} parent=5 // pred_check
      _
    $region30: #{nature_cnn_forward.5} parent=5 // pred_check_branch
      %143 = sbr.rel (%p140) target = $region32
    $region31: #{nature_cnn_forward.5} parent=5 // pred_region
      %s144 = ssub.s32 %s9, 1
      %s145 = smul.u32 64, %s14
      %p146 = scmp.lt.s32.totalorder %s145, 127
      %s147 = scalar_select %p146, %s145, 127
      %s148 = smul.addr %s147, 2
      %s149 = smul.addr %s148, 4
      %s150 = scalar_lea.vmem %s0, %s149
      %p151 = pneg %p35
      %p152 = pneg %p32
      %p153 = pneg %p56
      %p154 = pneg %p53
      %p155 = pneg %p77
      %p156 = pneg %p74
      %p157 = pneg %p103
      %p158 = pneg %p100
      %s159 = smul.u32 64, %s14
      %p160 = scmp.lt.s32.totalorder %s159, 127
      %s161 = scalar_select %p160, %s159, 127
      %s162 = smul.addr %s161, 4
      %s163 = scalar_lea.vmem %s3, %s162
      %s164 = smul.u32 64, %s14
      %p165 = scmp.lt.s32.totalorder %s164, 127
      %s166 = scalar_select %p165, %s164, 127
      %s167 = smul.addr %s166, 2
      %s168 = smul.addr %s167, 4
      %s169 = scalar_lea.vmem %s0, %s168
      %s170 = smul.u32 64, %s14
      %s171 = smul.u32 64, %s14
      %p172 = scmp.lt.s32.totalorder %s171, 127
      %s173 = scalar_select %p172, %s171, 127
      %s174 = smul.addr %s173, 4
      %s175 = scalar_lea.vmem %s3, %s174
      %s176 = smul.u32 64, %s14
      %v178 = vld [vmem:[%s169] sm:$0xff]
      %v179 = vld [vmem:[%s169 + $0x8] sm:$0xff]
      %v180 = vld [vmem:[%s169 + $0x10] sm:$0xff]
      %v181 = vld [vmem:[%s169 + $0x18] sm:$0xff]
      %v182 = vld [vmem:[%s169 + $0x20] sm:$0xff]
      %v183 = vld [vmem:[%s169 + $0x28] sm:$0xff]
      %v184 = vld [vmem:[%s169 + $0x30] sm:$0xff]
      %v185 = vld [vmem:[%s169 + $0x38] sm:$0xff]
      %v186 = vld [vmem:[%s169 + $0x40] sm:$0xff]
      %v187 = vld [vmem:[%s169 + $0x48] sm:$0xff]
      %v188 = vld [vmem:[%s169 + $0x50] sm:$0xff]
      %v189 = vld [vmem:[%s169 + $0x58] sm:$0xff]
      %v190 = vld [vmem:[%s169 + $0x60] sm:$0xff]
      %v191 = vld [vmem:[%s169 + $0x68] sm:$0xff]
      %v192 = vld [vmem:[%s169 + $0x70] sm:$0xff]
      %v193 = vld [vmem:[%s169 + $0x78] sm:$0xff]
      %v194 = vld [vmem:[%s169 + $0x80] sm:$0xff]
      %v195 = vld [vmem:[%s169 + $0x88] sm:$0xff]
      %v196 = vld [vmem:[%s169 + $0x90] sm:$0xff]
      %v197 = vld [vmem:[%s169 + $0x98] sm:$0xff]
      %v198 = vld [vmem:[%s169 + $0xa0] sm:$0xff]
      %v199 = vld [vmem:[%s169 + $0xa8] sm:$0xff]
      %v200 = vld [vmem:[%s169 + $0xb0] sm:$0xff]
      %v201 = vld [vmem:[%s169 + $0xb8] sm:$0xff]
      %v202 = vld [vmem:[%s169 + $0xc0] sm:$0xff]
      %v203 = vld [vmem:[%s169 + $0xc8] sm:$0xff]
      %v204 = vld [vmem:[%s169 + $0xd0] sm:$0xff]
      %v205 = vld [vmem:[%s169 + $0xd8] sm:$0xff]
      %v206 = vld [vmem:[%s169 + $0xe0] sm:$0xff]
      %v207 = vld [vmem:[%s169 + $0xe8] sm:$0xff]
      %v208 = vld [vmem:[%s169 + $0xf0] sm:$0xff]
      %v209 = vld [vmem:[%s169 + $0xf8] sm:$0xff]
      %v210 = vld [vmem:[%s169 + $0x100] sm:$0xff]
      %v211 = vld [vmem:[%s169 + $0x108] sm:$0xff]
      %v212 = vld [vmem:[%s169 + $0x110] sm:$0xff]
      %v213 = vld [vmem:[%s169 + $0x118] sm:$0xff]
      %v214 = vld [vmem:[%s169 + $0x120] sm:$0xff]
      %v215 = vld [vmem:[%s169 + $0x128] sm:$0xff]
      %v216 = vld [vmem:[%s169 + $0x130] sm:$0xff]
      %v217 = vld [vmem:[%s169 + $0x138] sm:$0xff]
      %v218 = vld [vmem:[%s169 + $0x140] sm:$0xff]
      %v219 = vld [vmem:[%s169 + $0x148] sm:$0xff]
      %v220 = vld [vmem:[%s169 + $0x150] sm:$0xff]
      %v221 = vld [vmem:[%s169 + $0x158] sm:$0xff]
      %v222 = vld [vmem:[%s169 + $0x160] sm:$0xff]
      %v223 = vld [vmem:[%s169 + $0x168] sm:$0xff]
      %v224 = vld [vmem:[%s169 + $0x170] sm:$0xff]
      %v225 = vld [vmem:[%s169 + $0x178] sm:$0xff]
      %v226 = vld [vmem:[%s169 + $0x180] sm:$0xff]
      %v227 = vld [vmem:[%s169 + $0x188] sm:$0xff]
      %v228 = vld [vmem:[%s169 + $0x190] sm:$0xff]
      %v229 = vld [vmem:[%s169 + $0x198] sm:$0xff]
      %v230 = vld [vmem:[%s169 + $0x1a0] sm:$0xff]
      %v231 = vld [vmem:[%s169 + $0x1a8] sm:$0xff]
      %v232 = vld [vmem:[%s169 + $0x1b0] sm:$0xff]
      %v233 = vld [vmem:[%s169 + $0x1b8] sm:$0xff]
      %v234 = vld [vmem:[%s169 + $0x1c0] sm:$0xff]
      %v235 = vld [vmem:[%s169 + $0x1c8] sm:$0xff]
      %v236 = vld [vmem:[%s169 + $0x1d0] sm:$0xff]
      %v237 = vld [vmem:[%s169 + $0x1d8] sm:$0xff]
      %v238 = vld [vmem:[%s169 + $0x1e0] sm:$0xff]
      %v239 = vld [vmem:[%s169 + $0x1e8] sm:$0xff]
      %v240 = vld [vmem:[%s169 + $0x1f0] sm:$0xff]
      %v241 = vld [vmem:[%s169 + $0x1f8] sm:$0xff]
      %v242 = vld [vmem:[%s1] sm:$0xf]
      %v243 = vld [vmem:[%s1 + $0x4] sm:$0xf]
      %v244 = vld [vmem:[%s1 + $0x8] sm:$0xf]
      %v245 = vld [vmem:[%s1 + $0xc] sm:$0xf]
      %v246 = vld [vmem:[%s1 + $0x10] sm:$0xf]
      %v247 = vld [vmem:[%s1 + $0x14] sm:$0xf]
      %v248 = vld [vmem:[%s1 + $0x18] sm:$0xf]
      %v249 = vld [vmem:[%s1 + $0x1c] sm:$0xf]
      %v250 = vld [vmem:[%s1 + $0x20] sm:$0xf]
      %v251 = vld [vmem:[%s1 + $0x24] sm:$0xf]
      %v252 = vld [vmem:[%s1 + $0x28] sm:$0xf]
      %v253 = vld [vmem:[%s1 + $0x2c] sm:$0xf]
      %v254 = vld [vmem:[%s1 + $0x30] sm:$0xf]
      %v255 = vld [vmem:[%s1 + $0x34] sm:$0xf]
      %v256 = vld [vmem:[%s1 + $0x38] sm:$0xf]
      %v257 = vld [vmem:[%s1 + $0x3c] sm:$0xf]
      %v258 = vld [vmem:[%s1 + $0x40] sm:$0xf]
      %v259 = vld [vmem:[%s1 + $0x44] sm:$0xf]
      %v260 = vld [vmem:[%s1 + $0x48] sm:$0xf]
      %v261 = vld [vmem:[%s1 + $0x4c] sm:$0xf]
      %v262 = vld [vmem:[%s1 + $0x50] sm:$0xf]
      %v263 = vld [vmem:[%s1 + $0x54] sm:$0xf]
      %v264 = vld [vmem:[%s1 + $0x58] sm:$0xf]
      %v265 = vld [vmem:[%s1 + $0x5c] sm:$0xf]
      %v266 = vld [vmem:[%s2] sm:$0x1]
      %v268 = vlaneseq
      %v269 = vshrl.u32 %v268, 7
      %v270 = vsub.s32 0, %v269
      %v271 = vrot.slane %v266, %v270
      %v337 = vunpack.c.l.b16 %v178
      %v338 = vunpack.c.h.b16 %v178
      %v339 = vunpack.c.l.b16 %v179
      %v340 = vunpack.c.h.b16 %v179
      %v341 = vunpack.c.l.b16 %v180
      %v342 = vunpack.c.h.b16 %v180
      %v343 = vunpack.c.l.b16 %v181
      %v344 = vunpack.c.h.b16 %v181
      %v345 = vunpack.c.l.b16 %v182
      %v346 = vunpack.c.h.b16 %v182
      %v347 = vunpack.c.l.b16 %v183
      %v348 = vunpack.c.h.b16 %v183
      %v349 = vunpack.c.l.b16 %v184
      %v350 = vunpack.c.h.b16 %v184
      %v351 = vunpack.c.l.b16 %v185
      %v352 = vunpack.c.h.b16 %v185
      %v353 = vunpack.c.l.b16 %v186
      %v354 = vunpack.c.h.b16 %v186
      %v355 = vunpack.c.l.b16 %v187
      %v356 = vunpack.c.h.b16 %v187
      %v357 = vunpack.c.l.b16 %v188
      %v358 = vunpack.c.h.b16 %v188
      %v359 = vunpack.c.l.b16 %v189
      %v360 = vunpack.c.h.b16 %v189
      %v361 = vunpack.c.l.b16 %v190
      %v362 = vunpack.c.h.b16 %v190
      %v363 = vunpack.c.l.b16 %v191
      %v364 = vunpack.c.h.b16 %v191
      %v365 = vunpack.c.l.b16 %v192
      %v366 = vunpack.c.h.b16 %v192
      %v367 = vunpack.c.l.b16 %v193
      %v368 = vunpack.c.h.b16 %v193
      %v369 = vunpack.c.l.b16 %v194
      %v370 = vunpack.c.h.b16 %v194
      %v371 = vunpack.c.l.b16 %v195
      %v372 = vunpack.c.h.b16 %v195
      %v373 = vunpack.c.l.b16 %v196
      %v374 = vunpack.c.h.b16 %v196
      %v375 = vunpack.c.l.b16 %v197
      %v376 = vunpack.c.h.b16 %v197
      %v377 = vunpack.c.l.b16 %v198
      %v378 = vunpack.c.h.b16 %v198
      %v379 = vunpack.c.l.b16 %v199
      %v380 = vunpack.c.h.b16 %v199
      %v381 = vunpack.c.l.b16 %v200
      %v382 = vunpack.c.h.b16 %v200
      %v383 = vunpack.c.l.b16 %v201
      %v384 = vunpack.c.h.b16 %v201
      %v385 = vunpack.c.l.b16 %v202
      %v386 = vunpack.c.h.b16 %v202
      %v387 = vunpack.c.l.b16 %v203
      %v388 = vunpack.c.h.b16 %v203
      %v389 = vunpack.c.l.b16 %v204
      %v390 = vunpack.c.h.b16 %v204
      %v391 = vunpack.c.l.b16 %v205
      %v392 = vunpack.c.h.b16 %v205
      %v393 = vunpack.c.l.b16 %v206
      %v394 = vunpack.c.h.b16 %v206
      %v395 = vunpack.c.l.b16 %v207
      %v396 = vunpack.c.h.b16 %v207
      %v397 = vunpack.c.l.b16 %v208
      %v398 = vunpack.c.h.b16 %v208
      %v399 = vunpack.c.l.b16 %v209
      %v400 = vunpack.c.h.b16 %v209
      %v401 = vunpack.c.l.b16 %v210
      %v402 = vunpack.c.h.b16 %v210
      %v403 = vunpack.c.l.b16 %v211
      %v404 = vunpack.c.h.b16 %v211
      %v405 = vunpack.c.l.b16 %v212
      %v406 = vunpack.c.h.b16 %v212
      %v407 = vunpack.c.l.b16 %v213
      %v408 = vunpack.c.h.b16 %v213
      %v409 = vunpack.c.l.b16 %v214
      %v410 = vunpack.c.h.b16 %v214
      %v411 = vunpack.c.l.b16 %v215
      %v412 = vunpack.c.h.b16 %v215
      %v413 = vunpack.c.l.b16 %v216
      %v414 = vunpack.c.h.b16 %v216
      %v415 = vunpack.c.l.b16 %v217
      %v416 = vunpack.c.h.b16 %v217
      %v417 = vunpack.c.l.b16 %v218
      %v418 = vunpack.c.h.b16 %v218
      %v419 = vunpack.c.l.b16 %v219
      %v420 = vunpack.c.h.b16 %v219
      %v421 = vunpack.c.l.b16 %v220
      %v422 = vunpack.c.h.b16 %v220
      %v423 = vunpack.c.l.b16 %v221
      %v424 = vunpack.c.h.b16 %v221
      %v425 = vunpack.c.l.b16 %v222
      %v426 = vunpack.c.h.b16 %v222
      %v427 = vunpack.c.l.b16 %v223
      %v428 = vunpack.c.h.b16 %v223
      %v429 = vunpack.c.l.b16 %v224
      %v430 = vunpack.c.h.b16 %v224
      %v431 = vunpack.c.l.b16 %v225
      %v432 = vunpack.c.h.b16 %v225
      %v433 = vunpack.c.l.b16 %v226
      %v434 = vunpack.c.h.b16 %v226
      %v435 = vunpack.c.l.b16 %v227
      %v436 = vunpack.c.h.b16 %v227
      %v437 = vunpack.c.l.b16 %v228
      %v438 = vunpack.c.h.b16 %v228
      %v439 = vunpack.c.l.b16 %v229
      %v440 = vunpack.c.h.b16 %v229
      %v441 = vunpack.c.l.b16 %v230
      %v442 = vunpack.c.h.b16 %v230
      %v443 = vunpack.c.l.b16 %v231
      %v444 = vunpack.c.h.b16 %v231
      %v445 = vunpack.c.l.b16 %v232
      %v446 = vunpack.c.h.b16 %v232
      %v447 = vunpack.c.l.b16 %v233
      %v448 = vunpack.c.h.b16 %v233
      %v449 = vunpack.c.l.b16 %v234
      %v450 = vunpack.c.h.b16 %v234
      %v451 = vunpack.c.l.b16 %v235
      %v452 = vunpack.c.h.b16 %v235
      %v453 = vunpack.c.l.b16 %v236
      %v454 = vunpack.c.h.b16 %v236
      %v455 = vunpack.c.l.b16 %v237
      %v456 = vunpack.c.h.b16 %v237
      %v457 = vunpack.c.l.b16 %v238
      %v458 = vunpack.c.h.b16 %v238
      %v459 = vunpack.c.l.b16 %v239
      %v460 = vunpack.c.h.b16 %v239
      %v461 = vunpack.c.l.b16 %v240
      %v462 = vunpack.c.h.b16 %v240
      %v463 = vunpack.c.l.b16 %v241
      %v464 = vunpack.c.h.b16 %v241
      %v465 = vpack.c.b16 %v339, %v337
      %v466 = vpack.c.b16 %v340, %v338
      %v467 = vpack.c.b16 %v343, %v341
      %v468 = vpack.c.b16 %v344, %v342
      %v469 = vpack.c.b16 %v347, %v345
      %v470 = vpack.c.b16 %v348, %v346
      %v471 = vpack.c.b16 %v351, %v349
      %v472 = vpack.c.b16 %v352, %v350
      %v473 = vpack.c.b16 %v355, %v353
      %v474 = vpack.c.b16 %v356, %v354
      %v475 = vpack.c.b16 %v359, %v357
      %v476 = vpack.c.b16 %v360, %v358
      %v477 = vpack.c.b16 %v363, %v361
      %v478 = vpack.c.b16 %v364, %v362
      %v479 = vpack.c.b16 %v367, %v365
      %v480 = vpack.c.b16 %v368, %v366
      %v481 = vpack.c.b16 %v371, %v369
      %v482 = vpack.c.b16 %v372, %v370
      %v483 = vpack.c.b16 %v375, %v373
      %v484 = vpack.c.b16 %v376, %v374
      %v485 = vpack.c.b16 %v379, %v377
      %v486 = vpack.c.b16 %v380, %v378
      %v487 = vpack.c.b16 %v383, %v381
      %v488 = vpack.c.b16 %v384, %v382
      %v489 = vpack.c.b16 %v387, %v385
      %v490 = vpack.c.b16 %v388, %v386
      %v491 = vpack.c.b16 %v391, %v389
      %v492 = vpack.c.b16 %v392, %v390
      %v493 = vpack.c.b16 %v395, %v393
      %v494 = vpack.c.b16 %v396, %v394
      %v495 = vpack.c.b16 %v399, %v397
      %v496 = vpack.c.b16 %v400, %v398
      %v497 = vpack.c.b16 %v403, %v401
      %v498 = vpack.c.b16 %v404, %v402
      %v499 = vpack.c.b16 %v407, %v405
      %v500 = vpack.c.b16 %v408, %v406
      %v501 = vpack.c.b16 %v411, %v409
      %v502 = vpack.c.b16 %v412, %v410
      %v503 = vpack.c.b16 %v415, %v413
      %v504 = vpack.c.b16 %v416, %v414
      %v505 = vpack.c.b16 %v419, %v417
      %v506 = vpack.c.b16 %v420, %v418
      %v507 = vpack.c.b16 %v423, %v421
      %v508 = vpack.c.b16 %v424, %v422
      %v509 = vpack.c.b16 %v427, %v425
      %v510 = vpack.c.b16 %v428, %v426
      %v511 = vpack.c.b16 %v431, %v429
      %v512 = vpack.c.b16 %v432, %v430
      %v513 = vpack.c.b16 %v435, %v433
      %v514 = vpack.c.b16 %v436, %v434
      %v515 = vpack.c.b16 %v439, %v437
      %v516 = vpack.c.b16 %v440, %v438
      %v517 = vpack.c.b16 %v443, %v441
      %v518 = vpack.c.b16 %v444, %v442
      %v519 = vpack.c.b16 %v447, %v445
      %v520 = vpack.c.b16 %v448, %v446
      %v521 = vpack.c.b16 %v451, %v449
      %v522 = vpack.c.b16 %v452, %v450
      %v523 = vpack.c.b16 %v455, %v453
      %v524 = vpack.c.b16 %v456, %v454
      %v525 = vpack.c.b16 %v459, %v457
      %v526 = vpack.c.b16 %v460, %v458
      %v527 = vpack.c.b16 %v463, %v461
      %v528 = vpack.c.b16 %v464, %v462
      %v585 = vunpack.c.l.b16 %v242
      %v586 = vunpack.c.l.b16 %v243
      %v587 = vunpack.c.l.b16 %v244
      %v588 = vunpack.c.l.b16 %v245
      %v589 = vunpack.c.l.b16 %v246
      %v590 = vunpack.c.l.b16 %v247
      %v591 = vunpack.c.l.b16 %v248
      %v592 = vunpack.c.l.b16 %v249
      %v593 = vunpack.c.l.b16 %v250
      %v594 = vunpack.c.l.b16 %v251
      %v595 = vunpack.c.l.b16 %v252
      %v596 = vunpack.c.l.b16 %v253
      %v597 = vunpack.c.l.b16 %v254
      %v598 = vunpack.c.l.b16 %v255
      %v599 = vunpack.c.l.b16 %v256
      %v600 = vunpack.c.l.b16 %v257
      %v601 = vunpack.c.l.b16 %v258
      %v602 = vunpack.c.l.b16 %v259
      %v603 = vunpack.c.l.b16 %v260
      %v604 = vunpack.c.l.b16 %v261
      %v605 = vunpack.c.l.b16 %v262
      %v606 = vunpack.c.l.b16 %v263
      %v607 = vunpack.c.l.b16 %v264
      %v608 = vunpack.c.l.b16 %v265
      %v609 = vpack.c.b16 %v586, %v585
      %v610 = vpack.c.b16 %v588, %v587
      %v611 = vpack.c.b16 %v590, %v589
      %v612 = vpack.c.b16 %v592, %v591
      %v613 = vpack.c.b16 %v594, %v593
      %v614 = vpack.c.b16 %v596, %v595
      %v615 = vpack.c.b16 %v598, %v597
      %v616 = vpack.c.b16 %v600, %v599
      %v617 = vpack.c.b16 %v602, %v601
      %v618 = vpack.c.b16 %v604, %v603
      %v619 = vpack.c.b16 %v606, %v605
      %v620 = vpack.c.b16 %v608, %v607
      %vm633 = vcmask 523264
      %v635 = vsel %vm633, %v466, 0
      %v638 = vsel %vm633, %v468, 0
      %v641 = vsel %vm633, %v470, 0
      %v644 = vsel %vm633, %v472, 0
      %v647 = vsel %vm633, %v474, 0
      %v650 = vsel %vm633, %v476, 0
      %v653 = vsel %vm633, %v478, 0
      %v656 = vsel %vm633, %v480, 0
      %v659 = vsel %vm633, %v482, 0
      %v662 = vsel %vm633, %v484, 0
      %v665 = vsel %vm633, %v486, 0
      %v668 = vsel %vm633, %v488, 0
      %v671 = vsel %vm633, %v490, 0
      %v674 = vsel %vm633, %v492, 0
      %v677 = vsel %vm633, %v494, 0
      %v680 = vsel %vm633, %v496, 0
      %v683 = vsel %vm633, %v498, 0
      %v686 = vsel %vm633, %v500, 0
      %v689 = vsel %vm633, %v502, 0
      %v692 = vsel %vm633, %v504, 0
      %v695 = vsel %vm633, %v506, 0
      %v698 = vsel %vm633, %v508, 0
      %v701 = vsel %vm633, %v510, 0
      %v704 = vsel %vm633, %v512, 0
      %v707 = vsel %vm633, %v514, 0
      %v710 = vsel %vm633, %v516, 0
      %v713 = vsel %vm633, %v518, 0
      %v716 = vsel %vm633, %v520, 0
      %v719 = vsel %vm633, %v522, 0
      %v722 = vsel %vm633, %v524, 0
      %v725 = vsel %vm633, %v526, 0
      %v728 = vsel %vm633, %v528, 0
      %730 = vmatprep.subr.bf16.mxu0 0
      %731 = vmatpush1.bf16.msra.mxu0 %v609
      %732 = vmatprep.subr.bf16.mxu0 0
      %733 = vmatpush1.bf16.msra.mxu0 %v610
      %734 = vmatprep.subr.bf16.mxu0 0
      %735 = vmatpush1.bf16.msra.mxu0 %v611
      %736 = vmatprep.subr.bf16.mxu0 0
      %737 = vmatpush1.bf16.msra.mxu0 %v612
      %738 = vmatprep.subr.bf16.mxu0 0
      %739 = vmatpush1.bf16.msra.mxu0 %v613
      %740 = vmatprep.subr.bf16.mxu0 0
      %741 = vmatpush1.bf16.msra.mxu0 %v614
      %742 = vmatprep.subr.bf16.mxu0 0
      %743 = vmatpush1.bf16.msra.mxu0 %v615
      %744 = vmatprep.subr.bf16.mxu0 0
      %745 = vmatpush1.bf16.msra.mxu0 %v616
      %746 = vmatprep.subr.bf16.mxu0 0
      %747 = vmatpush1.bf16.msra.mxu0 %v617
      %748 = vmatprep.subr.bf16.mxu0 0
      %749 = vmatpush1.bf16.msra.mxu0 %v618
      %750 = vmatprep.subr.bf16.mxu0 0
      %751 = vmatpush1.bf16.msra.mxu0 %v619
      %752 = vmatprep.subr.bf16.mxu0 0
      %753 = vmatpush1.bf16.msra.mxu0 %v620
      %754 = vmatprep.subr.bf16.mxu0 0
      %755 = vmatpush1.bf16.msra.mxu0 0
      %756 = vmatprep.subr.bf16.mxu0 0
      %757 = vmatpush1.bf16.msra.mxu0 0
      %758 = vmatprep.subr.bf16.mxu0 0
      %759 = vmatpush1.bf16.msra.mxu0 0
      %760 = vmatprep.subr.bf16.mxu0 0
      %761 = vmatpush1.bf16.msra.mxu0 0
      %762 = vmatprep.mubr.bf16.mxu0 %v635
      %763 = vmatmul.mubr.bf16.gmra.mrb[0].mxu0 %v465
      %v764 = vpop.f32.mrb[0].mxu0
      %v765 = vadd.f32 %v271, %v764
      %v766 = vpop.f32.mrb[0].mxu0
      %v767 = vpop.f32.mrb[0].mxu0
      %v768 = vadd.f32 %v271, %v767
      %v769 = vpop.f32.mrb[0].mxu0
      %770 = vmatprep.mubr.bf16.mxu0 %v638
      %771 = vmatmul.mubr.bf16.gmra.mrb[0].mxu0 %v467
      %v772 = vpop.f32.mrb[0].mxu0
      %v773 = vadd.f32 %v271, %v772
      %v774 = vpop.f32.mrb[0].mxu0
      %v775 = vpop.f32.mrb[0].mxu0
      %v776 = vadd.f32 %v271, %v775
      %v777 = vpop.f32.mrb[0].mxu0
      %778 = vmatprep.mubr.bf16.mxu0 %v641
      %779 = vmatmul.mubr.bf16.gmra.mrb[0].mxu0 %v469
      %v780 = vpop.f32.mrb[0].mxu0
      %v781 = vadd.f32 %v271, %v780
      %v782 = vpop.f32.mrb[0].mxu0
      %v783 = vpop.f32.mrb[0].mxu0
      %v784 = vadd.f32 %v271, %v783
      %v785 = vpop.f32.mrb[0].mxu0
      %786 = vmatprep.mubr.bf16.mxu0 %v644
      %787 = vmatmul.mubr.bf16.gmra.mrb[0].mxu0 %v471
      %v788 = vpop.f32.mrb[0].mxu0
      %v789 = vadd.f32 %v271, %v788
      %v790 = vpop.f32.mrb[0].mxu0
      %v791 = vpop.f32.mrb[0].mxu0
      %v792 = vadd.f32 %v271, %v791
      %v793 = vpop.f32.mrb[0].mxu0
      %794 = vmatprep.mubr.bf16.mxu0 %v647
      %795 = vmatmul.mubr.bf16.gmra.mrb[0].mxu0 %v473
      %v796 = vpop.f32.mrb[0].mxu0
      %v797 = vadd.f32 %v271, %v796
      %v798 = vpop.f32.mrb[0].mxu0
      %v799 = vpop.f32.mrb[0].mxu0
      %v800 = vadd.f32 %v271, %v799
      %v801 = vpop.f32.mrb[0].mxu0
      %802 = vmatprep.mubr.bf16.mxu0 %v650
      %803 = vmatmul.mubr.bf16.gmra.mrb[0].mxu0 %v475
      %v804 = vpop.f32.mrb[0].mxu0
      %v805 = vadd.f32 %v271, %v804
      %v806 = vpop.f32.mrb[0].mxu0
      %v807 = vpop.f32.mrb[0].mxu0
      %v808 = vadd.f32 %v271, %v807
      %v809 = vpop.f32.mrb[0].mxu0
      %810 = vmatprep.mubr.bf16.mxu0 %v653
      %811 = vmatmul.mubr.bf16.gmra.mrb[0].mxu0 %v477
      %v812 = vpop.f32.mrb[0].mxu0
      %v813 = vadd.f32 %v271, %v812
      %v814 = vpop.f32.mrb[0].mxu0
      %v815 = vpop.f32.mrb[0].mxu0
      %v816 = vadd.f32 %v271, %v815
      %v817 = vpop.f32.mrb[0].mxu0
      %818 = vmatprep.mubr.bf16.mxu0 %v656
      %819 = vmatmul.mubr.bf16.gmra.mrb[0].mxu0 %v479
      %v820 = vpop.f32.mrb[0].mxu0
      %v821 = vadd.f32 %v271, %v820
      %v822 = vpop.f32.mrb[0].mxu0
      %v823 = vpop.f32.mrb[0].mxu0
      %v824 = vadd.f32 %v271, %v823
      %v825 = vpop.f32.mrb[0].mxu0
      %826 = vmatprep.mubr.bf16.mxu0 %v659
      %827 = vmatmul.mubr.bf16.gmra.mrb[0].mxu0 %v481
      %v828 = vpop.f32.mrb[0].mxu0
      %v829 = vadd.f32 %v271, %v828
      %v830 = vpop.f32.mrb[0].mxu0
      %v831 = vpop.f32.mrb[0].mxu0
      %v832 = vadd.f32 %v271, %v831
      %v833 = vpop.f32.mrb[0].mxu0
      %834 = vmatprep.mubr.bf16.mxu0 %v662
      %835 = vmatmul.mubr.bf16.gmra.mrb[0].mxu0 %v483
      %v836 = vpop.f32.mrb[0].mxu0
      %v837 = vadd.f32 %v271, %v836
      %v838 = vpop.f32.mrb[0].mxu0
      %v839 = vpop.f32.mrb[0].mxu0
      %v840 = vadd.f32 %v271, %v839
      %v841 = vpop.f32.mrb[0].mxu0
      %842 = vmatprep.mubr.bf16.mxu0 %v665
      %843 = vmatmul.mubr.bf16.gmra.mrb[0].mxu0 %v485
      %v844 = vpop.f32.mrb[0].mxu0
      %v845 = vadd.f32 %v271, %v844
      %v846 = vpop.f32.mrb[0].mxu0
      %v847 = vpop.f32.mrb[0].mxu0
      %v848 = vadd.f32 %v271, %v847
      %v849 = vpop.f32.mrb[0].mxu0
      %850 = vmatprep.mubr.bf16.mxu0 %v668
      %851 = vmatmul.mubr.bf16.gmra.mrb[0].mxu0 %v487
      %v852 = vpop.f32.mrb[0].mxu0
      %v853 = vadd.f32 %v271, %v852
      %v854 = vpop.f32.mrb[0].mxu0
      %v855 = vpop.f32.mrb[0].mxu0
      %v856 = vadd.f32 %v271, %v855
      %v857 = vpop.f32.mrb[0].mxu0
      %858 = vmatprep.mubr.bf16.mxu0 %v671
      %859 = vmatmul.mubr.bf16.gmra.mrb[0].mxu0 %v489
      %v860 = vpop.f32.mrb[0].mxu0
      %v861 = vadd.f32 %v271, %v860
      %v862 = vpop.f32.mrb[0].mxu0
      %v863 = vpop.f32.mrb[0].mxu0
      %v864 = vadd.f32 %v271, %v863
      %v865 = vpop.f32.mrb[0].mxu0
      %866 = vmatprep.mubr.bf16.mxu0 %v674
      %867 = vmatmul.mubr.bf16.gmra.mrb[0].mxu0 %v491
      %v868 = vpop.f32.mrb[0].mxu0
      %v869 = vadd.f32 %v271, %v868
      %v870 = vpop.f32.mrb[0].mxu0
      %v871 = vpop.f32.mrb[0].mxu0
      %v872 = vadd.f32 %v271, %v871
      %v873 = vpop.f32.mrb[0].mxu0
      %874 = vmatprep.mubr.bf16.mxu0 %v677
      %875 = vmatmul.mubr.bf16.gmra.mrb[0].mxu0 %v493
      %v876 = vpop.f32.mrb[0].mxu0
      %v877 = vadd.f32 %v271, %v876
      %v878 = vpop.f32.mrb[0].mxu0
      %v879 = vpop.f32.mrb[0].mxu0
      %v880 = vadd.f32 %v271, %v879
      %v881 = vpop.f32.mrb[0].mxu0
      %882 = vmatprep.mubr.bf16.mxu0 %v680
      %883 = vmatmul.mubr.bf16.gmra.mrb[0].mxu0 %v495
      %v884 = vpop.f32.mrb[0].mxu0
      %v885 = vadd.f32 %v271, %v884
      %v886 = vpop.f32.mrb[0].mxu0
      %v887 = vpop.f32.mrb[0].mxu0
      %v888 = vadd.f32 %v271, %v887
      %v889 = vpop.f32.mrb[0].mxu0
      %890 = vmatprep.mubr.bf16.mxu0 %v683
      %891 = vmatmul.mubr.bf16.gmra.mrb[0].mxu0 %v497
      %v892 = vpop.f32.mrb[0].mxu0
      %v893 = vadd.f32 %v271, %v892
      %v894 = vpop.f32.mrb[0].mxu0
      %v895 = vpop.f32.mrb[0].mxu0
      %v896 = vadd.f32 %v271, %v895
      %v897 = vpop.f32.mrb[0].mxu0
      %898 = vmatprep.mubr.bf16.mxu0 %v686
      %899 = vmatmul.mubr.bf16.gmra.mrb[0].mxu0 %v499
      %v900 = vpop.f32.mrb[0].mxu0
      %v901 = vadd.f32 %v271, %v900
      %v902 = vpop.f32.mrb[0].mxu0
      %v903 = vpop.f32.mrb[0].mxu0
      %v904 = vadd.f32 %v271, %v903
      %v905 = vpop.f32.mrb[0].mxu0
      %906 = vmatprep.mubr.bf16.mxu0 %v689
      %907 = vmatmul.mubr.bf16.gmra.mrb[0].mxu0 %v501
      %v908 = vpop.f32.mrb[0].mxu0
      %v909 = vadd.f32 %v271, %v908
      %v910 = vpop.f32.mrb[0].mxu0
      %v911 = vpop.f32.mrb[0].mxu0
      %v912 = vadd.f32 %v271, %v911
      %v913 = vpop.f32.mrb[0].mxu0
      %914 = vmatprep.mubr.bf16.mxu0 %v692
      %915 = vmatmul.mubr.bf16.gmra.mrb[0].mxu0 %v503
      %v916 = vpop.f32.mrb[0].mxu0
      %v917 = vadd.f32 %v271, %v916
      %v918 = vpop.f32.mrb[0].mxu0
      %v919 = vpop.f32.mrb[0].mxu0
      %v920 = vadd.f32 %v271, %v919
      %v921 = vpop.f32.mrb[0].mxu0
      %922 = vmatprep.mubr.bf16.mxu0 %v695
      %923 = vmatmul.mubr.bf16.gmra.mrb[0].mxu0 %v505
      %v924 = vpop.f32.mrb[0].mxu0
      %v925 = vadd.f32 %v271, %v924
      %v926 = vpop.f32.mrb[0].mxu0
      %v927 = vpop.f32.mrb[0].mxu0
      %v928 = vadd.f32 %v271, %v927
      %v929 = vpop.f32.mrb[0].mxu0
      %930 = vmatprep.mubr.bf16.mxu0 %v698
      %931 = vmatmul.mubr.bf16.gmra.mrb[0].mxu0 %v507
      %v932 = vpop.f32.mrb[0].mxu0
      %v933 = vadd.f32 %v271, %v932
      %v934 = vpop.f32.mrb[0].mxu0
      %v935 = vpop.f32.mrb[0].mxu0
      %v936 = vadd.f32 %v271, %v935
      %v937 = vpop.f32.mrb[0].mxu0
      %938 = vmatprep.mubr.bf16.mxu0 %v701
      %939 = vmatmul.mubr.bf16.gmra.mrb[0].mxu0 %v509
      %v940 = vpop.f32.mrb[0].mxu0
      %v941 = vadd.f32 %v271, %v940
      %v942 = vpop.f32.mrb[0].mxu0
      %v943 = vpop.f32.mrb[0].mxu0
      %v944 = vadd.f32 %v271, %v943
      %v945 = vpop.f32.mrb[0].mxu0
      %946 = vmatprep.mubr.bf16.mxu0 %v704
      %947 = vmatmul.mubr.bf16.gmra.mrb[0].mxu0 %v511
      %v948 = vpop.f32.mrb[0].mxu0
      %v949 = vadd.f32 %v271, %v948
      %v950 = vpop.f32.mrb[0].mxu0
      %v951 = vpop.f32.mrb[0].mxu0
      %v952 = vadd.f32 %v271, %v951
      %v953 = vpop.f32.mrb[0].mxu0
      %954 = vmatprep.mubr.bf16.mxu0 %v707
      %955 = vmatmul.mubr.bf16.gmra.mrb[0].mxu0 %v513
      %v956 = vpop.f32.mrb[0].mxu0
      %v957 = vadd.f32 %v271, %v956
      %v958 = vpop.f32.mrb[0].mxu0
      %v959 = vpop.f32.mrb[0].mxu0
      %v960 = vadd.f32 %v271, %v959
      %v961 = vpop.f32.mrb[0].mxu0
      %962 = vmatprep.mubr.bf16.mxu0 %v710
      %963 = vmatmul.mubr.bf16.gmra.mrb[0].mxu0 %v515
      %v964 = vpop.f32.mrb[0].mxu0
      %v965 = vadd.f32 %v271, %v964
      %v966 = vpop.f32.mrb[0].mxu0
      %v967 = vpop.f32.mrb[0].mxu0
      %v968 = vadd.f32 %v271, %v967
      %v969 = vpop.f32.mrb[0].mxu0
      %970 = vmatprep.mubr.bf16.mxu0 %v713
      %971 = vmatmul.mubr.bf16.gmra.mrb[0].mxu0 %v517
      %v972 = vpop.f32.mrb[0].mxu0
      %v973 = vadd.f32 %v271, %v972
      %v974 = vpop.f32.mrb[0].mxu0
      %v975 = vpop.f32.mrb[0].mxu0
      %v976 = vadd.f32 %v271, %v975
      %v977 = vpop.f32.mrb[0].mxu0
      %978 = vmatprep.mubr.bf16.mxu0 %v716
      %979 = vmatmul.mubr.bf16.gmra.mrb[0].mxu0 %v519
      %v980 = vpop.f32.mrb[0].mxu0
      %v981 = vadd.f32 %v271, %v980
      %v982 = vpop.f32.mrb[0].mxu0
      %v983 = vpop.f32.mrb[0].mxu0
      %v984 = vadd.f32 %v271, %v983
      %v985 = vpop.f32.mrb[0].mxu0
      %986 = vmatprep.mubr.bf16.mxu0 %v719
      %987 = vmatmul.mubr.bf16.gmra.mrb[0].mxu0 %v521
      %v988 = vpop.f32.mrb[0].mxu0
      %v989 = vadd.f32 %v271, %v988
      %v990 = vpop.f32.mrb[0].mxu0
      %v991 = vpop.f32.mrb[0].mxu0
      %v992 = vadd.f32 %v271, %v991
      %v993 = vpop.f32.mrb[0].mxu0
      %994 = vmatprep.mubr.bf16.mxu0 %v722
      %995 = vmatmul.mubr.bf16.gmra.mrb[0].mxu0 %v523
      %v996 = vpop.f32.mrb[0].mxu0
      %v997 = vadd.f32 %v271, %v996
      %v998 = vpop.f32.mrb[0].mxu0
      %v999 = vpop.f32.mrb[0].mxu0
      %v1000 = vadd.f32 %v271, %v999
      %v1001 = vpop.f32.mrb[0].mxu0
      %1002 = vmatprep.mubr.bf16.mxu0 %v725
      %1003 = vmatmul.mubr.bf16.gmra.mrb[0].mxu0 %v525
      %v1004 = vpop.f32.mrb[0].mxu0
      %v1005 = vadd.f32 %v271, %v1004
      %v1006 = vpop.f32.mrb[0].mxu0
      %v1007 = vpop.f32.mrb[0].mxu0
      %v1008 = vadd.f32 %v271, %v1007
      %v1009 = vpop.f32.mrb[0].mxu0
      %1010 = vmatprep.mubr.bf16.mxu0 %v728
      %1011 = vmatmul.mubr.bf16.gmra.mrb[0].mxu0 %v527
      %v1012 = vpop.f32.mrb[0].mxu0
      %v1013 = vadd.f32 %v271, %v1012
      %v1014 = vpop.f32.mrb[0].mxu0
      %v1015 = vpop.f32.mrb[0].mxu0
      %v1016 = vadd.f32 %v271, %v1015
      %v1017 = vpop.f32.mrb[0].mxu0
      %1018 = vdwg.mxu0
      %v1019 = vmax.f32 %v765, 0.0
      %v1020 = vmax.f32 %v768, 0.0
      %v1021 = vmax.f32 %v773, 0.0
      %v1022 = vmax.f32 %v776, 0.0
      %v1023 = vmax.f32 %v781, 0.0
      %v1024 = vmax.f32 %v784, 0.0
      %v1025 = vmax.f32 %v789, 0.0
      %v1026 = vmax.f32 %v792, 0.0
      %v1027 = vmax.f32 %v797, 0.0
      %v1028 = vmax.f32 %v800, 0.0
      %v1029 = vmax.f32 %v805, 0.0
      %v1030 = vmax.f32 %v808, 0.0
      %v1031 = vmax.f32 %v813, 0.0
      %v1032 = vmax.f32 %v816, 0.0
      %v1033 = vmax.f32 %v821, 0.0
      %v1034 = vmax.f32 %v824, 0.0
      %v1035 = vmax.f32 %v829, 0.0
      %v1036 = vmax.f32 %v832, 0.0
      %v1037 = vmax.f32 %v837, 0.0
      %v1038 = vmax.f32 %v840, 0.0
      %v1039 = vmax.f32 %v845, 0.0
      %v1040 = vmax.f32 %v848, 0.0
      %v1041 = vmax.f32 %v853, 0.0
      %v1042 = vmax.f32 %v856, 0.0
      %v1043 = vmax.f32 %v861, 0.0
      %v1044 = vmax.f32 %v864, 0.0
      %v1045 = vmax.f32 %v869, 0.0
      %v1046 = vmax.f32 %v872, 0.0
      %v1047 = vmax.f32 %v877, 0.0
      %v1048 = vmax.f32 %v880, 0.0
      %v1049 = vmax.f32 %v885, 0.0
      %v1050 = vmax.f32 %v888, 0.0
      %v1051 = vmax.f32 %v893, 0.0
      %v1052 = vmax.f32 %v896, 0.0
      %v1053 = vmax.f32 %v901, 0.0
      %v1054 = vmax.f32 %v904, 0.0
      %v1055 = vmax.f32 %v909, 0.0
      %v1056 = vmax.f32 %v912, 0.0
      %v1057 = vmax.f32 %v917, 0.0
      %v1058 = vmax.f32 %v920, 0.0
      %v1059 = vmax.f32 %v925, 0.0
      %v1060 = vmax.f32 %v928, 0.0
      %v1061 = vmax.f32 %v933, 0.0
      %v1062 = vmax.f32 %v936, 0.0
      %v1063 = vmax.f32 %v941, 0.0
      %v1064 = vmax.f32 %v944, 0.0
      %v1065 = vmax.f32 %v949, 0.0
      %v1066 = vmax.f32 %v952, 0.0
      %v1067 = vmax.f32 %v957, 0.0
      %v1068 = vmax.f32 %v960, 0.0
      %v1069 = vmax.f32 %v965, 0.0
      %v1070 = vmax.f32 %v968, 0.0
      %v1071 = vmax.f32 %v973, 0.0
      %v1072 = vmax.f32 %v976, 0.0
      %v1073 = vmax.f32 %v981, 0.0
      %v1074 = vmax.f32 %v984, 0.0
      %v1075 = vmax.f32 %v989, 0.0
      %v1076 = vmax.f32 %v992, 0.0
      %v1077 = vmax.f32 %v997, 0.0
      %v1078 = vmax.f32 %v1000, 0.0
      %v1079 = vmax.f32 %v1005, 0.0
      %v1080 = vmax.f32 %v1008, 0.0
      %v1081 = vmax.f32 %v1013, 0.0
      %v1082 = vmax.f32 %v1016, 0.0
      %v1083 = vpack.c.bf16 %v1020, %v1019
      %v1084 = vpack.c.bf16 %v1022, %v1021
      %v1085 = vpack.c.bf16 %v1024, %v1023
      %v1086 = vpack.c.bf16 %v1026, %v1025
      %v1087 = vpack.c.bf16 %v1028, %v1027
      %v1088 = vpack.c.bf16 %v1030, %v1029
      %v1089 = vpack.c.bf16 %v1032, %v1031
      %v1090 = vpack.c.bf16 %v1034, %v1033
      %v1091 = vpack.c.bf16 %v1036, %v1035
      %v1092 = vpack.c.bf16 %v1038, %v1037
      %v1093 = vpack.c.bf16 %v1040, %v1039
      %v1094 = vpack.c.bf16 %v1042, %v1041
      %v1095 = vpack.c.bf16 %v1044, %v1043
      %v1096 = vpack.c.bf16 %v1046, %v1045
      %v1097 = vpack.c.bf16 %v1048, %v1047
      %v1098 = vpack.c.bf16 %v1050, %v1049
      %v1099 = vpack.c.bf16 %v1052, %v1051
      %v1100 = vpack.c.bf16 %v1054, %v1053
      %v1101 = vpack.c.bf16 %v1056, %v1055
      %v1102 = vpack.c.bf16 %v1058, %v1057
      %v1103 = vpack.c.bf16 %v1060, %v1059
      %v1104 = vpack.c.bf16 %v1062, %v1061
      %v1105 = vpack.c.bf16 %v1064, %v1063
      %v1106 = vpack.c.bf16 %v1066, %v1065
      %v1107 = vpack.c.bf16 %v1068, %v1067
      %v1108 = vpack.c.bf16 %v1070, %v1069
      %v1109 = vpack.c.bf16 %v1072, %v1071
      %v1110 = vpack.c.bf16 %v1074, %v1073
      %v1111 = vpack.c.bf16 %v1076, %v1075
      %v1112 = vpack.c.bf16 %v1078, %v1077
      %v1113 = vpack.c.bf16 %v1080, %v1079
      %v1114 = vpack.c.bf16 %v1082, %v1081
      %v1147 = vunpack.c.l.b16 %v1083
      %v1148 = vunpack.c.h.b16 %v1083
      %v1149 = vunpack.c.l.b16 %v1084
      %v1150 = vunpack.c.h.b16 %v1084
      %v1151 = vunpack.c.l.b16 %v1085
      %v1152 = vunpack.c.h.b16 %v1085
      %v1153 = vunpack.c.l.b16 %v1086
      %v1154 = vunpack.c.h.b16 %v1086
      %v1155 = vunpack.c.l.b16 %v1087
      %v1156 = vunpack.c.h.b16 %v1087
      %v1157 = vunpack.c.l.b16 %v1088
      %v1158 = vunpack.c.h.b16 %v1088
      %v1159 = vunpack.c.l.b16 %v1089
      %v1160 = vunpack.c.h.b16 %v1089
      %v1161 = vunpack.c.l.b16 %v1090
      %v1162 = vunpack.c.h.b16 %v1090
      %v1163 = vunpack.c.l.b16 %v1091
      %v1164 = vunpack.c.h.b16 %v1091
      %v1165 = vunpack.c.l.b16 %v1092
      %v1166 = vunpack.c.h.b16 %v1092
      %v1167 = vunpack.c.l.b16 %v1093
      %v1168 = vunpack.c.h.b16 %v1093
      %v1169 = vunpack.c.l.b16 %v1094
      %v1170 = vunpack.c.h.b16 %v1094
      %v1171 = vunpack.c.l.b16 %v1095
      %v1172 = vunpack.c.h.b16 %v1095
      %v1173 = vunpack.c.l.b16 %v1096
      %v1174 = vunpack.c.h.b16 %v1096
      %v1175 = vunpack.c.l.b16 %v1097
      %v1176 = vunpack.c.h.b16 %v1097
      %v1177 = vunpack.c.l.b16 %v1098
      %v1178 = vunpack.c.h.b16 %v1098
      %v1179 = vunpack.c.l.b16 %v1099
      %v1180 = vunpack.c.h.b16 %v1099
      %v1181 = vunpack.c.l.b16 %v1100
      %v1182 = vunpack.c.h.b16 %v1100
      %v1183 = vunpack.c.l.b16 %v1101
      %v1184 = vunpack.c.h.b16 %v1101
      %v1185 = vunpack.c.l.b16 %v1102
      %v1186 = vunpack.c.h.b16 %v1102
      %v1187 = vunpack.c.l.b16 %v1103
      %v1188 = vunpack.c.h.b16 %v1103
      %v1189 = vunpack.c.l.b16 %v1104
      %v1190 = vunpack.c.h.b16 %v1104
      %v1191 = vunpack.c.l.b16 %v1105
      %v1192 = vunpack.c.h.b16 %v1105
      %v1193 = vunpack.c.l.b16 %v1106
      %v1194 = vunpack.c.h.b16 %v1106
      %v1195 = vunpack.c.l.b16 %v1107
      %v1196 = vunpack.c.h.b16 %v1107
      %v1197 = vunpack.c.l.b16 %v1108
      %v1198 = vunpack.c.h.b16 %v1108
      %v1199 = vunpack.c.l.b16 %v1109
      %v1200 = vunpack.c.h.b16 %v1109
      %v1201 = vunpack.c.l.b16 %v1110
      %v1202 = vunpack.c.h.b16 %v1110
      %v1203 = vunpack.c.l.b16 %v1111
      %v1204 = vunpack.c.h.b16 %v1111
      %v1205 = vunpack.c.l.b16 %v1112
      %v1206 = vunpack.c.h.b16 %v1112
      %v1207 = vunpack.c.l.b16 %v1113
      %v1208 = vunpack.c.h.b16 %v1113
      %v1209 = vunpack.c.l.b16 %v1114
      %v1210 = vunpack.c.h.b16 %v1114
      %v1211 = vpack.c.b16 %v1147, %v1147
      %v1212 = vpack.c.b16 %v1148, %v1148
      %v1213 = vpack.c.b16 %v1149, %v1149
      %v1214 = vpack.c.b16 %v1150, %v1150
      %v1215 = vpack.c.b16 %v1151, %v1151
      %v1216 = vpack.c.b16 %v1152, %v1152
      %v1217 = vpack.c.b16 %v1153, %v1153
      %v1218 = vpack.c.b16 %v1154, %v1154
      %v1219 = vpack.c.b16 %v1155, %v1155
      %v1220 = vpack.c.b16 %v1156, %v1156
      %v1221 = vpack.c.b16 %v1157, %v1157
      %v1222 = vpack.c.b16 %v1158, %v1158
      %v1223 = vpack.c.b16 %v1159, %v1159
      %v1224 = vpack.c.b16 %v1160, %v1160
      %v1225 = vpack.c.b16 %v1161, %v1161
      %v1226 = vpack.c.b16 %v1162, %v1162
      %v1227 = vpack.c.b16 %v1163, %v1163
      %v1228 = vpack.c.b16 %v1164, %v1164
      %v1229 = vpack.c.b16 %v1165, %v1165
      %v1230 = vpack.c.b16 %v1166, %v1166
      %v1231 = vpack.c.b16 %v1167, %v1167
      %v1232 = vpack.c.b16 %v1168, %v1168
      %v1233 = vpack.c.b16 %v1169, %v1169
      %v1234 = vpack.c.b16 %v1170, %v1170
      %v1235 = vpack.c.b16 %v1171, %v1171
      %v1236 = vpack.c.b16 %v1172, %v1172
      %v1237 = vpack.c.b16 %v1173, %v1173
      %v1238 = vpack.c.b16 %v1174, %v1174
      %v1239 = vpack.c.b16 %v1175, %v1175
      %v1240 = vpack.c.b16 %v1176, %v1176
      %v1241 = vpack.c.b16 %v1177, %v1177
      %v1242 = vpack.c.b16 %v1178, %v1178
      %v1243 = vpack.c.b16 %v1179, %v1179
      %v1244 = vpack.c.b16 %v1180, %v1180
      %v1245 = vpack.c.b16 %v1181, %v1181
      %v1246 = vpack.c.b16 %v1182, %v1182
      %v1247 = vpack.c.b16 %v1183, %v1183
      %v1248 = vpack.c.b16 %v1184, %v1184
      %v1249 = vpack.c.b16 %v1185, %v1185
      %v1250 = vpack.c.b16 %v1186, %v1186
      %v1251 = vpack.c.b16 %v1187, %v1187
      %v1252 = vpack.c.b16 %v1188, %v1188
      %v1253 = vpack.c.b16 %v1189, %v1189
      %v1254 = vpack.c.b16 %v1190, %v1190
      %v1255 = vpack.c.b16 %v1191, %v1191
      %v1256 = vpack.c.b16 %v1192, %v1192
      %v1257 = vpack.c.b16 %v1193, %v1193
      %v1258 = vpack.c.b16 %v1194, %v1194
      %v1259 = vpack.c.b16 %v1195, %v1195
      %v1260 = vpack.c.b16 %v1196, %v1196
      %v1261 = vpack.c.b16 %v1197, %v1197
      %v1262 = vpack.c.b16 %v1198, %v1198
      %v1263 = vpack.c.b16 %v1199, %v1199
      %v1264 = vpack.c.b16 %v1200, %v1200
      %v1265 = vpack.c.b16 %v1201, %v1201
      %v1266 = vpack.c.b16 %v1202, %v1202
      %v1267 = vpack.c.b16 %v1203, %v1203
      %v1268 = vpack.c.b16 %v1204, %v1204
      %v1269 = vpack.c.b16 %v1205, %v1205
      %v1270 = vpack.c.b16 %v1206, %v1206
      %v1271 = vpack.c.b16 %v1207, %v1207
      %v1272 = vpack.c.b16 %v1208, %v1208
      %v1273 = vpack.c.b16 %v1209, %v1209
      %v1274 = vpack.c.b16 %v1210, %v1210
      %vm1339 = vcmask 257024
      %1340 = vst.msk [vmem:[%s175] sm:$0xf] %vm1339, %v1211
      %1341 = vst.msk [vmem:[%s175 + $0x4] sm:$0xf] %vm1339, %v1212
      %1342 = vst.msk [vmem:[%s175 + $0x8] sm:$0xf] %vm1339, %v1213
      %1343 = vst.msk [vmem:[%s175 + $0xc] sm:$0xf] %vm1339, %v1214
      %1344 = vst.msk [vmem:[%s175 + $0x10] sm:$0xf] %vm1339, %v1215
      %1345 = vst.msk [vmem:[%s175 + $0x14] sm:$0xf] %vm1339, %v1216
      %1346 = vst.msk [vmem:[%s175 + $0x18] sm:$0xf] %vm1339, %v1217
      %1347 = vst.msk [vmem:[%s175 + $0x1c] sm:$0xf] %vm1339, %v1218
      %1348 = vst.msk [vmem:[%s175 + $0x20] sm:$0xf] %vm1339, %v1219
      %1349 = vst.msk [vmem:[%s175 + $0x24] sm:$0xf] %vm1339, %v1220
      %1350 = vst.msk [vmem:[%s175 + $0x28] sm:$0xf] %vm1339, %v1221
      %1351 = vst.msk [vmem:[%s175 + $0x2c] sm:$0xf] %vm1339, %v1222
      %1352 = vst.msk [vmem:[%s175 + $0x30] sm:$0xf] %vm1339, %v1223
      %1353 = vst.msk [vmem:[%s175 + $0x34] sm:$0xf] %vm1339, %v1224
      %1354 = vst.msk [vmem:[%s175 + $0x38] sm:$0xf] %vm1339, %v1225
      %1355 = vst.msk [vmem:[%s175 + $0x3c] sm:$0xf] %vm1339, %v1226
      %1356 = vst.msk [vmem:[%s175 + $0x40] sm:$0xf] %vm1339, %v1227
      %1357 = vst.msk [vmem:[%s175 + $0x44] sm:$0xf] %vm1339, %v1228
      %1358 = vst.msk [vmem:[%s175 + $0x48] sm:$0xf] %vm1339, %v1229
      %1359 = vst.msk [vmem:[%s175 + $0x4c] sm:$0xf] %vm1339, %v1230
      %1360 = vst.msk [vmem:[%s175 + $0x50] sm:$0xf] %vm1339, %v1231
      %1361 = vst.msk [vmem:[%s175 + $0x54] sm:$0xf] %vm1339, %v1232
      %1362 = vst.msk [vmem:[%s175 + $0x58] sm:$0xf] %vm1339, %v1233
      %1363 = vst.msk [vmem:[%s175 + $0x5c] sm:$0xf] %vm1339, %v1234
      %1364 = vst.msk [vmem:[%s175 + $0x60] sm:$0xf] %vm1339, %v1235
      %1365 = vst.msk [vmem:[%s175 + $0x64] sm:$0xf] %vm1339, %v1236
      %1366 = vst.msk [vmem:[%s175 + $0x68] sm:$0xf] %vm1339, %v1237
      %1367 = vst.msk [vmem:[%s175 + $0x6c] sm:$0xf] %vm1339, %v1238
      %1368 = vst.msk [vmem:[%s175 + $0x70] sm:$0xf] %vm1339, %v1239
      %1369 = vst.msk [vmem:[%s175 + $0x74] sm:$0xf] %vm1339, %v1240
      %1370 = vst.msk [vmem:[%s175 + $0x78] sm:$0xf] %vm1339, %v1241
      %1371 = vst.msk [vmem:[%s175 + $0x7c] sm:$0xf] %vm1339, %v1242
      %1372 = vst.msk [vmem:[%s175 + $0x80] sm:$0xf] %vm1339, %v1243
      %1373 = vst.msk [vmem:[%s175 + $0x84] sm:$0xf] %vm1339, %v1244
      %1374 = vst.msk [vmem:[%s175 + $0x88] sm:$0xf] %vm1339, %v1245
      %1375 = vst.msk [vmem:[%s175 + $0x8c] sm:$0xf] %vm1339, %v1246
      %1376 = vst.msk [vmem:[%s175 + $0x90] sm:$0xf] %vm1339, %v1247
      %1377 = vst.msk [vmem:[%s175 + $0x94] sm:$0xf] %vm1339, %v1248
      %1378 = vst.msk [vmem:[%s175 + $0x98] sm:$0xf] %vm1339, %v1249
      %1379 = vst.msk [vmem:[%s175 + $0x9c] sm:$0xf] %vm1339, %v1250
      %1380 = vst.msk [vmem:[%s175 + $0xa0] sm:$0xf] %vm1339, %v1251
      %1381 = vst.msk [vmem:[%s175 + $0xa4] sm:$0xf] %vm1339, %v1252
      %1382 = vst.msk [vmem:[%s175 + $0xa8] sm:$0xf] %vm1339, %v1253
      %1383 = vst.msk [vmem:[%s175 + $0xac] sm:$0xf] %vm1339, %v1254
      %1384 = vst.msk [vmem:[%s175 + $0xb0] sm:$0xf] %vm1339, %v1255
      %1385 = vst.msk [vmem:[%s175 + $0xb4] sm:$0xf] %vm1339, %v1256
      %1386 = vst.msk [vmem:[%s175 + $0xb8] sm:$0xf] %vm1339, %v1257
      %1387 = vst.msk [vmem:[%s175 + $0xbc] sm:$0xf] %vm1339, %v1258
      %1388 = vst.msk [vmem:[%s175 + $0xc0] sm:$0xf] %vm1339, %v1259
      %1389 = vst.msk [vmem:[%s175 + $0xc4] sm:$0xf] %vm1339, %v1260
      %1390 = vst.msk [vmem:[%s175 + $0xc8] sm:$0xf] %vm1339, %v1261
      %1391 = vst.msk [vmem:[%s175 + $0xcc] sm:$0xf] %vm1339, %v1262
      %1392 = vst.msk [vmem:[%s175 + $0xd0] sm:$0xf] %vm1339, %v1263
      %1393 = vst.msk [vmem:[%s175 + $0xd4] sm:$0xf] %vm1339, %v1264
      %1394 = vst.msk [vmem:[%s175 + $0xd8] sm:$0xf] %vm1339, %v1265
      %1395 = vst.msk [vmem:[%s175 + $0xdc] sm:$0xf] %vm1339, %v1266
      %1396 = vst.msk [vmem:[%s175 + $0xe0] sm:$0xf] %vm1339, %v1267
      %1397 = vst.msk [vmem:[%s175 + $0xe4] sm:$0xf] %vm1339, %v1268
      %1398 = vst.msk [vmem:[%s175 + $0xe8] sm:$0xf] %vm1339, %v1269
      %1399 = vst.msk [vmem:[%s175 + $0xec] sm:$0xf] %vm1339, %v1270
      %1400 = vst.msk [vmem:[%s175 + $0xf0] sm:$0xf] %vm1339, %v1271
      %1401 = vst.msk [vmem:[%s175 + $0xf4] sm:$0xf] %vm1339, %v1272
      %1402 = vst.msk [vmem:[%s175 + $0xf8] sm:$0xf] %vm1339, %v1273
      %1403 = vst.msk [vmem:[%s175 + $0xfc] sm:$0xf] %vm1339, %v1274
      %s1404 = smul.u32 64, %s14
      %p1405 = scmp.lt.s32.totalorder %s1404, 127
      %s1406 = scalar_select %p1405, %s1404, 127
      %s1407 = smul.addr %s1406, 4
      %s1408 = scalar_lea.vmem %s3, %s1407
      // Predicated region
      $region33: #{nature_cnn_forward.5} parent=31 // pred_check
        %p1409 = pneg %p100
      $region34: #{nature_cnn_forward.5} parent=31 // pred_check_branch
        %1411 = sbr.rel (%p1409) target = $region36
      $region35: #{nature_cnn_forward.5} parent=31 // pred_region
        %s1412 = smul.u32 64, %s14
      $region36: #{nature_cnn_forward.5} parent=31 // pred_fallthru
        _
    $region32: #{nature_cnn_forward.5} parent=5 // pred_fallthru
      _
    %p1413 = scmp.le.s32.totalorder 2, %s9
    // Predicated region
    $region37: #{nature_cnn_forward.5} parent=5 // pred_check
      %p1414 = pneg %p1413
    $region38: #{nature_cnn_forward.5} parent=5 // pred_check_branch
      %1416 = sbr.rel (%p1414) target = $region40
    $region39: #{nature_cnn_forward.5} parent=5 // pred_region
      %s1417 = ssub.s32 %s9, 2
      // Predicated region
      $region41: #{nature_cnn_forward.5} parent=39 // pred_check
        %p1418 = pneg %p106
      $region42: #{nature_cnn_forward.5} parent=39 // pred_check_branch
        %1420 = sbr.rel (%p1418) target = $region44
      $region43: #{nature_cnn_forward.5} parent=39 // pred_region
        %s1421 = smul.u32 64, %s15
        %p1422 = scmp.lt.s32.totalorder %s1421, 127
        %s1423 = scalar_select %p1422, %s1421, 127
        %s1424 = smul.addr %s1423, 4
        %s1425 = scalar_lea.vmem %s3, %s1424
      $region44: #{nature_cnn_forward.5} parent=39 // pred_fallthru
        _
    $region40: #{nature_cnn_forward.5} parent=5 // pred_fallthru
      _
  $region6: #{nature_cnn_forward.5} parent=0 // loop_footer
    %s13 = sadd.s32 1, %s9
  $region7: #{nature_cnn_forward.5} parent=0 // loop_footer_branch
    %8 = sbr.rel target = $region3
  $region8: #{nature_cnn_forward.5} parent=0 // loop_exit
    _

// kernel: nature_cnn_forward.6
$region0: #{nature_cnn_forward.6}
  #allocation0 [shape = 'u32[]', space=smem, size = 0x4, offset = 0x4, fixed_abs, tag = 'smem constant byte address 0x4 - core index']
  #allocation1 [shape = 'u32[144,128]{1,0:T(1,128)}', space=vmem, size = 0x12000, scoped, tag = 'internal scratch']
  %s0 = inlined_call_operand.vmem [shape: bf16[144,512], index: 0, kind: input, shape index: {}]
  %s1 = inlined_call_operand.vmem [shape: bf16[512,64], index: 1, kind: input, shape index: {}]
  %s2 = inlined_call_operand.vmem [shape: f32[1,64], index: 2, kind: input, shape index: {}]
  %s3 = inlined_call_operand.vmem [shape: bf16[144,64], index: 3, kind: output, shape index: {}]
  %s4 = sld [smem:[#allocation0]]
  $region22: #{nature_cnn_forward.6} parent=0
    _
  %s6 = ssub.s32 1, %s4
  %s7 = scalar_select 0, %s6, %s4
  // Predicated region
  $region2: #{nature_cnn_forward.6} parent=0 // pred_check
    _
  $region3: #{nature_cnn_forward.6} parent=0 // pred_check_branch
    %9 = sbr.rel (0) target = $region5
  $region4: #{nature_cnn_forward.6} parent=0 // pred_region
    _
  $region5: #{nature_cnn_forward.6} parent=0 // pred_fallthru
    _
  // Predicated region
  $region6: #{nature_cnn_forward.6} parent=0 // pred_check
    _
  $region7: #{nature_cnn_forward.6} parent=0 // pred_check_branch
    %11 = sbr.rel (0) target = $region9
  $region8: #{nature_cnn_forward.6} parent=0 // pred_region
    _
  $region9: #{nature_cnn_forward.6} parent=0 // pred_fallthru
    _
  // Predicated region
  $region10: #{nature_cnn_forward.6} parent=0 // pred_check
    _
  $region11: #{nature_cnn_forward.6} parent=0 // pred_check_branch
    %13 = sbr.rel (0) target = $region13
  $region12: #{nature_cnn_forward.6} parent=0 // pred_region
    _
  $region13: #{nature_cnn_forward.6} parent=0 // pred_fallthru
    _
  %v15 = vld [vmem:[%s0] sm:$0xff]
  %v16 = vld [vmem:[%s0 + $0x8] sm:$0xff]
  %v17 = vld [vmem:[%s0 + $0x10] sm:$0xff]
  %v18 = vld [vmem:[%s0 + $0x18] sm:$0xff]
  %v19 = vld [vmem:[%s0 + $0x20] sm:$0xff]
  %v20 = vld [vmem:[%s0 + $0x28] sm:$0xff]
  %v21 = vld [vmem:[%s0 + $0x30] sm:$0xff]
  %v22 = vld [vmem:[%s0 + $0x38] sm:$0xff]
  %v23 = vld [vmem:[%s0 + $0x40] sm:$0xff]
  %v24 = vld [vmem:[%s0 + $0x48] sm:$0xff]
  %v25 = vld [vmem:[%s0 + $0x50] sm:$0xff]
  %v26 = vld [vmem:[%s0 + $0x58] sm:$0xff]
  %v27 = vld [vmem:[%s0 + $0x60] sm:$0xff]
  %v28 = vld [vmem:[%s0 + $0x68] sm:$0xff]
  %v29 = vld [vmem:[%s0 + $0x70] sm:$0xff]
  %v30 = vld [vmem:[%s0 + $0x78] sm:$0xff]
  %v31 = vld [vmem:[%s0 + $0x80] sm:$0xff]
  %v32 = vld [vmem:[%s0 + $0x88] sm:$0xff]
  %v33 = vld [vmem:[%s0 + $0x90] sm:$0xff]
  %v34 = vld [vmem:[%s0 + $0x98] sm:$0xff]
  %v35 = vld [vmem:[%s0 + $0xa0] sm:$0xff]
  %v36 = vld [vmem:[%s0 + $0xa8] sm:$0xff]
  %v37 = vld [vmem:[%s0 + $0xb0] sm:$0xff]
  %v38 = vld [vmem:[%s0 + $0xb8] sm:$0xff]
  %v39 = vld [vmem:[%s0 + $0xc0] sm:$0xff]
  %v40 = vld [vmem:[%s0 + $0xc8] sm:$0xff]
  %v41 = vld [vmem:[%s0 + $0xd0] sm:$0xff]
  %v42 = vld [vmem:[%s0 + $0xd8] sm:$0xff]
  %v43 = vld [vmem:[%s0 + $0xe0] sm:$0xff]
  %v44 = vld [vmem:[%s0 + $0xe8] sm:$0xff]
  %v45 = vld [vmem:[%s0 + $0xf0] sm:$0xff]
  %v46 = vld [vmem:[%s0 + $0xf8] sm:$0xff]
  %v47 = vld [vmem:[%s0 + $0x100] sm:$0xff]
  %v48 = vld [vmem:[%s0 + $0x108] sm:$0xff]
  %v49 = vld [vmem:[%s0 + $0x110] sm:$0xff]
  %v50 = vld [vmem:[%s0 + $0x118] sm:$0xff]
  %v51 = vld [vmem:[%s1] sm:$0xf]
  %v52 = vld [vmem:[%s1 + $0x4] sm:$0xf]
  %v53 = vld [vmem:[%s1 + $0x8] sm:$0xf]
  %v54 = vld [vmem:[%s1 + $0xc] sm:$0xf]
  %v55 = vld [vmem:[%s1 + $0x10] sm:$0xf]
  %v56 = vld [vmem:[%s1 + $0x14] sm:$0xf]
  %v57 = vld [vmem:[%s1 + $0x18] sm:$0xf]
  %v58 = vld [vmem:[%s1 + $0x1c] sm:$0xf]
  %v59 = vld [vmem:[%s1 + $0x20] sm:$0xf]
  %v60 = vld [vmem:[%s1 + $0x24] sm:$0xf]
  %v61 = vld [vmem:[%s1 + $0x28] sm:$0xf]
  %v62 = vld [vmem:[%s1 + $0x2c] sm:$0xf]
  %v63 = vld [vmem:[%s1 + $0x30] sm:$0xf]
  %v64 = vld [vmem:[%s1 + $0x34] sm:$0xf]
  %v65 = vld [vmem:[%s1 + $0x38] sm:$0xf]
  %v66 = vld [vmem:[%s1 + $0x3c] sm:$0xf]
  %v67 = vld [vmem:[%s1 + $0x40] sm:$0xf]
  %v68 = vld [vmem:[%s1 + $0x44] sm:$0xf]
  %v69 = vld [vmem:[%s1 + $0x48] sm:$0xf]
  %v70 = vld [vmem:[%s1 + $0x4c] sm:$0xf]
  %v71 = vld [vmem:[%s1 + $0x50] sm:$0xf]
  %v72 = vld [vmem:[%s1 + $0x54] sm:$0xf]
  %v73 = vld [vmem:[%s1 + $0x58] sm:$0xf]
  %v74 = vld [vmem:[%s1 + $0x5c] sm:$0xf]
  %v75 = vld [vmem:[%s1 + $0x60] sm:$0xf]
  %v76 = vld [vmem:[%s1 + $0x64] sm:$0xf]
  %v77 = vld [vmem:[%s1 + $0x68] sm:$0xf]
  %v78 = vld [vmem:[%s1 + $0x6c] sm:$0xf]
  %v79 = vld [vmem:[%s1 + $0x70] sm:$0xf]
  %v80 = vld [vmem:[%s1 + $0x74] sm:$0xf]
  %v81 = vld [vmem:[%s1 + $0x78] sm:$0xf]
  %v82 = vld [vmem:[%s1 + $0x7c] sm:$0xf]
  %v83 = vld [vmem:[%s1 + $0x80] sm:$0xf]
  %v84 = vld [vmem:[%s1 + $0x84] sm:$0xf]
  %v85 = vld [vmem:[%s1 + $0x88] sm:$0xf]
  %v86 = vld [vmem:[%s1 + $0x8c] sm:$0xf]
  %v87 = vld [vmem:[%s1 + $0x90] sm:$0xf]
  %v88 = vld [vmem:[%s1 + $0x94] sm:$0xf]
  %v89 = vld [vmem:[%s1 + $0x98] sm:$0xf]
  %v90 = vld [vmem:[%s1 + $0x9c] sm:$0xf]
  %v91 = vld [vmem:[%s1 + $0xa0] sm:$0xf]
  %v92 = vld [vmem:[%s1 + $0xa4] sm:$0xf]
  %v93 = vld [vmem:[%s1 + $0xa8] sm:$0xf]
  %v94 = vld [vmem:[%s1 + $0xac] sm:$0xf]
  %v95 = vld [vmem:[%s1 + $0xb0] sm:$0xf]
  %v96 = vld [vmem:[%s1 + $0xb4] sm:$0xf]
  %v97 = vld [vmem:[%s1 + $0xb8] sm:$0xf]
  %v98 = vld [vmem:[%s1 + $0xbc] sm:$0xf]
  %v99 = vld [vmem:[%s1 + $0xc0] sm:$0xf]
  %v100 = vld [vmem:[%s1 + $0xc4] sm:$0xf]
  %v101 = vld [vmem:[%s1 + $0xc8] sm:$0xf]
  %v102 = vld [vmem:[%s1 + $0xcc] sm:$0xf]
  %v103 = vld [vmem:[%s1 + $0xd0] sm:$0xf]
  %v104 = vld [vmem:[%s1 + $0xd4] sm:$0xf]
  %v105 = vld [vmem:[%s1 + $0xd8] sm:$0xf]
  %v106 = vld [vmem:[%s1 + $0xdc] sm:$0xf]
  %v107 = vld [vmem:[%s1 + $0xe0] sm:$0xf]
  %v108 = vld [vmem:[%s1 + $0xe4] sm:$0xf]
  %v109 = vld [vmem:[%s1 + $0xe8] sm:$0xf]
  %v110 = vld [vmem:[%s1 + $0xec] sm:$0xf]
  %v111 = vld [vmem:[%s1 + $0xf0] sm:$0xf]
  %v112 = vld [vmem:[%s1 + $0xf4] sm:$0xf]
  %v113 = vld [vmem:[%s1 + $0xf8] sm:$0xf]
  %v114 = vld [vmem:[%s1 + $0xfc] sm:$0xf]
  %v115 = vld [vmem:[%s2] sm:$0x1]
  %v117 = vlaneseq
  %v118 = vshrl.u32 %v117, 7
  %v119 = vsub.s32 0, %v118
  %v120 = vrot.slane %v115, %v119
  %v158 = vunpack.c.l.b16 %v15
  %v159 = vunpack.c.h.b16 %v15
  %v160 = vunpack.c.l.b16 %v16
  %v161 = vunpack.c.h.b16 %v16
  %v162 = vunpack.c.l.b16 %v17
  %v163 = vunpack.c.h.b16 %v17
  %v164 = vunpack.c.l.b16 %v18
  %v165 = vunpack.c.h.b16 %v18
  %v166 = vunpack.c.l.b16 %v19
  %v167 = vunpack.c.h.b16 %v19
  %v168 = vunpack.c.l.b16 %v20
  %v169 = vunpack.c.h.b16 %v20
  %v170 = vunpack.c.l.b16 %v21
  %v171 = vunpack.c.h.b16 %v21
  %v172 = vunpack.c.l.b16 %v22
  %v173 = vunpack.c.h.b16 %v22
  %v174 = vunpack.c.l.b16 %v23
  %v175 = vunpack.c.h.b16 %v23
  %v176 = vunpack.c.l.b16 %v24
  %v177 = vunpack.c.h.b16 %v24
  %v178 = vunpack.c.l.b16 %v25
  %v179 = vunpack.c.h.b16 %v25
  %v180 = vunpack.c.l.b16 %v26
  %v181 = vunpack.c.h.b16 %v26
  %v182 = vunpack.c.l.b16 %v27
  %v183 = vunpack.c.h.b16 %v27
  %v184 = vunpack.c.l.b16 %v28
  %v185 = vunpack.c.h.b16 %v28
  %v186 = vunpack.c.l.b16 %v29
  %v187 = vunpack.c.h.b16 %v29
  %v188 = vunpack.c.l.b16 %v30
  %v189 = vunpack.c.h.b16 %v30
  %v190 = vunpack.c.l.b16 %v31
  %v191 = vunpack.c.h.b16 %v31
  %v192 = vunpack.c.l.b16 %v32
  %v193 = vunpack.c.h.b16 %v32
  %v194 = vunpack.c.l.b16 %v33
  %v195 = vunpack.c.h.b16 %v33
  %v196 = vunpack.c.l.b16 %v34
  %v197 = vunpack.c.h.b16 %v34
  %v198 = vunpack.c.l.b16 %v35
  %v199 = vunpack.c.h.b16 %v35
  %v200 = vunpack.c.l.b16 %v36
  %v201 = vunpack.c.h.b16 %v36
  %v202 = vunpack.c.l.b16 %v37
  %v203 = vunpack.c.h.b16 %v37
  %v204 = vunpack.c.l.b16 %v38
  %v205 = vunpack.c.h.b16 %v38
  %v206 = vunpack.c.l.b16 %v39
  %v207 = vunpack.c.h.b16 %v39
  %v208 = vunpack.c.l.b16 %v40
  %v209 = vunpack.c.h.b16 %v40
  %v210 = vunpack.c.l.b16 %v41
  %v211 = vunpack.c.h.b16 %v41
  %v212 = vunpack.c.l.b16 %v42
  %v213 = vunpack.c.h.b16 %v42
  %v214 = vunpack.c.l.b16 %v43
  %v215 = vunpack.c.h.b16 %v43
  %v216 = vunpack.c.l.b16 %v44
  %v217 = vunpack.c.h.b16 %v44
  %v218 = vunpack.c.l.b16 %v45
  %v219 = vunpack.c.h.b16 %v45
  %v220 = vunpack.c.l.b16 %v46
  %v221 = vunpack.c.h.b16 %v46
  %v222 = vunpack.c.l.b16 %v47
  %v223 = vunpack.c.h.b16 %v47
  %v224 = vunpack.c.l.b16 %v48
  %v225 = vunpack.c.h.b16 %v48
  %v226 = vunpack.c.l.b16 %v49
  %v227 = vunpack.c.h.b16 %v49
  %v228 = vunpack.c.l.b16 %v50
  %v229 = vunpack.c.h.b16 %v50
  %v230 = vpack.c.b16 %v162, %v158
  %v231 = vpack.c.b16 %v163, %v159
  %v232 = vpack.c.b16 %v164, %v160
  %v233 = vpack.c.b16 %v165, %v161
  %v234 = vpack.c.b16 %v170, %v166
  %v235 = vpack.c.b16 %v171, %v167
  %v236 = vpack.c.b16 %v172, %v168
  %v237 = vpack.c.b16 %v173, %v169
  %v238 = vpack.c.b16 %v178, %v174
  %v239 = vpack.c.b16 %v179, %v175
  %v240 = vpack.c.b16 %v180, %v176
  %v241 = vpack.c.b16 %v181, %v177
  %v242 = vpack.c.b16 %v186, %v182
  %v243 = vpack.c.b16 %v187, %v183
  %v244 = vpack.c.b16 %v188, %v184
  %v245 = vpack.c.b16 %v189, %v185
  %v246 = vpack.c.b16 %v194, %v190
  %v247 = vpack.c.b16 %v195, %v191
  %v248 = vpack.c.b16 %v196, %v192
  %v249 = vpack.c.b16 %v197, %v193
  %v250 = vpack.c.b16 %v202, %v198
  %v251 = vpack.c.b16 %v203, %v199
  %v252 = vpack.c.b16 %v204, %v200
  %v253 = vpack.c.b16 %v205, %v201
  %v254 = vpack.c.b16 %v210, %v206
  %v255 = vpack.c.b16 %v211, %v207
  %v256 = vpack.c.b16 %v212, %v208
  %v257 = vpack.c.b16 %v213, %v209
  %v258 = vpack.c.b16 %v218, %v214
  %v259 = vpack.c.b16 %v219, %v215
  %v260 = vpack.c.b16 %v220, %v216
  %v261 = vpack.c.b16 %v221, %v217
  %v262 = vpack.c.b16 %v226, %v222
  %v263 = vpack.c.b16 %v227, %v223
  %v264 = vpack.c.b16 %v228, %v224
  %v265 = vpack.c.b16 %v229, %v225
  %v366 = vunpack.c.l.b16 %v51
  %v367 = vunpack.c.l.b16 %v52
  %v368 = vunpack.c.l.b16 %v53
  %v369 = vunpack.c.l.b16 %v54
  %v370 = vunpack.c.l.b16 %v55
  %v371 = vunpack.c.l.b16 %v56
  %v372 = vunpack.c.l.b16 %v57
  %v373 = vunpack.c.l.b16 %v58
  %v374 = vunpack.c.l.b16 %v59
  %v375 = vunpack.c.l.b16 %v60
  %v376 = vunpack.c.l.b16 %v61
  %v377 = vunpack.c.l.b16 %v62
  %v378 = vunpack.c.l.b16 %v63
  %v379 = vunpack.c.l.b16 %v64
  %v380 = vunpack.c.l.b16 %v65
  %v381 = vunpack.c.l.b16 %v66
  %v382 = vunpack.c.l.b16 %v67
  %v383 = vunpack.c.l.b16 %v68
  %v384 = vunpack.c.l.b16 %v69
  %v385 = vunpack.c.l.b16 %v70
  %v386 = vunpack.c.l.b16 %v71
  %v387 = vunpack.c.l.b16 %v72
  %v388 = vunpack.c.l.b16 %v73
  %v389 = vunpack.c.l.b16 %v74
  %v390 = vunpack.c.l.b16 %v75
  %v391 = vunpack.c.l.b16 %v76
  %v392 = vunpack.c.l.b16 %v77
  %v393 = vunpack.c.l.b16 %v78
  %v394 = vunpack.c.l.b16 %v79
  %v395 = vunpack.c.l.b16 %v80
  %v396 = vunpack.c.l.b16 %v81
  %v397 = vunpack.c.l.b16 %v82
  %v398 = vunpack.c.l.b16 %v83
  %v399 = vunpack.c.l.b16 %v84
  %v400 = vunpack.c.l.b16 %v85
  %v401 = vunpack.c.l.b16 %v86
  %v402 = vunpack.c.l.b16 %v87
  %v403 = vunpack.c.l.b16 %v88
  %v404 = vunpack.c.l.b16 %v89
  %v405 = vunpack.c.l.b16 %v90
  %v406 = vunpack.c.l.b16 %v91
  %v407 = vunpack.c.l.b16 %v92
  %v408 = vunpack.c.l.b16 %v93
  %v409 = vunpack.c.l.b16 %v94
  %v410 = vunpack.c.l.b16 %v95
  %v411 = vunpack.c.l.b16 %v96
  %v412 = vunpack.c.l.b16 %v97
  %v413 = vunpack.c.l.b16 %v98
  %v414 = vunpack.c.l.b16 %v99
  %v415 = vunpack.c.l.b16 %v100
  %v416 = vunpack.c.l.b16 %v101
  %v417 = vunpack.c.l.b16 %v102
  %v418 = vunpack.c.l.b16 %v103
  %v419 = vunpack.c.l.b16 %v104
  %v420 = vunpack.c.l.b16 %v105
  %v421 = vunpack.c.l.b16 %v106
  %v422 = vunpack.c.l.b16 %v107
  %v423 = vunpack.c.l.b16 %v108
  %v424 = vunpack.c.l.b16 %v109
  %v425 = vunpack.c.l.b16 %v110
  %v426 = vunpack.c.l.b16 %v111
  %v427 = vunpack.c.l.b16 %v112
  %v428 = vunpack.c.l.b16 %v113
  %v429 = vunpack.c.l.b16 %v114
  %v430 = vpack.c.b16 %v367, %v366
  %v431 = vpack.c.b16 %v369, %v368
  %v432 = vpack.c.b16 %v371, %v370
  %v433 = vpack.c.b16 %v373, %v372
  %v434 = vpack.c.b16 %v375, %v374
  %v435 = vpack.c.b16 %v377, %v376
  %v436 = vpack.c.b16 %v379, %v378
  %v437 = vpack.c.b16 %v381, %v380
  %v438 = vpack.c.b16 %v383, %v382
  %v439 = vpack.c.b16 %v385, %v384
  %v440 = vpack.c.b16 %v387, %v386
  %v441 = vpack.c.b16 %v389, %v388
  %v442 = vpack.c.b16 %v391, %v390
  %v443 = vpack.c.b16 %v393, %v392
  %v444 = vpack.c.b16 %v395, %v394
  %v445 = vpack.c.b16 %v397, %v396
  %v446 = vpack.c.b16 %v399, %v398
  %v447 = vpack.c.b16 %v401, %v400
  %v448 = vpack.c.b16 %v403, %v402
  %v449 = vpack.c.b16 %v405, %v404
  %v450 = vpack.c.b16 %v407, %v406
  %v451 = vpack.c.b16 %v409, %v408
  %v452 = vpack.c.b16 %v411, %v410
  %v453 = vpack.c.b16 %v413, %v412
  %v454 = vpack.c.b16 %v415, %v414
  %v455 = vpack.c.b16 %v417, %v416
  %v456 = vpack.c.b16 %v419, %v418
  %v457 = vpack.c.b16 %v421, %v420
  %v458 = vpack.c.b16 %v423, %v422
  %v459 = vpack.c.b16 %v425, %v424
  %v460 = vpack.c.b16 %v427, %v426
  %v461 = vpack.c.b16 %v429, %v428
  %494 = vmatprep.subr.bf16.mxu0 0
  %495 = vmatpush1.bf16.msra.mxu0 %v430
  %496 = vmatprep.subr.bf16.mxu0 0
  %497 = vmatpush1.bf16.msra.mxu0 %v431
  %498 = vmatprep.subr.bf16.mxu0 0
  %499 = vmatpush1.bf16.msra.mxu0 %v432
  %500 = vmatprep.subr.bf16.mxu0 0
  %501 = vmatpush1.bf16.msra.mxu0 %v433
  %502 = vmatprep.subr.bf16.mxu0 0
  %503 = vmatpush1.bf16.msra.mxu0 %v434
  %504 = vmatprep.subr.bf16.mxu0 0
  %505 = vmatpush1.bf16.msra.mxu0 %v435
  %506 = vmatprep.subr.bf16.mxu0 0
  %507 = vmatpush1.bf16.msra.mxu0 %v436
  %508 = vmatprep.subr.bf16.mxu0 0
  %509 = vmatpush1.bf16.msra.mxu0 %v437
  %510 = vmatprep.subr.bf16.mxu0 0
  %511 = vmatpush1.bf16.msra.mxu0 %v438
  %512 = vmatprep.subr.bf16.mxu0 0
  %513 = vmatpush1.bf16.msra.mxu0 %v439
  %514 = vmatprep.subr.bf16.mxu0 0
  %515 = vmatpush1.bf16.msra.mxu0 %v440
  %516 = vmatprep.subr.bf16.mxu0 0
  %517 = vmatpush1.bf16.msra.mxu0 %v441
  %518 = vmatprep.subr.bf16.mxu0 0
  %519 = vmatpush1.bf16.msra.mxu0 %v442
  %520 = vmatprep.subr.bf16.mxu0 0
  %521 = vmatpush1.bf16.msra.mxu0 %v443
  %522 = vmatprep.subr.bf16.mxu0 0
  %523 = vmatpush1.bf16.msra.mxu0 %v444
  %524 = vmatprep.subr.bf16.mxu0 0
  %525 = vmatpush1.bf16.msra.mxu0 %v445
  %526 = vmatprep.mubr.bf16.mxu0 %v231
  %527 = vmatmul.mubr.bf16.gmra.mrb[0].mxu0 %v230
  %v528 = vpop.f32.mrb[0].mxu0
  %v529 = vadd.f32 %v120, %v528
  %v530 = vpop.f32.mrb[0].mxu0
  %v531 = vpop.f32.mrb[0].mxu0
  %v532 = vadd.f32 %v120, %v531
  %v533 = vpop.f32.mrb[0].mxu0
  %534 = vmatprep.mubr.bf16.mxu0 %v235
  %535 = vmatmul.mubr.bf16.gmra.mrb[0].mxu0 %v234
  %v536 = vpop.f32.mrb[0].mxu0
  %v537 = vadd.f32 %v120, %v536
  %v538 = vpop.f32.mrb[0].mxu0
  %v539 = vpop.f32.mrb[0].mxu0
  %v540 = vadd.f32 %v120, %v539
  %v541 = vpop.f32.mrb[0].mxu0
  %542 = vmatprep.mubr.bf16.mxu0 %v239
  %543 = vmatmul.mubr.bf16.gmra.mrb[0].mxu0 %v238
  %v544 = vpop.f32.mrb[0].mxu0
  %v545 = vadd.f32 %v120, %v544
  %v546 = vpop.f32.mrb[0].mxu0
  %v547 = vpop.f32.mrb[0].mxu0
  %v548 = vadd.f32 %v120, %v547
  %v549 = vpop.f32.mrb[0].mxu0
  %550 = vmatprep.mubr.bf16.mxu0 %v243
  %551 = vmatmul.mubr.bf16.gmra.mrb[0].mxu0 %v242
  %v552 = vpop.f32.mrb[0].mxu0
  %v553 = vadd.f32 %v120, %v552
  %v554 = vpop.f32.mrb[0].mxu0
  %v555 = vpop.f32.mrb[0].mxu0
  %v556 = vadd.f32 %v120, %v555
  %v557 = vpop.f32.mrb[0].mxu0
  %558 = vmatprep.mubr.bf16.mxu0 %v247
  %559 = vmatmul.mubr.bf16.gmra.mrb[0].mxu0 %v246
  %v560 = vpop.f32.mrb[0].mxu0
  %v561 = vadd.f32 %v120, %v560
  %v562 = vpop.f32.mrb[0].mxu0
  %v563 = vpop.f32.mrb[0].mxu0
  %v564 = vadd.f32 %v120, %v563
  %v565 = vpop.f32.mrb[0].mxu0
  %566 = vmatprep.mubr.bf16.mxu0 %v251
  %567 = vmatmul.mubr.bf16.gmra.mrb[0].mxu0 %v250
  %v568 = vpop.f32.mrb[0].mxu0
  %v569 = vadd.f32 %v120, %v568
  %v570 = vpop.f32.mrb[0].mxu0
  %v571 = vpop.f32.mrb[0].mxu0
  %v572 = vadd.f32 %v120, %v571
  %v573 = vpop.f32.mrb[0].mxu0
  %574 = vmatprep.mubr.bf16.mxu0 %v255
  %575 = vmatmul.mubr.bf16.gmra.mrb[0].mxu0 %v254
  %v576 = vpop.f32.mrb[0].mxu0
  %v577 = vadd.f32 %v120, %v576
  %v578 = vpop.f32.mrb[0].mxu0
  %v579 = vpop.f32.mrb[0].mxu0
  %v580 = vadd.f32 %v120, %v579
  %v581 = vpop.f32.mrb[0].mxu0
  %582 = vmatprep.mubr.bf16.mxu0 %v259
  %583 = vmatmul.mubr.bf16.gmra.mrb[0].mxu0 %v258
  %v584 = vpop.f32.mrb[0].mxu0
  %v585 = vadd.f32 %v120, %v584
  %v586 = vpop.f32.mrb[0].mxu0
  %v587 = vpop.f32.mrb[0].mxu0
  %v588 = vadd.f32 %v120, %v587
  %v589 = vpop.f32.mrb[0].mxu0
  %590 = vmatprep.mubr.bf16.mxu0 %v263
  %591 = vmatmul.mubr.bf16.gmra.mrb[0].mxu0 %v262
  %v592 = vpop.f32.mrb[0].mxu0
  %v593 = vadd.f32 %v120, %v592
  %v594 = vpop.f32.mrb[0].mxu0
  %v595 = vpop.f32.mrb[0].mxu0
  %v596 = vadd.f32 %v120, %v595
  %v597 = vpop.f32.mrb[0].mxu0
  %598 = vdwg.mxu0
  %599 = vmatprep.subr.bf16.mxu0 0
  %600 = vmatpush1.bf16.msra.mxu0 %v446
  %601 = vmatprep.subr.bf16.mxu0 0
  %602 = vmatpush1.bf16.msra.mxu0 %v447
  %603 = vmatprep.subr.bf16.mxu0 0
  %604 = vmatpush1.bf16.msra.mxu0 %v448
  %605 = vmatprep.subr.bf16.mxu0 0
  %606 = vmatpush1.bf16.msra.mxu0 %v449
  %607 = vmatprep.subr.bf16.mxu0 0
  %608 = vmatpush1.bf16.msra.mxu0 %v450
  %609 = vmatprep.subr.bf16.mxu0 0
  %610 = vmatpush1.bf16.msra.mxu0 %v451
  %611 = vmatprep.subr.bf16.mxu0 0
  %612 = vmatpush1.bf16.msra.mxu0 %v452
  %613 = vmatprep.subr.bf16.mxu0 0
  %614 = vmatpush1.bf16.msra.mxu0 %v453
  %615 = vmatprep.subr.bf16.mxu0 0
  %616 = vmatpush1.bf16.msra.mxu0 %v454
  %617 = vmatprep.subr.bf16.mxu0 0
  %618 = vmatpush1.bf16.msra.mxu0 %v455
  %619 = vmatprep.subr.bf16.mxu0 0
  %620 = vmatpush1.bf16.msra.mxu0 %v456
  %621 = vmatprep.subr.bf16.mxu0 0
  %622 = vmatpush1.bf16.msra.mxu0 %v457
  %623 = vmatprep.subr.bf16.mxu0 0
  %624 = vmatpush1.bf16.msra.mxu0 %v458
  %625 = vmatprep.subr.bf16.mxu0 0
  %626 = vmatpush1.bf16.msra.mxu0 %v459
  %627 = vmatprep.subr.bf16.mxu0 0
  %628 = vmatpush1.bf16.msra.mxu0 %v460
  %629 = vmatprep.subr.bf16.mxu0 0
  %630 = vmatpush1.bf16.msra.mxu0 %v461
  %631 = vmatprep.mubr.bf16.mxu0 %v233
  %632 = vmatmul.mubr.bf16.gmra.mrb[0].mxu0 %v232
  %v633 = vpop.f32.mrb[0].mxu0
  %v634 = vadd.f32 %v529, %v633
  %v635 = vpop.f32.mrb[0].mxu0
  %v636 = vpop.f32.mrb[0].mxu0
  %v637 = vadd.f32 %v532, %v636
  %v638 = vpop.f32.mrb[0].mxu0
  %639 = vmatprep.mubr.bf16.mxu0 %v237
  %640 = vmatmul.mubr.bf16.gmra.mrb[0].mxu0 %v236
  %v641 = vpop.f32.mrb[0].mxu0
  %v642 = vadd.f32 %v537, %v641
  %v643 = vpop.f32.mrb[0].mxu0
  %v644 = vpop.f32.mrb[0].mxu0
  %v645 = vadd.f32 %v540, %v644
  %v646 = vpop.f32.mrb[0].mxu0
  %647 = vmatprep.mubr.bf16.mxu0 %v241
  %648 = vmatmul.mubr.bf16.gmra.mrb[0].mxu0 %v240
  %v649 = vpop.f32.mrb[0].mxu0
  %v650 = vadd.f32 %v545, %v649
  %v651 = vpop.f32.mrb[0].mxu0
  %v652 = vpop.f32.mrb[0].mxu0
  %v653 = vadd.f32 %v548, %v652
  %v654 = vpop.f32.mrb[0].mxu0
  %655 = vmatprep.mubr.bf16.mxu0 %v245
  %656 = vmatmul.mubr.bf16.gmra.mrb[0].mxu0 %v244
  %v657 = vpop.f32.mrb[0].mxu0
  %v658 = vadd.f32 %v553, %v657
  %v659 = vpop.f32.mrb[0].mxu0
  %v660 = vpop.f32.mrb[0].mxu0
  %v661 = vadd.f32 %v556, %v660
  %v662 = vpop.f32.mrb[0].mxu0
  %663 = vmatprep.mubr.bf16.mxu0 %v249
  %664 = vmatmul.mubr.bf16.gmra.mrb[0].mxu0 %v248
  %v665 = vpop.f32.mrb[0].mxu0
  %v666 = vadd.f32 %v561, %v665
  %v667 = vpop.f32.mrb[0].mxu0
  %v668 = vpop.f32.mrb[0].mxu0
  %v669 = vadd.f32 %v564, %v668
  %v670 = vpop.f32.mrb[0].mxu0
  %671 = vmatprep.mubr.bf16.mxu0 %v253
  %672 = vmatmul.mubr.bf16.gmra.mrb[0].mxu0 %v252
  %v673 = vpop.f32.mrb[0].mxu0
  %v674 = vadd.f32 %v569, %v673
  %v675 = vpop.f32.mrb[0].mxu0
  %v676 = vpop.f32.mrb[0].mxu0
  %v677 = vadd.f32 %v572, %v676
  %v678 = vpop.f32.mrb[0].mxu0
  %679 = vmatprep.mubr.bf16.mxu0 %v257
  %680 = vmatmul.mubr.bf16.gmra.mrb[0].mxu0 %v256
  %v681 = vpop.f32.mrb[0].mxu0
  %v682 = vadd.f32 %v577, %v681
  %v683 = vpop.f32.mrb[0].mxu0
  %v684 = vpop.f32.mrb[0].mxu0
  %v685 = vadd.f32 %v580, %v684
  %v686 = vpop.f32.mrb[0].mxu0
  %687 = vmatprep.mubr.bf16.mxu0 %v261
  %688 = vmatmul.mubr.bf16.gmra.mrb[0].mxu0 %v260
  %v689 = vpop.f32.mrb[0].mxu0
  %v690 = vadd.f32 %v585, %v689
  %v691 = vpop.f32.mrb[0].mxu0
  %v692 = vpop.f32.mrb[0].mxu0
  %v693 = vadd.f32 %v588, %v692
  %v694 = vpop.f32.mrb[0].mxu0
  %695 = vmatprep.mubr.bf16.mxu0 %v265
  %696 = vmatmul.mubr.bf16.gmra.mrb[0].mxu0 %v264
  %v697 = vpop.f32.mrb[0].mxu0
  %v698 = vadd.f32 %v593, %v697
  %v699 = vpop.f32.mrb[0].mxu0
  %v700 = vpop.f32.mrb[0].mxu0
  %v701 = vadd.f32 %v596, %v700
  %v702 = vpop.f32.mrb[0].mxu0
  %703 = vdwg.mxu0
  %v704 = vmax.f32 %v634, 0.0
  %v705 = vmax.f32 %v637, 0.0
  %v706 = vmax.f32 %v642, 0.0
  %v707 = vmax.f32 %v645, 0.0
  %v708 = vmax.f32 %v650, 0.0
  %v709 = vmax.f32 %v653, 0.0
  %v710 = vmax.f32 %v658, 0.0
  %v711 = vmax.f32 %v661, 0.0
  %v712 = vmax.f32 %v666, 0.0
  %v713 = vmax.f32 %v669, 0.0
  %v714 = vmax.f32 %v674, 0.0
  %v715 = vmax.f32 %v677, 0.0
  %v716 = vmax.f32 %v682, 0.0
  %v717 = vmax.f32 %v685, 0.0
  %v718 = vmax.f32 %v690, 0.0
  %v719 = vmax.f32 %v693, 0.0
  %v720 = vmax.f32 %v698, 0.0
  %v721 = vmax.f32 %v701, 0.0
  %v722 = vpack.c.bf16 %v705, %v704
  %v723 = vpack.c.bf16 %v707, %v706
  %v724 = vpack.c.bf16 %v709, %v708
  %v725 = vpack.c.bf16 %v711, %v710
  %v726 = vpack.c.bf16 %v713, %v712
  %v727 = vpack.c.bf16 %v715, %v714
  %v728 = vpack.c.bf16 %v717, %v716
  %v729 = vpack.c.bf16 %v719, %v718
  %v730 = vpack.c.bf16 %v721, %v720
  %v740 = vunpack.c.l.b16 %v722
  %v741 = vunpack.c.h.b16 %v722
  %v742 = vunpack.c.l.b16 %v723
  %v743 = vunpack.c.h.b16 %v723
  %v744 = vunpack.c.l.b16 %v724
  %v745 = vunpack.c.h.b16 %v724
  %v746 = vunpack.c.l.b16 %v725
  %v747 = vunpack.c.h.b16 %v725
  %v748 = vunpack.c.l.b16 %v726
  %v749 = vunpack.c.h.b16 %v726
  %v750 = vunpack.c.l.b16 %v727
  %v751 = vunpack.c.h.b16 %v727
  %v752 = vunpack.c.l.b16 %v728
  %v753 = vunpack.c.h.b16 %v728
  %v754 = vunpack.c.l.b16 %v729
  %v755 = vunpack.c.h.b16 %v729
  %v756 = vunpack.c.l.b16 %v730
  %v757 = vunpack.c.h.b16 %v730
  %v758 = vpack.c.b16 %v740, %v740
  %v759 = vpack.c.b16 %v741, %v741
  %v760 = vpack.c.b16 %v742, %v742
  %v761 = vpack.c.b16 %v743, %v743
  %v762 = vpack.c.b16 %v744, %v744
  %v763 = vpack.c.b16 %v745, %v745
  %v764 = vpack.c.b16 %v746, %v746
  %v765 = vpack.c.b16 %v747, %v747
  %v766 = vpack.c.b16 %v748, %v748
  %v767 = vpack.c.b16 %v749, %v749
  %v768 = vpack.c.b16 %v750, %v750
  %v769 = vpack.c.b16 %v751, %v751
  %v770 = vpack.c.b16 %v752, %v752
  %v771 = vpack.c.b16 %v753, %v753
  %v772 = vpack.c.b16 %v754, %v754
  %v773 = vpack.c.b16 %v755, %v755
  %v774 = vpack.c.b16 %v756, %v756
  %v775 = vpack.c.b16 %v757, %v757
  %vm794 = vcmask 519168
  %795 = vst.msk [vmem:[%s3] sm:$0xf] %vm794, %v758
  %796 = vst.msk [vmem:[%s3 + $0x4] sm:$0xf] %vm794, %v759
  %797 = vst.msk [vmem:[%s3 + $0x8] sm:$0xf] %vm794, %v760
  %798 = vst.msk [vmem:[%s3 + $0xc] sm:$0xf] %vm794, %v761
  %799 = vst.msk [vmem:[%s3 + $0x10] sm:$0xf] %vm794, %v762
  %800 = vst.msk [vmem:[%s3 + $0x14] sm:$0xf] %vm794, %v763
  %801 = vst.msk [vmem:[%s3 + $0x18] sm:$0xf] %vm794, %v764
  %802 = vst.msk [vmem:[%s3 + $0x1c] sm:$0xf] %vm794, %v765
  %803 = vst.msk [vmem:[%s3 + $0x20] sm:$0xf] %vm794, %v766
  %804 = vst.msk [vmem:[%s3 + $0x24] sm:$0xf] %vm794, %v767
  %805 = vst.msk [vmem:[%s3 + $0x28] sm:$0xf] %vm794, %v768
  %806 = vst.msk [vmem:[%s3 + $0x2c] sm:$0xf] %vm794, %v769
  %807 = vst.msk [vmem:[%s3 + $0x30] sm:$0xf] %vm794, %v770
  %808 = vst.msk [vmem:[%s3 + $0x34] sm:$0xf] %vm794, %v771
  %809 = vst.msk [vmem:[%s3 + $0x38] sm:$0xf] %vm794, %v772
  %810 = vst.msk [vmem:[%s3 + $0x3c] sm:$0xf] %vm794, %v773
  %811 = vst.msk [vmem:[%s3 + $0x40] sm:$0xf] %vm794, %v774
  %812 = vst.msk [vmem:[%s3 + $0x44] sm:$0xf] %vm794, %v775
  // Predicated region
  $region14: #{nature_cnn_forward.6} parent=0 // pred_check
    _
  $region15: #{nature_cnn_forward.6} parent=0 // pred_check_branch
    %814 = sbr.rel (0) target = $region17
  $region16: #{nature_cnn_forward.6} parent=0 // pred_region
    _
  $region17: #{nature_cnn_forward.6} parent=0 // pred_fallthru
    _
  // Predicated region
  $region18: #{nature_cnn_forward.6} parent=0 // pred_check
    _
  $region19: #{nature_cnn_forward.6} parent=0 // pred_check_branch
    %816 = sbr.rel (0) target = $region21
  $region20: #{nature_cnn_forward.6} parent=0 // pred_region
    _
  $region21: #{nature_cnn_forward.6} parent=0 // pred_fallthru
    _

// kernel: nature_cnn_forward.7
$region0: #{nature_cnn_forward.7}
  #allocation0 [shape = 'u32[]', space=smem, size = 0x4, offset = 0x4, fixed_abs, tag = 'smem constant byte address 0x4 - core index']
  #allocation1 [shape = 'u32[144,128]{1,0:T(1,128)}', space=vmem, size = 0x12000, scoped, tag = 'internal scratch']
  %s0 = inlined_call_operand.vmem [shape: bf16[16,576], index: 0, kind: input, shape index: {}]
  %s1 = inlined_call_operand.vmem [shape: bf16[576,64], index: 1, kind: input, shape index: {}]
  %s2 = inlined_call_operand.vmem [shape: f32[1,64], index: 2, kind: input, shape index: {}]
  %s3 = inlined_call_operand.vmem [shape: f32[16,64], index: 3, kind: output, shape index: {}]
  %s4 = sld [smem:[#allocation0]]
  $region22: #{nature_cnn_forward.7} parent=0
    _
  %s6 = ssub.s32 1, %s4
  %s7 = scalar_select 0, %s6, %s4
  // Predicated region
  $region2: #{nature_cnn_forward.7} parent=0 // pred_check
    _
  $region3: #{nature_cnn_forward.7} parent=0 // pred_check_branch
    %9 = sbr.rel (0) target = $region5
  $region4: #{nature_cnn_forward.7} parent=0 // pred_region
    _
  $region5: #{nature_cnn_forward.7} parent=0 // pred_fallthru
    _
  // Predicated region
  $region6: #{nature_cnn_forward.7} parent=0 // pred_check
    _
  $region7: #{nature_cnn_forward.7} parent=0 // pred_check_branch
    %11 = sbr.rel (0) target = $region9
  $region8: #{nature_cnn_forward.7} parent=0 // pred_region
    _
  $region9: #{nature_cnn_forward.7} parent=0 // pred_fallthru
    _
  // Predicated region
  $region10: #{nature_cnn_forward.7} parent=0 // pred_check
    _
  $region11: #{nature_cnn_forward.7} parent=0 // pred_check_branch
    %13 = sbr.rel (0) target = $region13
  $region12: #{nature_cnn_forward.7} parent=0 // pred_region
    _
  $region13: #{nature_cnn_forward.7} parent=0 // pred_fallthru
    _
  %v15 = vld [vmem:[%s0] sm:$0xff]
  %v16 = vld [vmem:[%s0 + $0x8] sm:$0xff]
  %v17 = vld [vmem:[%s0 + $0x10] sm:$0xf]
  %v18 = vld [vmem:[%s0 + $0x14] sm:$0xff]
  %v19 = vld [vmem:[%s0 + $0x1c] sm:$0xff]
  %v20 = vld [vmem:[%s0 + $0x24] sm:$0xf]
  %v21 = vld [vmem:[%s1] sm:$0xf]
  %v22 = vld [vmem:[%s1 + $0x4] sm:$0xf]
  %v23 = vld [vmem:[%s1 + $0x8] sm:$0xf]
  %v24 = vld [vmem:[%s1 + $0xc] sm:$0xf]
  %v25 = vld [vmem:[%s1 + $0x10] sm:$0xf]
  %v26 = vld [vmem:[%s1 + $0x14] sm:$0xf]
  %v27 = vld [vmem:[%s1 + $0x18] sm:$0xf]
  %v28 = vld [vmem:[%s1 + $0x1c] sm:$0xf]
  %v29 = vld [vmem:[%s1 + $0x20] sm:$0xf]
  %v30 = vld [vmem:[%s1 + $0x24] sm:$0xf]
  %v31 = vld [vmem:[%s1 + $0x28] sm:$0xf]
  %v32 = vld [vmem:[%s1 + $0x2c] sm:$0xf]
  %v33 = vld [vmem:[%s1 + $0x30] sm:$0xf]
  %v34 = vld [vmem:[%s1 + $0x34] sm:$0xf]
  %v35 = vld [vmem:[%s1 + $0x38] sm:$0xf]
  %v36 = vld [vmem:[%s1 + $0x3c] sm:$0xf]
  %v37 = vld [vmem:[%s1 + $0x40] sm:$0xf]
  %v38 = vld [vmem:[%s1 + $0x44] sm:$0xf]
  %v39 = vld [vmem:[%s1 + $0x48] sm:$0xf]
  %v40 = vld [vmem:[%s1 + $0x4c] sm:$0xf]
  %v41 = vld [vmem:[%s1 + $0x50] sm:$0xf]
  %v42 = vld [vmem:[%s1 + $0x54] sm:$0xf]
  %v43 = vld [vmem:[%s1 + $0x58] sm:$0xf]
  %v44 = vld [vmem:[%s1 + $0x5c] sm:$0xf]
  %v45 = vld [vmem:[%s1 + $0x60] sm:$0xf]
  %v46 = vld [vmem:[%s1 + $0x64] sm:$0xf]
  %v47 = vld [vmem:[%s1 + $0x68] sm:$0xf]
  %v48 = vld [vmem:[%s1 + $0x6c] sm:$0xf]
  %v49 = vld [vmem:[%s1 + $0x70] sm:$0xf]
  %v50 = vld [vmem:[%s1 + $0x74] sm:$0xf]
  %v51 = vld [vmem:[%s1 + $0x78] sm:$0xf]
  %v52 = vld [vmem:[%s1 + $0x7c] sm:$0xf]
  %v53 = vld [vmem:[%s1 + $0x80] sm:$0xf]
  %v54 = vld [vmem:[%s1 + $0x84] sm:$0xf]
  %v55 = vld [vmem:[%s1 + $0x88] sm:$0xf]
  %v56 = vld [vmem:[%s1 + $0x8c] sm:$0xf]
  %v57 = vld [vmem:[%s1 + $0x90] sm:$0xf]
  %v58 = vld [vmem:[%s1 + $0x94] sm:$0xf]
  %v59 = vld [vmem:[%s1 + $0x98] sm:$0xf]
  %v60 = vld [vmem:[%s1 + $0x9c] sm:$0xf]
  %v61 = vld [vmem:[%s1 + $0xa0] sm:$0xf]
  %v62 = vld [vmem:[%s1 + $0xa4] sm:$0xf]
  %v63 = vld [vmem:[%s1 + $0xa8] sm:$0xf]
  %v64 = vld [vmem:[%s1 + $0xac] sm:$0xf]
  %v65 = vld [vmem:[%s1 + $0xb0] sm:$0xf]
  %v66 = vld [vmem:[%s1 + $0xb4] sm:$0xf]
  %v67 = vld [vmem:[%s1 + $0xb8] sm:$0xf]
  %v68 = vld [vmem:[%s1 + $0xbc] sm:$0xf]
  %v69 = vld [vmem:[%s1 + $0xc0] sm:$0xf]
  %v70 = vld [vmem:[%s1 + $0xc4] sm:$0xf]
  %v71 = vld [vmem:[%s1 + $0xc8] sm:$0xf]
  %v72 = vld [vmem:[%s1 + $0xcc] sm:$0xf]
  %v73 = vld [vmem:[%s1 + $0xd0] sm:$0xf]
  %v74 = vld [vmem:[%s1 + $0xd4] sm:$0xf]
  %v75 = vld [vmem:[%s1 + $0xd8] sm:$0xf]
  %v76 = vld [vmem:[%s1 + $0xdc] sm:$0xf]
  %v77 = vld [vmem:[%s1 + $0xe0] sm:$0xf]
  %v78 = vld [vmem:[%s1 + $0xe4] sm:$0xf]
  %v79 = vld [vmem:[%s1 + $0xe8] sm:$0xf]
  %v80 = vld [vmem:[%s1 + $0xec] sm:$0xf]
  %v81 = vld [vmem:[%s1 + $0xf0] sm:$0xf]
  %v82 = vld [vmem:[%s1 + $0xf4] sm:$0xf]
  %v83 = vld [vmem:[%s1 + $0xf8] sm:$0xf]
  %v84 = vld [vmem:[%s1 + $0xfc] sm:$0xf]
  %v85 = vld [vmem:[%s1 + $0x100] sm:$0xf]
  %v86 = vld [vmem:[%s1 + $0x104] sm:$0xf]
  %v87 = vld [vmem:[%s1 + $0x108] sm:$0xf]
  %v88 = vld [vmem:[%s1 + $0x10c] sm:$0xf]
  %v89 = vld [vmem:[%s1 + $0x110] sm:$0xf]
  %v90 = vld [vmem:[%s1 + $0x114] sm:$0xf]
  %v91 = vld [vmem:[%s1 + $0x118] sm:$0xf]
  %v92 = vld [vmem:[%s1 + $0x11c] sm:$0xf]
  %v93 = vld [vmem:[%s2] sm:$0x1]
  %v95 = vlaneseq
  %v96 = vshrl.u32 %v95, 7
  %v97 = vsub.s32 0, %v96
  %v98 = vrot.slane %v93, %v97
  %v106 = vunpack.c.l.b16 %v15
  %v107 = vunpack.c.h.b16 %v15
  %v108 = vunpack.c.l.b16 %v16
  %v109 = vunpack.c.h.b16 %v16
  %v110 = vunpack.c.l.b16 %v17
  %v111 = vunpack.c.l.b16 %v18
  %v112 = vunpack.c.h.b16 %v18
  %v113 = vunpack.c.l.b16 %v19
  %v114 = vunpack.c.h.b16 %v19
  %v115 = vunpack.c.l.b16 %v20
  %v116 = vpack.c.b16 %v111, %v106
  %v117 = vpack.c.b16 %v112, %v107
  %v118 = vpack.c.b16 %v113, %v108
  %v119 = vpack.c.b16 %v114, %v109
  %v120 = vpack.c.b16 %v115, %v110
  %v197 = vunpack.c.l.b16 %v21
  %v198 = vunpack.c.l.b16 %v22
  %v199 = vunpack.c.l.b16 %v23
  %v200 = vunpack.c.l.b16 %v24
  %v201 = vunpack.c.l.b16 %v25
  %v202 = vunpack.c.l.b16 %v26
  %v203 = vunpack.c.l.b16 %v27
  %v204 = vunpack.c.l.b16 %v28
  %v205 = vunpack.c.l.b16 %v29
  %v206 = vunpack.c.l.b16 %v30
  %v207 = vunpack.c.l.b16 %v31
  %v208 = vunpack.c.l.b16 %v32
  %v209 = vunpack.c.l.b16 %v33
  %v210 = vunpack.c.l.b16 %v34
  %v211 = vunpack.c.l.b16 %v35
  %v212 = vunpack.c.l.b16 %v36
  %v213 = vunpack.c.l.b16 %v37
  %v214 = vunpack.c.l.b16 %v38
  %v215 = vunpack.c.l.b16 %v39
  %v216 = vunpack.c.l.b16 %v40
  %v217 = vunpack.c.l.b16 %v41
  %v218 = vunpack.c.l.b16 %v42
  %v219 = vunpack.c.l.b16 %v43
  %v220 = vunpack.c.l.b16 %v44
  %v221 = vunpack.c.l.b16 %v45
  %v222 = vunpack.c.l.b16 %v46
  %v223 = vunpack.c.l.b16 %v47
  %v224 = vunpack.c.l.b16 %v48
  %v225 = vunpack.c.l.b16 %v49
  %v226 = vunpack.c.l.b16 %v50
  %v227 = vunpack.c.l.b16 %v51
  %v228 = vunpack.c.l.b16 %v52
  %v229 = vunpack.c.l.b16 %v53
  %v230 = vunpack.c.l.b16 %v54
  %v231 = vunpack.c.l.b16 %v55
  %v232 = vunpack.c.l.b16 %v56
  %v233 = vunpack.c.l.b16 %v57
  %v234 = vunpack.c.l.b16 %v58
  %v235 = vunpack.c.l.b16 %v59
  %v236 = vunpack.c.l.b16 %v60
  %v237 = vunpack.c.l.b16 %v61
  %v238 = vunpack.c.l.b16 %v62
  %v239 = vunpack.c.l.b16 %v63
  %v240 = vunpack.c.l.b16 %v64
  %v241 = vunpack.c.l.b16 %v65
  %v242 = vunpack.c.l.b16 %v66
  %v243 = vunpack.c.l.b16 %v67
  %v244 = vunpack.c.l.b16 %v68
  %v245 = vunpack.c.l.b16 %v69
  %v246 = vunpack.c.l.b16 %v70
  %v247 = vunpack.c.l.b16 %v71
  %v248 = vunpack.c.l.b16 %v72
  %v249 = vunpack.c.l.b16 %v73
  %v250 = vunpack.c.l.b16 %v74
  %v251 = vunpack.c.l.b16 %v75
  %v252 = vunpack.c.l.b16 %v76
  %v253 = vunpack.c.l.b16 %v77
  %v254 = vunpack.c.l.b16 %v78
  %v255 = vunpack.c.l.b16 %v79
  %v256 = vunpack.c.l.b16 %v80
  %v257 = vunpack.c.l.b16 %v81
  %v258 = vunpack.c.l.b16 %v82
  %v259 = vunpack.c.l.b16 %v83
  %v260 = vunpack.c.l.b16 %v84
  %v261 = vunpack.c.l.b16 %v85
  %v262 = vunpack.c.l.b16 %v86
  %v263 = vunpack.c.l.b16 %v87
  %v264 = vunpack.c.l.b16 %v88
  %v265 = vunpack.c.l.b16 %v89
  %v266 = vunpack.c.l.b16 %v90
  %v267 = vunpack.c.l.b16 %v91
  %v268 = vunpack.c.l.b16 %v92
  %v269 = vpack.c.b16 %v198, %v197
  %v270 = vpack.c.b16 %v200, %v199
  %v271 = vpack.c.b16 %v202, %v201
  %v272 = vpack.c.b16 %v204, %v203
  %v273 = vpack.c.b16 %v206, %v205
  %v274 = vpack.c.b16 %v208, %v207
  %v275 = vpack.c.b16 %v210, %v209
  %v276 = vpack.c.b16 %v212, %v211
  %v277 = vpack.c.b16 %v214, %v213
  %v278 = vpack.c.b16 %v216, %v215
  %v279 = vpack.c.b16 %v218, %v217
  %v280 = vpack.c.b16 %v220, %v219
  %v281 = vpack.c.b16 %v222, %v221
  %v282 = vpack.c.b16 %v224, %v223
  %v283 = vpack.c.b16 %v226, %v225
  %v284 = vpack.c.b16 %v228, %v227
  %v285 = vpack.c.b16 %v230, %v229
  %v286 = vpack.c.b16 %v232, %v231
  %v287 = vpack.c.b16 %v234, %v233
  %v288 = vpack.c.b16 %v236, %v235
  %v289 = vpack.c.b16 %v238, %v237
  %v290 = vpack.c.b16 %v240, %v239
  %v291 = vpack.c.b16 %v242, %v241
  %v292 = vpack.c.b16 %v244, %v243
  %v293 = vpack.c.b16 %v246, %v245
  %v294 = vpack.c.b16 %v248, %v247
  %v295 = vpack.c.b16 %v250, %v249
  %v296 = vpack.c.b16 %v252, %v251
  %v297 = vpack.c.b16 %v254, %v253
  %v298 = vpack.c.b16 %v256, %v255
  %v299 = vpack.c.b16 %v258, %v257
  %v300 = vpack.c.b16 %v260, %v259
  %v301 = vpack.c.b16 %v262, %v261
  %v302 = vpack.c.b16 %v264, %v263
  %v303 = vpack.c.b16 %v266, %v265
  %v304 = vpack.c.b16 %v268, %v267
  %vm341 = vcmask 523264
  %v343 = vsel %vm341, %v120, 0
  %345 = vmatprep.subr.bf16.mxu0 0
  %346 = vmatpush1.bf16.msra.mxu0 %v269
  %347 = vmatprep.subr.bf16.mxu0 0
  %348 = vmatpush1.bf16.msra.mxu0 %v270
  %349 = vmatprep.subr.bf16.mxu0 0
  %350 = vmatpush1.bf16.msra.mxu0 %v271
  %351 = vmatprep.subr.bf16.mxu0 0
  %352 = vmatpush1.bf16.msra.mxu0 %v272
  %353 = vmatprep.subr.bf16.mxu0 0
  %354 = vmatpush1.bf16.msra.mxu0 %v273
  %355 = vmatprep.subr.bf16.mxu0 0
  %356 = vmatpush1.bf16.msra.mxu0 %v274
  %357 = vmatprep.subr.bf16.mxu0 0
  %358 = vmatpush1.bf16.msra.mxu0 %v275
  %359 = vmatprep.subr.bf16.mxu0 0
  %360 = vmatpush1.bf16.msra.mxu0 %v276
  %361 = vmatprep.subr.bf16.mxu0 0
  %362 = vmatpush1.bf16.msra.mxu0 %v277
  %363 = vmatprep.subr.bf16.mxu0 0
  %364 = vmatpush1.bf16.msra.mxu0 %v278
  %365 = vmatprep.subr.bf16.mxu0 0
  %366 = vmatpush1.bf16.msra.mxu0 %v279
  %367 = vmatprep.subr.bf16.mxu0 0
  %368 = vmatpush1.bf16.msra.mxu0 %v280
  %369 = vmatprep.subr.bf16.mxu0 0
  %370 = vmatpush1.bf16.msra.mxu0 %v281
  %371 = vmatprep.subr.bf16.mxu0 0
  %372 = vmatpush1.bf16.msra.mxu0 %v282
  %373 = vmatprep.subr.bf16.mxu0 0
  %374 = vmatpush1.bf16.msra.mxu0 %v283
  %375 = vmatprep.subr.bf16.mxu0 0
  %376 = vmatpush1.bf16.msra.mxu0 %v284
  %377 = vmatprep.mubr.bf16.mxu0 %v117
  %378 = vmatmul.mubr.bf16.gmra.mrb[0].mxu0 %v116
  %v379 = vpop.f32.mrb[0].mxu0
  %v380 = vadd.f32 %v98, %v379
  %v381 = vpop.f32.mrb[0].mxu0
  %v382 = vpop.f32.mrb[0].mxu0
  %v383 = vadd.f32 %v98, %v382
  %v384 = vpop.f32.mrb[0].mxu0
  %385 = vdwg.mxu0
  %386 = vmatprep.subr.bf16.mxu0 0
  %387 = vmatpush1.bf16.msra.mxu0 %v285
  %388 = vmatprep.subr.bf16.mxu0 0
  %389 = vmatpush1.bf16.msra.mxu0 %v286
  %390 = vmatprep.subr.bf16.mxu0 0
  %391 = vmatpush1.bf16.msra.mxu0 %v287
  %392 = vmatprep.subr.bf16.mxu0 0
  %393 = vmatpush1.bf16.msra.mxu0 %v288
  %394 = vmatprep.subr.bf16.mxu0 0
  %395 = vmatpush1.bf16.msra.mxu0 %v289
  %396 = vmatprep.subr.bf16.mxu0 0
  %397 = vmatpush1.bf16.msra.mxu0 %v290
  %398 = vmatprep.subr.bf16.mxu0 0
  %399 = vmatpush1.bf16.msra.mxu0 %v291
  %400 = vmatprep.subr.bf16.mxu0 0
  %401 = vmatpush1.bf16.msra.mxu0 %v292
  %402 = vmatprep.subr.bf16.mxu0 0
  %403 = vmatpush1.bf16.msra.mxu0 %v293
  %404 = vmatprep.subr.bf16.mxu0 0
  %405 = vmatpush1.bf16.msra.mxu0 %v294
  %406 = vmatprep.subr.bf16.mxu0 0
  %407 = vmatpush1.bf16.msra.mxu0 %v295
  %408 = vmatprep.subr.bf16.mxu0 0
  %409 = vmatpush1.bf16.msra.mxu0 %v296
  %410 = vmatprep.subr.bf16.mxu0 0
  %411 = vmatpush1.bf16.msra.mxu0 %v297
  %412 = vmatprep.subr.bf16.mxu0 0
  %413 = vmatpush1.bf16.msra.mxu0 %v298
  %414 = vmatprep.subr.bf16.mxu0 0
  %415 = vmatpush1.bf16.msra.mxu0 %v299
  %416 = vmatprep.subr.bf16.mxu0 0
  %417 = vmatpush1.bf16.msra.mxu0 %v300
  %418 = vmatprep.mubr.bf16.mxu0 %v119
  %419 = vmatmul.mubr.bf16.gmra.mrb[0].mxu0 %v118
  %v420 = vpop.f32.mrb[0].mxu0
  %v421 = vadd.f32 %v380, %v420
  %v422 = vpop.f32.mrb[0].mxu0
  %v423 = vpop.f32.mrb[0].mxu0
  %v424 = vadd.f32 %v383, %v423
  %v425 = vpop.f32.mrb[0].mxu0
  %426 = vdwg.mxu0
  %427 = vmatprep.subr.bf16.mxu0 0
  %428 = vmatpush1.bf16.msra.mxu0 %v301
  %429 = vmatprep.subr.bf16.mxu0 0
  %430 = vmatpush1.bf16.msra.mxu0 %v302
  %431 = vmatprep.subr.bf16.mxu0 0
  %432 = vmatpush1.bf16.msra.mxu0 %v303
  %433 = vmatprep.subr.bf16.mxu0 0
  %434 = vmatpush1.bf16.msra.mxu0 %v304
  %435 = vmatprep.subr.bf16.mxu0 0
  %436 = vmatpush1.bf16.msra.mxu0 0
  %437 = vmatprep.subr.bf16.mxu0 0
  %438 = vmatpush1.bf16.msra.mxu0 0
  %439 = vmatprep.subr.bf16.mxu0 0
  %440 = vmatpush1.bf16.msra.mxu0 0
  %441 = vmatprep.subr.bf16.mxu0 0
  %442 = vmatpush1.bf16.msra.mxu0 0
  %443 = vmatprep.subr.bf16.mxu0 0
  %444 = vmatpush1.bf16.msra.mxu0 0
  %445 = vmatprep.subr.bf16.mxu0 0
  %446 = vmatpush1.bf16.msra.mxu0 0
  %447 = vmatprep.subr.bf16.mxu0 0
  %448 = vmatpush1.bf16.msra.mxu0 0
  %449 = vmatprep.subr.bf16.mxu0 0
  %450 = vmatpush1.bf16.msra.mxu0 0
  %451 = vmatprep.subr.bf16.mxu0 0
  %452 = vmatpush1.bf16.msra.mxu0 0
  %453 = vmatprep.subr.bf16.mxu0 0
  %454 = vmatpush1.bf16.msra.mxu0 0
  %455 = vmatprep.subr.bf16.mxu0 0
  %456 = vmatpush1.bf16.msra.mxu0 0
  %457 = vmatprep.subr.bf16.mxu0 0
  %458 = vmatpush1.bf16.msra.mxu0 0
  %459 = vmatprep.mubr.bf16.mxu0 0
  %460 = vmatmul.mubr.bf16.gmra.mrb[0].mxu0 %v343
  %v461 = vpop.f32.mrb[0].mxu0
  %v462 = vadd.f32 %v421, %v461
  %v463 = vpop.f32.mrb[0].mxu0
  %v464 = vpop.f32.mrb[0].mxu0
  %v465 = vadd.f32 %v424, %v464
  %v466 = vpop.f32.mrb[0].mxu0
  %467 = vdwg.mxu0
  %v468 = vmax.f32 %v462, 0.0
  %v469 = vmax.f32 %v465, 0.0
  %470 = vst.msk [vmem:[%s3] sm:$0xff] %vm341, %v468
  %471 = vst.msk [vmem:[%s3 + $0x8] sm:$0xff] %vm341, %v469
  // Predicated region
  $region14: #{nature_cnn_forward.7} parent=0 // pred_check
    _
  $region15: #{nature_cnn_forward.7} parent=0 // pred_check_branch
    %473 = sbr.rel (0) target = $region17
  $region16: #{nature_cnn_forward.7} parent=0 // pred_region
    _
  $region17: #{nature_cnn_forward.7} parent=0 // pred_fallthru
    _
  // Predicated region
  $region18: #{nature_cnn_forward.7} parent=0 // pred_check
    _
  $region19: #{nature_cnn_forward.7} parent=0 // pred_check_branch
    %475 = sbr.rel (0) target = $region21
  $region20: #{nature_cnn_forward.7} parent=0 // pred_region
    _
  $region21: #{nature_cnn_forward.7} parent=0 // pred_fallthru
    _

// kernel: nature_cnn_forward.8
$region0: #{nature_cnn_forward.8}
  #allocation0 [shape = 'u32[]', space=smem, size = 0x4, offset = 0x4, fixed_abs, tag = 'smem constant byte address 0x4 - core index']
  #allocation1 [shape = 'u32[144,128]{1,0:T(1,128)}', space=vmem, size = 0x12000, scoped, tag = 'internal scratch']
  %s0 = inlined_call_operand.vmem [shape: bf16[16,32], index: 0, kind: input, shape index: {}]
  %s1 = inlined_call_operand.vmem [shape: bf16[32,1024], index: 1, kind: input, shape index: {}]
  %s2 = inlined_call_operand.vmem [shape: f32[1,1024], index: 2, kind: input, shape index: {}]
  %s3 = inlined_call_operand.vmem [shape: bf16[1024,512], index: 3, kind: input, shape index: {}]
  %s4 = inlined_call_operand.vmem [shape: f32[1,512], index: 4, kind: input, shape index: {}]
  %s5 = inlined_call_operand.vmem [shape: f32[16,512], index: 5, kind: output, shape index: {}]
  %s6 = sld [smem:[#allocation0]]
  $region30: #{nature_cnn_forward.8} parent=0
    _
  %s8 = ssub.s32 1, %s6
  %s9 = scalar_select 0, %s8, %s6
  // Predicated region
  $region2: #{nature_cnn_forward.8} parent=0 // pred_check
    _
  $region3: #{nature_cnn_forward.8} parent=0 // pred_check_branch
    %11 = sbr.rel (0) target = $region5
  $region4: #{nature_cnn_forward.8} parent=0 // pred_region
    _
  $region5: #{nature_cnn_forward.8} parent=0 // pred_fallthru
    _
  // Predicated region
  $region6: #{nature_cnn_forward.8} parent=0 // pred_check
    _
  $region7: #{nature_cnn_forward.8} parent=0 // pred_check_branch
    %13 = sbr.rel (0) target = $region9
  $region8: #{nature_cnn_forward.8} parent=0 // pred_region
    _
  $region9: #{nature_cnn_forward.8} parent=0 // pred_fallthru
    _
  // Predicated region
  $region10: #{nature_cnn_forward.8} parent=0 // pred_check
    _
  $region11: #{nature_cnn_forward.8} parent=0 // pred_check_branch
    %15 = sbr.rel (0) target = $region13
  $region12: #{nature_cnn_forward.8} parent=0 // pred_region
    _
  $region13: #{nature_cnn_forward.8} parent=0 // pred_fallthru
    _
  // Predicated region
  $region14: #{nature_cnn_forward.8} parent=0 // pred_check
    _
  $region15: #{nature_cnn_forward.8} parent=0 // pred_check_branch
    %17 = sbr.rel (0) target = $region17
  $region16: #{nature_cnn_forward.8} parent=0 // pred_region
    _
  $region17: #{nature_cnn_forward.8} parent=0 // pred_fallthru
    _
  // Predicated region
  $region18: #{nature_cnn_forward.8} parent=0 // pred_check
    _
  $region19: #{nature_cnn_forward.8} parent=0 // pred_check_branch
    %19 = sbr.rel (0) target = $region21
  $region20: #{nature_cnn_forward.8} parent=0 // pred_region
    _
  $region21: #{nature_cnn_forward.8} parent=0 // pred_fallthru
    _
  %v21 = vld [vmem:[%s0] sm:$0xf]
  %v22 = vld [vmem:[%s0 + $0x4] sm:$0xf]
  %v23 = vld [vmem:[%s1] sm:$0xff]
  %v24 = vld [vmem:[%s1 + $0x8] sm:$0xff]
  %v25 = vld [vmem:[%s1 + $0x10] sm:$0xff]
  %v26 = vld [vmem:[%s1 + $0x18] sm:$0xff]
  %v27 = vld [vmem:[%s1 + $0x20] sm:$0xff]
  %v28 = vld [vmem:[%s1 + $0x28] sm:$0xff]
  %v29 = vld [vmem:[%s1 + $0x30] sm:$0xff]
  %v30 = vld [vmem:[%s1 + $0x38] sm:$0xff]
  %v31 = vld [vmem:[%s1 + $0x40] sm:$0xff]
  %v32 = vld [vmem:[%s1 + $0x48] sm:$0xff]
  %v33 = vld [vmem:[%s1 + $0x50] sm:$0xff]
  %v34 = vld [vmem:[%s1 + $0x58] sm:$0xff]
  %v35 = vld [vmem:[%s1 + $0x60] sm:$0xff]
  %v36 = vld [vmem:[%s1 + $0x68] sm:$0xff]
  %v37 = vld [vmem:[%s1 + $0x70] sm:$0xff]
  %v38 = vld [vmem:[%s1 + $0x78] sm:$0xff]
  %v39 = vld [vmem:[%s2] sm:$0xff]
  %v41 = vlaneseq
  %v42 = vshrl.u32 %v41, 7
  %v43 = vsub.s32 0, %v42
  %v44 = vrot.slane %v39, %v43
  %v45 = vlaneseq
  %v46 = vshrl.u32 %v45, 7
  %v47 = vsub.s32 1, %v46
  %v48 = vrot.slane %v39, %v47
  %v49 = vlaneseq
  %v50 = vshrl.u32 %v49, 7
  %v51 = vsub.s32 2, %v50
  %v52 = vrot.slane %v39, %v51
  %v53 = vlaneseq
  %v54 = vshrl.u32 %v53, 7
  %v55 = vsub.s32 3, %v54
  %v56 = vrot.slane %v39, %v55
  %v57 = vlaneseq
  %v58 = vshrl.u32 %v57, 7
  %v59 = vsub.s32 4, %v58
  %v60 = vrot.slane %v39, %v59
  %v61 = vlaneseq
  %v62 = vshrl.u32 %v61, 7
  %v63 = vsub.s32 5, %v62
  %v64 = vrot.slane %v39, %v63
  %v65 = vlaneseq
  %v66 = vshrl.u32 %v65, 7
  %v67 = vsub.s32 6, %v66
  %v68 = vrot.slane %v39, %v67
  %v69 = vlaneseq
  %v70 = vshrl.u32 %v69, 7
  %v71 = vsub.s32 7, %v70
  %v72 = vrot.slane %v39, %v71
  %v83 = vunpack.c.l.b16 %v21
  %v84 = vunpack.c.l.b16 %v22
  %v85 = vpack.c.b16 %v84, %v83
  %v102 = vunpack.c.l.b16 %v23
  %v103 = vunpack.c.h.b16 %v23
  %v104 = vunpack.c.l.b16 %v24
  %v105 = vunpack.c.h.b16 %v24
  %v106 = vunpack.c.l.b16 %v25
  %v107 = vunpack.c.h.b16 %v25
  %v108 = vunpack.c.l.b16 %v26
  %v109 = vunpack.c.h.b16 %v26
  %v110 = vunpack.c.l.b16 %v27
  %v111 = vunpack.c.h.b16 %v27
  %v112 = vunpack.c.l.b16 %v28
  %v113 = vunpack.c.h.b16 %v28
  %v114 = vunpack.c.l.b16 %v29
  %v115 = vunpack.c.h.b16 %v29
  %v116 = vunpack.c.l.b16 %v30
  %v117 = vunpack.c.h.b16 %v30
  %v118 = vunpack.c.l.b16 %v31
  %v119 = vunpack.c.h.b16 %v31
  %v120 = vunpack.c.l.b16 %v32
  %v121 = vunpack.c.h.b16 %v32
  %v122 = vunpack.c.l.b16 %v33
  %v123 = vunpack.c.h.b16 %v33
  %v124 = vunpack.c.l.b16 %v34
  %v125 = vunpack.c.h.b16 %v34
  %v126 = vunpack.c.l.b16 %v35
  %v127 = vunpack.c.h.b16 %v35
  %v128 = vunpack.c.l.b16 %v36
  %v129 = vunpack.c.h.b16 %v36
  %v130 = vunpack.c.l.b16 %v37
  %v131 = vunpack.c.h.b16 %v37
  %v132 = vunpack.c.l.b16 %v38
  %v133 = vunpack.c.h.b16 %v38
  %v134 = vpack.c.b16 %v110, %v102
  %v135 = vpack.c.b16 %v111, %v103
  %v136 = vpack.c.b16 %v112, %v104
  %v137 = vpack.c.b16 %v113, %v105
  %v138 = vpack.c.b16 %v114, %v106
  %v139 = vpack.c.b16 %v115, %v107
  %v140 = vpack.c.b16 %v116, %v108
  %v141 = vpack.c.b16 %v117, %v109
  %v142 = vpack.c.b16 %v126, %v118
  %v143 = vpack.c.b16 %v127, %v119
  %v144 = vpack.c.b16 %v128, %v120
  %v145 = vpack.c.b16 %v129, %v121
  %v146 = vpack.c.b16 %v130, %v122
  %v147 = vpack.c.b16 %v131, %v123
  %v148 = vpack.c.b16 %v132, %v124
  %v149 = vpack.c.b16 %v133, %v125
  %vm166 = vcmask 261120
  %v168 = vsel %vm166, %v85, 0
  %170 = vmatprep.subr.bf16.mxu0 %v135
  %171 = vmatpush1.bf16.msra.mxu0 %v134
  %172 = vmatprep.subr.bf16.mxu0 %v143
  %173 = vmatpush1.bf16.msra.mxu0 %v142
  %174 = vmatprep.subr.bf16.mxu0 0
  %175 = vmatpush1.bf16.msra.mxu0 0
  %176 = vmatprep.subr.bf16.mxu0 0
  %177 = vmatpush1.bf16.msra.mxu0 0
  %178 = vmatprep.subr.bf16.mxu0 0
  %179 = vmatpush1.bf16.msra.mxu0 0
  %180 = vmatprep.subr.bf16.mxu0 0
  %181 = vmatpush1.bf16.msra.mxu0 0
  %182 = vmatprep.subr.bf16.mxu0 0
  %183 = vmatpush1.bf16.msra.mxu0 0
  %184 = vmatprep.subr.bf16.mxu0 0
  %185 = vmatpush1.bf16.msra.mxu0 0
  %186 = vmatprep.subr.bf16.mxu0 0
  %187 = vmatpush1.bf16.msra.mxu0 0
  %188 = vmatprep.subr.bf16.mxu0 0
  %189 = vmatpush1.bf16.msra.mxu0 0
  %190 = vmatprep.subr.bf16.mxu0 0
  %191 = vmatpush1.bf16.msra.mxu0 0
  %192 = vmatprep.subr.bf16.mxu0 0
  %193 = vmatpush1.bf16.msra.mxu0 0
  %194 = vmatprep.subr.bf16.mxu0 0
  %195 = vmatpush1.bf16.msra.mxu0 0
  %196 = vmatprep.subr.bf16.mxu0 0
  %197 = vmatpush1.bf16.msra.mxu0 0
  %198 = vmatprep.subr.bf16.mxu0 0
  %199 = vmatpush1.bf16.msra.mxu0 0
  %200 = vmatprep.subr.bf16.mxu0 0
  %201 = vmatpush1.bf16.msra.mxu0 0
  %202 = vmatprep.mubr.bf16.mxu0 0
  %203 = vmatmul.mubr.bf16.gmra.mrb[0].mxu0 %v168
  %v204 = vpop.f32.mrb[0].mxu0
  %v205 = vadd.f32 %v44, %v204
  %v206 = vpop.f32.mrb[0].mxu0
  %v207 = vadd.f32 %v48, %v206
  %v208 = vpop.f32.mrb[0].mxu0
  %v209 = vadd.f32 %v44, %v208
  %v210 = vpop.f32.mrb[0].mxu0
  %v211 = vadd.f32 %v48, %v210
  %212 = vdwg.mxu0
  %213 = vmatprep.subr.bf16.mxu0 %v137
  %214 = vmatpush1.bf16.msra.mxu0 %v136
  %215 = vmatprep.subr.bf16.mxu0 %v145
  %216 = vmatpush1.bf16.msra.mxu0 %v144
  %217 = vmatprep.subr.bf16.mxu0 0
  %218 = vmatpush1.bf16.msra.mxu0 0
  %219 = vmatprep.subr.bf16.mxu0 0
  %220 = vmatpush1.bf16.msra.mxu0 0
  %221 = vmatprep.subr.bf16.mxu0 0
  %222 = vmatpush1.bf16.msra.mxu0 0
  %223 = vmatprep.subr.bf16.mxu0 0
  %224 = vmatpush1.bf16.msra.mxu0 0
  %225 = vmatprep.subr.bf16.mxu0 0
  %226 = vmatpush1.bf16.msra.mxu0 0
  %227 = vmatprep.subr.bf16.mxu0 0
  %228 = vmatpush1.bf16.msra.mxu0 0
  %229 = vmatprep.subr.bf16.mxu0 0
  %230 = vmatpush1.bf16.msra.mxu0 0
  %231 = vmatprep.subr.bf16.mxu0 0
  %232 = vmatpush1.bf16.msra.mxu0 0
  %233 = vmatprep.subr.bf16.mxu0 0
  %234 = vmatpush1.bf16.msra.mxu0 0
  %235 = vmatprep.subr.bf16.mxu0 0
  %236 = vmatpush1.bf16.msra.mxu0 0
  %237 = vmatprep.subr.bf16.mxu0 0
  %238 = vmatpush1.bf16.msra.mxu0 0
  %239 = vmatprep.subr.bf16.mxu0 0
  %240 = vmatpush1.bf16.msra.mxu0 0
  %241 = vmatprep.subr.bf16.mxu0 0
  %242 = vmatpush1.bf16.msra.mxu0 0
  %243 = vmatprep.subr.bf16.mxu0 0
  %244 = vmatpush1.bf16.msra.mxu0 0
  %245 = vmatprep.mubr.bf16.mxu0 0
  %246 = vmatmul.mubr.bf16.gmra.mrb[0].mxu0 %v168
  %v247 = vpop.f32.mrb[0].mxu0
  %v248 = vadd.f32 %v52, %v247
  %v249 = vpop.f32.mrb[0].mxu0
  %v250 = vadd.f32 %v56, %v249
  %v251 = vpop.f32.mrb[0].mxu0
  %v252 = vadd.f32 %v52, %v251
  %v253 = vpop.f32.mrb[0].mxu0
  %v254 = vadd.f32 %v56, %v253
  %255 = vdwg.mxu0
  %256 = vmatprep.subr.bf16.mxu0 %v139
  %257 = vmatpush1.bf16.msra.mxu0 %v138
  %258 = vmatprep.subr.bf16.mxu0 %v147
  %259 = vmatpush1.bf16.msra.mxu0 %v146
  %260 = vmatprep.subr.bf16.mxu0 0
  %261 = vmatpush1.bf16.msra.mxu0 0
  %262 = vmatprep.subr.bf16.mxu0 0
  %263 = vmatpush1.bf16.msra.mxu0 0
  %264 = vmatprep.subr.bf16.mxu0 0
  %265 = vmatpush1.bf16.msra.mxu0 0
  %266 = vmatprep.subr.bf16.mxu0 0
  %267 = vmatpush1.bf16.msra.mxu0 0
  %268 = vmatprep.subr.bf16.mxu0 0
  %269 = vmatpush1.bf16.msra.mxu0 0
  %270 = vmatprep.subr.bf16.mxu0 0
  %271 = vmatpush1.bf16.msra.mxu0 0
  %272 = vmatprep.subr.bf16.mxu0 0
  %273 = vmatpush1.bf16.msra.mxu0 0
  %274 = vmatprep.subr.bf16.mxu0 0
  %275 = vmatpush1.bf16.msra.mxu0 0
  %276 = vmatprep.subr.bf16.mxu0 0
  %277 = vmatpush1.bf16.msra.mxu0 0
  %278 = vmatprep.subr.bf16.mxu0 0
  %279 = vmatpush1.bf16.msra.mxu0 0
  %280 = vmatprep.subr.bf16.mxu0 0
  %281 = vmatpush1.bf16.msra.mxu0 0
  %282 = vmatprep.subr.bf16.mxu0 0
  %283 = vmatpush1.bf16.msra.mxu0 0
  %284 = vmatprep.subr.bf16.mxu0 0
  %285 = vmatpush1.bf16.msra.mxu0 0
  %286 = vmatprep.subr.bf16.mxu0 0
  %287 = vmatpush1.bf16.msra.mxu0 0
  %288 = vmatprep.mubr.bf16.mxu0 0
  %289 = vmatmul.mubr.bf16.gmra.mrb[0].mxu0 %v168
  %v290 = vpop.f32.mrb[0].mxu0
  %v291 = vadd.f32 %v60, %v290
  %v292 = vpop.f32.mrb[0].mxu0
  %v293 = vadd.f32 %v64, %v292
  %v294 = vpop.f32.mrb[0].mxu0
  %v295 = vadd.f32 %v60, %v294
  %v296 = vpop.f32.mrb[0].mxu0
  %v297 = vadd.f32 %v64, %v296
  %298 = vdwg.mxu0
  %299 = vmatprep.subr.bf16.mxu0 %v141
  %300 = vmatpush1.bf16.msra.mxu0 %v140
  %301 = vmatprep.subr.bf16.mxu0 %v149
  %302 = vmatpush1.bf16.msra.mxu0 %v148
  %303 = vmatprep.subr.bf16.mxu0 0
  %304 = vmatpush1.bf16.msra.mxu0 0
  %305 = vmatprep.subr.bf16.mxu0 0
  %306 = vmatpush1.bf16.msra.mxu0 0
  %307 = vmatprep.subr.bf16.mxu0 0
  %308 = vmatpush1.bf16.msra.mxu0 0
  %309 = vmatprep.subr.bf16.mxu0 0
  %310 = vmatpush1.bf16.msra.mxu0 0
  %311 = vmatprep.subr.bf16.mxu0 0
  %312 = vmatpush1.bf16.msra.mxu0 0
  %313 = vmatprep.subr.bf16.mxu0 0
  %314 = vmatpush1.bf16.msra.mxu0 0
  %315 = vmatprep.subr.bf16.mxu0 0
  %316 = vmatpush1.bf16.msra.mxu0 0
  %317 = vmatprep.subr.bf16.mxu0 0
  %318 = vmatpush1.bf16.msra.mxu0 0
  %319 = vmatprep.subr.bf16.mxu0 0
  %320 = vmatpush1.bf16.msra.mxu0 0
  %321 = vmatprep.subr.bf16.mxu0 0
  %322 = vmatpush1.bf16.msra.mxu0 0
  %323 = vmatprep.subr.bf16.mxu0 0
  %324 = vmatpush1.bf16.msra.mxu0 0
  %325 = vmatprep.subr.bf16.mxu0 0
  %326 = vmatpush1.bf16.msra.mxu0 0
  %327 = vmatprep.subr.bf16.mxu0 0
  %328 = vmatpush1.bf16.msra.mxu0 0
  %329 = vmatprep.subr.bf16.mxu0 0
  %330 = vmatpush1.bf16.msra.mxu0 0
  %331 = vmatprep.mubr.bf16.mxu0 0
  %332 = vmatmul.mubr.bf16.gmra.mrb[0].mxu0 %v168
  %v333 = vpop.f32.mrb[0].mxu0
  %v334 = vadd.f32 %v68, %v333
  %v335 = vpop.f32.mrb[0].mxu0
  %v336 = vadd.f32 %v72, %v335
  %v337 = vpop.f32.mrb[0].mxu0
  %v338 = vadd.f32 %v68, %v337
  %v339 = vpop.f32.mrb[0].mxu0
  %v340 = vadd.f32 %v72, %v339
  %341 = vdwg.mxu0
  %v342 = vmax.f32 %v205, 0.0
  %v343 = vmax.f32 %v207, 0.0
  %v344 = vmax.f32 %v248, 0.0
  %v345 = vmax.f32 %v250, 0.0
  %v346 = vmax.f32 %v291, 0.0
  %v347 = vmax.f32 %v293, 0.0
  %v348 = vmax.f32 %v334, 0.0
  %v349 = vmax.f32 %v336, 0.0
  %v350 = vmax.f32 %v209, 0.0
  %v351 = vmax.f32 %v211, 0.0
  %v352 = vmax.f32 %v252, 0.0
  %v353 = vmax.f32 %v254, 0.0
  %v354 = vmax.f32 %v295, 0.0
  %v355 = vmax.f32 %v297, 0.0
  %v356 = vmax.f32 %v338, 0.0
  %v357 = vmax.f32 %v340, 0.0
  %v358 = vpack.c.bf16 %v350, %v342
  %v359 = vpack.c.bf16 %v351, %v343
  %v360 = vpack.c.bf16 %v352, %v344
  %v361 = vpack.c.bf16 %v353, %v345
  %v362 = vpack.c.bf16 %v354, %v346
  %v363 = vpack.c.bf16 %v355, %v347
  %v364 = vpack.c.bf16 %v356, %v348
  %v365 = vpack.c.bf16 %v357, %v349
  %v366 = vld [vmem:[%s3] sm:$0xff]
  %v367 = vld [vmem:[%s3 + $0x8] sm:$0xff]
  %v368 = vld [vmem:[%s3 + $0x10] sm:$0xff]
  %v369 = vld [vmem:[%s3 + $0x18] sm:$0xff]
  %v370 = vld [vmem:[%s3 + $0x20] sm:$0xff]
  %v371 = vld [vmem:[%s3 + $0x28] sm:$0xff]
  %v372 = vld [vmem:[%s3 + $0x30] sm:$0xff]
  %v373 = vld [vmem:[%s3 + $0x38] sm:$0xff]
  %v374 = vld [vmem:[%s3 + $0x40] sm:$0xff]
  %v375 = vld [vmem:[%s3 + $0x48] sm:$0xff]
  %v376 = vld [vmem:[%s3 + $0x50] sm:$0xff]
  %v377 = vld [vmem:[%s3 + $0x58] sm:$0xff]
  %v378 = vld [vmem:[%s3 + $0x60] sm:$0xff]
  %v379 = vld [vmem:[%s3 + $0x68] sm:$0xff]
  %v380 = vld [vmem:[%s3 + $0x70] sm:$0xff]
  %v381 = vld [vmem:[%s3 + $0x78] sm:$0xff]
  %v382 = vld [vmem:[%s3 + $0x80] sm:$0xff]
  %v383 = vld [vmem:[%s3 + $0x88] sm:$0xff]
  %v384 = vld [vmem:[%s3 + $0x90] sm:$0xff]
  %v385 = vld [vmem:[%s3 + $0x98] sm:$0xff]
  %v386 = vld [vmem:[%s3 + $0xa0] sm:$0xff]
  %v387 = vld [vmem:[%s3 + $0xa8] sm:$0xff]
  %v388 = vld [vmem:[%s3 + $0xb0] sm:$0xff]
  %v389 = vld [vmem:[%s3 + $0xb8] sm:$0xff]
  %v390 = vld [vmem:[%s3 + $0xc0] sm:$0xff]
  %v391 = vld [vmem:[%s3 + $0xc8] sm:$0xff]
  %v392 = vld [vmem:[%s3 + $0xd0] sm:$0xff]
  %v393 = vld [vmem:[%s3 + $0xd8] sm:$0xff]
  %v394 = vld [vmem:[%s3 + $0xe0] sm:$0xff]
  %v395 = vld [vmem:[%s3 + $0xe8] sm:$0xff]
  %v396 = vld [vmem:[%s3 + $0xf0] sm:$0xff]
  %v397 = vld [vmem:[%s3 + $0xf8] sm:$0xff]
  %v398 = vld [vmem:[%s3 + $0x100] sm:$0xff]
  %v399 = vld [vmem:[%s3 + $0x108] sm:$0xff]
  %v400 = vld [vmem:[%s3 + $0x110] sm:$0xff]
  %v401 = vld [vmem:[%s3 + $0x118] sm:$0xff]
  %v402 = vld [vmem:[%s3 + $0x120] sm:$0xff]
  %v403 = vld [vmem:[%s3 + $0x128] sm:$0xff]
  %v404 = vld [vmem:[%s3 + $0x130] sm:$0xff]
  %v405 = vld [vmem:[%s3 + $0x138] sm:$0xff]
  %v406 = vld [vmem:[%s3 + $0x140] sm:$0xff]
  %v407 = vld [vmem:[%s3 + $0x148] sm:$0xff]
  %v408 = vld [vmem:[%s3 + $0x150] sm:$0xff]
  %v409 = vld [vmem:[%s3 + $0x158] sm:$0xff]
  %v410 = vld [vmem:[%s3 + $0x160] sm:$0xff]
  %v411 = vld [vmem:[%s3 + $0x168] sm:$0xff]
  %v412 = vld [vmem:[%s3 + $0x170] sm:$0xff]
  %v413 = vld [vmem:[%s3 + $0x178] sm:$0xff]
  %v414 = vld [vmem:[%s3 + $0x180] sm:$0xff]
  %v415 = vld [vmem:[%s3 + $0x188] sm:$0xff]
  %v416 = vld [vmem:[%s3 + $0x190] sm:$0xff]
  %v417 = vld [vmem:[%s3 + $0x198] sm:$0xff]
  %v418 = vld [vmem:[%s3 + $0x1a0] sm:$0xff]
  %v419 = vld [vmem:[%s3 + $0x1a8] sm:$0xff]
  %v420 = vld [vmem:[%s3 + $0x1b0] sm:$0xff]
  %v421 = vld [vmem:[%s3 + $0x1b8] sm:$0xff]
  %v422 = vld [vmem:[%s3 + $0x1c0] sm:$0xff]
  %v423 = vld [vmem:[%s3 + $0x1c8] sm:$0xff]
  %v424 = vld [vmem:[%s3 + $0x1d0] sm:$0xff]
  %v425 = vld [vmem:[%s3 + $0x1d8] sm:$0xff]
  %v426 = vld [vmem:[%s3 + $0x1e0] sm:$0xff]
  %v427 = vld [vmem:[%s3 + $0x1e8] sm:$0xff]
  %v428 = vld [vmem:[%s3 + $0x1f0] sm:$0xff]
  %v429 = vld [vmem:[%s3 + $0x1f8] sm:$0xff]
  %v430 = vld [vmem:[%s3 + $0x200] sm:$0xff]
  %v431 = vld [vmem:[%s3 + $0x208] sm:$0xff]
  %v432 = vld [vmem:[%s3 + $0x210] sm:$0xff]
  %v433 = vld [vmem:[%s3 + $0x218] sm:$0xff]
  %v434 = vld [vmem:[%s3 + $0x220] sm:$0xff]
  %v435 = vld [vmem:[%s3 + $0x228] sm:$0xff]
  %v436 = vld [vmem:[%s3 + $0x230] sm:$0xff]
  %v437 = vld [vmem:[%s3 + $0x238] sm:$0xff]
  %v438 = vld [vmem:[%s3 + $0x240] sm:$0xff]
  %v439 = vld [vmem:[%s3 + $0x248] sm:$0xff]
  %v440 = vld [vmem:[%s3 + $0x250] sm:$0xff]
  %v441 = vld [vmem:[%s3 + $0x258] sm:$0xff]
  %v442 = vld [vmem:[%s3 + $0x260] sm:$0xff]
  %v443 = vld [vmem:[%s3 + $0x268] sm:$0xff]
  %v444 = vld [vmem:[%s3 + $0x270] sm:$0xff]
  %v445 = vld [vmem:[%s3 + $0x278] sm:$0xff]
  %v446 = vld [vmem:[%s3 + $0x280] sm:$0xff]
  %v447 = vld [vmem:[%s3 + $0x288] sm:$0xff]
  %v448 = vld [vmem:[%s3 + $0x290] sm:$0xff]
  %v449 = vld [vmem:[%s3 + $0x298] sm:$0xff]
  %v450 = vld [vmem:[%s3 + $0x2a0] sm:$0xff]
  %v451 = vld [vmem:[%s3 + $0x2a8] sm:$0xff]
  %v452 = vld [vmem:[%s3 + $0x2b0] sm:$0xff]
  %v453 = vld [vmem:[%s3 + $0x2b8] sm:$0xff]
  %v454 = vld [vmem:[%s3 + $0x2c0] sm:$0xff]
  %v455 = vld [vmem:[%s3 + $0x2c8] sm:$0xff]
  %v456 = vld [vmem:[%s3 + $0x2d0] sm:$0xff]
  %v457 = vld [vmem:[%s3 + $0x2d8] sm:$0xff]
  %v458 = vld [vmem:[%s3 + $0x2e0] sm:$0xff]
  %v459 = vld [vmem:[%s3 + $0x2e8] sm:$0xff]
  %v460 = vld [vmem:[%s3 + $0x2f0] sm:$0xff]
  %v461 = vld [vmem:[%s3 + $0x2f8] sm:$0xff]
  %v462 = vld [vmem:[%s3 + $0x300] sm:$0xff]
  %v463 = vld [vmem:[%s3 + $0x308] sm:$0xff]
  %v464 = vld [vmem:[%s3 + $0x310] sm:$0xff]
  %v465 = vld [vmem:[%s3 + $0x318] sm:$0xff]
  %v466 = vld [vmem:[%s3 + $0x320] sm:$0xff]
  %v467 = vld [vmem:[%s3 + $0x328] sm:$0xff]
  %v468 = vld [vmem:[%s3 + $0x330] sm:$0xff]
  %v469 = vld [vmem:[%s3 + $0x338] sm:$0xff]
  %v470 = vld [vmem:[%s3 + $0x340] sm:$0xff]
  %v471 = vld [vmem:[%s3 + $0x348] sm:$0xff]
  %v472 = vld [vmem:[%s3 + $0x350] sm:$0xff]
  %v473 = vld [vmem:[%s3 + $0x358] sm:$0xff]
  %v474 = vld [vmem:[%s3 + $0x360] sm:$0xff]
  %v475 = vld [vmem:[%s3 + $0x368] sm:$0xff]
  %v476 = vld [vmem:[%s3 + $0x370] sm:$0xff]
  %v477 = vld [vmem:[%s3 + $0x378] sm:$0xff]
  %v478 = vld [vmem:[%s3 + $0x380] sm:$0xff]
  %v479 = vld [vmem:[%s3 + $0x388] sm:$0xff]
  %v480 = vld [vmem:[%s3 + $0x390] sm:$0xff]
  %v481 = vld [vmem:[%s3 + $0x398] sm:$0xff]
  %v482 = vld [vmem:[%s3 + $0x3a0] sm:$0xff]
  %v483 = vld [vmem:[%s3 + $0x3a8] sm:$0xff]
  %v484 = vld [vmem:[%s3 + $0x3b0] sm:$0xff]
  %v485 = vld [vmem:[%s3 + $0x3b8] sm:$0xff]
  %v486 = vld [vmem:[%s3 + $0x3c0] sm:$0xff]
  %v487 = vld [vmem:[%s3 + $0x3c8] sm:$0xff]
  %v488 = vld [vmem:[%s3 + $0x3d0] sm:$0xff]
  %v489 = vld [vmem:[%s3 + $0x3d8] sm:$0xff]
  %v490 = vld [vmem:[%s3 + $0x3e0] sm:$0xff]
  %v491 = vld [vmem:[%s3 + $0x3e8] sm:$0xff]
  %v492 = vld [vmem:[%s3 + $0x3f0] sm:$0xff]
  %v493 = vld [vmem:[%s3 + $0x3f8] sm:$0xff]
  %v494 = vld [vmem:[%s3 + $0x400] sm:$0xff]
  %v495 = vld [vmem:[%s3 + $0x408] sm:$0xff]
  %v496 = vld [vmem:[%s3 + $0x410] sm:$0xff]
  %v497 = vld [vmem:[%s3 + $0x418] sm:$0xff]
  %v498 = vld [vmem:[%s3 + $0x420] sm:$0xff]
  %v499 = vld [vmem:[%s3 + $0x428] sm:$0xff]
  %v500 = vld [vmem:[%s3 + $0x430] sm:$0xff]
  %v501 = vld [vmem:[%s3 + $0x438] sm:$0xff]
  %v502 = vld [vmem:[%s3 + $0x440] sm:$0xff]
  %v503 = vld [vmem:[%s3 + $0x448] sm:$0xff]
  %v504 = vld [vmem:[%s3 + $0x450] sm:$0xff]
  %v505 = vld [vmem:[%s3 + $0x458] sm:$0xff]
  %v506 = vld [vmem:[%s3 + $0x460] sm:$0xff]
  %v507 = vld [vmem:[%s3 + $0x468] sm:$0xff]
  %v508 = vld [vmem:[%s3 + $0x470] sm:$0xff]
  %v509 = vld [vmem:[%s3 + $0x478] sm:$0xff]
  %v510 = vld [vmem:[%s3 + $0x480] sm:$0xff]
  %v511 = vld [vmem:[%s3 + $0x488] sm:$0xff]
  %v512 = vld [vmem:[%s3 + $0x490] sm:$0xff]
  %v513 = vld [vmem:[%s3 + $0x498] sm:$0xff]
  %v514 = vld [vmem:[%s3 + $0x4a0] sm:$0xff]
  %v515 = vld [vmem:[%s3 + $0x4a8] sm:$0xff]
  %v516 = vld [vmem:[%s3 + $0x4b0] sm:$0xff]
  %v517 = vld [vmem:[%s3 + $0x4b8] sm:$0xff]
  %v518 = vld [vmem:[%s3 + $0x4c0] sm:$0xff]
  %v519 = vld [vmem:[%s3 + $0x4c8] sm:$0xff]
  %v520 = vld [vmem:[%s3 + $0x4d0] sm:$0xff]
  %v521 = vld [vmem:[%s3 + $0x4d8] sm:$0xff]
  %v522 = vld [vmem:[%s3 + $0x4e0] sm:$0xff]
  %v523 = vld [vmem:[%s3 + $0x4e8] sm:$0xff]
  %v524 = vld [vmem:[%s3 + $0x4f0] sm:$0xff]
  %v525 = vld [vmem:[%s3 + $0x4f8] sm:$0xff]
  %v526 = vld [vmem:[%s3 + $0x500] sm:$0xff]
  %v527 = vld [vmem:[%s3 + $0x508] sm:$0xff]
  %v528 = vld [vmem:[%s3 + $0x510] sm:$0xff]
  %v529 = vld [vmem:[%s3 + $0x518] sm:$0xff]
  %v530 = vld [vmem:[%s3 + $0x520] sm:$0xff]
  %v531 = vld [vmem:[%s3 + $0x528] sm:$0xff]
  %v532 = vld [vmem:[%s3 + $0x530] sm:$0xff]
  %v533 = vld [vmem:[%s3 + $0x538] sm:$0xff]
  %v534 = vld [vmem:[%s3 + $0x540] sm:$0xff]
  %v535 = vld [vmem:[%s3 + $0x548] sm:$0xff]
  %v536 = vld [vmem:[%s3 + $0x550] sm:$0xff]
  %v537 = vld [vmem:[%s3 + $0x558] sm:$0xff]
  %v538 = vld [vmem:[%s3 + $0x560] sm:$0xff]
  %v539 = vld [vmem:[%s3 + $0x568] sm:$0xff]
  %v540 = vld [vmem:[%s3 + $0x570] sm:$0xff]
  %v541 = vld [vmem:[%s3 + $0x578] sm:$0xff]
  %v542 = vld [vmem:[%s3 + $0x580] sm:$0xff]
  %v543 = vld [vmem:[%s3 + $0x588] sm:$0xff]
  %v544 = vld [vmem:[%s3 + $0x590] sm:$0xff]
  %v545 = vld [vmem:[%s3 + $0x598] sm:$0xff]
  %v546 = vld [vmem:[%s3 + $0x5a0] sm:$0xff]
  %v547 = vld [vmem:[%s3 + $0x5a8] sm:$0xff]
  %v548 = vld [vmem:[%s3 + $0x5b0] sm:$0xff]
  %v549 = vld [vmem:[%s3 + $0x5b8] sm:$0xff]
  %v550 = vld [vmem:[%s3 + $0x5c0] sm:$0xff]
  %v551 = vld [vmem:[%s3 + $0x5c8] sm:$0xff]
  %v552 = vld [vmem:[%s3 + $0x5d0] sm:$0xff]
  %v553 = vld [vmem:[%s3 + $0x5d8] sm:$0xff]
  %v554 = vld [vmem:[%s3 + $0x5e0] sm:$0xff]
  %v555 = vld [vmem:[%s3 + $0x5e8] sm:$0xff]
  %v556 = vld [vmem:[%s3 + $0x5f0] sm:$0xff]
  %v557 = vld [vmem:[%s3 + $0x5f8] sm:$0xff]
  %v558 = vld [vmem:[%s3 + $0x600] sm:$0xff]
  %v559 = vld [vmem:[%s3 + $0x608] sm:$0xff]
  %v560 = vld [vmem:[%s3 + $0x610] sm:$0xff]
  %v561 = vld [vmem:[%s3 + $0x618] sm:$0xff]
  %v562 = vld [vmem:[%s3 + $0x620] sm:$0xff]
  %v563 = vld [vmem:[%s3 + $0x628] sm:$0xff]
  %v564 = vld [vmem:[%s3 + $0x630] sm:$0xff]
  %v565 = vld [vmem:[%s3 + $0x638] sm:$0xff]
  %v566 = vld [vmem:[%s3 + $0x640] sm:$0xff]
  %v567 = vld [vmem:[%s3 + $0x648] sm:$0xff]
  %v568 = vld [vmem:[%s3 + $0x650] sm:$0xff]
  %v569 = vld [vmem:[%s3 + $0x658] sm:$0xff]
  %v570 = vld [vmem:[%s3 + $0x660] sm:$0xff]
  %v571 = vld [vmem:[%s3 + $0x668] sm:$0xff]
  %v572 = vld [vmem:[%s3 + $0x670] sm:$0xff]
  %v573 = vld [vmem:[%s3 + $0x678] sm:$0xff]
  %v574 = vld [vmem:[%s3 + $0x680] sm:$0xff]
  %v575 = vld [vmem:[%s3 + $0x688] sm:$0xff]
  %v576 = vld [vmem:[%s3 + $0x690] sm:$0xff]
  %v577 = vld [vmem:[%s3 + $0x698] sm:$0xff]
  %v578 = vld [vmem:[%s3 + $0x6a0] sm:$0xff]
  %v579 = vld [vmem:[%s3 + $0x6a8] sm:$0xff]
  %v580 = vld [vmem:[%s3 + $0x6b0] sm:$0xff]
  %v581 = vld [vmem:[%s3 + $0x6b8] sm:$0xff]
  %v582 = vld [vmem:[%s3 + $0x6c0] sm:$0xff]
  %v583 = vld [vmem:[%s3 + $0x6c8] sm:$0xff]
  %v584 = vld [vmem:[%s3 + $0x6d0] sm:$0xff]
  %v585 = vld [vmem:[%s3 + $0x6d8] sm:$0xff]
  %v586 = vld [vmem:[%s3 + $0x6e0] sm:$0xff]
  %v587 = vld [vmem:[%s3 + $0x6e8] sm:$0xff]
  %v588 = vld [vmem:[%s3 + $0x6f0] sm:$0xff]
  %v589 = vld [vmem:[%s3 + $0x6f8] sm:$0xff]
  %v590 = vld [vmem:[%s3 + $0x700] sm:$0xff]
  %v591 = vld [vmem:[%s3 + $0x708] sm:$0xff]
  %v592 = vld [vmem:[%s3 + $0x710] sm:$0xff]
  %v593 = vld [vmem:[%s3 + $0x718] sm:$0xff]
  %v594 = vld [vmem:[%s3 + $0x720] sm:$0xff]
  %v595 = vld [vmem:[%s3 + $0x728] sm:$0xff]
  %v596 = vld [vmem:[%s3 + $0x730] sm:$0xff]
  %v597 = vld [vmem:[%s3 + $0x738] sm:$0xff]
  %v598 = vld [vmem:[%s3 + $0x740] sm:$0xff]
  %v599 = vld [vmem:[%s3 + $0x748] sm:$0xff]
  %v600 = vld [vmem:[%s3 + $0x750] sm:$0xff]
  %v601 = vld [vmem:[%s3 + $0x758] sm:$0xff]
  %v602 = vld [vmem:[%s3 + $0x760] sm:$0xff]
  %v603 = vld [vmem:[%s3 + $0x768] sm:$0xff]
  %v604 = vld [vmem:[%s3 + $0x770] sm:$0xff]
  %v605 = vld [vmem:[%s3 + $0x778] sm:$0xff]
  %v606 = vld [vmem:[%s3 + $0x780] sm:$0xff]
  %v607 = vld [vmem:[%s3 + $0x788] sm:$0xff]
  %v608 = vld [vmem:[%s3 + $0x790] sm:$0xff]
  %v609 = vld [vmem:[%s3 + $0x798] sm:$0xff]
  %v610 = vld [vmem:[%s3 + $0x7a0] sm:$0xff]
  %v611 = vld [vmem:[%s3 + $0x7a8] sm:$0xff]
  %v612 = vld [vmem:[%s3 + $0x7b0] sm:$0xff]
  %v613 = vld [vmem:[%s3 + $0x7b8] sm:$0xff]
  %v614 = vld [vmem:[%s3 + $0x7c0] sm:$0xff]
  %v615 = vld [vmem:[%s3 + $0x7c8] sm:$0xff]
  %v616 = vld [vmem:[%s3 + $0x7d0] sm:$0xff]
  %v617 = vld [vmem:[%s3 + $0x7d8] sm:$0xff]
  %v618 = vld [vmem:[%s3 + $0x7e0] sm:$0xff]
  %v619 = vld [vmem:[%s3 + $0x7e8] sm:$0xff]
  %v620 = vld [vmem:[%s3 + $0x7f0] sm:$0xff]
  %v621 = vld [vmem:[%s3 + $0x7f8] sm:$0xff]
  %v622 = vld [vmem:[%s4] sm:$0xf]
  %v624 = vlaneseq
  %v625 = vshrl.u32 %v624, 7
  %v626 = vsub.s32 0, %v625
  %v627 = vrot.slane %v622, %v626
  %v628 = vlaneseq
  %v629 = vshrl.u32 %v628, 7
  %v630 = vsub.s32 1, %v629
  %v631 = vrot.slane %v622, %v630
  %v632 = vlaneseq
  %v633 = vshrl.u32 %v632, 7
  %v634 = vsub.s32 2, %v633
  %v635 = vrot.slane %v622, %v634
  %v636 = vlaneseq
  %v637 = vshrl.u32 %v636, 7
  %v638 = vsub.s32 3, %v637
  %v639 = vrot.slane %v622, %v638
  %v900 = vunpack.c.l.b16 %v366
  %v901 = vunpack.c.h.b16 %v366
  %v902 = vunpack.c.l.b16 %v367
  %v903 = vunpack.c.h.b16 %v367
  %v904 = vunpack.c.l.b16 %v368
  %v905 = vunpack.c.h.b16 %v368
  %v906 = vunpack.c.l.b16 %v369
  %v907 = vunpack.c.h.b16 %v369
  %v908 = vunpack.c.l.b16 %v370
  %v909 = vunpack.c.h.b16 %v370
  %v910 = vunpack.c.l.b16 %v371
  %v911 = vunpack.c.h.b16 %v371
  %v912 = vunpack.c.l.b16 %v372
  %v913 = vunpack.c.h.b16 %v372
  %v914 = vunpack.c.l.b16 %v373
  %v915 = vunpack.c.h.b16 %v373
  %v916 = vunpack.c.l.b16 %v374
  %v917 = vunpack.c.h.b16 %v374
  %v918 = vunpack.c.l.b16 %v375
  %v919 = vunpack.c.h.b16 %v375
  %v920 = vunpack.c.l.b16 %v376
  %v921 = vunpack.c.h.b16 %v376
  %v922 = vunpack.c.l.b16 %v377
  %v923 = vunpack.c.h.b16 %v377
  %v924 = vunpack.c.l.b16 %v378
  %v925 = vunpack.c.h.b16 %v378
  %v926 = vunpack.c.l.b16 %v379
  %v927 = vunpack.c.h.b16 %v379
  %v928 = vunpack.c.l.b16 %v380
  %v929 = vunpack.c.h.b16 %v380
  %v930 = vunpack.c.l.b16 %v381
  %v931 = vunpack.c.h.b16 %v381
  %v932 = vunpack.c.l.b16 %v382
  %v933 = vunpack.c.h.b16 %v382
  %v934 = vunpack.c.l.b16 %v383
  %v935 = vunpack.c.h.b16 %v383
  %v936 = vunpack.c.l.b16 %v384
  %v937 = vunpack.c.h.b16 %v384
  %v938 = vunpack.c.l.b16 %v385
  %v939 = vunpack.c.h.b16 %v385
  %v940 = vunpack.c.l.b16 %v386
  %v941 = vunpack.c.h.b16 %v386
  %v942 = vunpack.c.l.b16 %v387
  %v943 = vunpack.c.h.b16 %v387
  %v944 = vunpack.c.l.b16 %v388
  %v945 = vunpack.c.h.b16 %v388
  %v946 = vunpack.c.l.b16 %v389
  %v947 = vunpack.c.h.b16 %v389
  %v948 = vunpack.c.l.b16 %v390
  %v949 = vunpack.c.h.b16 %v390
  %v950 = vunpack.c.l.b16 %v391
  %v951 = vunpack.c.h.b16 %v391
  %v952 = vunpack.c.l.b16 %v392
  %v953 = vunpack.c.h.b16 %v392
  %v954 = vunpack.c.l.b16 %v393
  %v955 = vunpack.c.h.b16 %v393
  %v956 = vunpack.c.l.b16 %v394
  %v957 = vunpack.c.h.b16 %v394
  %v958 = vunpack.c.l.b16 %v395
  %v959 = vunpack.c.h.b16 %v395
  %v960 = vunpack.c.l.b16 %v396
  %v961 = vunpack.c.h.b16 %v396
  %v962 = vunpack.c.l.b16 %v397
  %v963 = vunpack.c.h.b16 %v397
  %v964 = vunpack.c.l.b16 %v398
  %v965 = vunpack.c.h.b16 %v398
  %v966 = vunpack.c.l.b16 %v399
  %v967 = vunpack.c.h.b16 %v399
  %v968 = vunpack.c.l.b16 %v400
  %v969 = vunpack.c.h.b16 %v400
  %v970 = vunpack.c.l.b16 %v401
  %v971 = vunpack.c.h.b16 %v401
  %v972 = vunpack.c.l.b16 %v402
  %v973 = vunpack.c.h.b16 %v402
  %v974 = vunpack.c.l.b16 %v403
  %v975 = vunpack.c.h.b16 %v403
  %v976 = vunpack.c.l.b16 %v404
  %v977 = vunpack.c.h.b16 %v404
  %v978 = vunpack.c.l.b16 %v405
  %v979 = vunpack.c.h.b16 %v405
  %v980 = vunpack.c.l.b16 %v406
  %v981 = vunpack.c.h.b16 %v406
  %v982 = vunpack.c.l.b16 %v407
  %v983 = vunpack.c.h.b16 %v407
  %v984 = vunpack.c.l.b16 %v408
  %v985 = vunpack.c.h.b16 %v408
  %v986 = vunpack.c.l.b16 %v409
  %v987 = vunpack.c.h.b16 %v409
  %v988 = vunpack.c.l.b16 %v410
  %v989 = vunpack.c.h.b16 %v410
  %v990 = vunpack.c.l.b16 %v411
  %v991 = vunpack.c.h.b16 %v411
  %v992 = vunpack.c.l.b16 %v412
  %v993 = vunpack.c.h.b16 %v412
  %v994 = vunpack.c.l.b16 %v413
  %v995 = vunpack.c.h.b16 %v413
  %v996 = vunpack.c.l.b16 %v414
  %v997 = vunpack.c.h.b16 %v414
  %v998 = vunpack.c.l.b16 %v415
  %v999 = vunpack.c.h.b16 %v415
  %v1000 = vunpack.c.l.b16 %v416
  %v1001 = vunpack.c.h.b16 %v416
  %v1002 = vunpack.c.l.b16 %v417
  %v1003 = vunpack.c.h.b16 %v417
  %v1004 = vunpack.c.l.b16 %v418
  %v1005 = vunpack.c.h.b16 %v418
  %v1006 = vunpack.c.l.b16 %v419
  %v1007 = vunpack.c.h.b16 %v419
  %v1008 = vunpack.c.l.b16 %v420
  %v1009 = vunpack.c.h.b16 %v420
  %v1010 = vunpack.c.l.b16 %v421
  %v1011 = vunpack.c.h.b16 %v421
  %v1012 = vunpack.c.l.b16 %v422
  %v1013 = vunpack.c.h.b16 %v422
  %v1014 = vunpack.c.l.b16 %v423
  %v1015 = vunpack.c.h.b16 %v423
  %v1016 = vunpack.c.l.b16 %v424
  %v1017 = vunpack.c.h.b16 %v424
  %v1018 = vunpack.c.l.b16 %v425
  %v1019 = vunpack.c.h.b16 %v425
  %v1020 = vunpack.c.l.b16 %v426
  %v1021 = vunpack.c.h.b16 %v426
  %v1022 = vunpack.c.l.b16 %v427
  %v1023 = vunpack.c.h.b16 %v427
  %v1024 = vunpack.c.l.b16 %v428
  %v1025 = vunpack.c.h.b16 %v428
  %v1026 = vunpack.c.l.b16 %v429
  %v1027 = vunpack.c.h.b16 %v429
  %v1028 = vunpack.c.l.b16 %v430
  %v1029 = vunpack.c.h.b16 %v430
  %v1030 = vunpack.c.l.b16 %v431
  %v1031 = vunpack.c.h.b16 %v431
  %v1032 = vunpack.c.l.b16 %v432
  %v1033 = vunpack.c.h.b16 %v432
  %v1034 = vunpack.c.l.b16 %v433
  %v1035 = vunpack.c.h.b16 %v433
  %v1036 = vunpack.c.l.b16 %v434
  %v1037 = vunpack.c.h.b16 %v434
  %v1038 = vunpack.c.l.b16 %v435
  %v1039 = vunpack.c.h.b16 %v435
  %v1040 = vunpack.c.l.b16 %v436
  %v1041 = vunpack.c.h.b16 %v436
  %v1042 = vunpack.c.l.b16 %v437
  %v1043 = vunpack.c.h.b16 %v437
  %v1044 = vunpack.c.l.b16 %v438
  %v1045 = vunpack.c.h.b16 %v438
  %v1046 = vunpack.c.l.b16 %v439
  %v1047 = vunpack.c.h.b16 %v439
  %v1048 = vunpack.c.l.b16 %v440
  %v1049 = vunpack.c.h.b16 %v440
  %v1050 = vunpack.c.l.b16 %v441
  %v1051 = vunpack.c.h.b16 %v441
  %v1052 = vunpack.c.l.b16 %v442
  %v1053 = vunpack.c.h.b16 %v442
  %v1054 = vunpack.c.l.b16 %v443
  %v1055 = vunpack.c.h.b16 %v443
  %v1056 = vunpack.c.l.b16 %v444
  %v1057 = vunpack.c.h.b16 %v444
  %v1058 = vunpack.c.l.b16 %v445
  %v1059 = vunpack.c.h.b16 %v445
  %v1060 = vunpack.c.l.b16 %v446
  %v1061 = vunpack.c.h.b16 %v446
  %v1062 = vunpack.c.l.b16 %v447
  %v1063 = vunpack.c.h.b16 %v447
  %v1064 = vunpack.c.l.b16 %v448
  %v1065 = vunpack.c.h.b16 %v448
  %v1066 = vunpack.c.l.b16 %v449
  %v1067 = vunpack.c.h.b16 %v449
  %v1068 = vunpack.c.l.b16 %v450
  %v1069 = vunpack.c.h.b16 %v450
  %v1070 = vunpack.c.l.b16 %v451
  %v1071 = vunpack.c.h.b16 %v451
  %v1072 = vunpack.c.l.b16 %v452
  %v1073 = vunpack.c.h.b16 %v452
  %v1074 = vunpack.c.l.b16 %v453
  %v1075 = vunpack.c.h.b16 %v453
  %v1076 = vunpack.c.l.b16 %v454
  %v1077 = vunpack.c.h.b16 %v454
  %v1078 = vunpack.c.l.b16 %v455
  %v1079 = vunpack.c.h.b16 %v455
  %v1080 = vunpack.c.l.b16 %v456
  %v1081 = vunpack.c.h.b16 %v456
  %v1082 = vunpack.c.l.b16 %v457
  %v1083 = vunpack.c.h.b16 %v457
  %v1084 = vunpack.c.l.b16 %v458
  %v1085 = vunpack.c.h.b16 %v458
  %v1086 = vunpack.c.l.b16 %v459
  %v1087 = vunpack.c.h.b16 %v459
  %v1088 = vunpack.c.l.b16 %v460
  %v1089 = vunpack.c.h.b16 %v460
  %v1090 = vunpack.c.l.b16 %v461
  %v1091 = vunpack.c.h.b16 %v461
  %v1092 = vunpack.c.l.b16 %v462
  %v1093 = vunpack.c.h.b16 %v462
  %v1094 = vunpack.c.l.b16 %v463
  %v1095 = vunpack.c.h.b16 %v463
  %v1096 = vunpack.c.l.b16 %v464
  %v1097 = vunpack.c.h.b16 %v464
  %v1098 = vunpack.c.l.b16 %v465
  %v1099 = vunpack.c.h.b16 %v465
  %v1100 = vunpack.c.l.b16 %v466
  %v1101 = vunpack.c.h.b16 %v466
  %v1102 = vunpack.c.l.b16 %v467
  %v1103 = vunpack.c.h.b16 %v467
  %v1104 = vunpack.c.l.b16 %v468
  %v1105 = vunpack.c.h.b16 %v468
  %v1106 = vunpack.c.l.b16 %v469
  %v1107 = vunpack.c.h.b16 %v469
  %v1108 = vunpack.c.l.b16 %v470
  %v1109 = vunpack.c.h.b16 %v470
  %v1110 = vunpack.c.l.b16 %v471
  %v1111 = vunpack.c.h.b16 %v471
  %v1112 = vunpack.c.l.b16 %v472
  %v1113 = vunpack.c.h.b16 %v472
  %v1114 = vunpack.c.l.b16 %v473
  %v1115 = vunpack.c.h.b16 %v473
  %v1116 = vunpack.c.l.b16 %v474
  %v1117 = vunpack.c.h.b16 %v474
  %v1118 = vunpack.c.l.b16 %v475
  %v1119 = vunpack.c.h.b16 %v475
  %v1120 = vunpack.c.l.b16 %v476
  %v1121 = vunpack.c.h.b16 %v476
  %v1122 = vunpack.c.l.b16 %v477
  %v1123 = vunpack.c.h.b16 %v477
  %v1124 = vunpack.c.l.b16 %v478
  %v1125 = vunpack.c.h.b16 %v478
  %v1126 = vunpack.c.l.b16 %v479
  %v1127 = vunpack.c.h.b16 %v479
  %v1128 = vunpack.c.l.b16 %v480
  %v1129 = vunpack.c.h.b16 %v480
  %v1130 = vunpack.c.l.b16 %v481
  %v1131 = vunpack.c.h.b16 %v481
  %v1132 = vunpack.c.l.b16 %v482
  %v1133 = vunpack.c.h.b16 %v482
  %v1134 = vunpack.c.l.b16 %v483
  %v1135 = vunpack.c.h.b16 %v483
  %v1136 = vunpack.c.l.b16 %v484
  %v1137 = vunpack.c.h.b16 %v484
  %v1138 = vunpack.c.l.b16 %v485
  %v1139 = vunpack.c.h.b16 %v485
  %v1140 = vunpack.c.l.b16 %v486
  %v1141 = vunpack.c.h.b16 %v486
  %v1142 = vunpack.c.l.b16 %v487
  %v1143 = vunpack.c.h.b16 %v487
  %v1144 = vunpack.c.l.b16 %v488
  %v1145 = vunpack.c.h.b16 %v488
  %v1146 = vunpack.c.l.b16 %v489
  %v1147 = vunpack.c.h.b16 %v489
  %v1148 = vunpack.c.l.b16 %v490
  %v1149 = vunpack.c.h.b16 %v490
  %v1150 = vunpack.c.l.b16 %v491
  %v1151 = vunpack.c.h.b16 %v491
  %v1152 = vunpack.c.l.b16 %v492
  %v1153 = vunpack.c.h.b16 %v492
  %v1154 = vunpack.c.l.b16 %v493
  %v1155 = vunpack.c.h.b16 %v493
  %v1156 = vunpack.c.l.b16 %v494
  %v1157 = vunpack.c.h.b16 %v494
  %v1158 = vunpack.c.l.b16 %v495
  %v1159 = vunpack.c.h.b16 %v495
  %v1160 = vunpack.c.l.b16 %v496
  %v1161 = vunpack.c.h.b16 %v496
  %v1162 = vunpack.c.l.b16 %v497
  %v1163 = vunpack.c.h.b16 %v497
  %v1164 = vunpack.c.l.b16 %v498
  %v1165 = vunpack.c.h.b16 %v498
  %v1166 = vunpack.c.l.b16 %v499
  %v1167 = vunpack.c.h.b16 %v499
  %v1168 = vunpack.c.l.b16 %v500
  %v1169 = vunpack.c.h.b16 %v500
  %v1170 = vunpack.c.l.b16 %v501
  %v1171 = vunpack.c.h.b16 %v501
  %v1172 = vunpack.c.l.b16 %v502
  %v1173 = vunpack.c.h.b16 %v502
  %v1174 = vunpack.c.l.b16 %v503
  %v1175 = vunpack.c.h.b16 %v503
  %v1176 = vunpack.c.l.b16 %v504
  %v1177 = vunpack.c.h.b16 %v504
  %v1178 = vunpack.c.l.b16 %v505
  %v1179 = vunpack.c.h.b16 %v505
  %v1180 = vunpack.c.l.b16 %v506
  %v1181 = vunpack.c.h.b16 %v506
  %v1182 = vunpack.c.l.b16 %v507
  %v1183 = vunpack.c.h.b16 %v507
  %v1184 = vunpack.c.l.b16 %v508
  %v1185 = vunpack.c.h.b16 %v508
  %v1186 = vunpack.c.l.b16 %v509
  %v1187 = vunpack.c.h.b16 %v509
  %v1188 = vunpack.c.l.b16 %v510
  %v1189 = vunpack.c.h.b16 %v510
  %v1190 = vunpack.c.l.b16 %v511
  %v1191 = vunpack.c.h.b16 %v511
  %v1192 = vunpack.c.l.b16 %v512
  %v1193 = vunpack.c.h.b16 %v512
  %v1194 = vunpack.c.l.b16 %v513
  %v1195 = vunpack.c.h.b16 %v513
  %v1196 = vunpack.c.l.b16 %v514
  %v1197 = vunpack.c.h.b16 %v514
  %v1198 = vunpack.c.l.b16 %v515
  %v1199 = vunpack.c.h.b16 %v515
  %v1200 = vunpack.c.l.b16 %v516
  %v1201 = vunpack.c.h.b16 %v516
  %v1202 = vunpack.c.l.b16 %v517
  %v1203 = vunpack.c.h.b16 %v517
  %v1204 = vunpack.c.l.b16 %v518
  %v1205 = vunpack.c.h.b16 %v518
  %v1206 = vunpack.c.l.b16 %v519
  %v1207 = vunpack.c.h.b16 %v519
  %v1208 = vunpack.c.l.b16 %v520
  %v1209 = vunpack.c.h.b16 %v520
  %v1210 = vunpack.c.l.b16 %v521
  %v1211 = vunpack.c.h.b16 %v521
  %v1212 = vunpack.c.l.b16 %v522
  %v1213 = vunpack.c.h.b16 %v522
  %v1214 = vunpack.c.l.b16 %v523
  %v1215 = vunpack.c.h.b16 %v523
  %v1216 = vunpack.c.l.b16 %v524
  %v1217 = vunpack.c.h.b16 %v524
  %v1218 = vunpack.c.l.b16 %v525
  %v1219 = vunpack.c.h.b16 %v525
  %v1220 = vunpack.c.l.b16 %v526
  %v1221 = vunpack.c.h.b16 %v526
  %v1222 = vunpack.c.l.b16 %v527
  %v1223 = vunpack.c.h.b16 %v527
  %v1224 = vunpack.c.l.b16 %v528
  %v1225 = vunpack.c.h.b16 %v528
  %v1226 = vunpack.c.l.b16 %v529
  %v1227 = vunpack.c.h.b16 %v529
  %v1228 = vunpack.c.l.b16 %v530
  %v1229 = vunpack.c.h.b16 %v530
  %v1230 = vunpack.c.l.b16 %v531
  %v1231 = vunpack.c.h.b16 %v531
  %v1232 = vunpack.c.l.b16 %v532
  %v1233 = vunpack.c.h.b16 %v532
  %v1234 = vunpack.c.l.b16 %v533
  %v1235 = vunpack.c.h.b16 %v533
  %v1236 = vunpack.c.l.b16 %v534
  %v1237 = vunpack.c.h.b16 %v534
  %v1238 = vunpack.c.l.b16 %v535
  %v1239 = vunpack.c.h.b16 %v535
  %v1240 = vunpack.c.l.b16 %v536
  %v1241 = vunpack.c.h.b16 %v536
  %v1242 = vunpack.c.l.b16 %v537
  %v1243 = vunpack.c.h.b16 %v537
  %v1244 = vunpack.c.l.b16 %v538
  %v1245 = vunpack.c.h.b16 %v538
  %v1246 = vunpack.c.l.b16 %v539
  %v1247 = vunpack.c.h.b16 %v539
  %v1248 = vunpack.c.l.b16 %v540
  %v1249 = vunpack.c.h.b16 %v540
  %v1250 = vunpack.c.l.b16 %v541
  %v1251 = vunpack.c.h.b16 %v541
  %v1252 = vunpack.c.l.b16 %v542
  %v1253 = vunpack.c.h.b16 %v542
  %v1254 = vunpack.c.l.b16 %v543
  %v1255 = vunpack.c.h.b16 %v543
  %v1256 = vunpack.c.l.b16 %v544
  %v1257 = vunpack.c.h.b16 %v544
  %v1258 = vunpack.c.l.b16 %v545
  %v1259 = vunpack.c.h.b16 %v545
  %v1260 = vunpack.c.l.b16 %v546
  %v1261 = vunpack.c.h.b16 %v546
  %v1262 = vunpack.c.l.b16 %v547
  %v1263 = vunpack.c.h.b16 %v547
  %v1264 = vunpack.c.l.b16 %v548
  %v1265 = vunpack.c.h.b16 %v548
  %v1266 = vunpack.c.l.b16 %v549
  %v1267 = vunpack.c.h.b16 %v549
  %v1268 = vunpack.c.l.b16 %v550
  %v1269 = vunpack.c.h.b16 %v550
  %v1270 = vunpack.c.l.b16 %v551
  %v1271 = vunpack.c.h.b16 %v551
  %v1272 = vunpack.c.l.b16 %v552
  %v1273 = vunpack.c.h.b16 %v552
  %v1274 = vunpack.c.l.b16 %v553
  %v1275 = vunpack.c.h.b16 %v553
  %v1276 = vunpack.c.l.b16 %v554
  %v1277 = vunpack.c.h.b16 %v554
  %v1278 = vunpack.c.l.b16 %v555
  %v1279 = vunpack.c.h.b16 %v555
  %v1280 = vunpack.c.l.b16 %v556
  %v1281 = vunpack.c.h.b16 %v556
  %v1282 = vunpack.c.l.b16 %v557
  %v1283 = vunpack.c.h.b16 %v557
  %v1284 = vunpack.c.l.b16 %v558
  %v1285 = vunpack.c.h.b16 %v558
  %v1286 = vunpack.c.l.b16 %v559
  %v1287 = vunpack.c.h.b16 %v559
  %v1288 = vunpack.c.l.b16 %v560
  %v1289 = vunpack.c.h.b16 %v560
  %v1290 = vunpack.c.l.b16 %v561
  %v1291 = vunpack.c.h.b16 %v561
  %v1292 = vunpack.c.l.b16 %v562
  %v1293 = vunpack.c.h.b16 %v562
  %v1294 = vunpack.c.l.b16 %v563
  %v1295 = vunpack.c.h.b16 %v563
  %v1296 = vunpack.c.l.b16 %v564
  %v1297 = vunpack.c.h.b16 %v564
  %v1298 = vunpack.c.l.b16 %v565
  %v1299 = vunpack.c.h.b16 %v565
  %v1300 = vunpack.c.l.b16 %v566
  %v1301 = vunpack.c.h.b16 %v566
  %v1302 = vunpack.c.l.b16 %v567
  %v1303 = vunpack.c.h.b16 %v567
  %v1304 = vunpack.c.l.b16 %v568
  %v1305 = vunpack.c.h.b16 %v568
  %v1306 = vunpack.c.l.b16 %v569
  %v1307 = vunpack.c.h.b16 %v569
  %v1308 = vunpack.c.l.b16 %v570
  %v1309 = vunpack.c.h.b16 %v570
  %v1310 = vunpack.c.l.b16 %v571
  %v1311 = vunpack.c.h.b16 %v571
  %v1312 = vunpack.c.l.b16 %v572
  %v1313 = vunpack.c.h.b16 %v572
  %v1314 = vunpack.c.l.b16 %v573
  %v1315 = vunpack.c.h.b16 %v573
  %v1316 = vunpack.c.l.b16 %v574
  %v1317 = vunpack.c.h.b16 %v574
  %v1318 = vunpack.c.l.b16 %v575
  %v1319 = vunpack.c.h.b16 %v575
  %v1320 = vunpack.c.l.b16 %v576
  %v1321 = vunpack.c.h.b16 %v576
  %v1322 = vunpack.c.l.b16 %v577
  %v1323 = vunpack.c.h.b16 %v577
  %v1324 = vunpack.c.l.b16 %v578
  %v1325 = vunpack.c.h.b16 %v578
  %v1326 = vunpack.c.l.b16 %v579
  %v1327 = vunpack.c.h.b16 %v579
  %v1328 = vunpack.c.l.b16 %v580
  %v1329 = vunpack.c.h.b16 %v580
  %v1330 = vunpack.c.l.b16 %v581
  %v1331 = vunpack.c.h.b16 %v581
  %v1332 = vunpack.c.l.b16 %v582
  %v1333 = vunpack.c.h.b16 %v582
  %v1334 = vunpack.c.l.b16 %v583
  %v1335 = vunpack.c.h.b16 %v583
  %v1336 = vunpack.c.l.b16 %v584
  %v1337 = vunpack.c.h.b16 %v584
  %v1338 = vunpack.c.l.b16 %v585
  %v1339 = vunpack.c.h.b16 %v585
  %v1340 = vunpack.c.l.b16 %v586
  %v1341 = vunpack.c.h.b16 %v586
  %v1342 = vunpack.c.l.b16 %v587
  %v1343 = vunpack.c.h.b16 %v587
  %v1344 = vunpack.c.l.b16 %v588
  %v1345 = vunpack.c.h.b16 %v588
  %v1346 = vunpack.c.l.b16 %v589
  %v1347 = vunpack.c.h.b16 %v589
  %v1348 = vunpack.c.l.b16 %v590
  %v1349 = vunpack.c.h.b16 %v590
  %v1350 = vunpack.c.l.b16 %v591
  %v1351 = vunpack.c.h.b16 %v591
  %v1352 = vunpack.c.l.b16 %v592
  %v1353 = vunpack.c.h.b16 %v592
  %v1354 = vunpack.c.l.b16 %v593
  %v1355 = vunpack.c.h.b16 %v593
  %v1356 = vunpack.c.l.b16 %v594
  %v1357 = vunpack.c.h.b16 %v594
  %v1358 = vunpack.c.l.b16 %v595
  %v1359 = vunpack.c.h.b16 %v595
  %v1360 = vunpack.c.l.b16 %v596
  %v1361 = vunpack.c.h.b16 %v596
  %v1362 = vunpack.c.l.b16 %v597
  %v1363 = vunpack.c.h.b16 %v597
  %v1364 = vunpack.c.l.b16 %v598
  %v1365 = vunpack.c.h.b16 %v598
  %v1366 = vunpack.c.l.b16 %v599
  %v1367 = vunpack.c.h.b16 %v599
  %v1368 = vunpack.c.l.b16 %v600
  %v1369 = vunpack.c.h.b16 %v600
  %v1370 = vunpack.c.l.b16 %v601
  %v1371 = vunpack.c.h.b16 %v601
  %v1372 = vunpack.c.l.b16 %v602
  %v1373 = vunpack.c.h.b16 %v602
  %v1374 = vunpack.c.l.b16 %v603
  %v1375 = vunpack.c.h.b16 %v603
  %v1376 = vunpack.c.l.b16 %v604
  %v1377 = vunpack.c.h.b16 %v604
  %v1378 = vunpack.c.l.b16 %v605
  %v1379 = vunpack.c.h.b16 %v605
  %v1380 = vunpack.c.l.b16 %v606
  %v1381 = vunpack.c.h.b16 %v606
  %v1382 = vunpack.c.l.b16 %v607
  %v1383 = vunpack.c.h.b16 %v607
  %v1384 = vunpack.c.l.b16 %v608
  %v1385 = vunpack.c.h.b16 %v608
  %v1386 = vunpack.c.l.b16 %v609
  %v1387 = vunpack.c.h.b16 %v609
  %v1388 = vunpack.c.l.b16 %v610
  %v1389 = vunpack.c.h.b16 %v610
  %v1390 = vunpack.c.l.b16 %v611
  %v1391 = vunpack.c.h.b16 %v611
  %v1392 = vunpack.c.l.b16 %v612
  %v1393 = vunpack.c.h.b16 %v612
  %v1394 = vunpack.c.l.b16 %v613
  %v1395 = vunpack.c.h.b16 %v613
  %v1396 = vunpack.c.l.b16 %v614
  %v1397 = vunpack.c.h.b16 %v614
  %v1398 = vunpack.c.l.b16 %v615
  %v1399 = vunpack.c.h.b16 %v615
  %v1400 = vunpack.c.l.b16 %v616
  %v1401 = vunpack.c.h.b16 %v616
  %v1402 = vunpack.c.l.b16 %v617
  %v1403 = vunpack.c.h.b16 %v617
  %v1404 = vunpack.c.l.b16 %v618
  %v1405 = vunpack.c.h.b16 %v618
  %v1406 = vunpack.c.l.b16 %v619
  %v1407 = vunpack.c.h.b16 %v619
  %v1408 = vunpack.c.l.b16 %v620
  %v1409 = vunpack.c.h.b16 %v620
  %v1410 = vunpack.c.l.b16 %v621
  %v1411 = vunpack.c.h.b16 %v621
  %v1412 = vpack.c.b16 %v904, %v900
  %v1413 = vpack.c.b16 %v905, %v901
  %v1414 = vpack.c.b16 %v906, %v902
  %v1415 = vpack.c.b16 %v907, %v903
  %v1416 = vpack.c.b16 %v912, %v908
  %v1417 = vpack.c.b16 %v913, %v909
  %v1418 = vpack.c.b16 %v914, %v910
  %v1419 = vpack.c.b16 %v915, %v911
  %v1420 = vpack.c.b16 %v920, %v916
  %v1421 = vpack.c.b16 %v921, %v917
  %v1422 = vpack.c.b16 %v922, %v918
  %v1423 = vpack.c.b16 %v923, %v919
  %v1424 = vpack.c.b16 %v928, %v924
  %v1425 = vpack.c.b16 %v929, %v925
  %v1426 = vpack.c.b16 %v930, %v926
  %v1427 = vpack.c.b16 %v931, %v927
  %v1428 = vpack.c.b16 %v936, %v932
  %v1429 = vpack.c.b16 %v937, %v933
  %v1430 = vpack.c.b16 %v938, %v934
  %v1431 = vpack.c.b16 %v939, %v935
  %v1432 = vpack.c.b16 %v944, %v940
  %v1433 = vpack.c.b16 %v945, %v941
  %v1434 = vpack.c.b16 %v946, %v942
  %v1435 = vpack.c.b16 %v947, %v943
  %v1436 = vpack.c.b16 %v952, %v948
  %v1437 = vpack.c.b16 %v953, %v949
  %v1438 = vpack.c.b16 %v954, %v950
  %v1439 = vpack.c.b16 %v955, %v951
  %v1440 = vpack.c.b16 %v960, %v956
  %v1441 = vpack.c.b16 %v961, %v957
  %v1442 = vpack.c.b16 %v962, %v958
  %v1443 = vpack.c.b16 %v963, %v959
  %v1444 = vpack.c.b16 %v968, %v964
  %v1445 = vpack.c.b16 %v969, %v965
  %v1446 = vpack.c.b16 %v970, %v966
  %v1447 = vpack.c.b16 %v971, %v967
  %v1448 = vpack.c.b16 %v976, %v972
  %v1449 = vpack.c.b16 %v977, %v973
  %v1450 = vpack.c.b16 %v978, %v974
  %v1451 = vpack.c.b16 %v979, %v975
  %v1452 = vpack.c.b16 %v984, %v980
  %v1453 = vpack.c.b16 %v985, %v981
  %v1454 = vpack.c.b16 %v986, %v982
  %v1455 = vpack.c.b16 %v987, %v983
  %v1456 = vpack.c.b16 %v992, %v988
  %v1457 = vpack.c.b16 %v993, %v989
  %v1458 = vpack.c.b16 %v994, %v990
  %v1459 = vpack.c.b16 %v995, %v991
  %v1460 = vpack.c.b16 %v1000, %v996
  %v1461 = vpack.c.b16 %v1001, %v997
  %v1462 = vpack.c.b16 %v1002, %v998
  %v1463 = vpack.c.b16 %v1003, %v999
  %v1464 = vpack.c.b16 %v1008, %v1004
  %v1465 = vpack.c.b16 %v1009, %v1005
  %v1466 = vpack.c.b16 %v1010, %v1006
  %v1467 = vpack.c.b16 %v1011, %v1007
  %v1468 = vpack.c.b16 %v1016, %v1012
  %v1469 = vpack.c.b16 %v1017, %v1013
  %v1470 = vpack.c.b16 %v1018, %v1014
  %v1471 = vpack.c.b16 %v1019, %v1015
  %v1472 = vpack.c.b16 %v1024, %v1020
  %v1473 = vpack.c.b16 %v1025, %v1021
  %v1474 = vpack.c.b16 %v1026, %v1022
  %v1475 = vpack.c.b16 %v1027, %v1023
  %v1476 = vpack.c.b16 %v1032, %v1028
  %v1477 = vpack.c.b16 %v1033, %v1029
  %v1478 = vpack.c.b16 %v1034, %v1030
  %v1479 = vpack.c.b16 %v1035, %v1031
  %v1480 = vpack.c.b16 %v1040, %v1036
  %v1481 = vpack.c.b16 %v1041, %v1037
  %v1482 = vpack.c.b16 %v1042, %v1038
  %v1483 = vpack.c.b16 %v1043, %v1039
  %v1484 = vpack.c.b16 %v1048, %v1044
  %v1485 = vpack.c.b16 %v1049, %v1045
  %v1486 = vpack.c.b16 %v1050, %v1046
  %v1487 = vpack.c.b16 %v1051, %v1047
  %v1488 = vpack.c.b16 %v1056, %v1052
  %v1489 = vpack.c.b16 %v1057, %v1053
  %v1490 = vpack.c.b16 %v1058, %v1054
  %v1491 = vpack.c.b16 %v1059, %v1055
  %v1492 = vpack.c.b16 %v1064, %v1060
  %v1493 = vpack.c.b16 %v1065, %v1061
  %v1494 = vpack.c.b16 %v1066, %v1062
  %v1495 = vpack.c.b16 %v1067, %v1063
  %v1496 = vpack.c.b16 %v1072, %v1068
  %v1497 = vpack.c.b16 %v1073, %v1069
  %v1498 = vpack.c.b16 %v1074, %v1070
  %v1499 = vpack.c.b16 %v1075, %v1071
  %v1500 = vpack.c.b16 %v1080, %v1076
  %v1501 = vpack.c.b16 %v1081, %v1077
  %v1502 = vpack.c.b16 %v1082, %v1078
  %v1503 = vpack.c.b16 %v1083, %v1079
  %v1504 = vpack.c.b16 %v1088, %v1084
  %v1505 = vpack.c.b16 %v1089, %v1085
  %v1506 = vpack.c.b16 %v1090, %v1086
  %v1507 = vpack.c.b16 %v1091, %v1087
  %v1508 = vpack.c.b16 %v1096, %v1092
  %v1509 = vpack.c.b16 %v1097, %v1093
  %v1510 = vpack.c.b16 %v1098, %v1094
  %v1511 = vpack.c.b16 %v1099, %v1095
  %v1512 = vpack.c.b16 %v1104, %v1100
  %v1513 = vpack.c.b16 %v1105, %v1101
  %v1514 = vpack.c.b16 %v1106, %v1102
  %v1515 = vpack.c.b16 %v1107, %v1103
  %v1516 = vpack.c.b16 %v1112, %v1108
  %v1517 = vpack.c.b16 %v1113, %v1109
  %v1518 = vpack.c.b16 %v1114, %v1110
  %v1519 = vpack.c.b16 %v1115, %v1111
  %v1520 = vpack.c.b16 %v1120, %v1116
  %v1521 = vpack.c.b16 %v1121, %v1117
  %v1522 = vpack.c.b16 %v1122, %v1118
  %v1523 = vpack.c.b16 %v1123, %v1119
  %v1524 = vpack.c.b16 %v1128, %v1124
  %v1525 = vpack.c.b16 %v1129, %v1125
  %v1526 = vpack.c.b16 %v1130, %v1126
  %v1527 = vpack.c.b16 %v1131, %v1127
  %v1528 = vpack.c.b16 %v1136, %v1132
  %v1529 = vpack.c.b16 %v1137, %v1133
  %v1530 = vpack.c.b16 %v1138, %v1134
  %v1531 = vpack.c.b16 %v1139, %v1135
  %v1532 = vpack.c.b16 %v1144, %v1140
  %v1533 = vpack.c.b16 %v1145, %v1141
  %v1534 = vpack.c.b16 %v1146, %v1142
  %v1535 = vpack.c.b16 %v1147, %v1143
  %v1536 = vpack.c.b16 %v1152, %v1148
  %v1537 = vpack.c.b16 %v1153, %v1149
  %v1538 = vpack.c.b16 %v1154, %v1150
  %v1539 = vpack.c.b16 %v1155, %v1151
  %v1540 = vpack.c.b16 %v1160, %v1156
  %v1541 = vpack.c.b16 %v1161, %v1157
  %v1542 = vpack.c.b16 %v1162, %v1158
  %v1543 = vpack.c.b16 %v1163, %v1159
  %v1544 = vpack.c.b16 %v1168, %v1164
  %v1545 = vpack.c.b16 %v1169, %v1165
  %v1546 = vpack.c.b16 %v1170, %v1166
  %v1547 = vpack.c.b16 %v1171, %v1167
  %v1548 = vpack.c.b16 %v1176, %v1172
  %v1549 = vpack.c.b16 %v1177, %v1173
  %v1550 = vpack.c.b16 %v1178, %v1174
  %v1551 = vpack.c.b16 %v1179, %v1175
  %v1552 = vpack.c.b16 %v1184, %v1180
  %v1553 = vpack.c.b16 %v1185, %v1181
  %v1554 = vpack.c.b16 %v1186, %v1182
  %v1555 = vpack.c.b16 %v1187, %v1183
  %v1556 = vpack.c.b16 %v1192, %v1188
  %v1557 = vpack.c.b16 %v1193, %v1189
  %v1558 = vpack.c.b16 %v1194, %v1190
  %v1559 = vpack.c.b16 %v1195, %v1191
  %v1560 = vpack.c.b16 %v1200, %v1196
  %v1561 = vpack.c.b16 %v1201, %v1197
  %v1562 = vpack.c.b16 %v1202, %v1198
  %v1563 = vpack.c.b16 %v1203, %v1199
  %v1564 = vpack.c.b16 %v1208, %v1204
  %v1565 = vpack.c.b16 %v1209, %v1205
  %v1566 = vpack.c.b16 %v1210, %v1206
  %v1567 = vpack.c.b16 %v1211, %v1207
  %v1568 = vpack.c.b16 %v1216, %v1212
  %v1569 = vpack.c.b16 %v1217, %v1213
  %v1570 = vpack.c.b16 %v1218, %v1214
  %v1571 = vpack.c.b16 %v1219, %v1215
  %v1572 = vpack.c.b16 %v1224, %v1220
  %v1573 = vpack.c.b16 %v1225, %v1221
  %v1574 = vpack.c.b16 %v1226, %v1222
  %v1575 = vpack.c.b16 %v1227, %v1223
  %v1576 = vpack.c.b16 %v1232, %v1228
  %v1577 = vpack.c.b16 %v1233, %v1229
  %v1578 = vpack.c.b16 %v1234, %v1230
  %v1579 = vpack.c.b16 %v1235, %v1231
  %v1580 = vpack.c.b16 %v1240, %v1236
  %v1581 = vpack.c.b16 %v1241, %v1237
  %v1582 = vpack.c.b16 %v1242, %v1238
  %v1583 = vpack.c.b16 %v1243, %v1239
  %v1584 = vpack.c.b16 %v1248, %v1244
  %v1585 = vpack.c.b16 %v1249, %v1245
  %v1586 = vpack.c.b16 %v1250, %v1246
  %v1587 = vpack.c.b16 %v1251, %v1247
  %v1588 = vpack.c.b16 %v1256, %v1252
  %v1589 = vpack.c.b16 %v1257, %v1253
  %v1590 = vpack.c.b16 %v1258, %v1254
  %v1591 = vpack.c.b16 %v1259, %v1255
  %v1592 = vpack.c.b16 %v1264, %v1260
  %v1593 = vpack.c.b16 %v1265, %v1261
  %v1594 = vpack.c.b16 %v1266, %v1262
  %v1595 = vpack.c.b16 %v1267, %v1263
  %v1596 = vpack.c.b16 %v1272, %v1268
  %v1597 = vpack.c.b16 %v1273, %v1269
  %v1598 = vpack.c.b16 %v1274, %v1270
  %v1599 = vpack.c.b16 %v1275, %v1271
  %v1600 = vpack.c.b16 %v1280, %v1276
  %v1601 = vpack.c.b16 %v1281, %v1277
  %v1602 = vpack.c.b16 %v1282, %v1278
  %v1603 = vpack.c.b16 %v1283, %v1279
  %v1604 = vpack.c.b16 %v1288, %v1284
  %v1605 = vpack.c.b16 %v1289, %v1285
  %v1606 = vpack.c.b16 %v1290, %v1286
  %v1607 = vpack.c.b16 %v1291, %v1287
  %v1608 = vpack.c.b16 %v1296, %v1292
  %v1609 = vpack.c.b16 %v1297, %v1293
  %v1610 = vpack.c.b16 %v1298, %v1294
  %v1611 = vpack.c.b16 %v1299, %v1295
  %v1612 = vpack.c.b16 %v1304, %v1300
  %v1613 = vpack.c.b16 %v1305, %v1301
  %v1614 = vpack.c.b16 %v1306, %v1302
  %v1615 = vpack.c.b16 %v1307, %v1303
  %v1616 = vpack.c.b16 %v1312, %v1308
  %v1617 = vpack.c.b16 %v1313, %v1309
  %v1618 = vpack.c.b16 %v1314, %v1310
  %v1619 = vpack.c.b16 %v1315, %v1311
  %v1620 = vpack.c.b16 %v1320, %v1316
  %v1621 = vpack.c.b16 %v1321, %v1317
  %v1622 = vpack.c.b16 %v1322, %v1318
  %v1623 = vpack.c.b16 %v1323, %v1319
  %v1624 = vpack.c.b16 %v1328, %v1324
  %v1625 = vpack.c.b16 %v1329, %v1325
  %v1626 = vpack.c.b16 %v1330, %v1326
  %v1627 = vpack.c.b16 %v1331, %v1327
  %v1628 = vpack.c.b16 %v1336, %v1332
  %v1629 = vpack.c.b16 %v1337, %v1333
  %v1630 = vpack.c.b16 %v1338, %v1334
  %v1631 = vpack.c.b16 %v1339, %v1335
  %v1632 = vpack.c.b16 %v1344, %v1340
  %v1633 = vpack.c.b16 %v1345, %v1341
  %v1634 = vpack.c.b16 %v1346, %v1342
  %v1635 = vpack.c.b16 %v1347, %v1343
  %v1636 = vpack.c.b16 %v1352, %v1348
  %v1637 = vpack.c.b16 %v1353, %v1349
  %v1638 = vpack.c.b16 %v1354, %v1350
  %v1639 = vpack.c.b16 %v1355, %v1351
  %v1640 = vpack.c.b16 %v1360, %v1356
  %v1641 = vpack.c.b16 %v1361, %v1357
  %v1642 = vpack.c.b16 %v1362, %v1358
  %v1643 = vpack.c.b16 %v1363, %v1359
  %v1644 = vpack.c.b16 %v1368, %v1364
  %v1645 = vpack.c.b16 %v1369, %v1365
  %v1646 = vpack.c.b16 %v1370, %v1366
  %v1647 = vpack.c.b16 %v1371, %v1367
  %v1648 = vpack.c.b16 %v1376, %v1372
  %v1649 = vpack.c.b16 %v1377, %v1373
  %v1650 = vpack.c.b16 %v1378, %v1374
  %v1651 = vpack.c.b16 %v1379, %v1375
  %v1652 = vpack.c.b16 %v1384, %v1380
  %v1653 = vpack.c.b16 %v1385, %v1381
  %v1654 = vpack.c.b16 %v1386, %v1382
  %v1655 = vpack.c.b16 %v1387, %v1383
  %v1656 = vpack.c.b16 %v1392, %v1388
  %v1657 = vpack.c.b16 %v1393, %v1389
  %v1658 = vpack.c.b16 %v1394, %v1390
  %v1659 = vpack.c.b16 %v1395, %v1391
  %v1660 = vpack.c.b16 %v1400, %v1396
  %v1661 = vpack.c.b16 %v1401, %v1397
  %v1662 = vpack.c.b16 %v1402, %v1398
  %v1663 = vpack.c.b16 %v1403, %v1399
  %v1664 = vpack.c.b16 %v1408, %v1404
  %v1665 = vpack.c.b16 %v1409, %v1405
  %v1666 = vpack.c.b16 %v1410, %v1406
  %v1667 = vpack.c.b16 %v1411, %v1407
  %1924 = vmatprep.subr.bf16.mxu0 %v1413
  %1925 = vmatpush1.bf16.msra.mxu0 %v1412
  %1926 = vmatprep.subr.bf16.mxu0 %v1417
  %1927 = vmatpush1.bf16.msra.mxu0 %v1416
  %1928 = vmatprep.subr.bf16.mxu0 %v1421
  %1929 = vmatpush1.bf16.msra.mxu0 %v1420
  %1930 = vmatprep.subr.bf16.mxu0 %v1425
  %1931 = vmatpush1.bf16.msra.mxu0 %v1424
  %1932 = vmatprep.subr.bf16.mxu0 %v1429
  %1933 = vmatpush1.bf16.msra.mxu0 %v1428
  %1934 = vmatprep.subr.bf16.mxu0 %v1433
  %1935 = vmatpush1.bf16.msra.mxu0 %v1432
  %1936 = vmatprep.subr.bf16.mxu0 %v1437
  %1937 = vmatpush1.bf16.msra.mxu0 %v1436
  %1938 = vmatprep.subr.bf16.mxu0 %v1441
  %1939 = vmatpush1.bf16.msra.mxu0 %v1440
  %1940 = vmatprep.subr.bf16.mxu0 %v1445
  %1941 = vmatpush1.bf16.msra.mxu0 %v1444
  %1942 = vmatprep.subr.bf16.mxu0 %v1449
  %1943 = vmatpush1.bf16.msra.mxu0 %v1448
  %1944 = vmatprep.subr.bf16.mxu0 %v1453
  %1945 = vmatpush1.bf16.msra.mxu0 %v1452
  %1946 = vmatprep.subr.bf16.mxu0 %v1457
  %1947 = vmatpush1.bf16.msra.mxu0 %v1456
  %1948 = vmatprep.subr.bf16.mxu0 %v1461
  %1949 = vmatpush1.bf16.msra.mxu0 %v1460
  %1950 = vmatprep.subr.bf16.mxu0 %v1465
  %1951 = vmatpush1.bf16.msra.mxu0 %v1464
  %1952 = vmatprep.subr.bf16.mxu0 %v1469
  %1953 = vmatpush1.bf16.msra.mxu0 %v1468
  %1954 = vmatprep.subr.bf16.mxu0 %v1473
  %1955 = vmatpush1.bf16.msra.mxu0 %v1472
  %1956 = vmatprep.mubr.bf16.mxu0 %v359
  %1957 = vmatmul.mubr.bf16.gmra.mrb[0].mxu0 %v358
  %v1958 = vpop.f32.mrb[0].mxu0
  %v1959 = vadd.f32 %v627, %v1958
  %v1960 = vpop.f32.mrb[0].mxu0
  %v1961 = vadd.f32 %v631, %v1960
  %v1962 = vpop.f32.mrb[0].mxu0
  %v1963 = vadd.f32 %v627, %v1962
  %v1964 = vpop.f32.mrb[0].mxu0
  %v1965 = vadd.f32 %v631, %v1964
  %1966 = vdwg.mxu0
  %1967 = vmatprep.subr.bf16.mxu0 %v1477
  %1968 = vmatpush1.bf16.msra.mxu0 %v1476
  %1969 = vmatprep.subr.bf16.mxu0 %v1481
  %1970 = vmatpush1.bf16.msra.mxu0 %v1480
  %1971 = vmatprep.subr.bf16.mxu0 %v1485
  %1972 = vmatpush1.bf16.msra.mxu0 %v1484
  %1973 = vmatprep.subr.bf16.mxu0 %v1489
  %1974 = vmatpush1.bf16.msra.mxu0 %v1488
  %1975 = vmatprep.subr.bf16.mxu0 %v1493
  %1976 = vmatpush1.bf16.msra.mxu0 %v1492
  %1977 = vmatprep.subr.bf16.mxu0 %v1497
  %1978 = vmatpush1.bf16.msra.mxu0 %v1496
  %1979 = vmatprep.subr.bf16.mxu0 %v1501
  %1980 = vmatpush1.bf16.msra.mxu0 %v1500
  %1981 = vmatprep.subr.bf16.mxu0 %v1505
  %1982 = vmatpush1.bf16.msra.mxu0 %v1504
  %1983 = vmatprep.subr.bf16.mxu0 %v1509
  %1984 = vmatpush1.bf16.msra.mxu0 %v1508
  %1985 = vmatprep.subr.bf16.mxu0 %v1513
  %1986 = vmatpush1.bf16.msra.mxu0 %v1512
  %1987 = vmatprep.subr.bf16.mxu0 %v1517
  %1988 = vmatpush1.bf16.msra.mxu0 %v1516
  %1989 = vmatprep.subr.bf16.mxu0 %v1521
  %1990 = vmatpush1.bf16.msra.mxu0 %v1520
  %1991 = vmatprep.subr.bf16.mxu0 %v1525
  %1992 = vmatpush1.bf16.msra.mxu0 %v1524
  %1993 = vmatprep.subr.bf16.mxu0 %v1529
  %1994 = vmatpush1.bf16.msra.mxu0 %v1528
  %1995 = vmatprep.subr.bf16.mxu0 %v1533
  %1996 = vmatpush1.bf16.msra.mxu0 %v1532
  %1997 = vmatprep.subr.bf16.mxu0 %v1537
  %1998 = vmatpush1.bf16.msra.mxu0 %v1536
  %1999 = vmatprep.mubr.bf16.mxu0 %v361
  %2000 = vmatmul.mubr.bf16.gmra.mrb[0].mxu0 %v360
  %v2001 = vpop.f32.mrb[0].mxu0
  %v2002 = vadd.f32 %v1959, %v2001
  %v2003 = vpop.f32.mrb[0].mxu0
  %v2004 = vadd.f32 %v1961, %v2003
  %v2005 = vpop.f32.mrb[0].mxu0
  %v2006 = vadd.f32 %v1963, %v2005
  %v2007 = vpop.f32.mrb[0].mxu0
  %v2008 = vadd.f32 %v1965, %v2007
  %2009 = vdwg.mxu0
  %2010 = vmatprep.subr.bf16.mxu0 %v1541
  %2011 = vmatpush1.bf16.msra.mxu0 %v1540
  %2012 = vmatprep.subr.bf16.mxu0 %v1545
  %2013 = vmatpush1.bf16.msra.mxu0 %v1544
  %2014 = vmatprep.subr.bf16.mxu0 %v1549
  %2015 = vmatpush1.bf16.msra.mxu0 %v1548
  %2016 = vmatprep.subr.bf16.mxu0 %v1553
  %2017 = vmatpush1.bf16.msra.mxu0 %v1552
  %2018 = vmatprep.subr.bf16.mxu0 %v1557
  %2019 = vmatpush1.bf16.msra.mxu0 %v1556
  %2020 = vmatprep.subr.bf16.mxu0 %v1561
  %2021 = vmatpush1.bf16.msra.mxu0 %v1560
  %2022 = vmatprep.subr.bf16.mxu0 %v1565
  %2023 = vmatpush1.bf16.msra.mxu0 %v1564
  %2024 = vmatprep.subr.bf16.mxu0 %v1569
  %2025 = vmatpush1.bf16.msra.mxu0 %v1568
  %2026 = vmatprep.subr.bf16.mxu0 %v1573
  %2027 = vmatpush1.bf16.msra.mxu0 %v1572
  %2028 = vmatprep.subr.bf16.mxu0 %v1577
  %2029 = vmatpush1.bf16.msra.mxu0 %v1576
  %2030 = vmatprep.subr.bf16.mxu0 %v1581
  %2031 = vmatpush1.bf16.msra.mxu0 %v1580
  %2032 = vmatprep.subr.bf16.mxu0 %v1585
  %2033 = vmatpush1.bf16.msra.mxu0 %v1584
  %2034 = vmatprep.subr.bf16.mxu0 %v1589
  %2035 = vmatpush1.bf16.msra.mxu0 %v1588
  %2036 = vmatprep.subr.bf16.mxu0 %v1593
  %2037 = vmatpush1.bf16.msra.mxu0 %v1592
  %2038 = vmatprep.subr.bf16.mxu0 %v1597
  %2039 = vmatpush1.bf16.msra.mxu0 %v1596
  %2040 = vmatprep.subr.bf16.mxu0 %v1601
  %2041 = vmatpush1.bf16.msra.mxu0 %v1600
  %2042 = vmatprep.mubr.bf16.mxu0 %v363
  %2043 = vmatmul.mubr.bf16.gmra.mrb[0].mxu0 %v362
  %v2044 = vpop.f32.mrb[0].mxu0
  %v2045 = vadd.f32 %v2002, %v2044
  %v2046 = vpop.f32.mrb[0].mxu0
  %v2047 = vadd.f32 %v2004, %v2046
  %v2048 = vpop.f32.mrb[0].mxu0
  %v2049 = vadd.f32 %v2006, %v2048
  %v2050 = vpop.f32.mrb[0].mxu0
  %v2051 = vadd.f32 %v2008, %v2050
  %2052 = vdwg.mxu0
  %2053 = vmatprep.subr.bf16.mxu0 %v1605
  %2054 = vmatpush1.bf16.msra.mxu0 %v1604
  %2055 = vmatprep.subr.bf16.mxu0 %v1609
  %2056 = vmatpush1.bf16.msra.mxu0 %v1608
  %2057 = vmatprep.subr.bf16.mxu0 %v1613
  %2058 = vmatpush1.bf16.msra.mxu0 %v1612
  %2059 = vmatprep.subr.bf16.mxu0 %v1617
  %2060 = vmatpush1.bf16.msra.mxu0 %v1616
  %2061 = vmatprep.subr.bf16.mxu0 %v1621
  %2062 = vmatpush1.bf16.msra.mxu0 %v1620
  %2063 = vmatprep.subr.bf16.mxu0 %v1625
  %2064 = vmatpush1.bf16.msra.mxu0 %v1624
  %2065 = vmatprep.subr.bf16.mxu0 %v1629
  %2066 = vmatpush1.bf16.msra.mxu0 %v1628
  %2067 = vmatprep.subr.bf16.mxu0 %v1633
  %2068 = vmatpush1.bf16.msra.mxu0 %v1632
  %2069 = vmatprep.subr.bf16.mxu0 %v1637
  %2070 = vmatpush1.bf16.msra.mxu0 %v1636
  %2071 = vmatprep.subr.bf16.mxu0 %v1641
  %2072 = vmatpush1.bf16.msra.mxu0 %v1640
  %2073 = vmatprep.subr.bf16.mxu0 %v1645
  %2074 = vmatpush1.bf16.msra.mxu0 %v1644
  %2075 = vmatprep.subr.bf16.mxu0 %v1649
  %2076 = vmatpush1.bf16.msra.mxu0 %v1648
  %2077 = vmatprep.subr.bf16.mxu0 %v1653
  %2078 = vmatpush1.bf16.msra.mxu0 %v1652
  %2079 = vmatprep.subr.bf16.mxu0 %v1657
  %2080 = vmatpush1.bf16.msra.mxu0 %v1656
  %2081 = vmatprep.subr.bf16.mxu0 %v1661
  %2082 = vmatpush1.bf16.msra.mxu0 %v1660
  %2083 = vmatprep.subr.bf16.mxu0 %v1665
  %2084 = vmatpush1.bf16.msra.mxu0 %v1664
  %2085 = vmatprep.mubr.bf16.mxu0 %v365
  %2086 = vmatmul.mubr.bf16.gmra.mrb[0].mxu0 %v364
  %v2087 = vpop.f32.mrb[0].mxu0
  %v2088 = vadd.f32 %v2045, %v2087
  %v2089 = vpop.f32.mrb[0].mxu0
  %v2090 = vadd.f32 %v2047, %v2089
  %v2091 = vpop.f32.mrb[0].mxu0
  %v2092 = vadd.f32 %v2049, %v2091
  %v2093 = vpop.f32.mrb[0].mxu0
  %v2094 = vadd.f32 %v2051, %v2093
  %2095 = vdwg.mxu0
  %2096 = vmatprep.subr.bf16.mxu0 %v1415
  %2097 = vmatpush1.bf16.msra.mxu0 %v1414
  %2098 = vmatprep.subr.bf16.mxu0 %v1419
  %2099 = vmatpush1.bf16.msra.mxu0 %v1418
  %2100 = vmatprep.subr.bf16.mxu0 %v1423
  %2101 = vmatpush1.bf16.msra.mxu0 %v1422
  %2102 = vmatprep.subr.bf16.mxu0 %v1427
  %2103 = vmatpush1.bf16.msra.mxu0 %v1426
  %2104 = vmatprep.subr.bf16.mxu0 %v1431
  %2105 = vmatpush1.bf16.msra.mxu0 %v1430
  %2106 = vmatprep.subr.bf16.mxu0 %v1435
  %2107 = vmatpush1.bf16.msra.mxu0 %v1434
  %2108 = vmatprep.subr.bf16.mxu0 %v1439
  %2109 = vmatpush1.bf16.msra.mxu0 %v1438
  %2110 = vmatprep.subr.bf16.mxu0 %v1443
  %2111 = vmatpush1.bf16.msra.mxu0 %v1442
  %2112 = vmatprep.subr.bf16.mxu0 %v1447
  %2113 = vmatpush1.bf16.msra.mxu0 %v1446
  %2114 = vmatprep.subr.bf16.mxu0 %v1451
  %2115 = vmatpush1.bf16.msra.mxu0 %v1450
  %2116 = vmatprep.subr.bf16.mxu0 %v1455
  %2117 = vmatpush1.bf16.msra.mxu0 %v1454
  %2118 = vmatprep.subr.bf16.mxu0 %v1459
  %2119 = vmatpush1.bf16.msra.mxu0 %v1458
  %2120 = vmatprep.subr.bf16.mxu0 %v1463
  %2121 = vmatpush1.bf16.msra.mxu0 %v1462
  %2122 = vmatprep.subr.bf16.mxu0 %v1467
  %2123 = vmatpush1.bf16.msra.mxu0 %v1466
  %2124 = vmatprep.subr.bf16.mxu0 %v1471
  %2125 = vmatpush1.bf16.msra.mxu0 %v1470
  %2126 = vmatprep.subr.bf16.mxu0 %v1475
  %2127 = vmatpush1.bf16.msra.mxu0 %v1474
  %2128 = vmatprep.mubr.bf16.mxu0 %v359
  %2129 = vmatmul.mubr.bf16.gmra.mrb[0].mxu0 %v358
  %v2130 = vpop.f32.mrb[0].mxu0
  %v2131 = vadd.f32 %v635, %v2130
  %v2132 = vpop.f32.mrb[0].mxu0
  %v2133 = vadd.f32 %v639, %v2132
  %v2134 = vpop.f32.mrb[0].mxu0
  %v2135 = vadd.f32 %v635, %v2134
  %v2136 = vpop.f32.mrb[0].mxu0
  %v2137 = vadd.f32 %v639, %v2136
  %2138 = vdwg.mxu0
  %2139 = vmatprep.subr.bf16.mxu0 %v1479
  %2140 = vmatpush1.bf16.msra.mxu0 %v1478
  %2141 = vmatprep.subr.bf16.mxu0 %v1483
  %2142 = vmatpush1.bf16.msra.mxu0 %v1482
  %2143 = vmatprep.subr.bf16.mxu0 %v1487
  %2144 = vmatpush1.bf16.msra.mxu0 %v1486
  %2145 = vmatprep.subr.bf16.mxu0 %v1491
  %2146 = vmatpush1.bf16.msra.mxu0 %v1490
  %2147 = vmatprep.subr.bf16.mxu0 %v1495
  %2148 = vmatpush1.bf16.msra.mxu0 %v1494
  %2149 = vmatprep.subr.bf16.mxu0 %v1499
  %2150 = vmatpush1.bf16.msra.mxu0 %v1498
  %2151 = vmatprep.subr.bf16.mxu0 %v1503
  %2152 = vmatpush1.bf16.msra.mxu0 %v1502
  %2153 = vmatprep.subr.bf16.mxu0 %v1507
  %2154 = vmatpush1.bf16.msra.mxu0 %v1506
  %2155 = vmatprep.subr.bf16.mxu0 %v1511
  %2156 = vmatpush1.bf16.msra.mxu0 %v1510
  %2157 = vmatprep.subr.bf16.mxu0 %v1515
  %2158 = vmatpush1.bf16.msra.mxu0 %v1514
  %2159 = vmatprep.subr.bf16.mxu0 %v1519
  %2160 = vmatpush1.bf16.msra.mxu0 %v1518
  %2161 = vmatprep.subr.bf16.mxu0 %v1523
  %2162 = vmatpush1.bf16.msra.mxu0 %v1522
  %2163 = vmatprep.subr.bf16.mxu0 %v1527
  %2164 = vmatpush1.bf16.msra.mxu0 %v1526
  %2165 = vmatprep.subr.bf16.mxu0 %v1531
  %2166 = vmatpush1.bf16.msra.mxu0 %v1530
  %2167 = vmatprep.subr.bf16.mxu0 %v1535
  %2168 = vmatpush1.bf16.msra.mxu0 %v1534
  %2169 = vmatprep.subr.bf16.mxu0 %v1539
  %2170 = vmatpush1.bf16.msra.mxu0 %v1538
  %2171 = vmatprep.mubr.bf16.mxu0 %v361
  %2172 = vmatmul.mubr.bf16.gmra.mrb[0].mxu0 %v360
  %v2173 = vpop.f32.mrb[0].mxu0
  %v2174 = vadd.f32 %v2131, %v2173
  %v2175 = vpop.f32.mrb[0].mxu0
  %v2176 = vadd.f32 %v2133, %v2175
  %v2177 = vpop.f32.mrb[0].mxu0
  %v2178 = vadd.f32 %v2135, %v2177
  %v2179 = vpop.f32.mrb[0].mxu0
  %v2180 = vadd.f32 %v2137, %v2179
  %2181 = vdwg.mxu0
  %2182 = vmatprep.subr.bf16.mxu0 %v1543
  %2183 = vmatpush1.bf16.msra.mxu0 %v1542
  %2184 = vmatprep.subr.bf16.mxu0 %v1547
  %2185 = vmatpush1.bf16.msra.mxu0 %v1546
  %2186 = vmatprep.subr.bf16.mxu0 %v1551
  %2187 = vmatpush1.bf16.msra.mxu0 %v1550
  %2188 = vmatprep.subr.bf16.mxu0 %v1555
  %2189 = vmatpush1.bf16.msra.mxu0 %v1554
  %2190 = vmatprep.subr.bf16.mxu0 %v1559
  %2191 = vmatpush1.bf16.msra.mxu0 %v1558
  %2192 = vmatprep.subr.bf16.mxu0 %v1563
  %2193 = vmatpush1.bf16.msra.mxu0 %v1562
  %2194 = vmatprep.subr.bf16.mxu0 %v1567
  %2195 = vmatpush1.bf16.msra.mxu0 %v1566
  %2196 = vmatprep.subr.bf16.mxu0 %v1571
  %2197 = vmatpush1.bf16.msra.mxu0 %v1570
  %2198 = vmatprep.subr.bf16.mxu0 %v1575
  %2199 = vmatpush1.bf16.msra.mxu0 %v1574
  %2200 = vmatprep.subr.bf16.mxu0 %v1579
  %2201 = vmatpush1.bf16.msra.mxu0 %v1578
  %2202 = vmatprep.subr.bf16.mxu0 %v1583
  %2203 = vmatpush1.bf16.msra.mxu0 %v1582
  %2204 = vmatprep.subr.bf16.mxu0 %v1587
  %2205 = vmatpush1.bf16.msra.mxu0 %v1586
  %2206 = vmatprep.subr.bf16.mxu0 %v1591
  %2207 = vmatpush1.bf16.msra.mxu0 %v1590
  %2208 = vmatprep.subr.bf16.mxu0 %v1595
  %2209 = vmatpush1.bf16.msra.mxu0 %v1594
  %2210 = vmatprep.subr.bf16.mxu0 %v1599
  %2211 = vmatpush1.bf16.msra.mxu0 %v1598
  %2212 = vmatprep.subr.bf16.mxu0 %v1603
  %2213 = vmatpush1.bf16.msra.mxu0 %v1602
  %2214 = vmatprep.mubr.bf16.mxu0 %v363
  %2215 = vmatmul.mubr.bf16.gmra.mrb[0].mxu0 %v362
  %v2216 = vpop.f32.mrb[0].mxu0
  %v2217 = vadd.f32 %v2174, %v2216
  %v2218 = vpop.f32.mrb[0].mxu0
  %v2219 = vadd.f32 %v2176, %v2218
  %v2220 = vpop.f32.mrb[0].mxu0
  %v2221 = vadd.f32 %v2178, %v2220
  %v2222 = vpop.f32.mrb[0].mxu0
  %v2223 = vadd.f32 %v2180, %v2222
  %2224 = vdwg.mxu0
  %2225 = vmatprep.subr.bf16.mxu0 %v1607
  %2226 = vmatpush1.bf16.msra.mxu0 %v1606
  %2227 = vmatprep.subr.bf16.mxu0 %v1611
  %2228 = vmatpush1.bf16.msra.mxu0 %v1610
  %2229 = vmatprep.subr.bf16.mxu0 %v1615
  %2230 = vmatpush1.bf16.msra.mxu0 %v1614
  %2231 = vmatprep.subr.bf16.mxu0 %v1619
  %2232 = vmatpush1.bf16.msra.mxu0 %v1618
  %2233 = vmatprep.subr.bf16.mxu0 %v1623
  %2234 = vmatpush1.bf16.msra.mxu0 %v1622
  %2235 = vmatprep.subr.bf16.mxu0 %v1627
  %2236 = vmatpush1.bf16.msra.mxu0 %v1626
  %2237 = vmatprep.subr.bf16.mxu0 %v1631
  %2238 = vmatpush1.bf16.msra.mxu0 %v1630
  %2239 = vmatprep.subr.bf16.mxu0 %v1635
  %2240 = vmatpush1.bf16.msra.mxu0 %v1634
  %2241 = vmatprep.subr.bf16.mxu0 %v1639
  %2242 = vmatpush1.bf16.msra.mxu0 %v1638
  %2243 = vmatprep.subr.bf16.mxu0 %v1643
  %2244 = vmatpush1.bf16.msra.mxu0 %v1642
  %2245 = vmatprep.subr.bf16.mxu0 %v1647
  %2246 = vmatpush1.bf16.msra.mxu0 %v1646
  %2247 = vmatprep.subr.bf16.mxu0 %v1651
  %2248 = vmatpush1.bf16.msra.mxu0 %v1650
  %2249 = vmatprep.subr.bf16.mxu0 %v1655
  %2250 = vmatpush1.bf16.msra.mxu0 %v1654
  %2251 = vmatprep.subr.bf16.mxu0 %v1659
  %2252 = vmatpush1.bf16.msra.mxu0 %v1658
  %2253 = vmatprep.subr.bf16.mxu0 %v1663
  %2254 = vmatpush1.bf16.msra.mxu0 %v1662
  %2255 = vmatprep.subr.bf16.mxu0 %v1667
  %2256 = vmatpush1.bf16.msra.mxu0 %v1666
  %2257 = vmatprep.mubr.bf16.mxu0 %v365
  %2258 = vmatmul.mubr.bf16.gmra.mrb[0].mxu0 %v364
  %v2259 = vpop.f32.mrb[0].mxu0
  %v2260 = vadd.f32 %v2217, %v2259
  %v2261 = vpop.f32.mrb[0].mxu0
  %v2262 = vadd.f32 %v2219, %v2261
  %v2263 = vpop.f32.mrb[0].mxu0
  %v2264 = vadd.f32 %v2221, %v2263
  %v2265 = vpop.f32.mrb[0].mxu0
  %v2266 = vadd.f32 %v2223, %v2265
  %2267 = vdwg.mxu0
  %2268 = vst [vmem:[%s5] sm:$0xff] %v2088
  %2269 = vst [vmem:[%s5 + $0x8] sm:$0xff] %v2090
  %2270 = vst [vmem:[%s5 + $0x10] sm:$0xff] %v2260
  %2271 = vst [vmem:[%s5 + $0x18] sm:$0xff] %v2262
  %2272 = vst [vmem:[%s5 + $0x20] sm:$0xff] %v2092
  %2273 = vst [vmem:[%s5 + $0x28] sm:$0xff] %v2094
  %2274 = vst [vmem:[%s5 + $0x30] sm:$0xff] %v2264
  %2275 = vst [vmem:[%s5 + $0x38] sm:$0xff] %v2266
  // Predicated region
  $region22: #{nature_cnn_forward.8} parent=0 // pred_check
    _
  $region23: #{nature_cnn_forward.8} parent=0 // pred_check_branch
    %2277 = sbr.rel (0) target = $region25
  $region24: #{nature_cnn_forward.8} parent=0 // pred_region
    _
  $region25: #{nature_cnn_forward.8} parent=0 // pred_fallthru
    _
  // Predicated region
  $region26: #{nature_cnn_forward.8} parent=0 // pred_check
    _
  $region27: #{nature_cnn_forward.8} parent=0 // pred_check_branch
    %2279 = sbr.rel (0) target = $region29
  $region28: #{nature_cnn_forward.8} parent=0 // pred_region
    _
  $region29: #{nature_cnn_forward.8} parent=0 // pred_fallthru
    _

// kernel: nature_cnn_forward.9
$region0: #{nature_cnn_forward.9}
  #allocation0 [shape = 'u32[]', space=smem, size = 0x4, offset = 0x4, fixed_abs, tag = 'smem constant byte address 0x4 - core index']
  #allocation1 [shape = 'u32[144,128]{1,0:T(1,128)}', space=vmem, size = 0x12000, scoped, tag = 'internal scratch']
  %s0 = inlined_call_operand.vmem [shape: f32[4,8,576], index: 0, kind: input, shape index: {}]
  %s1 = inlined_call_operand.vmem [shape: f32[4,8,576], index: 1, kind: input, shape index: {}]
  %s2 = inlined_call_operand.vmem [shape: f32[576,512], index: 2, kind: input, shape index: {}]
  %s3 = inlined_call_operand.vmem [shape: f32[128,512], index: 3, kind: input, shape index: {}]
  %s4 = inlined_call_operand.vmem [shape: f32[1,512], index: 4, kind: input, shape index: {}]
  %s5 = inlined_call_operand.vmem [shape: f32[128,512], index: 5, kind: input, shape index: {}]
  %s6 = inlined_call_operand.vmem [shape: f32[128,512], index: 6, kind: input, shape index: {}]
  %s7 = inlined_call_operand.vmem [shape: f32[1,512], index: 7, kind: input, shape index: {}]
  %s8 = inlined_call_operand.vmem [shape: f32[576,512], index: 8, kind: input, shape index: {}]
  %s9 = inlined_call_operand.vmem [shape: f32[128,512], index: 9, kind: input, shape index: {}]
  %s10 = inlined_call_operand.vmem [shape: f32[1,512], index: 10, kind: input, shape index: {}]
  %s11 = inlined_call_operand.vmem [shape: f32[128,512], index: 11, kind: input, shape index: {}]
  %s12 = inlined_call_operand.vmem [shape: f32[128,512], index: 12, kind: input, shape index: {}]
  %s13 = inlined_call_operand.vmem [shape: f32[1,512], index: 13, kind: input, shape index: {}]
  %s14 = inlined_call_operand.vmem [shape: f32[256,512], index: 14, kind: input, shape index: {}]
  %s15 = inlined_call_operand.vmem [shape: f32[1,512], index: 15, kind: input, shape index: {}]
  %s16 = inlined_call_operand.vmem [shape: f32[512,16], index: 16, kind: input, shape index: {}]
  %s17 = inlined_call_operand.vmem [shape: f32[1,16], index: 17, kind: input, shape index: {}]
  %s18 = inlined_call_operand.vmem [shape: f32[8,16], index: 18, kind: output, shape index: {}]
  %s19 = sld [smem:[#allocation0]]
  $region82: #{nature_cnn_forward.9} parent=0
    _
  %s21 = ssub.s32 1, %s19
  %s22 = scalar_select 0, %s21, %s19
  // Predicated region
  $region2: #{nature_cnn_forward.9} parent=0 // pred_check
    _
  $region3: #{nature_cnn_forward.9} parent=0 // pred_check_branch
    %24 = sbr.rel (0) target = $region5
  $region4: #{nature_cnn_forward.9} parent=0 // pred_region
    _
  $region5: #{nature_cnn_forward.9} parent=0 // pred_fallthru
    _
  // Predicated region
  $region6: #{nature_cnn_forward.9} parent=0 // pred_check
    _
  $region7: #{nature_cnn_forward.9} parent=0 // pred_check_branch
    %26 = sbr.rel (0) target = $region9
  $region8: #{nature_cnn_forward.9} parent=0 // pred_region
    _
  $region9: #{nature_cnn_forward.9} parent=0 // pred_fallthru
    _
  // Predicated region
  $region10: #{nature_cnn_forward.9} parent=0 // pred_check
    _
  $region11: #{nature_cnn_forward.9} parent=0 // pred_check_branch
    %28 = sbr.rel (0) target = $region13
  $region12: #{nature_cnn_forward.9} parent=0 // pred_region
    _
  $region13: #{nature_cnn_forward.9} parent=0 // pred_fallthru
    _
  // Predicated region
  $region14: #{nature_cnn_forward.9} parent=0 // pred_check
    _
  $region15: #{nature_cnn_forward.9} parent=0 // pred_check_branch
    %30 = sbr.rel (0) target = $region17
  $region16: #{nature_cnn_forward.9} parent=0 // pred_region
    _
  $region17: #{nature_cnn_forward.9} parent=0 // pred_fallthru
    _
  // Predicated region
  $region18: #{nature_cnn_forward.9} parent=0 // pred_check
    _
  $region19: #{nature_cnn_forward.9} parent=0 // pred_check_branch
    %32 = sbr.rel (0) target = $region21
  $region20: #{nature_cnn_forward.9} parent=0 // pred_region
    _
  $region21: #{nature_cnn_forward.9} parent=0 // pred_fallthru
    _
  // Predicated region
  $region22: #{nature_cnn_forward.9} parent=0 // pred_check
    _
  $region23: #{nature_cnn_forward.9} parent=0 // pred_check_branch
    %34 = sbr.rel (0) target = $region25
  $region24: #{nature_cnn_forward.9} parent=0 // pred_region
    _
  $region25: #{nature_cnn_forward.9} parent=0 // pred_fallthru
    _
  // Predicated region
  $region26: #{nature_cnn_forward.9} parent=0 // pred_check
    _
  $region27: #{nature_cnn_forward.9} parent=0 // pred_check_branch
    %36 = sbr.rel (0) target = $region29
  $region28: #{nature_cnn_forward.9} parent=0 // pred_region
    _
  $region29: #{nature_cnn_forward.9} parent=0 // pred_fallthru
    _
  // Predicated region
  $region30: #{nature_cnn_forward.9} parent=0 // pred_check
    _
  $region31: #{nature_cnn_forward.9} parent=0 // pred_check_branch
    %38 = sbr.rel (0) target = $region33
  $region32: #{nature_cnn_forward.9} parent=0 // pred_region
    _
  $region33: #{nature_cnn_forward.9} parent=0 // pred_fallthru
    _
  // Predicated region
  $region34: #{nature_cnn_forward.9} parent=0 // pred_check
    _
  $region35: #{nature_cnn_forward.9} parent=0 // pred_check_branch
    %40 = sbr.rel (0) target = $region37
  $region36: #{nature_cnn_forward.9} parent=0 // pred_region
    _
  $region37: #{nature_cnn_forward.9} parent=0 // pred_fallthru
    _
  // Predicated region
  $region38: #{nature_cnn_forward.9} parent=0 // pred_check
    _
  $region39: #{nature_cnn_forward.9} parent=0 // pred_check_branch
    %42 = sbr.rel (0) target = $region41
  $region40: #{nature_cnn_forward.9} parent=0 // pred_region
    _
  $region41: #{nature_cnn_forward.9} parent=0 // pred_fallthru
    _
  // Predicated region
  $region42: #{nature_cnn_forward.9} parent=0 // pred_check
    _
  $region43: #{nature_cnn_forward.9} parent=0 // pred_check_branch
    %44 = sbr.rel (0) target = $region45
  $region44: #{nature_cnn_forward.9} parent=0 // pred_region
    _
  $region45: #{nature_cnn_forward.9} parent=0 // pred_fallthru
    _
  // Predicated region
  $region46: #{nature_cnn_forward.9} parent=0 // pred_check
    _
  $region47: #{nature_cnn_forward.9} parent=0 // pred_check_branch
    %46 = sbr.rel (0) target = $region49
  $region48: #{nature_cnn_forward.9} parent=0 // pred_region
    _
  $region49: #{nature_cnn_forward.9} parent=0 // pred_fallthru
    _
  // Predicated region
  $region50: #{nature_cnn_forward.9} parent=0 // pred_check
    _
  $region51: #{nature_cnn_forward.9} parent=0 // pred_check_branch
    %48 = sbr.rel (0) target = $region53
  $region52: #{nature_cnn_forward.9} parent=0 // pred_region
    _
  $region53: #{nature_cnn_forward.9} parent=0 // pred_fallthru
    _
  // Predicated region
  $region54: #{nature_cnn_forward.9} parent=0 // pred_check
    _
  $region55: #{nature_cnn_forward.9} parent=0 // pred_check_branch
    %50 = sbr.rel (0) target = $region57
  $region56: #{nature_cnn_forward.9} parent=0 // pred_region
    _
  $region57: #{nature_cnn_forward.9} parent=0 // pred_fallthru
    _
  // Predicated region
  $region58: #{nature_cnn_forward.9} parent=0 // pred_check
    _
  $region59: #{nature_cnn_forward.9} parent=0 // pred_check_branch
    %52 = sbr.rel (0) target = $region61
  $region60: #{nature_cnn_forward.9} parent=0 // pred_region
    _
  $region61: #{nature_cnn_forward.9} parent=0 // pred_fallthru
    _
  // Predicated region
  $region62: #{nature_cnn_forward.9} parent=0 // pred_check
    _
  $region63: #{nature_cnn_forward.9} parent=0 // pred_check_branch
    %54 = sbr.rel (0) target = $region65
  $region64: #{nature_cnn_forward.9} parent=0 // pred_region
    _
  $region65: #{nature_cnn_forward.9} parent=0 // pred_fallthru
    _
  // Predicated region
  $region66: #{nature_cnn_forward.9} parent=0 // pred_check
    _
  $region67: #{nature_cnn_forward.9} parent=0 // pred_check_branch
    %56 = sbr.rel (0) target = $region69
  $region68: #{nature_cnn_forward.9} parent=0 // pred_region
    _
  $region69: #{nature_cnn_forward.9} parent=0 // pred_fallthru
    _
  // Predicated region
  $region70: #{nature_cnn_forward.9} parent=0 // pred_check
    _
  $region71: #{nature_cnn_forward.9} parent=0 // pred_check_branch
    %58 = sbr.rel (0) target = $region73
  $region72: #{nature_cnn_forward.9} parent=0 // pred_region
    _
  $region73: #{nature_cnn_forward.9} parent=0 // pred_fallthru
    _
  %v59 = vld [vmem:[%s0] sm:$0xff]
  %v60 = vld [vmem:[%s0 + $0x8] sm:$0xff]
  %v61 = vld [vmem:[%s0 + $0x10] sm:$0xff]
  %v62 = vld [vmem:[%s0 + $0x18] sm:$0xff]
  %v63 = vld [vmem:[%s0 + $0x20] sm:$0xff]
  %v64 = vld [vmem:[%s0 + $0x28] sm:$0xff]
  %v65 = vld [vmem:[%s0 + $0x30] sm:$0xff]
  %v66 = vld [vmem:[%s0 + $0x38] sm:$0xff]
  %v67 = vld [vmem:[%s0 + $0x40] sm:$0xff]
  %v68 = vld [vmem:[%s0 + $0x48] sm:$0xff]
  %v69 = vld [vmem:[%s0 + $0x50] sm:$0xff]
  %v70 = vld [vmem:[%s0 + $0x58] sm:$0xff]
  %v71 = vld [vmem:[%s0 + $0x60] sm:$0xff]
  %v72 = vld [vmem:[%s0 + $0x68] sm:$0xff]
  %v73 = vld [vmem:[%s0 + $0x70] sm:$0xff]
  %v74 = vld [vmem:[%s0 + $0x78] sm:$0xff]
  %v75 = vld [vmem:[%s0 + $0x80] sm:$0xff]
  %v76 = vld [vmem:[%s0 + $0x88] sm:$0xff]
  %v77 = vld [vmem:[%s0 + $0x90] sm:$0xff]
  %v78 = vld [vmem:[%s0 + $0x98] sm:$0xff]
  %v79 = vld [vmem:[%s2] sm:$0xff]
  %v80 = vld [vmem:[%s2 + $0x8] sm:$0xff]
  %v81 = vld [vmem:[%s2 + $0x10] sm:$0xff]
  %v82 = vld [vmem:[%s2 + $0x18] sm:$0xff]
  %v83 = vld [vmem:[%s2 + $0x20] sm:$0xff]
  %v84 = vld [vmem:[%s2 + $0x28] sm:$0xff]
  %v85 = vld [vmem:[%s2 + $0x30] sm:$0xff]
  %v86 = vld [vmem:[%s2 + $0x38] sm:$0xff]
  %v87 = vld [vmem:[%s2 + $0x40] sm:$0xff]
  %v88 = vld [vmem:[%s2 + $0x48] sm:$0xff]
  %v89 = vld [vmem:[%s2 + $0x50] sm:$0xff]
  %v90 = vld [vmem:[%s2 + $0x58] sm:$0xff]
  %v91 = vld [vmem:[%s2 + $0x60] sm:$0xff]
  %v92 = vld [vmem:[%s2 + $0x68] sm:$0xff]
  %v93 = vld [vmem:[%s2 + $0x70] sm:$0xff]
  %v94 = vld [vmem:[%s2 + $0x78] sm:$0xff]
  %v95 = vld [vmem:[%s2 + $0x80] sm:$0xff]
  %v96 = vld [vmem:[%s2 + $0x88] sm:$0xff]
  %v97 = vld [vmem:[%s2 + $0x90] sm:$0xff]
  %v98 = vld [vmem:[%s2 + $0x98] sm:$0xff]
  %v99 = vld [vmem:[%s2 + $0xa0] sm:$0xff]
  %v100 = vld [vmem:[%s2 + $0xa8] sm:$0xff]
  %v101 = vld [vmem:[%s2 + $0xb0] sm:$0xff]
  %v102 = vld [vmem:[%s2 + $0xb8] sm:$0xff]
  %v103 = vld [vmem:[%s2 + $0xc0] sm:$0xff]
  %v104 = vld [vmem:[%s2 + $0xc8] sm:$0xff]
  %v105 = vld [vmem:[%s2 + $0xd0] sm:$0xff]
  %v106 = vld [vmem:[%s2 + $0xd8] sm:$0xff]
  %v107 = vld [vmem:[%s2 + $0xe0] sm:$0xff]
  %v108 = vld [vmem:[%s2 + $0xe8] sm:$0xff]
  %v109 = vld [vmem:[%s2 + $0xf0] sm:$0xff]
  %v110 = vld [vmem:[%s2 + $0xf8] sm:$0xff]
  %v111 = vld [vmem:[%s2 + $0x100] sm:$0xff]
  %v112 = vld [vmem:[%s2 + $0x108] sm:$0xff]
  %v113 = vld [vmem:[%s2 + $0x110] sm:$0xff]
  %v114 = vld [vmem:[%s2 + $0x118] sm:$0xff]
  %v115 = vld [vmem:[%s2 + $0x120] sm:$0xff]
  %v116 = vld [vmem:[%s2 + $0x128] sm:$0xff]
  %v117 = vld [vmem:[%s2 + $0x130] sm:$0xff]
  %v118 = vld [vmem:[%s2 + $0x138] sm:$0xff]
  %v119 = vld [vmem:[%s2 + $0x140] sm:$0xff]
  %v120 = vld [vmem:[%s2 + $0x148] sm:$0xff]
  %v121 = vld [vmem:[%s2 + $0x150] sm:$0xff]
  %v122 = vld [vmem:[%s2 + $0x158] sm:$0xff]
  %v123 = vld [vmem:[%s2 + $0x160] sm:$0xff]
  %v124 = vld [vmem:[%s2 + $0x168] sm:$0xff]
  %v125 = vld [vmem:[%s2 + $0x170] sm:$0xff]
  %v126 = vld [vmem:[%s2 + $0x178] sm:$0xff]
  %v127 = vld [vmem:[%s2 + $0x180] sm:$0xff]
  %v128 = vld [vmem:[%s2 + $0x188] sm:$0xff]
  %v129 = vld [vmem:[%s2 + $0x190] sm:$0xff]
  %v130 = vld [vmem:[%s2 + $0x198] sm:$0xff]
  %v131 = vld [vmem:[%s2 + $0x1a0] sm:$0xff]
  %v132 = vld [vmem:[%s2 + $0x1a8] sm:$0xff]
  %v133 = vld [vmem:[%s2 + $0x1b0] sm:$0xff]
  %v134 = vld [vmem:[%s2 + $0x1b8] sm:$0xff]
  %v135 = vld [vmem:[%s2 + $0x1c0] sm:$0xff]
  %v136 = vld [vmem:[%s2 + $0x1c8] sm:$0xff]
  %v137 = vld [vmem:[%s2 + $0x1d0] sm:$0xff]
  %v138 = vld [vmem:[%s2 + $0x1d8] sm:$0xff]
  %v139 = vld [vmem:[%s2 + $0x1e0] sm:$0xff]
  %v140 = vld [vmem:[%s2 + $0x1e8] sm:$0xff]
  %v141 = vld [vmem:[%s2 + $0x1f0] sm:$0xff]
  %v142 = vld [vmem:[%s2 + $0x1f8] sm:$0xff]
  %v143 = vld [vmem:[%s2 + $0x200] sm:$0xff]
  %v144 = vld [vmem:[%s2 + $0x208] sm:$0xff]
  %v145 = vld [vmem:[%s2 + $0x210] sm:$0xff]
  %v146 = vld [vmem:[%s2 + $0x218] sm:$0xff]
  %v147 = vld [vmem:[%s2 + $0x220] sm:$0xff]
  %v148 = vld [vmem:[%s2 + $0x228] sm:$0xff]
  %v149 = vld [vmem:[%s2 + $0x230] sm:$0xff]
  %v150 = vld [vmem:[%s2 + $0x238] sm:$0xff]
  %v151 = vld [vmem:[%s2 + $0x240] sm:$0xff]
  %v152 = vld [vmem:[%s2 + $0x248] sm:$0xff]
  %v153 = vld [vmem:[%s2 + $0x250] sm:$0xff]
  %v154 = vld [vmem:[%s2 + $0x258] sm:$0xff]
  %v155 = vld [vmem:[%s2 + $0x260] sm:$0xff]
  %v156 = vld [vmem:[%s2 + $0x268] sm:$0xff]
  %v157 = vld [vmem:[%s2 + $0x270] sm:$0xff]
  %v158 = vld [vmem:[%s2 + $0x278] sm:$0xff]
  %v159 = vld [vmem:[%s2 + $0x280] sm:$0xff]
  %v160 = vld [vmem:[%s2 + $0x288] sm:$0xff]
  %v161 = vld [vmem:[%s2 + $0x290] sm:$0xff]
  %v162 = vld [vmem:[%s2 + $0x298] sm:$0xff]
  %v163 = vld [vmem:[%s2 + $0x2a0] sm:$0xff]
  %v164 = vld [vmem:[%s2 + $0x2a8] sm:$0xff]
  %v165 = vld [vmem:[%s2 + $0x2b0] sm:$0xff]
  %v166 = vld [vmem:[%s2 + $0x2b8] sm:$0xff]
  %v167 = vld [vmem:[%s2 + $0x2c0] sm:$0xff]
  %v168 = vld [vmem:[%s2 + $0x2c8] sm:$0xff]
  %v169 = vld [vmem:[%s2 + $0x2d0] sm:$0xff]
  %v170 = vld [vmem:[%s2 + $0x2d8] sm:$0xff]
  %v171 = vld [vmem:[%s2 + $0x2e0] sm:$0xff]
  %v172 = vld [vmem:[%s2 + $0x2e8] sm:$0xff]
  %v173 = vld [vmem:[%s2 + $0x2f0] sm:$0xff]
  %v174 = vld [vmem:[%s2 + $0x2f8] sm:$0xff]
  %v175 = vld [vmem:[%s2 + $0x300] sm:$0xff]
  %v176 = vld [vmem:[%s2 + $0x308] sm:$0xff]
  %v177 = vld [vmem:[%s2 + $0x310] sm:$0xff]
  %v178 = vld [vmem:[%s2 + $0x318] sm:$0xff]
  %v179 = vld [vmem:[%s2 + $0x320] sm:$0xff]
  %v180 = vld [vmem:[%s2 + $0x328] sm:$0xff]
  %v181 = vld [vmem:[%s2 + $0x330] sm:$0xff]
  %v182 = vld [vmem:[%s2 + $0x338] sm:$0xff]
  %v183 = vld [vmem:[%s2 + $0x340] sm:$0xff]
  %v184 = vld [vmem:[%s2 + $0x348] sm:$0xff]
  %v185 = vld [vmem:[%s2 + $0x350] sm:$0xff]
  %v186 = vld [vmem:[%s2 + $0x358] sm:$0xff]
  %v187 = vld [vmem:[%s2 + $0x360] sm:$0xff]
  %v188 = vld [vmem:[%s2 + $0x368] sm:$0xff]
  %v189 = vld [vmem:[%s2 + $0x370] sm:$0xff]
  %v190 = vld [vmem:[%s2 + $0x378] sm:$0xff]
  %v191 = vld [vmem:[%s2 + $0x380] sm:$0xff]
  %v192 = vld [vmem:[%s2 + $0x388] sm:$0xff]
  %v193 = vld [vmem:[%s2 + $0x390] sm:$0xff]
  %v194 = vld [vmem:[%s2 + $0x398] sm:$0xff]
  %v195 = vld [vmem:[%s2 + $0x3a0] sm:$0xff]
  %v196 = vld [vmem:[%s2 + $0x3a8] sm:$0xff]
  %v197 = vld [vmem:[%s2 + $0x3b0] sm:$0xff]
  %v198 = vld [vmem:[%s2 + $0x3b8] sm:$0xff]
  %v199 = vld [vmem:[%s2 + $0x3c0] sm:$0xff]
  %v200 = vld [vmem:[%s2 + $0x3c8] sm:$0xff]
  %v201 = vld [vmem:[%s2 + $0x3d0] sm:$0xff]
  %v202 = vld [vmem:[%s2 + $0x3d8] sm:$0xff]
  %v203 = vld [vmem:[%s2 + $0x3e0] sm:$0xff]
  %v204 = vld [vmem:[%s2 + $0x3e8] sm:$0xff]
  %v205 = vld [vmem:[%s2 + $0x3f0] sm:$0xff]
  %v206 = vld [vmem:[%s2 + $0x3f8] sm:$0xff]
  %v207 = vld [vmem:[%s2 + $0x400] sm:$0xff]
  %v208 = vld [vmem:[%s2 + $0x408] sm:$0xff]
  %v209 = vld [vmem:[%s2 + $0x410] sm:$0xff]
  %v210 = vld [vmem:[%s2 + $0x418] sm:$0xff]
  %v211 = vld [vmem:[%s2 + $0x420] sm:$0xff]
  %v212 = vld [vmem:[%s2 + $0x428] sm:$0xff]
  %v213 = vld [vmem:[%s2 + $0x430] sm:$0xff]
  %v214 = vld [vmem:[%s2 + $0x438] sm:$0xff]
  %v215 = vld [vmem:[%s2 + $0x440] sm:$0xff]
  %v216 = vld [vmem:[%s2 + $0x448] sm:$0xff]
  %v217 = vld [vmem:[%s2 + $0x450] sm:$0xff]
  %v218 = vld [vmem:[%s2 + $0x458] sm:$0xff]
  %v219 = vld [vmem:[%s2 + $0x460] sm:$0xff]
  %v220 = vld [vmem:[%s2 + $0x468] sm:$0xff]
  %v221 = vld [vmem:[%s2 + $0x470] sm:$0xff]
  %v222 = vld [vmem:[%s2 + $0x478] sm:$0xff]
  %v223 = vld [vmem:[%s2 + $0x480] sm:$0xff]
  %v224 = vld [vmem:[%s2 + $0x488] sm:$0xff]
  %v225 = vld [vmem:[%s2 + $0x490] sm:$0xff]
  %v226 = vld [vmem:[%s2 + $0x498] sm:$0xff]
  %v227 = vld [vmem:[%s2 + $0x4a0] sm:$0xff]
  %v228 = vld [vmem:[%s2 + $0x4a8] sm:$0xff]
  %v229 = vld [vmem:[%s2 + $0x4b0] sm:$0xff]
  %v230 = vld [vmem:[%s2 + $0x4b8] sm:$0xff]
  %v231 = vld [vmem:[%s2 + $0x4c0] sm:$0xff]
  %v232 = vld [vmem:[%s2 + $0x4c8] sm:$0xff]
  %v233 = vld [vmem:[%s2 + $0x4d0] sm:$0xff]
  %v234 = vld [vmem:[%s2 + $0x4d8] sm:$0xff]
  %v235 = vld [vmem:[%s2 + $0x4e0] sm:$0xff]
  %v236 = vld [vmem:[%s2 + $0x4e8] sm:$0xff]
  %v237 = vld [vmem:[%s2 + $0x4f0] sm:$0xff]
  %v238 = vld [vmem:[%s2 + $0x4f8] sm:$0xff]
  %v239 = vld [vmem:[%s2 + $0x500] sm:$0xff]
  %v240 = vld [vmem:[%s2 + $0x508] sm:$0xff]
  %v241 = vld [vmem:[%s2 + $0x510] sm:$0xff]
  %v242 = vld [vmem:[%s2 + $0x518] sm:$0xff]
  %v243 = vld [vmem:[%s2 + $0x520] sm:$0xff]
  %v244 = vld [vmem:[%s2 + $0x528] sm:$0xff]
  %v245 = vld [vmem:[%s2 + $0x530] sm:$0xff]
  %v246 = vld [vmem:[%s2 + $0x538] sm:$0xff]
  %v247 = vld [vmem:[%s2 + $0x540] sm:$0xff]
  %v248 = vld [vmem:[%s2 + $0x548] sm:$0xff]
  %v249 = vld [vmem:[%s2 + $0x550] sm:$0xff]
  %v250 = vld [vmem:[%s2 + $0x558] sm:$0xff]
  %v251 = vld [vmem:[%s2 + $0x560] sm:$0xff]
  %v252 = vld [vmem:[%s2 + $0x568] sm:$0xff]
  %v253 = vld [vmem:[%s2 + $0x570] sm:$0xff]
  %v254 = vld [vmem:[%s2 + $0x578] sm:$0xff]
  %v255 = vld [vmem:[%s2 + $0x580] sm:$0xff]
  %v256 = vld [vmem:[%s2 + $0x588] sm:$0xff]
  %v257 = vld [vmem:[%s2 + $0x590] sm:$0xff]
  %v258 = vld [vmem:[%s2 + $0x598] sm:$0xff]
  %v259 = vld [vmem:[%s2 + $0x5a0] sm:$0xff]
  %v260 = vld [vmem:[%s2 + $0x5a8] sm:$0xff]
  %v261 = vld [vmem:[%s2 + $0x5b0] sm:$0xff]
  %v262 = vld [vmem:[%s2 + $0x5b8] sm:$0xff]
  %v263 = vld [vmem:[%s2 + $0x5c0] sm:$0xff]
  %v264 = vld [vmem:[%s2 + $0x5c8] sm:$0xff]
  %v265 = vld [vmem:[%s2 + $0x5d0] sm:$0xff]
  %v266 = vld [vmem:[%s2 + $0x5d8] sm:$0xff]
  %v267 = vld [vmem:[%s2 + $0x5e0] sm:$0xff]
  %v268 = vld [vmem:[%s2 + $0x5e8] sm:$0xff]
  %v269 = vld [vmem:[%s2 + $0x5f0] sm:$0xff]
  %v270 = vld [vmem:[%s2 + $0x5f8] sm:$0xff]
  %v271 = vld [vmem:[%s2 + $0x600] sm:$0xff]
  %v272 = vld [vmem:[%s2 + $0x608] sm:$0xff]
  %v273 = vld [vmem:[%s2 + $0x610] sm:$0xff]
  %v274 = vld [vmem:[%s2 + $0x618] sm:$0xff]
  %v275 = vld [vmem:[%s2 + $0x620] sm:$0xff]
  %v276 = vld [vmem:[%s2 + $0x628] sm:$0xff]
  %v277 = vld [vmem:[%s2 + $0x630] sm:$0xff]
  %v278 = vld [vmem:[%s2 + $0x638] sm:$0xff]
  %v279 = vld [vmem:[%s2 + $0x640] sm:$0xff]
  %v280 = vld [vmem:[%s2 + $0x648] sm:$0xff]
  %v281 = vld [vmem:[%s2 + $0x650] sm:$0xff]
  %v282 = vld [vmem:[%s2 + $0x658] sm:$0xff]
  %v283 = vld [vmem:[%s2 + $0x660] sm:$0xff]
  %v284 = vld [vmem:[%s2 + $0x668] sm:$0xff]
  %v285 = vld [vmem:[%s2 + $0x670] sm:$0xff]
  %v286 = vld [vmem:[%s2 + $0x678] sm:$0xff]
  %v287 = vld [vmem:[%s2 + $0x680] sm:$0xff]
  %v288 = vld [vmem:[%s2 + $0x688] sm:$0xff]
  %v289 = vld [vmem:[%s2 + $0x690] sm:$0xff]
  %v290 = vld [vmem:[%s2 + $0x698] sm:$0xff]
  %v291 = vld [vmem:[%s2 + $0x6a0] sm:$0xff]
  %v292 = vld [vmem:[%s2 + $0x6a8] sm:$0xff]
  %v293 = vld [vmem:[%s2 + $0x6b0] sm:$0xff]
  %v294 = vld [vmem:[%s2 + $0x6b8] sm:$0xff]
  %v295 = vld [vmem:[%s2 + $0x6c0] sm:$0xff]
  %v296 = vld [vmem:[%s2 + $0x6c8] sm:$0xff]
  %v297 = vld [vmem:[%s2 + $0x6d0] sm:$0xff]
  %v298 = vld [vmem:[%s2 + $0x6d8] sm:$0xff]
  %v299 = vld [vmem:[%s2 + $0x6e0] sm:$0xff]
  %v300 = vld [vmem:[%s2 + $0x6e8] sm:$0xff]
  %v301 = vld [vmem:[%s2 + $0x6f0] sm:$0xff]
  %v302 = vld [vmem:[%s2 + $0x6f8] sm:$0xff]
  %v303 = vld [vmem:[%s2 + $0x700] sm:$0xff]
  %v304 = vld [vmem:[%s2 + $0x708] sm:$0xff]
  %v305 = vld [vmem:[%s2 + $0x710] sm:$0xff]
  %v306 = vld [vmem:[%s2 + $0x718] sm:$0xff]
  %v307 = vld [vmem:[%s2 + $0x720] sm:$0xff]
  %v308 = vld [vmem:[%s2 + $0x728] sm:$0xff]
  %v309 = vld [vmem:[%s2 + $0x730] sm:$0xff]
  %v310 = vld [vmem:[%s2 + $0x738] sm:$0xff]
  %v311 = vld [vmem:[%s2 + $0x740] sm:$0xff]
  %v312 = vld [vmem:[%s2 + $0x748] sm:$0xff]
  %v313 = vld [vmem:[%s2 + $0x750] sm:$0xff]
  %v314 = vld [vmem:[%s2 + $0x758] sm:$0xff]
  %v315 = vld [vmem:[%s2 + $0x760] sm:$0xff]
  %v316 = vld [vmem:[%s2 + $0x768] sm:$0xff]
  %v317 = vld [vmem:[%s2 + $0x770] sm:$0xff]
  %v318 = vld [vmem:[%s2 + $0x778] sm:$0xff]
  %v319 = vld [vmem:[%s2 + $0x780] sm:$0xff]
  %v320 = vld [vmem:[%s2 + $0x788] sm:$0xff]
  %v321 = vld [vmem:[%s2 + $0x790] sm:$0xff]
  %v322 = vld [vmem:[%s2 + $0x798] sm:$0xff]
  %v323 = vld [vmem:[%s2 + $0x7a0] sm:$0xff]
  %v324 = vld [vmem:[%s2 + $0x7a8] sm:$0xff]
  %v325 = vld [vmem:[%s2 + $0x7b0] sm:$0xff]
  %v326 = vld [vmem:[%s2 + $0x7b8] sm:$0xff]
  %v327 = vld [vmem:[%s2 + $0x7c0] sm:$0xff]
  %v328 = vld [vmem:[%s2 + $0x7c8] sm:$0xff]
  %v329 = vld [vmem:[%s2 + $0x7d0] sm:$0xff]
  %v330 = vld [vmem:[%s2 + $0x7d8] sm:$0xff]
  %v331 = vld [vmem:[%s2 + $0x7e0] sm:$0xff]
  %v332 = vld [vmem:[%s2 + $0x7e8] sm:$0xff]
  %v333 = vld [vmem:[%s2 + $0x7f0] sm:$0xff]
  %v334 = vld [vmem:[%s2 + $0x7f8] sm:$0xff]
  %v335 = vld [vmem:[%s2 + $0x800] sm:$0xff]
  %v336 = vld [vmem:[%s2 + $0x808] sm:$0xff]
  %v337 = vld [vmem:[%s2 + $0x810] sm:$0xff]
  %v338 = vld [vmem:[%s2 + $0x818] sm:$0xff]
  %v339 = vld [vmem:[%s2 + $0x820] sm:$0xff]
  %v340 = vld [vmem:[%s2 + $0x828] sm:$0xff]
  %v341 = vld [vmem:[%s2 + $0x830] sm:$0xff]
  %v342 = vld [vmem:[%s2 + $0x838] sm:$0xff]
  %v343 = vld [vmem:[%s2 + $0x840] sm:$0xff]
  %v344 = vld [vmem:[%s2 + $0x848] sm:$0xff]
  %v345 = vld [vmem:[%s2 + $0x850] sm:$0xff]
  %v346 = vld [vmem:[%s2 + $0x858] sm:$0xff]
  %v347 = vld [vmem:[%s2 + $0x860] sm:$0xff]
  %v348 = vld [vmem:[%s2 + $0x868] sm:$0xff]
  %v349 = vld [vmem:[%s2 + $0x870] sm:$0xff]
  %v350 = vld [vmem:[%s2 + $0x878] sm:$0xff]
  %v351 = vld [vmem:[%s2 + $0x880] sm:$0xff]
  %v352 = vld [vmem:[%s2 + $0x888] sm:$0xff]
  %v353 = vld [vmem:[%s2 + $0x890] sm:$0xff]
  %v354 = vld [vmem:[%s2 + $0x898] sm:$0xff]
  %v355 = vld [vmem:[%s2 + $0x8a0] sm:$0xff]
  %v356 = vld [vmem:[%s2 + $0x8a8] sm:$0xff]
  %v357 = vld [vmem:[%s2 + $0x8b0] sm:$0xff]
  %v358 = vld [vmem:[%s2 + $0x8b8] sm:$0xff]
  %v359 = vld [vmem:[%s2 + $0x8c0] sm:$0xff]
  %v360 = vld [vmem:[%s2 + $0x8c8] sm:$0xff]
  %v361 = vld [vmem:[%s2 + $0x8d0] sm:$0xff]
  %v362 = vld [vmem:[%s2 + $0x8d8] sm:$0xff]
  %v363 = vld [vmem:[%s2 + $0x8e0] sm:$0xff]
  %v364 = vld [vmem:[%s2 + $0x8e8] sm:$0xff]
  %v365 = vld [vmem:[%s2 + $0x8f0] sm:$0xff]
  %v366 = vld [vmem:[%s2 + $0x8f8] sm:$0xff]
  %v367 = vld [vmem:[%s3] sm:$0xff]
  %v368 = vld [vmem:[%s3 + $0x8] sm:$0xff]
  %v369 = vld [vmem:[%s3 + $0x10] sm:$0xff]
  %v370 = vld [vmem:[%s3 + $0x18] sm:$0xff]
  %v371 = vld [vmem:[%s3 + $0x20] sm:$0xff]
  %v372 = vld [vmem:[%s3 + $0x28] sm:$0xff]
  %v373 = vld [vmem:[%s3 + $0x30] sm:$0xff]
  %v374 = vld [vmem:[%s3 + $0x38] sm:$0xff]
  %v375 = vld [vmem:[%s3 + $0x40] sm:$0xff]
  %v376 = vld [vmem:[%s3 + $0x48] sm:$0xff]
  %v377 = vld [vmem:[%s3 + $0x50] sm:$0xff]
  %v378 = vld [vmem:[%s3 + $0x58] sm:$0xff]
  %v379 = vld [vmem:[%s3 + $0x60] sm:$0xff]
  %v380 = vld [vmem:[%s3 + $0x68] sm:$0xff]
  %v381 = vld [vmem:[%s3 + $0x70] sm:$0xff]
  %v382 = vld [vmem:[%s3 + $0x78] sm:$0xff]
  %v383 = vld [vmem:[%s3 + $0x80] sm:$0xff]
  %v384 = vld [vmem:[%s3 + $0x88] sm:$0xff]
  %v385 = vld [vmem:[%s3 + $0x90] sm:$0xff]
  %v386 = vld [vmem:[%s3 + $0x98] sm:$0xff]
  %v387 = vld [vmem:[%s3 + $0xa0] sm:$0xff]
  %v388 = vld [vmem:[%s3 + $0xa8] sm:$0xff]
  %v389 = vld [vmem:[%s3 + $0xb0] sm:$0xff]
  %v390 = vld [vmem:[%s3 + $0xb8] sm:$0xff]
  %v391 = vld [vmem:[%s3 + $0xc0] sm:$0xff]
  %v392 = vld [vmem:[%s3 + $0xc8] sm:$0xff]
  %v393 = vld [vmem:[%s3 + $0xd0] sm:$0xff]
  %v394 = vld [vmem:[%s3 + $0xd8] sm:$0xff]
  %v395 = vld [vmem:[%s3 + $0xe0] sm:$0xff]
  %v396 = vld [vmem:[%s3 + $0xe8] sm:$0xff]
  %v397 = vld [vmem:[%s3 + $0xf0] sm:$0xff]
  %v398 = vld [vmem:[%s3 + $0xf8] sm:$0xff]
  %v399 = vld [vmem:[%s3 + $0x100] sm:$0xff]
  %v400 = vld [vmem:[%s3 + $0x108] sm:$0xff]
  %v401 = vld [vmem:[%s3 + $0x110] sm:$0xff]
  %v402 = vld [vmem:[%s3 + $0x118] sm:$0xff]
  %v403 = vld [vmem:[%s3 + $0x120] sm:$0xff]
  %v404 = vld [vmem:[%s3 + $0x128] sm:$0xff]
  %v405 = vld [vmem:[%s3 + $0x130] sm:$0xff]
  %v406 = vld [vmem:[%s3 + $0x138] sm:$0xff]
  %v407 = vld [vmem:[%s3 + $0x140] sm:$0xff]
  %v408 = vld [vmem:[%s3 + $0x148] sm:$0xff]
  %v409 = vld [vmem:[%s3 + $0x150] sm:$0xff]
  %v410 = vld [vmem:[%s3 + $0x158] sm:$0xff]
  %v411 = vld [vmem:[%s3 + $0x160] sm:$0xff]
  %v412 = vld [vmem:[%s3 + $0x168] sm:$0xff]
  %v413 = vld [vmem:[%s3 + $0x170] sm:$0xff]
  %v414 = vld [vmem:[%s3 + $0x178] sm:$0xff]
  %v415 = vld [vmem:[%s3 + $0x180] sm:$0xff]
  %v416 = vld [vmem:[%s3 + $0x188] sm:$0xff]
  %v417 = vld [vmem:[%s3 + $0x190] sm:$0xff]
  %v418 = vld [vmem:[%s3 + $0x198] sm:$0xff]
  %v419 = vld [vmem:[%s3 + $0x1a0] sm:$0xff]
  %v420 = vld [vmem:[%s3 + $0x1a8] sm:$0xff]
  %v421 = vld [vmem:[%s3 + $0x1b0] sm:$0xff]
  %v422 = vld [vmem:[%s3 + $0x1b8] sm:$0xff]
  %v423 = vld [vmem:[%s3 + $0x1c0] sm:$0xff]
  %v424 = vld [vmem:[%s3 + $0x1c8] sm:$0xff]
  %v425 = vld [vmem:[%s3 + $0x1d0] sm:$0xff]
  %v426 = vld [vmem:[%s3 + $0x1d8] sm:$0xff]
  %v427 = vld [vmem:[%s3 + $0x1e0] sm:$0xff]
  %v428 = vld [vmem:[%s3 + $0x1e8] sm:$0xff]
  %v429 = vld [vmem:[%s3 + $0x1f0] sm:$0xff]
  %v430 = vld [vmem:[%s3 + $0x1f8] sm:$0xff]
  %v431 = vld [vmem:[%s4] sm:$0xf]
  %v432 = vld [vmem:[%s5] sm:$0xff]
  %v433 = vld [vmem:[%s5 + $0x8] sm:$0xff]
  %v434 = vld [vmem:[%s5 + $0x10] sm:$0xff]
  %v435 = vld [vmem:[%s5 + $0x18] sm:$0xff]
  %v436 = vld [vmem:[%s5 + $0x20] sm:$0xff]
  %v437 = vld [vmem:[%s5 + $0x28] sm:$0xff]
  %v438 = vld [vmem:[%s5 + $0x30] sm:$0xff]
  %v439 = vld [vmem:[%s5 + $0x38] sm:$0xff]
  %v440 = vld [vmem:[%s5 + $0x40] sm:$0xff]
  %v441 = vld [vmem:[%s5 + $0x48] sm:$0xff]
  %v442 = vld [vmem:[%s5 + $0x50] sm:$0xff]
  %v443 = vld [vmem:[%s5 + $0x58] sm:$0xff]
  %v444 = vld [vmem:[%s5 + $0x60] sm:$0xff]
  %v445 = vld [vmem:[%s5 + $0x68] sm:$0xff]
  %v446 = vld [vmem:[%s5 + $0x70] sm:$0xff]
  %v447 = vld [vmem:[%s5 + $0x78] sm:$0xff]
  %v448 = vld [vmem:[%s5 + $0x80] sm:$0xff]
  %v449 = vld [vmem:[%s5 + $0x88] sm:$0xff]
  %v450 = vld [vmem:[%s5 + $0x90] sm:$0xff]
  %v451 = vld [vmem:[%s5 + $0x98] sm:$0xff]
  %v452 = vld [vmem:[%s5 + $0xa0] sm:$0xff]
  %v453 = vld [vmem:[%s5 + $0xa8] sm:$0xff]
  %v454 = vld [vmem:[%s5 + $0xb0] sm:$0xff]
  %v455 = vld [vmem:[%s5 + $0xb8] sm:$0xff]
  %v456 = vld [vmem:[%s5 + $0xc0] sm:$0xff]
  %v457 = vld [vmem:[%s5 + $0xc8] sm:$0xff]
  %v458 = vld [vmem:[%s5 + $0xd0] sm:$0xff]
  %v459 = vld [vmem:[%s5 + $0xd8] sm:$0xff]
  %v460 = vld [vmem:[%s5 + $0xe0] sm:$0xff]
  %v461 = vld [vmem:[%s5 + $0xe8] sm:$0xff]
  %v462 = vld [vmem:[%s5 + $0xf0] sm:$0xff]
  %v463 = vld [vmem:[%s5 + $0xf8] sm:$0xff]
  %v464 = vld [vmem:[%s5 + $0x100] sm:$0xff]
  %v465 = vld [vmem:[%s5 + $0x108] sm:$0xff]
  %v466 = vld [vmem:[%s5 + $0x110] sm:$0xff]
  %v467 = vld [vmem:[%s5 + $0x118] sm:$0xff]
  %v468 = vld [vmem:[%s5 + $0x120] sm:$0xff]
  %v469 = vld [vmem:[%s5 + $0x128] sm:$0xff]
  %v470 = vld [vmem:[%s5 + $0x130] sm:$0xff]
  %v471 = vld [vmem:[%s5 + $0x138] sm:$0xff]
  %v472 = vld [vmem:[%s5 + $0x140] sm:$0xff]
  %v473 = vld [vmem:[%s5 + $0x148] sm:$0xff]
  %v474 = vld [vmem:[%s5 + $0x150] sm:$0xff]
  %v475 = vld [vmem:[%s5 + $0x158] sm:$0xff]
  %v476 = vld [vmem:[%s5 + $0x160] sm:$0xff]
  %v477 = vld [vmem:[%s5 + $0x168] sm:$0xff]
  %v478 = vld [vmem:[%s5 + $0x170] sm:$0xff]
  %v479 = vld [vmem:[%s5 + $0x178] sm:$0xff]
  %v480 = vld [vmem:[%s5 + $0x180] sm:$0xff]
  %v481 = vld [vmem:[%s5 + $0x188] sm:$0xff]
  %v482 = vld [vmem:[%s5 + $0x190] sm:$0xff]
  %v483 = vld [vmem:[%s5 + $0x198] sm:$0xff]
  %v484 = vld [vmem:[%s5 + $0x1a0] sm:$0xff]
  %v485 = vld [vmem:[%s5 + $0x1a8] sm:$0xff]
  %v486 = vld [vmem:[%s5 + $0x1b0] sm:$0xff]
  %v487 = vld [vmem:[%s5 + $0x1b8] sm:$0xff]
  %v488 = vld [vmem:[%s5 + $0x1c0] sm:$0xff]
  %v489 = vld [vmem:[%s5 + $0x1c8] sm:$0xff]
  %v490 = vld [vmem:[%s5 + $0x1d0] sm:$0xff]
  %v491 = vld [vmem:[%s5 + $0x1d8] sm:$0xff]
  %v492 = vld [vmem:[%s5 + $0x1e0] sm:$0xff]
  %v493 = vld [vmem:[%s5 + $0x1e8] sm:$0xff]
  %v494 = vld [vmem:[%s5 + $0x1f0] sm:$0xff]
  %v495 = vld [vmem:[%s5 + $0x1f8] sm:$0xff]
  %v496 = vld [vmem:[%s6] sm:$0xff]
  %v497 = vld [vmem:[%s6 + $0x8] sm:$0xff]
  %v498 = vld [vmem:[%s6 + $0x10] sm:$0xff]
  %v499 = vld [vmem:[%s6 + $0x18] sm:$0xff]
  %v500 = vld [vmem:[%s6 + $0x20] sm:$0xff]
  %v501 = vld [vmem:[%s6 + $0x28] sm:$0xff]
  %v502 = vld [vmem:[%s6 + $0x30] sm:$0xff]
  %v503 = vld [vmem:[%s6 + $0x38] sm:$0xff]
  %v504 = vld [vmem:[%s6 + $0x40] sm:$0xff]
  %v505 = vld [vmem:[%s6 + $0x48] sm:$0xff]
  %v506 = vld [vmem:[%s6 + $0x50] sm:$0xff]
  %v507 = vld [vmem:[%s6 + $0x58] sm:$0xff]
  %v508 = vld [vmem:[%s6 + $0x60] sm:$0xff]
  %v509 = vld [vmem:[%s6 + $0x68] sm:$0xff]
  %v510 = vld [vmem:[%s6 + $0x70] sm:$0xff]
  %v511 = vld [vmem:[%s6 + $0x78] sm:$0xff]
  %v512 = vld [vmem:[%s6 + $0x80] sm:$0xff]
  %v513 = vld [vmem:[%s6 + $0x88] sm:$0xff]
  %v514 = vld [vmem:[%s6 + $0x90] sm:$0xff]
  %v515 = vld [vmem:[%s6 + $0x98] sm:$0xff]
  %v516 = vld [vmem:[%s6 + $0xa0] sm:$0xff]
  %v517 = vld [vmem:[%s6 + $0xa8] sm:$0xff]
  %v518 = vld [vmem:[%s6 + $0xb0] sm:$0xff]
  %v519 = vld [vmem:[%s6 + $0xb8] sm:$0xff]
  %v520 = vld [vmem:[%s6 + $0xc0] sm:$0xff]
  %v521 = vld [vmem:[%s6 + $0xc8] sm:$0xff]
  %v522 = vld [vmem:[%s6 + $0xd0] sm:$0xff]
  %v523 = vld [vmem:[%s6 + $0xd8] sm:$0xff]
  %v524 = vld [vmem:[%s6 + $0xe0] sm:$0xff]
  %v525 = vld [vmem:[%s6 + $0xe8] sm:$0xff]
  %v526 = vld [vmem:[%s6 + $0xf0] sm:$0xff]
  %v527 = vld [vmem:[%s6 + $0xf8] sm:$0xff]
  %v528 = vld [vmem:[%s6 + $0x100] sm:$0xff]
  %v529 = vld [vmem:[%s6 + $0x108] sm:$0xff]
  %v530 = vld [vmem:[%s6 + $0x110] sm:$0xff]
  %v531 = vld [vmem:[%s6 + $0x118] sm:$0xff]
  %v532 = vld [vmem:[%s6 + $0x120] sm:$0xff]
  %v533 = vld [vmem:[%s6 + $0x128] sm:$0xff]
  %v534 = vld [vmem:[%s6 + $0x130] sm:$0xff]
  %v535 = vld [vmem:[%s6 + $0x138] sm:$0xff]
  %v536 = vld [vmem:[%s6 + $0x140] sm:$0xff]
  %v537 = vld [vmem:[%s6 + $0x148] sm:$0xff]
  %v538 = vld [vmem:[%s6 + $0x150] sm:$0xff]
  %v539 = vld [vmem:[%s6 + $0x158] sm:$0xff]
  %v540 = vld [vmem:[%s6 + $0x160] sm:$0xff]
  %v541 = vld [vmem:[%s6 + $0x168] sm:$0xff]
  %v542 = vld [vmem:[%s6 + $0x170] sm:$0xff]
  %v543 = vld [vmem:[%s6 + $0x178] sm:$0xff]
  %v544 = vld [vmem:[%s6 + $0x180] sm:$0xff]
  %v545 = vld [vmem:[%s6 + $0x188] sm:$0xff]
  %v546 = vld [vmem:[%s6 + $0x190] sm:$0xff]
  %v547 = vld [vmem:[%s6 + $0x198] sm:$0xff]
  %v548 = vld [vmem:[%s6 + $0x1a0] sm:$0xff]
  %v549 = vld [vmem:[%s6 + $0x1a8] sm:$0xff]
  %v550 = vld [vmem:[%s6 + $0x1b0] sm:$0xff]
  %v551 = vld [vmem:[%s6 + $0x1b8] sm:$0xff]
  %v552 = vld [vmem:[%s6 + $0x1c0] sm:$0xff]
  %v553 = vld [vmem:[%s6 + $0x1c8] sm:$0xff]
  %v554 = vld [vmem:[%s6 + $0x1d0] sm:$0xff]
  %v555 = vld [vmem:[%s6 + $0x1d8] sm:$0xff]
  %v556 = vld [vmem:[%s6 + $0x1e0] sm:$0xff]
  %v557 = vld [vmem:[%s6 + $0x1e8] sm:$0xff]
  %v558 = vld [vmem:[%s6 + $0x1f0] sm:$0xff]
  %v559 = vld [vmem:[%s6 + $0x1f8] sm:$0xff]
  %v560 = vld [vmem:[%s7] sm:$0xf]
  %v562 = vlaneseq
  %v563 = vshrl.u32 %v562, 7
  %v564 = vsub.s32 0, %v563
  %v565 = vrot.slane %v431, %v564
  %v566 = vlaneseq
  %v567 = vshrl.u32 %v566, 7
  %v568 = vsub.s32 1, %v567
  %v569 = vrot.slane %v431, %v568
  %v570 = vlaneseq
  %v571 = vshrl.u32 %v570, 7
  %v572 = vsub.s32 2, %v571
  %v573 = vrot.slane %v431, %v572
  %v574 = vlaneseq
  %v575 = vshrl.u32 %v574, 7
  %v576 = vsub.s32 3, %v575
  %v577 = vrot.slane %v431, %v576
  %vm582 = vcmask 523264
  %v584 = vsel %vm582, %v63, 0
  %v587 = vsel %vm582, %v68, 0
  %v590 = vsel %vm582, %v73, 0
  %v593 = vsel %vm582, %v78, 0
  %595 = vmatprep.subr.mxu0 %v80
  %596 = vmatpush1.msra.mxu0 %v79
  %597 = vmatprep.subr.mxu0 %v84
  %598 = vmatpush1.msra.mxu0 %v83
  %599 = vmatprep.subr.mxu0 %v88
  %600 = vmatpush1.msra.mxu0 %v87
  %601 = vmatprep.subr.mxu0 %v92
  %602 = vmatpush1.msra.mxu0 %v91
  %603 = vmatprep.subr.mxu0 %v96
  %604 = vmatpush1.msra.mxu0 %v95
  %605 = vmatprep.subr.mxu0 %v100
  %606 = vmatpush1.msra.mxu0 %v99
  %607 = vmatprep.subr.mxu0 %v104
  %608 = vmatpush1.msra.mxu0 %v103
  %609 = vmatprep.subr.mxu0 %v108
  %610 = vmatpush1.msra.mxu0 %v107
  %611 = vmatprep.subr.mxu0 %v112
  %612 = vmatpush1.msra.mxu0 %v111
  %613 = vmatprep.subr.mxu0 %v116
  %614 = vmatpush1.msra.mxu0 %v115
  %615 = vmatprep.subr.mxu0 %v120
  %616 = vmatpush1.msra.mxu0 %v119
  %617 = vmatprep.subr.mxu0 %v124
  %618 = vmatpush1.msra.mxu0 %v123
  %619 = vmatprep.subr.mxu0 %v128
  %620 = vmatpush1.msra.mxu0 %v127
  %621 = vmatprep.subr.mxu0 %v132
  %622 = vmatpush1.msra.mxu0 %v131
  %623 = vmatprep.subr.mxu0 %v136
  %624 = vmatpush1.msra.mxu0 %v135
  %625 = vmatprep.subr.mxu0 %v140
  %626 = vmatpush1.msra.mxu0 %v139
  %627 = vmatprep.subr.mxu0 %v144
  %628 = vmatpush1.msra.mxu0 %v143
  %629 = vmatprep.subr.mxu0 %v148
  %630 = vmatpush1.msra.mxu0 %v147
  %631 = vmatprep.subr.mxu0 %v152
  %632 = vmatpush1.msra.mxu0 %v151
  %633 = vmatprep.subr.mxu0 %v156
  %634 = vmatpush1.msra.mxu0 %v155
  %635 = vmatprep.subr.mxu0 %v160
  %636 = vmatpush1.msra.mxu0 %v159
  %637 = vmatprep.subr.mxu0 %v164
  %638 = vmatpush1.msra.mxu0 %v163
  %639 = vmatprep.subr.mxu0 %v168
  %640 = vmatpush1.msra.mxu0 %v167
  %641 = vmatprep.subr.mxu0 %v172
  %642 = vmatpush1.msra.mxu0 %v171
  %643 = vmatprep.subr.mxu0 %v176
  %644 = vmatpush1.msra.mxu0 %v175
  %645 = vmatprep.subr.mxu0 %v180
  %646 = vmatpush1.msra.mxu0 %v179
  %647 = vmatprep.subr.mxu0 %v184
  %648 = vmatpush1.msra.mxu0 %v183
  %649 = vmatprep.subr.mxu0 %v188
  %650 = vmatpush1.msra.mxu0 %v187
  %651 = vmatprep.subr.mxu0 %v192
  %652 = vmatpush1.msra.mxu0 %v191
  %653 = vmatprep.subr.mxu0 %v196
  %654 = vmatpush1.msra.mxu0 %v195
  %655 = vmatprep.subr.mxu0 %v200
  %656 = vmatpush1.msra.mxu0 %v199
  %657 = vmatprep.subr.mxu0 %v204
  %658 = vmatpush1.msra.mxu0 %v203
  %659 = vmatprep.mubr.f32.mxu0 %v60
  %660 = vmatmul.mubr.f32.gmra.mrb[0].mxu0 %v59
  %v661 = vpop.f32.mrb[0].mxu0
  %v662 = vadd.f32 %v565, %v661
  %v663 = vpop.f32.mrb[0].mxu0
  %v664 = vadd.f32 %v569, %v663
  %665 = vmatprep.mubr.f32.mxu0 %v65
  %666 = vmatmul.mubr.f32.gmra.mrb[0].mxu0 %v64
  %v667 = vpop.f32.mrb[0].mxu0
  %v668 = vadd.f32 %v565, %v667
  %v669 = vpop.f32.mrb[0].mxu0
  %v670 = vadd.f32 %v569, %v669
  %671 = vmatprep.mubr.f32.mxu0 %v70
  %672 = vmatmul.mubr.f32.gmra.mrb[0].mxu0 %v69
  %v673 = vpop.f32.mrb[0].mxu0
  %v674 = vadd.f32 %v565, %v673
  %v675 = vpop.f32.mrb[0].mxu0
  %v676 = vadd.f32 %v569, %v675
  %677 = vmatprep.mubr.f32.mxu0 %v75
  %678 = vmatmul.mubr.f32.gmra.mrb[0].mxu0 %v74
  %v679 = vpop.f32.mrb[0].mxu0
  %v680 = vadd.f32 %v565, %v679
  %v681 = vpop.f32.mrb[0].mxu0
  %v682 = vadd.f32 %v569, %v681
  %683 = vdwg.mxu0
  %684 = vmatprep.subr.mxu0 %v208
  %685 = vmatpush1.msra.mxu0 %v207
  %686 = vmatprep.subr.mxu0 %v212
  %687 = vmatpush1.msra.mxu0 %v211
  %688 = vmatprep.subr.mxu0 %v216
  %689 = vmatpush1.msra.mxu0 %v215
  %690 = vmatprep.subr.mxu0 %v220
  %691 = vmatpush1.msra.mxu0 %v219
  %692 = vmatprep.subr.mxu0 %v224
  %693 = vmatpush1.msra.mxu0 %v223
  %694 = vmatprep.subr.mxu0 %v228
  %695 = vmatpush1.msra.mxu0 %v227
  %696 = vmatprep.subr.mxu0 %v232
  %697 = vmatpush1.msra.mxu0 %v231
  %698 = vmatprep.subr.mxu0 %v236
  %699 = vmatpush1.msra.mxu0 %v235
  %700 = vmatprep.subr.mxu0 %v240
  %701 = vmatpush1.msra.mxu0 %v239
  %702 = vmatprep.subr.mxu0 %v244
  %703 = vmatpush1.msra.mxu0 %v243
  %704 = vmatprep.subr.mxu0 %v248
  %705 = vmatpush1.msra.mxu0 %v247
  %706 = vmatprep.subr.mxu0 %v252
  %707 = vmatpush1.msra.mxu0 %v251
  %708 = vmatprep.subr.mxu0 %v256
  %709 = vmatpush1.msra.mxu0 %v255
  %710 = vmatprep.subr.mxu0 %v260
  %711 = vmatpush1.msra.mxu0 %v259
  %712 = vmatprep.subr.mxu0 %v264
  %713 = vmatpush1.msra.mxu0 %v263
  %714 = vmatprep.subr.mxu0 %v268
  %715 = vmatpush1.msra.mxu0 %v267
  %716 = vmatprep.subr.mxu0 %v272
  %717 = vmatpush1.msra.mxu0 %v271
  %718 = vmatprep.subr.mxu0 %v276
  %719 = vmatpush1.msra.mxu0 %v275
  %720 = vmatprep.subr.mxu0 %v280
  %721 = vmatpush1.msra.mxu0 %v279
  %722 = vmatprep.subr.mxu0 %v284
  %723 = vmatpush1.msra.mxu0 %v283
  %724 = vmatprep.subr.mxu0 %v288
  %725 = vmatpush1.msra.mxu0 %v287
  %726 = vmatprep.subr.mxu0 %v292
  %727 = vmatpush1.msra.mxu0 %v291
  %728 = vmatprep.subr.mxu0 %v296
  %729 = vmatpush1.msra.mxu0 %v295
  %730 = vmatprep.subr.mxu0 %v300
  %731 = vmatpush1.msra.mxu0 %v299
  %732 = vmatprep.subr.mxu0 %v304
  %733 = vmatpush1.msra.mxu0 %v303
  %734 = vmatprep.subr.mxu0 %v308
  %735 = vmatpush1.msra.mxu0 %v307
  %736 = vmatprep.subr.mxu0 %v312
  %737 = vmatpush1.msra.mxu0 %v311
  %738 = vmatprep.subr.mxu0 %v316
  %739 = vmatpush1.msra.mxu0 %v315
  %740 = vmatprep.subr.mxu0 %v320
  %741 = vmatpush1.msra.mxu0 %v319
  %742 = vmatprep.subr.mxu0 %v324
  %743 = vmatpush1.msra.mxu0 %v323
  %744 = vmatprep.subr.mxu0 %v328
  %745 = vmatpush1.msra.mxu0 %v327
  %746 = vmatprep.subr.mxu0 %v332
  %747 = vmatpush1.msra.mxu0 %v331
  %748 = vmatprep.mubr.f32.mxu0 %v62
  %749 = vmatmul.mubr.f32.gmra.mrb[0].mxu0 %v61
  %v750 = vpop.f32.mrb[0].mxu0
  %v751 = vadd.f32 %v662, %v750
  %v752 = vpop.f32.mrb[0].mxu0
  %v753 = vadd.f32 %v664, %v752
  %754 = vmatprep.mubr.f32.mxu0 %v67
  %755 = vmatmul.mubr.f32.gmra.mrb[0].mxu0 %v66
  %v756 = vpop.f32.mrb[0].mxu0
  %v757 = vadd.f32 %v668, %v756
  %v758 = vpop.f32.mrb[0].mxu0
  %v759 = vadd.f32 %v670, %v758
  %760 = vmatprep.mubr.f32.mxu0 %v72
  %761 = vmatmul.mubr.f32.gmra.mrb[0].mxu0 %v71
  %v762 = vpop.f32.mrb[0].mxu0
  %v763 = vadd.f32 %v674, %v762
  %v764 = vpop.f32.mrb[0].mxu0
  %v765 = vadd.f32 %v676, %v764
  %766 = vmatprep.mubr.f32.mxu0 %v77
  %767 = vmatmul.mubr.f32.gmra.mrb[0].mxu0 %v76
  %v768 = vpop.f32.mrb[0].mxu0
  %v769 = vadd.f32 %v680, %v768
  %v770 = vpop.f32.mrb[0].mxu0
  %v771 = vadd.f32 %v682, %v770
  %772 = vdwg.mxu0
  %773 = vmatprep.subr.mxu0 %v336
  %774 = vmatpush1.msra.mxu0 %v335
  %775 = vmatprep.subr.mxu0 %v340
  %776 = vmatpush1.msra.mxu0 %v339
  %777 = vmatprep.subr.mxu0 %v344
  %778 = vmatpush1.msra.mxu0 %v343
  %779 = vmatprep.subr.mxu0 %v348
  %780 = vmatpush1.msra.mxu0 %v347
  %781 = vmatprep.subr.mxu0 %v352
  %782 = vmatpush1.msra.mxu0 %v351
  %783 = vmatprep.subr.mxu0 %v356
  %784 = vmatpush1.msra.mxu0 %v355
  %785 = vmatprep.subr.mxu0 %v360
  %786 = vmatpush1.msra.mxu0 %v359
  %787 = vmatprep.subr.mxu0 %v364
  %788 = vmatpush1.msra.mxu0 %v363
  %789 = vmatprep.subr.mxu0 0.0
  %790 = vmatpush1.msra.mxu0 0.0
  %791 = vmatprep.subr.mxu0 0.0
  %792 = vmatpush1.msra.mxu0 0.0
  %793 = vmatprep.subr.mxu0 0.0
  %794 = vmatpush1.msra.mxu0 0.0
  %795 = vmatprep.subr.mxu0 0.0
  %796 = vmatpush1.msra.mxu0 0.0
  %797 = vmatprep.subr.mxu0 0.0
  %798 = vmatpush1.msra.mxu0 0.0
  %799 = vmatprep.subr.mxu0 0.0
  %800 = vmatpush1.msra.mxu0 0.0
  %801 = vmatprep.subr.mxu0 0.0
  %802 = vmatpush1.msra.mxu0 0.0
  %803 = vmatprep.subr.mxu0 0.0
  %804 = vmatpush1.msra.mxu0 0.0
  %805 = vmatprep.subr.mxu0 0.0
  %806 = vmatpush1.msra.mxu0 0.0
  %807 = vmatprep.subr.mxu0 0.0
  %808 = vmatpush1.msra.mxu0 0.0
  %809 = vmatprep.subr.mxu0 0.0
  %810 = vmatpush1.msra.mxu0 0.0
  %811 = vmatprep.subr.mxu0 0.0
  %812 = vmatpush1.msra.mxu0 0.0
  %813 = vmatprep.subr.mxu0 0.0
  %814 = vmatpush1.msra.mxu0 0.0
  %815 = vmatprep.subr.mxu0 0.0
  %816 = vmatpush1.msra.mxu0 0.0
  %817 = vmatprep.subr.mxu0 0.0
  %818 = vmatpush1.msra.mxu0 0.0
  %819 = vmatprep.subr.mxu0 0.0
  %820 = vmatpush1.msra.mxu0 0.0
  %821 = vmatprep.subr.mxu0 0.0
  %822 = vmatpush1.msra.mxu0 0.0
  %823 = vmatprep.subr.mxu0 0.0
  %824 = vmatpush1.msra.mxu0 0.0
  %825 = vmatprep.subr.mxu0 0.0
  %826 = vmatpush1.msra.mxu0 0.0
  %827 = vmatprep.subr.mxu0 0.0
  %828 = vmatpush1.msra.mxu0 0.0
  %829 = vmatprep.subr.mxu0 0.0
  %830 = vmatpush1.msra.mxu0 0.0
  %831 = vmatprep.subr.mxu0 0.0
  %832 = vmatpush1.msra.mxu0 0.0
  %833 = vmatprep.subr.mxu0 0.0
  %834 = vmatpush1.msra.mxu0 0.0
  %835 = vmatprep.subr.mxu0 0.0
  %836 = vmatpush1.msra.mxu0 0.0
  %837 = vmatprep.mubr.f32.mxu0 0.0
  %838 = vmatmul.mubr.f32.gmra.mrb[0].mxu0 %v584
  %v839 = vpop.f32.mrb[0].mxu0
  %v840 = vadd.f32 %v751, %v839
  %v841 = vpop.f32.mrb[0].mxu0
  %v842 = vadd.f32 %v753, %v841
  %843 = vmatprep.mubr.f32.mxu0 0.0
  %844 = vmatmul.mubr.f32.gmra.mrb[0].mxu0 %v587
  %v845 = vpop.f32.mrb[0].mxu0
  %v846 = vadd.f32 %v757, %v845
  %v847 = vpop.f32.mrb[0].mxu0
  %v848 = vadd.f32 %v759, %v847
  %849 = vmatprep.mubr.f32.mxu0 0.0
  %850 = vmatmul.mubr.f32.gmra.mrb[0].mxu0 %v590
  %v851 = vpop.f32.mrb[0].mxu0
  %v852 = vadd.f32 %v763, %v851
  %v853 = vpop.f32.mrb[0].mxu0
  %v854 = vadd.f32 %v765, %v853
  %855 = vmatprep.mubr.f32.mxu0 0.0
  %856 = vmatmul.mubr.f32.gmra.mrb[0].mxu0 %v593
  %v857 = vpop.f32.mrb[0].mxu0
  %v858 = vadd.f32 %v769, %v857
  %v859 = vpop.f32.mrb[0].mxu0
  %v860 = vadd.f32 %v771, %v859
  %861 = vdwg.mxu0
  %862 = vmatprep.subr.mxu0 %v82
  %863 = vmatpush1.msra.mxu0 %v81
  %864 = vmatprep.subr.mxu0 %v86
  %865 = vmatpush1.msra.mxu0 %v85
  %866 = vmatprep.subr.mxu0 %v90
  %867 = vmatpush1.msra.mxu0 %v89
  %868 = vmatprep.subr.mxu0 %v94
  %869 = vmatpush1.msra.mxu0 %v93
  %870 = vmatprep.subr.mxu0 %v98
  %871 = vmatpush1.msra.mxu0 %v97
  %872 = vmatprep.subr.mxu0 %v102
  %873 = vmatpush1.msra.mxu0 %v101
  %874 = vmatprep.subr.mxu0 %v106
  %875 = vmatpush1.msra.mxu0 %v105
  %876 = vmatprep.subr.mxu0 %v110
  %877 = vmatpush1.msra.mxu0 %v109
  %878 = vmatprep.subr.mxu0 %v114
  %879 = vmatpush1.msra.mxu0 %v113
  %880 = vmatprep.subr.mxu0 %v118
  %881 = vmatpush1.msra.mxu0 %v117
  %882 = vmatprep.subr.mxu0 %v122
  %883 = vmatpush1.msra.mxu0 %v121
  %884 = vmatprep.subr.mxu0 %v126
  %885 = vmatpush1.msra.mxu0 %v125
  %886 = vmatprep.subr.mxu0 %v130
  %887 = vmatpush1.msra.mxu0 %v129
  %888 = vmatprep.subr.mxu0 %v134
  %889 = vmatpush1.msra.mxu0 %v133
  %890 = vmatprep.subr.mxu0 %v138
  %891 = vmatpush1.msra.mxu0 %v137
  %892 = vmatprep.subr.mxu0 %v142
  %893 = vmatpush1.msra.mxu0 %v141
  %894 = vmatprep.subr.mxu0 %v146
  %895 = vmatpush1.msra.mxu0 %v145
  %896 = vmatprep.subr.mxu0 %v150
  %897 = vmatpush1.msra.mxu0 %v149
  %898 = vmatprep.subr.mxu0 %v154
  %899 = vmatpush1.msra.mxu0 %v153
  %900 = vmatprep.subr.mxu0 %v158
  %901 = vmatpush1.msra.mxu0 %v157
  %902 = vmatprep.subr.mxu0 %v162
  %903 = vmatpush1.msra.mxu0 %v161
  %904 = vmatprep.subr.mxu0 %v166
  %905 = vmatpush1.msra.mxu0 %v165
  %906 = vmatprep.subr.mxu0 %v170
  %907 = vmatpush1.msra.mxu0 %v169
  %908 = vmatprep.subr.mxu0 %v174
  %909 = vmatpush1.msra.mxu0 %v173
  %910 = vmatprep.subr.mxu0 %v178
  %911 = vmatpush1.msra.mxu0 %v177
  %912 = vmatprep.subr.mxu0 %v182
  %913 = vmatpush1.msra.mxu0 %v181
  %914 = vmatprep.subr.mxu0 %v186
  %915 = vmatpush1.msra.mxu0 %v185
  %916 = vmatprep.subr.mxu0 %v190
  %917 = vmatpush1.msra.mxu0 %v189
  %918 = vmatprep.subr.mxu0 %v194
  %919 = vmatpush1.msra.mxu0 %v193
  %920 = vmatprep.subr.mxu0 %v198
  %921 = vmatpush1.msra.mxu0 %v197
  %922 = vmatprep.subr.mxu0 %v202
  %923 = vmatpush1.msra.mxu0 %v201
  %924 = vmatprep.subr.mxu0 %v206
  %925 = vmatpush1.msra.mxu0 %v205
  %926 = vmatprep.mubr.f32.mxu0 %v60
  %927 = vmatmul.mubr.f32.gmra.mrb[0].mxu0 %v59
  %v928 = vpop.f32.mrb[0].mxu0
  %v929 = vadd.f32 %v573, %v928
  %v930 = vpop.f32.mrb[0].mxu0
  %v931 = vadd.f32 %v577, %v930
  %932 = vmatprep.mubr.f32.mxu0 %v65
  %933 = vmatmul.mubr.f32.gmra.mrb[0].mxu0 %v64
  %v934 = vpop.f32.mrb[0].mxu0
  %v935 = vadd.f32 %v573, %v934
  %v936 = vpop.f32.mrb[0].mxu0
  %v937 = vadd.f32 %v577, %v936
  %938 = vmatprep.mubr.f32.mxu0 %v70
  %939 = vmatmul.mubr.f32.gmra.mrb[0].mxu0 %v69
  %v940 = vpop.f32.mrb[0].mxu0
  %v941 = vadd.f32 %v573, %v940
  %v942 = vpop.f32.mrb[0].mxu0
  %v943 = vadd.f32 %v577, %v942
  %944 = vmatprep.mubr.f32.mxu0 %v75
  %945 = vmatmul.mubr.f32.gmra.mrb[0].mxu0 %v74
  %v946 = vpop.f32.mrb[0].mxu0
  %v947 = vadd.f32 %v573, %v946
  %v948 = vpop.f32.mrb[0].mxu0
  %v949 = vadd.f32 %v577, %v948
  %950 = vdwg.mxu0
  %951 = vmatprep.subr.mxu0 %v210
  %952 = vmatpush1.msra.mxu0 %v209
  %953 = vmatprep.subr.mxu0 %v214
  %954 = vmatpush1.msra.mxu0 %v213
  %955 = vmatprep.subr.mxu0 %v218
  %956 = vmatpush1.msra.mxu0 %v217
  %957 = vmatprep.subr.mxu0 %v222
  %958 = vmatpush1.msra.mxu0 %v221
  %959 = vmatprep.subr.mxu0 %v226
  %960 = vmatpush1.msra.mxu0 %v225
  %961 = vmatprep.subr.mxu0 %v230
  %962 = vmatpush1.msra.mxu0 %v229
  %963 = vmatprep.subr.mxu0 %v234
  %964 = vmatpush1.msra.mxu0 %v233
  %965 = vmatprep.subr.mxu0 %v238
  %966 = vmatpush1.msra.mxu0 %v237
  %967 = vmatprep.subr.mxu0 %v242
  %968 = vmatpush1.msra.mxu0 %v241
  %969 = vmatprep.subr.mxu0 %v246
  %970 = vmatpush1.msra.mxu0 %v245
  %971 = vmatprep.subr.mxu0 %v250
  %972 = vmatpush1.msra.mxu0 %v249
  %973 = vmatprep.subr.mxu0 %v254
  %974 = vmatpush1.msra.mxu0 %v253
  %975 = vmatprep.subr.mxu0 %v258
  %976 = vmatpush1.msra.mxu0 %v257
  %977 = vmatprep.subr.mxu0 %v262
  %978 = vmatpush1.msra.mxu0 %v261
  %979 = vmatprep.subr.mxu0 %v266
  %980 = vmatpush1.msra.mxu0 %v265
  %981 = vmatprep.subr.mxu0 %v270
  %982 = vmatpush1.msra.mxu0 %v269
  %983 = vmatprep.subr.mxu0 %v274
  %984 = vmatpush1.msra.mxu0 %v273
  %985 = vmatprep.subr.mxu0 %v278
  %986 = vmatpush1.msra.mxu0 %v277
  %987 = vmatprep.subr.mxu0 %v282
  %988 = vmatpush1.msra.mxu0 %v281
  %989 = vmatprep.subr.mxu0 %v286
  %990 = vmatpush1.msra.mxu0 %v285
  %991 = vmatprep.subr.mxu0 %v290
  %992 = vmatpush1.msra.mxu0 %v289
  %993 = vmatprep.subr.mxu0 %v294
  %994 = vmatpush1.msra.mxu0 %v293
  %995 = vmatprep.subr.mxu0 %v298
  %996 = vmatpush1.msra.mxu0 %v297
  %997 = vmatprep.subr.mxu0 %v302
  %998 = vmatpush1.msra.mxu0 %v301
  %999 = vmatprep.subr.mxu0 %v306
  %1000 = vmatpush1.msra.mxu0 %v305
  %1001 = vmatprep.subr.mxu0 %v310
  %1002 = vmatpush1.msra.mxu0 %v309
  %1003 = vmatprep.subr.mxu0 %v314
  %1004 = vmatpush1.msra.mxu0 %v313
  %1005 = vmatprep.subr.mxu0 %v318
  %1006 = vmatpush1.msra.mxu0 %v317
  %1007 = vmatprep.subr.mxu0 %v322
  %1008 = vmatpush1.msra.mxu0 %v321
  %1009 = vmatprep.subr.mxu0 %v326
  %1010 = vmatpush1.msra.mxu0 %v325
  %1011 = vmatprep.subr.mxu0 %v330
  %1012 = vmatpush1.msra.mxu0 %v329
  %1013 = vmatprep.subr.mxu0 %v334
  %1014 = vmatpush1.msra.mxu0 %v333
  %1015 = vmatprep.mubr.f32.mxu0 %v62
  %1016 = vmatmul.mubr.f32.gmra.mrb[0].mxu0 %v61
  %v1017 = vpop.f32.mrb[0].mxu0
  %v1018 = vadd.f32 %v929, %v1017
  %v1019 = vpop.f32.mrb[0].mxu0
  %v1020 = vadd.f32 %v931, %v1019
  %1021 = vmatprep.mubr.f32.mxu0 %v67
  %1022 = vmatmul.mubr.f32.gmra.mrb[0].mxu0 %v66
  %v1023 = vpop.f32.mrb[0].mxu0
  %v1024 = vadd.f32 %v935, %v1023
  %v1025 = vpop.f32.mrb[0].mxu0
  %v1026 = vadd.f32 %v937, %v1025
  %1027 = vmatprep.mubr.f32.mxu0 %v72
  %1028 = vmatmul.mubr.f32.gmra.mrb[0].mxu0 %v71
  %v1029 = vpop.f32.mrb[0].mxu0
  %v1030 = vadd.f32 %v941, %v1029
  %v1031 = vpop.f32.mrb[0].mxu0
  %v1032 = vadd.f32 %v943, %v1031
  %1033 = vmatprep.mubr.f32.mxu0 %v77
  %1034 = vmatmul.mubr.f32.gmra.mrb[0].mxu0 %v76
  %v1035 = vpop.f32.mrb[0].mxu0
  %v1036 = vadd.f32 %v947, %v1035
  %v1037 = vpop.f32.mrb[0].mxu0
  %v1038 = vadd.f32 %v949, %v1037
  %1039 = vdwg.mxu0
  %1040 = vmatprep.subr.mxu0 %v338
  %1041 = vmatpush1.msra.mxu0 %v337
  %1042 = vmatprep.subr.mxu0 %v342
  %1043 = vmatpush1.msra.mxu0 %v341
  %1044 = vmatprep.subr.mxu0 %v346
  %1045 = vmatpush1.msra.mxu0 %v345
  %1046 = vmatprep.subr.mxu0 %v350
  %1047 = vmatpush1.msra.mxu0 %v349
  %1048 = vmatprep.subr.mxu0 %v354
  %1049 = vmatpush1.msra.mxu0 %v353
  %1050 = vmatprep.subr.mxu0 %v358
  %1051 = vmatpush1.msra.mxu0 %v357
  %1052 = vmatprep.subr.mxu0 %v362
  %1053 = vmatpush1.msra.mxu0 %v361
  %1054 = vmatprep.subr.mxu0 %v366
  %1055 = vmatpush1.msra.mxu0 %v365
  %1056 = vmatprep.subr.mxu0 0.0
  %1057 = vmatpush1.msra.mxu0 0.0
  %1058 = vmatprep.subr.mxu0 0.0
  %1059 = vmatpush1.msra.mxu0 0.0
  %1060 = vmatprep.subr.mxu0 0.0
  %1061 = vmatpush1.msra.mxu0 0.0
  %1062 = vmatprep.subr.mxu0 0.0
  %1063 = vmatpush1.msra.mxu0 0.0
  %1064 = vmatprep.subr.mxu0 0.0
  %1065 = vmatpush1.msra.mxu0 0.0
  %1066 = vmatprep.subr.mxu0 0.0
  %1067 = vmatpush1.msra.mxu0 0.0
  %1068 = vmatprep.subr.mxu0 0.0
  %1069 = vmatpush1.msra.mxu0 0.0
  %1070 = vmatprep.subr.mxu0 0.0
  %1071 = vmatpush1.msra.mxu0 0.0
  %1072 = vmatprep.subr.mxu0 0.0
  %1073 = vmatpush1.msra.mxu0 0.0
  %1074 = vmatprep.subr.mxu0 0.0
  %1075 = vmatpush1.msra.mxu0 0.0
  %1076 = vmatprep.subr.mxu0 0.0
  %1077 = vmatpush1.msra.mxu0 0.0
  %1078 = vmatprep.subr.mxu0 0.0
  %1079 = vmatpush1.msra.mxu0 0.0
  %1080 = vmatprep.subr.mxu0 0.0
  %1081 = vmatpush1.msra.mxu0 0.0
  %1082 = vmatprep.subr.mxu0 0.0
  %1083 = vmatpush1.msra.mxu0 0.0
  %1084 = vmatprep.subr.mxu0 0.0
  %1085 = vmatpush1.msra.mxu0 0.0
  %1086 = vmatprep.subr.mxu0 0.0
  %1087 = vmatpush1.msra.mxu0 0.0
  %1088 = vmatprep.subr.mxu0 0.0
  %1089 = vmatpush1.msra.mxu0 0.0
  %1090 = vmatprep.subr.mxu0 0.0
  %1091 = vmatpush1.msra.mxu0 0.0
  %1092 = vmatprep.subr.mxu0 0.0
  %1093 = vmatpush1.msra.mxu0 0.0
  %1094 = vmatprep.subr.mxu0 0.0
  %1095 = vmatpush1.msra.mxu0 0.0
  %1096 = vmatprep.subr.mxu0 0.0
  %1097 = vmatpush1.msra.mxu0 0.0
  %1098 = vmatprep.subr.mxu0 0.0
  %1099 = vmatpush1.msra.mxu0 0.0
  %1100 = vmatprep.subr.mxu0 0.0
  %1101 = vmatpush1.msra.mxu0 0.0
  %1102 = vmatprep.subr.mxu0 0.0
  %1103 = vmatpush1.msra.mxu0 0.0
  %1104 = vmatprep.mubr.f32.mxu0 0.0
  %1105 = vmatmul.mubr.f32.gmra.mrb[0].mxu0 %v584
  %v1106 = vpop.f32.mrb[0].mxu0
  %v1107 = vadd.f32 %v1018, %v1106
  %v1108 = vpop.f32.mrb[0].mxu0
  %v1109 = vadd.f32 %v1020, %v1108
  %1110 = vmatprep.mubr.f32.mxu0 0.0
  %1111 = vmatmul.mubr.f32.gmra.mrb[0].mxu0 %v587
  %v1112 = vpop.f32.mrb[0].mxu0
  %v1113 = vadd.f32 %v1024, %v1112
  %v1114 = vpop.f32.mrb[0].mxu0
  %v1115 = vadd.f32 %v1026, %v1114
  %1116 = vmatprep.mubr.f32.mxu0 0.0
  %1117 = vmatmul.mubr.f32.gmra.mrb[0].mxu0 %v590
  %v1118 = vpop.f32.mrb[0].mxu0
  %v1119 = vadd.f32 %v1030, %v1118
  %v1120 = vpop.f32.mrb[0].mxu0
  %v1121 = vadd.f32 %v1032, %v1120
  %1122 = vmatprep.mubr.f32.mxu0 0.0
  %1123 = vmatmul.mubr.f32.gmra.mrb[0].mxu0 %v593
  %v1124 = vpop.f32.mrb[0].mxu0
  %v1125 = vadd.f32 %v1036, %v1124
  %v1126 = vpop.f32.mrb[0].mxu0
  %v1127 = vadd.f32 %v1038, %v1126
  %1128 = vdwg.mxu0
  %1129 = vmatprep.subr.mxu0 %v368
  %1130 = vmatpush1.msra.mxu0 %v367
  %1131 = vmatprep.subr.mxu0 %v372
  %1132 = vmatpush1.msra.mxu0 %v371
  %1133 = vmatprep.subr.mxu0 %v376
  %1134 = vmatpush1.msra.mxu0 %v375
  %1135 = vmatprep.subr.mxu0 %v380
  %1136 = vmatpush1.msra.mxu0 %v379
  %1137 = vmatprep.subr.mxu0 %v384
  %1138 = vmatpush1.msra.mxu0 %v383
  %1139 = vmatprep.subr.mxu0 %v388
  %1140 = vmatpush1.msra.mxu0 %v387
  %1141 = vmatprep.subr.mxu0 %v392
  %1142 = vmatpush1.msra.mxu0 %v391
  %1143 = vmatprep.subr.mxu0 %v396
  %1144 = vmatpush1.msra.mxu0 %v395
  %1145 = vmatprep.subr.mxu0 %v400
  %1146 = vmatpush1.msra.mxu0 %v399
  %1147 = vmatprep.subr.mxu0 %v404
  %1148 = vmatpush1.msra.mxu0 %v403
  %1149 = vmatprep.subr.mxu0 %v408
  %1150 = vmatpush1.msra.mxu0 %v407
  %1151 = vmatprep.subr.mxu0 %v412
  %1152 = vmatpush1.msra.mxu0 %v411
  %1153 = vmatprep.subr.mxu0 %v416
  %1154 = vmatpush1.msra.mxu0 %v415
  %1155 = vmatprep.subr.mxu0 %v420
  %1156 = vmatpush1.msra.mxu0 %v419
  %1157 = vmatprep.subr.mxu0 %v424
  %1158 = vmatpush1.msra.mxu0 %v423
  %1159 = vmatprep.subr.mxu0 %v428
  %1160 = vmatpush1.msra.mxu0 %v427
  %1161 = vmatprep.subr.mxu0 0.0
  %1162 = vmatpush1.msra.mxu0 0.0
  %1163 = vmatprep.subr.mxu0 0.0
  %1164 = vmatpush1.msra.mxu0 0.0
  %1165 = vmatprep.subr.mxu0 0.0
  %1166 = vmatpush1.msra.mxu0 0.0
  %1167 = vmatprep.subr.mxu0 0.0
  %1168 = vmatpush1.msra.mxu0 0.0
  %1169 = vmatprep.subr.mxu0 0.0
  %1170 = vmatpush1.msra.mxu0 0.0
  %1171 = vmatprep.subr.mxu0 0.0
  %1172 = vmatpush1.msra.mxu0 0.0
  %1173 = vmatprep.subr.mxu0 0.0
  %1174 = vmatpush1.msra.mxu0 0.0
  %1175 = vmatprep.subr.mxu0 0.0
  %1176 = vmatpush1.msra.mxu0 0.0
  %1177 = vmatprep.subr.mxu0 0.0
  %1178 = vmatpush1.msra.mxu0 0.0
  %1179 = vmatprep.subr.mxu0 0.0
  %1180 = vmatpush1.msra.mxu0 0.0
  %1181 = vmatprep.subr.mxu0 0.0
  %1182 = vmatpush1.msra.mxu0 0.0
  %1183 = vmatprep.subr.mxu0 0.0
  %1184 = vmatpush1.msra.mxu0 0.0
  %1185 = vmatprep.subr.mxu0 0.0
  %1186 = vmatpush1.msra.mxu0 0.0
  %1187 = vmatprep.subr.mxu0 0.0
  %1188 = vmatpush1.msra.mxu0 0.0
  %1189 = vmatprep.subr.mxu0 0.0
  %1190 = vmatpush1.msra.mxu0 0.0
  %1191 = vmatprep.subr.mxu0 0.0
  %1192 = vmatpush1.msra.mxu0 0.0
  %1193 = vmatprep.mubr.f32.mxu0 0.0
  %1194 = vmatmul.mubr.f32.gmra.mrb[0].mxu0 0.0
  %v1195 = vpop.f32.mrb[0].mxu0
  %v1196 = vadd.f32 0.0, %v1195
  %v1197 = vpop.f32.mrb[0].mxu0
  %v1198 = vadd.f32 0.0, %v1197
  %1199 = vdwg.mxu0
  %1200 = vmatprep.subr.mxu0 %v370
  %1201 = vmatpush1.msra.mxu0 %v369
  %1202 = vmatprep.subr.mxu0 %v374
  %1203 = vmatpush1.msra.mxu0 %v373
  %1204 = vmatprep.subr.mxu0 %v378
  %1205 = vmatpush1.msra.mxu0 %v377
  %1206 = vmatprep.subr.mxu0 %v382
  %1207 = vmatpush1.msra.mxu0 %v381
  %1208 = vmatprep.subr.mxu0 %v386
  %1209 = vmatpush1.msra.mxu0 %v385
  %1210 = vmatprep.subr.mxu0 %v390
  %1211 = vmatpush1.msra.mxu0 %v389
  %1212 = vmatprep.subr.mxu0 %v394
  %1213 = vmatpush1.msra.mxu0 %v393
  %1214 = vmatprep.subr.mxu0 %v398
  %1215 = vmatpush1.msra.mxu0 %v397
  %1216 = vmatprep.subr.mxu0 %v402
  %1217 = vmatpush1.msra.mxu0 %v401
  %1218 = vmatprep.subr.mxu0 %v406
  %1219 = vmatpush1.msra.mxu0 %v405
  %1220 = vmatprep.subr.mxu0 %v410
  %1221 = vmatpush1.msra.mxu0 %v409
  %1222 = vmatprep.subr.mxu0 %v414
  %1223 = vmatpush1.msra.mxu0 %v413
  %1224 = vmatprep.subr.mxu0 %v418
  %1225 = vmatpush1.msra.mxu0 %v417
  %1226 = vmatprep.subr.mxu0 %v422
  %1227 = vmatpush1.msra.mxu0 %v421
  %1228 = vmatprep.subr.mxu0 %v426
  %1229 = vmatpush1.msra.mxu0 %v425
  %1230 = vmatprep.subr.mxu0 %v430
  %1231 = vmatpush1.msra.mxu0 %v429
  %1232 = vmatprep.subr.mxu0 0.0
  %1233 = vmatpush1.msra.mxu0 0.0
  %1234 = vmatprep.subr.mxu0 0.0
  %1235 = vmatpush1.msra.mxu0 0.0
  %1236 = vmatprep.subr.mxu0 0.0
  %1237 = vmatpush1.msra.mxu0 0.0
  %1238 = vmatprep.subr.mxu0 0.0
  %1239 = vmatpush1.msra.mxu0 0.0
  %1240 = vmatprep.subr.mxu0 0.0
  %1241 = vmatpush1.msra.mxu0 0.0
  %1242 = vmatprep.subr.mxu0 0.0
  %1243 = vmatpush1.msra.mxu0 0.0
  %1244 = vmatprep.subr.mxu0 0.0
  %1245 = vmatpush1.msra.mxu0 0.0
  %1246 = vmatprep.subr.mxu0 0.0
  %1247 = vmatpush1.msra.mxu0 0.0
  %1248 = vmatprep.subr.mxu0 0.0
  %1249 = vmatpush1.msra.mxu0 0.0
  %1250 = vmatprep.subr.mxu0 0.0
  %1251 = vmatpush1.msra.mxu0 0.0
  %1252 = vmatprep.subr.mxu0 0.0
  %1253 = vmatpush1.msra.mxu0 0.0
  %1254 = vmatprep.subr.mxu0 0.0
  %1255 = vmatpush1.msra.mxu0 0.0
  %1256 = vmatprep.subr.mxu0 0.0
  %1257 = vmatpush1.msra.mxu0 0.0
  %1258 = vmatprep.subr.mxu0 0.0
  %1259 = vmatpush1.msra.mxu0 0.0
  %1260 = vmatprep.subr.mxu0 0.0
  %1261 = vmatpush1.msra.mxu0 0.0
  %1262 = vmatprep.subr.mxu0 0.0
  %1263 = vmatpush1.msra.mxu0 0.0
  %1264 = vmatprep.mubr.f32.mxu0 0.0
  %1265 = vmatmul.mubr.f32.gmra.mrb[0].mxu0 0.0
  %v1266 = vpop.f32.mrb[0].mxu0
  %v1267 = vadd.f32 0.0, %v1266
  %v1268 = vpop.f32.mrb[0].mxu0
  %v1269 = vadd.f32 0.0, %v1268
  %1270 = vdwg.mxu0
  %v1271 = vadd.f32 %v840, %v1196
  %v1272 = vadd.f32 %v842, %v1198
  %v1273 = vadd.f32 %v1107, %v1267
  %v1274 = vadd.f32 %v1109, %v1269
  %v1275 = vxor.u32 %v1271, 2147483648
  %v1276 = vmul.f32 %v1275, 1.442695
  %v1277 = vpow.pop %v1276
  %v1278 = vadd.f32 %v1277, 1.0
  %v1279 = vrcp.pop %v1278
  %v1280 = vmul.f32 1.0, %v1279
  %v1281 = vxor.u32 %v1272, 2147483648
  %v1282 = vmul.f32 %v1281, 1.442695
  %v1283 = vpow.pop %v1282
  %v1284 = vadd.f32 %v1283, 1.0
  %v1285 = vrcp.pop %v1284
  %v1286 = vmul.f32 1.0, %v1285
  %v1287 = vtanh.pop %v1273
  %v1288 = vxor.u32 %v1274, 2147483648
  %v1289 = vmul.f32 %v1288, 1.442695
  %v1290 = vpow.pop %v1289
  %v1291 = vadd.f32 %v1290, 1.0
  %v1292 = vrcp.pop %v1291
  %v1293 = vmul.f32 1.0, %v1292
  %v1294 = vmul.f32 %v1286, 0.0
  %v1295 = vmul.f32 %v1280, %v1287
  %v1296 = vadd.f32 %v1294, %v1295
  %v1297 = vtanh.pop %v1296
  %v1298 = vmul.f32 %v1293, %v1297
  %1299 = vmatprep.subr.mxu0 %v368
  %1300 = vmatpush1.msra.mxu0 %v367
  %1301 = vmatprep.subr.mxu0 %v372
  %1302 = vmatpush1.msra.mxu0 %v371
  %1303 = vmatprep.subr.mxu0 %v376
  %1304 = vmatpush1.msra.mxu0 %v375
  %1305 = vmatprep.subr.mxu0 %v380
  %1306 = vmatpush1.msra.mxu0 %v379
  %1307 = vmatprep.subr.mxu0 %v384
  %1308 = vmatpush1.msra.mxu0 %v383
  %1309 = vmatprep.subr.mxu0 %v388
  %1310 = vmatpush1.msra.mxu0 %v387
  %1311 = vmatprep.subr.mxu0 %v392
  %1312 = vmatpush1.msra.mxu0 %v391
  %1313 = vmatprep.subr.mxu0 %v396
  %1314 = vmatpush1.msra.mxu0 %v395
  %1315 = vmatprep.subr.mxu0 %v400
  %1316 = vmatpush1.msra.mxu0 %v399
  %1317 = vmatprep.subr.mxu0 %v404
  %1318 = vmatpush1.msra.mxu0 %v403
  %1319 = vmatprep.subr.mxu0 %v408
  %1320 = vmatpush1.msra.mxu0 %v407
  %1321 = vmatprep.subr.mxu0 %v412
  %1322 = vmatpush1.msra.mxu0 %v411
  %1323 = vmatprep.subr.mxu0 %v416
  %1324 = vmatpush1.msra.mxu0 %v415
  %1325 = vmatprep.subr.mxu0 %v420
  %1326 = vmatpush1.msra.mxu0 %v419
  %1327 = vmatprep.subr.mxu0 %v424
  %1328 = vmatpush1.msra.mxu0 %v423
  %1329 = vmatprep.subr.mxu0 %v428
  %1330 = vmatpush1.msra.mxu0 %v427
  %1331 = vmatprep.subr.mxu0 0.0
  %1332 = vmatpush1.msra.mxu0 0.0
  %1333 = vmatprep.subr.mxu0 0.0
  %1334 = vmatpush1.msra.mxu0 0.0
  %1335 = vmatprep.subr.mxu0 0.0
  %1336 = vmatpush1.msra.mxu0 0.0
  %1337 = vmatprep.subr.mxu0 0.0
  %1338 = vmatpush1.msra.mxu0 0.0
  %1339 = vmatprep.subr.mxu0 0.0
  %1340 = vmatpush1.msra.mxu0 0.0
  %1341 = vmatprep.subr.mxu0 0.0
  %1342 = vmatpush1.msra.mxu0 0.0
  %1343 = vmatprep.subr.mxu0 0.0
  %1344 = vmatpush1.msra.mxu0 0.0
  %1345 = vmatprep.subr.mxu0 0.0
  %1346 = vmatpush1.msra.mxu0 0.0
  %1347 = vmatprep.subr.mxu0 0.0
  %1348 = vmatpush1.msra.mxu0 0.0
  %1349 = vmatprep.subr.mxu0 0.0
  %1350 = vmatpush1.msra.mxu0 0.0
  %1351 = vmatprep.subr.mxu0 0.0
  %1352 = vmatpush1.msra.mxu0 0.0
  %1353 = vmatprep.subr.mxu0 0.0
  %1354 = vmatpush1.msra.mxu0 0.0
  %1355 = vmatprep.subr.mxu0 0.0
  %1356 = vmatpush1.msra.mxu0 0.0
  %1357 = vmatprep.subr.mxu0 0.0
  %1358 = vmatpush1.msra.mxu0 0.0
  %1359 = vmatprep.subr.mxu0 0.0
  %1360 = vmatpush1.msra.mxu0 0.0
  %1361 = vmatprep.subr.mxu0 0.0
  %1362 = vmatpush1.msra.mxu0 0.0
  %1363 = vmatprep.mubr.f32.mxu0 0.0
  %1364 = vmatmul.mubr.f32.gmra.mrb[0].mxu0 %v1298
  %v1365 = vpop.f32.mrb[0].mxu0
  %v1366 = vadd.f32 0.0, %v1365
  %v1367 = vpop.f32.mrb[0].mxu0
  %v1368 = vadd.f32 0.0, %v1367
  %1369 = vdwg.mxu0
  %1370 = vmatprep.subr.mxu0 %v370
  %1371 = vmatpush1.msra.mxu0 %v369
  %1372 = vmatprep.subr.mxu0 %v374
  %1373 = vmatpush1.msra.mxu0 %v373
  %1374 = vmatprep.subr.mxu0 %v378
  %1375 = vmatpush1.msra.mxu0 %v377
  %1376 = vmatprep.subr.mxu0 %v382
  %1377 = vmatpush1.msra.mxu0 %v381
  %1378 = vmatprep.subr.mxu0 %v386
  %1379 = vmatpush1.msra.mxu0 %v385
  %1380 = vmatprep.subr.mxu0 %v390
  %1381 = vmatpush1.msra.mxu0 %v389
  %1382 = vmatprep.subr.mxu0 %v394
  %1383 = vmatpush1.msra.mxu0 %v393
  %1384 = vmatprep.subr.mxu0 %v398
  %1385 = vmatpush1.msra.mxu0 %v397
  %1386 = vmatprep.subr.mxu0 %v402
  %1387 = vmatpush1.msra.mxu0 %v401
  %1388 = vmatprep.subr.mxu0 %v406
  %1389 = vmatpush1.msra.mxu0 %v405
  %1390 = vmatprep.subr.mxu0 %v410
  %1391 = vmatpush1.msra.mxu0 %v409
  %1392 = vmatprep.subr.mxu0 %v414
  %1393 = vmatpush1.msra.mxu0 %v413
  %1394 = vmatprep.subr.mxu0 %v418
  %1395 = vmatpush1.msra.mxu0 %v417
  %1396 = vmatprep.subr.mxu0 %v422
  %1397 = vmatpush1.msra.mxu0 %v421
  %1398 = vmatprep.subr.mxu0 %v426
  %1399 = vmatpush1.msra.mxu0 %v425
  %1400 = vmatprep.subr.mxu0 %v430
  %1401 = vmatpush1.msra.mxu0 %v429
  %1402 = vmatprep.subr.mxu0 0.0
  %1403 = vmatpush1.msra.mxu0 0.0
  %1404 = vmatprep.subr.mxu0 0.0
  %1405 = vmatpush1.msra.mxu0 0.0
  %1406 = vmatprep.subr.mxu0 0.0
  %1407 = vmatpush1.msra.mxu0 0.0
  %1408 = vmatprep.subr.mxu0 0.0
  %1409 = vmatpush1.msra.mxu0 0.0
  %1410 = vmatprep.subr.mxu0 0.0
  %1411 = vmatpush1.msra.mxu0 0.0
  %1412 = vmatprep.subr.mxu0 0.0
  %1413 = vmatpush1.msra.mxu0 0.0
  %1414 = vmatprep.subr.mxu0 0.0
  %1415 = vmatpush1.msra.mxu0 0.0
  %1416 = vmatprep.subr.mxu0 0.0
  %1417 = vmatpush1.msra.mxu0 0.0
  %1418 = vmatprep.subr.mxu0 0.0
  %1419 = vmatpush1.msra.mxu0 0.0
  %1420 = vmatprep.subr.mxu0 0.0
  %1421 = vmatpush1.msra.mxu0 0.0
  %1422 = vmatprep.subr.mxu0 0.0
  %1423 = vmatpush1.msra.mxu0 0.0
  %1424 = vmatprep.subr.mxu0 0.0
  %1425 = vmatpush1.msra.mxu0 0.0
  %1426 = vmatprep.subr.mxu0 0.0
  %1427 = vmatpush1.msra.mxu0 0.0
  %1428 = vmatprep.subr.mxu0 0.0
  %1429 = vmatpush1.msra.mxu0 0.0
  %1430 = vmatprep.subr.mxu0 0.0
  %1431 = vmatpush1.msra.mxu0 0.0
  %1432 = vmatprep.subr.mxu0 0.0
  %1433 = vmatpush1.msra.mxu0 0.0
  %1434 = vmatprep.mubr.f32.mxu0 0.0
  %1435 = vmatmul.mubr.f32.gmra.mrb[0].mxu0 %v1298
  %v1436 = vpop.f32.mrb[0].mxu0
  %v1437 = vadd.f32 0.0, %v1436
  %v1438 = vpop.f32.mrb[0].mxu0
  %v1439 = vadd.f32 0.0, %v1438
  %1440 = vdwg.mxu0
  %v1441 = vadd.f32 %v846, %v1366
  %v1442 = vadd.f32 %v848, %v1368
  %v1443 = vadd.f32 %v1113, %v1437
  %v1444 = vadd.f32 %v1115, %v1439
  %v1445 = vxor.u32 %v1441, 2147483648
  %v1446 = vmul.f32 %v1445, 1.442695
  %v1447 = vpow.pop %v1446
  %v1448 = vadd.f32 %v1447, 1.0
  %v1449 = vrcp.pop %v1448
  %v1450 = vmul.f32 1.0, %v1449
  %v1451 = vxor.u32 %v1442, 2147483648
  %v1452 = vmul.f32 %v1451, 1.442695
  %v1453 = vpow.pop %v1452
  %v1454 = vadd.f32 %v1453, 1.0
  %v1455 = vrcp.pop %v1454
  %v1456 = vmul.f32 1.0, %v1455
  %v1457 = vtanh.pop %v1443
  %v1458 = vxor.u32 %v1444, 2147483648
  %v1459 = vmul.f32 %v1458, 1.442695
  %v1460 = vpow.pop %v1459
  %v1461 = vadd.f32 %v1460, 1.0
  %v1462 = vrcp.pop %v1461
  %v1463 = vmul.f32 1.0, %v1462
  %v1464 = vmul.f32 %v1456, %v1296
  %v1465 = vmul.f32 %v1450, %v1457
  %v1466 = vadd.f32 %v1464, %v1465
  %v1467 = vtanh.pop %v1466
  %v1468 = vmul.f32 %v1463, %v1467
  %1469 = vmatprep.subr.mxu0 %v368
  %1470 = vmatpush1.msra.mxu0 %v367
  %1471 = vmatprep.subr.mxu0 %v372
  %1472 = vmatpush1.msra.mxu0 %v371
  %1473 = vmatprep.subr.mxu0 %v376
  %1474 = vmatpush1.msra.mxu0 %v375
  %1475 = vmatprep.subr.mxu0 %v380
  %1476 = vmatpush1.msra.mxu0 %v379
  %1477 = vmatprep.subr.mxu0 %v384
  %1478 = vmatpush1.msra.mxu0 %v383
  %1479 = vmatprep.subr.mxu0 %v388
  %1480 = vmatpush1.msra.mxu0 %v387
  %1481 = vmatprep.subr.mxu0 %v392
  %1482 = vmatpush1.msra.mxu0 %v391
  %1483 = vmatprep.subr.mxu0 %v396
  %1484 = vmatpush1.msra.mxu0 %v395
  %1485 = vmatprep.subr.mxu0 %v400
  %1486 = vmatpush1.msra.mxu0 %v399
  %1487 = vmatprep.subr.mxu0 %v404
  %1488 = vmatpush1.msra.mxu0 %v403
  %1489 = vmatprep.subr.mxu0 %v408
  %1490 = vmatpush1.msra.mxu0 %v407
  %1491 = vmatprep.subr.mxu0 %v412
  %1492 = vmatpush1.msra.mxu0 %v411
  %1493 = vmatprep.subr.mxu0 %v416
  %1494 = vmatpush1.msra.mxu0 %v415
  %1495 = vmatprep.subr.mxu0 %v420
  %1496 = vmatpush1.msra.mxu0 %v419
  %1497 = vmatprep.subr.mxu0 %v424
  %1498 = vmatpush1.msra.mxu0 %v423
  %1499 = vmatprep.subr.mxu0 %v428
  %1500 = vmatpush1.msra.mxu0 %v427
  %1501 = vmatprep.subr.mxu0 0.0
  %1502 = vmatpush1.msra.mxu0 0.0
  %1503 = vmatprep.subr.mxu0 0.0
  %1504 = vmatpush1.msra.mxu0 0.0
  %1505 = vmatprep.subr.mxu0 0.0
  %1506 = vmatpush1.msra.mxu0 0.0
  %1507 = vmatprep.subr.mxu0 0.0
  %1508 = vmatpush1.msra.mxu0 0.0
  %1509 = vmatprep.subr.mxu0 0.0
  %1510 = vmatpush1.msra.mxu0 0.0
  %1511 = vmatprep.subr.mxu0 0.0
  %1512 = vmatpush1.msra.mxu0 0.0
  %1513 = vmatprep.subr.mxu0 0.0
  %1514 = vmatpush1.msra.mxu0 0.0
  %1515 = vmatprep.subr.mxu0 0.0
  %1516 = vmatpush1.msra.mxu0 0.0
  %1517 = vmatprep.subr.mxu0 0.0
  %1518 = vmatpush1.msra.mxu0 0.0
  %1519 = vmatprep.subr.mxu0 0.0
  %1520 = vmatpush1.msra.mxu0 0.0
  %1521 = vmatprep.subr.mxu0 0.0
  %1522 = vmatpush1.msra.mxu0 0.0
  %1523 = vmatprep.subr.mxu0 0.0
  %1524 = vmatpush1.msra.mxu0 0.0
  %1525 = vmatprep.subr.mxu0 0.0
  %1526 = vmatpush1.msra.mxu0 0.0
  %1527 = vmatprep.subr.mxu0 0.0
  %1528 = vmatpush1.msra.mxu0 0.0
  %1529 = vmatprep.subr.mxu0 0.0
  %1530 = vmatpush1.msra.mxu0 0.0
  %1531 = vmatprep.subr.mxu0 0.0
  %1532 = vmatpush1.msra.mxu0 0.0
  %1533 = vmatprep.mubr.f32.mxu0 0.0
  %1534 = vmatmul.mubr.f32.gmra.mrb[0].mxu0 %v1468
  %v1535 = vpop.f32.mrb[0].mxu0
  %v1536 = vadd.f32 0.0, %v1535
  %v1537 = vpop.f32.mrb[0].mxu0
  %v1538 = vadd.f32 0.0, %v1537
  %1539 = vdwg.mxu0
  %1540 = vmatprep.subr.mxu0 %v370
  %1541 = vmatpush1.msra.mxu0 %v369
  %1542 = vmatprep.subr.mxu0 %v374
  %1543 = vmatpush1.msra.mxu0 %v373
  %1544 = vmatprep.subr.mxu0 %v378
  %1545 = vmatpush1.msra.mxu0 %v377
  %1546 = vmatprep.subr.mxu0 %v382
  %1547 = vmatpush1.msra.mxu0 %v381
  %1548 = vmatprep.subr.mxu0 %v386
  %1549 = vmatpush1.msra.mxu0 %v385
  %1550 = vmatprep.subr.mxu0 %v390
  %1551 = vmatpush1.msra.mxu0 %v389
  %1552 = vmatprep.subr.mxu0 %v394
  %1553 = vmatpush1.msra.mxu0 %v393
  %1554 = vmatprep.subr.mxu0 %v398
  %1555 = vmatpush1.msra.mxu0 %v397
  %1556 = vmatprep.subr.mxu0 %v402
  %1557 = vmatpush1.msra.mxu0 %v401
  %1558 = vmatprep.subr.mxu0 %v406
  %1559 = vmatpush1.msra.mxu0 %v405
  %1560 = vmatprep.subr.mxu0 %v410
  %1561 = vmatpush1.msra.mxu0 %v409
  %1562 = vmatprep.subr.mxu0 %v414
  %1563 = vmatpush1.msra.mxu0 %v413
  %1564 = vmatprep.subr.mxu0 %v418
  %1565 = vmatpush1.msra.mxu0 %v417
  %1566 = vmatprep.subr.mxu0 %v422
  %1567 = vmatpush1.msra.mxu0 %v421
  %1568 = vmatprep.subr.mxu0 %v426
  %1569 = vmatpush1.msra.mxu0 %v425
  %1570 = vmatprep.subr.mxu0 %v430
  %1571 = vmatpush1.msra.mxu0 %v429
  %1572 = vmatprep.subr.mxu0 0.0
  %1573 = vmatpush1.msra.mxu0 0.0
  %1574 = vmatprep.subr.mxu0 0.0
  %1575 = vmatpush1.msra.mxu0 0.0
  %1576 = vmatprep.subr.mxu0 0.0
  %1577 = vmatpush1.msra.mxu0 0.0
  %1578 = vmatprep.subr.mxu0 0.0
  %1579 = vmatpush1.msra.mxu0 0.0
  %1580 = vmatprep.subr.mxu0 0.0
  %1581 = vmatpush1.msra.mxu0 0.0
  %1582 = vmatprep.subr.mxu0 0.0
  %1583 = vmatpush1.msra.mxu0 0.0
  %1584 = vmatprep.subr.mxu0 0.0
  %1585 = vmatpush1.msra.mxu0 0.0
  %1586 = vmatprep.subr.mxu0 0.0
  %1587 = vmatpush1.msra.mxu0 0.0
  %1588 = vmatprep.subr.mxu0 0.0
  %1589 = vmatpush1.msra.mxu0 0.0
  %1590 = vmatprep.subr.mxu0 0.0
  %1591 = vmatpush1.msra.mxu0 0.0
  %1592 = vmatprep.subr.mxu0 0.0
  %1593 = vmatpush1.msra.mxu0 0.0
  %1594 = vmatprep.subr.mxu0 0.0
  %1595 = vmatpush1.msra.mxu0 0.0
  %1596 = vmatprep.subr.mxu0 0.0
  %1597 = vmatpush1.msra.mxu0 0.0
  %1598 = vmatprep.subr.mxu0 0.0
  %1599 = vmatpush1.msra.mxu0 0.0
  %1600 = vmatprep.subr.mxu0 0.0
  %1601 = vmatpush1.msra.mxu0 0.0
  %1602 = vmatprep.subr.mxu0 0.0
  %1603 = vmatpush1.msra.mxu0 0.0
  %1604 = vmatprep.mubr.f32.mxu0 0.0
  %1605 = vmatmul.mubr.f32.gmra.mrb[0].mxu0 %v1468
  %v1606 = vpop.f32.mrb[0].mxu0
  %v1607 = vadd.f32 0.0, %v1606
  %v1608 = vpop.f32.mrb[0].mxu0
  %v1609 = vadd.f32 0.0, %v1608
  %1610 = vdwg.mxu0
  %v1611 = vadd.f32 %v852, %v1536
  %v1612 = vadd.f32 %v854, %v1538
  %v1613 = vadd.f32 %v1119, %v1607
  %v1614 = vadd.f32 %v1121, %v1609
  %v1615 = vxor.u32 %v1611, 2147483648
  %v1616 = vmul.f32 %v1615, 1.442695
  %v1617 = vpow.pop %v1616
  %v1618 = vadd.f32 %v1617, 1.0
  %v1619 = vrcp.pop %v1618
  %v1620 = vmul.f32 1.0, %v1619
  %v1621 = vxor.u32 %v1612, 2147483648
  %v1622 = vmul.f32 %v1621, 1.442695
  %v1623 = vpow.pop %v1622
  %v1624 = vadd.f32 %v1623, 1.0
  %v1625 = vrcp.pop %v1624
  %v1626 = vmul.f32 1.0, %v1625
  %v1627 = vtanh.pop %v1613
  %v1628 = vxor.u32 %v1614, 2147483648
  %v1629 = vmul.f32 %v1628, 1.442695
  %v1630 = vpow.pop %v1629
  %v1631 = vadd.f32 %v1630, 1.0
  %v1632 = vrcp.pop %v1631
  %v1633 = vmul.f32 1.0, %v1632
  %v1634 = vmul.f32 %v1626, %v1466
  %v1635 = vmul.f32 %v1620, %v1627
  %v1636 = vadd.f32 %v1634, %v1635
  %v1637 = vtanh.pop %v1636
  %v1638 = vmul.f32 %v1633, %v1637
  %1639 = vmatprep.subr.mxu0 %v368
  %1640 = vmatpush1.msra.mxu0 %v367
  %1641 = vmatprep.subr.mxu0 %v372
  %1642 = vmatpush1.msra.mxu0 %v371
  %1643 = vmatprep.subr.mxu0 %v376
  %1644 = vmatpush1.msra.mxu0 %v375
  %1645 = vmatprep.subr.mxu0 %v380
  %1646 = vmatpush1.msra.mxu0 %v379
  %1647 = vmatprep.subr.mxu0 %v384
  %1648 = vmatpush1.msra.mxu0 %v383
  %1649 = vmatprep.subr.mxu0 %v388
  %1650 = vmatpush1.msra.mxu0 %v387
  %1651 = vmatprep.subr.mxu0 %v392
  %1652 = vmatpush1.msra.mxu0 %v391
  %1653 = vmatprep.subr.mxu0 %v396
  %1654 = vmatpush1.msra.mxu0 %v395
  %1655 = vmatprep.subr.mxu0 %v400
  %1656 = vmatpush1.msra.mxu0 %v399
  %1657 = vmatprep.subr.mxu0 %v404
  %1658 = vmatpush1.msra.mxu0 %v403
  %1659 = vmatprep.subr.mxu0 %v408
  %1660 = vmatpush1.msra.mxu0 %v407
  %1661 = vmatprep.subr.mxu0 %v412
  %1662 = vmatpush1.msra.mxu0 %v411
  %1663 = vmatprep.subr.mxu0 %v416
  %1664 = vmatpush1.msra.mxu0 %v415
  %1665 = vmatprep.subr.mxu0 %v420
  %1666 = vmatpush1.msra.mxu0 %v419
  %1667 = vmatprep.subr.mxu0 %v424
  %1668 = vmatpush1.msra.mxu0 %v423
  %1669 = vmatprep.subr.mxu0 %v428
  %1670 = vmatpush1.msra.mxu0 %v427
  %1671 = vmatprep.subr.mxu0 0.0
  %1672 = vmatpush1.msra.mxu0 0.0
  %1673 = vmatprep.subr.mxu0 0.0
  %1674 = vmatpush1.msra.mxu0 0.0
  %1675 = vmatprep.subr.mxu0 0.0
  %1676 = vmatpush1.msra.mxu0 0.0
  %1677 = vmatprep.subr.mxu0 0.0
  %1678 = vmatpush1.msra.mxu0 0.0
  %1679 = vmatprep.subr.mxu0 0.0
  %1680 = vmatpush1.msra.mxu0 0.0
  %1681 = vmatprep.subr.mxu0 0.0
  %1682 = vmatpush1.msra.mxu0 0.0
  %1683 = vmatprep.subr.mxu0 0.0
  %1684 = vmatpush1.msra.mxu0 0.0
  %1685 = vmatprep.subr.mxu0 0.0
  %1686 = vmatpush1.msra.mxu0 0.0
  %1687 = vmatprep.subr.mxu0 0.0
  %1688 = vmatpush1.msra.mxu0 0.0
  %1689 = vmatprep.subr.mxu0 0.0
  %1690 = vmatpush1.msra.mxu0 0.0
  %1691 = vmatprep.subr.mxu0 0.0
  %1692 = vmatpush1.msra.mxu0 0.0
  %1693 = vmatprep.subr.mxu0 0.0
  %1694 = vmatpush1.msra.mxu0 0.0
  %1695 = vmatprep.subr.mxu0 0.0
  %1696 = vmatpush1.msra.mxu0 0.0
  %1697 = vmatprep.subr.mxu0 0.0
  %1698 = vmatpush1.msra.mxu0 0.0
  %1699 = vmatprep.subr.mxu0 0.0
  %1700 = vmatpush1.msra.mxu0 0.0
  %1701 = vmatprep.subr.mxu0 0.0
  %1702 = vmatpush1.msra.mxu0 0.0
  %1703 = vmatprep.mubr.f32.mxu0 0.0
  %1704 = vmatmul.mubr.f32.gmra.mrb[0].mxu0 %v1638
  %v1705 = vpop.f32.mrb[0].mxu0
  %v1706 = vadd.f32 0.0, %v1705
  %v1707 = vpop.f32.mrb[0].mxu0
  %v1708 = vadd.f32 0.0, %v1707
  %1709 = vdwg.mxu0
  %1710 = vmatprep.subr.mxu0 %v370
  %1711 = vmatpush1.msra.mxu0 %v369
  %1712 = vmatprep.subr.mxu0 %v374
  %1713 = vmatpush1.msra.mxu0 %v373
  %1714 = vmatprep.subr.mxu0 %v378
  %1715 = vmatpush1.msra.mxu0 %v377
  %1716 = vmatprep.subr.mxu0 %v382
  %1717 = vmatpush1.msra.mxu0 %v381
  %1718 = vmatprep.subr.mxu0 %v386
  %1719 = vmatpush1.msra.mxu0 %v385
  %1720 = vmatprep.subr.mxu0 %v390
  %1721 = vmatpush1.msra.mxu0 %v389
  %1722 = vmatprep.subr.mxu0 %v394
  %1723 = vmatpush1.msra.mxu0 %v393
  %1724 = vmatprep.subr.mxu0 %v398
  %1725 = vmatpush1.msra.mxu0 %v397
  %1726 = vmatprep.subr.mxu0 %v402
  %1727 = vmatpush1.msra.mxu0 %v401
  %1728 = vmatprep.subr.mxu0 %v406
  %1729 = vmatpush1.msra.mxu0 %v405
  %1730 = vmatprep.subr.mxu0 %v410
  %1731 = vmatpush1.msra.mxu0 %v409
  %1732 = vmatprep.subr.mxu0 %v414
  %1733 = vmatpush1.msra.mxu0 %v413
  %1734 = vmatprep.subr.mxu0 %v418
  %1735 = vmatpush1.msra.mxu0 %v417
  %1736 = vmatprep.subr.mxu0 %v422
  %1737 = vmatpush1.msra.mxu0 %v421
  %1738 = vmatprep.subr.mxu0 %v426
  %1739 = vmatpush1.msra.mxu0 %v425
  %1740 = vmatprep.subr.mxu0 %v430
  %1741 = vmatpush1.msra.mxu0 %v429
  %1742 = vmatprep.subr.mxu0 0.0
  %1743 = vmatpush1.msra.mxu0 0.0
  %1744 = vmatprep.subr.mxu0 0.0
  %1745 = vmatpush1.msra.mxu0 0.0
  %1746 = vmatprep.subr.mxu0 0.0
  %1747 = vmatpush1.msra.mxu0 0.0
  %1748 = vmatprep.subr.mxu0 0.0
  %1749 = vmatpush1.msra.mxu0 0.0
  %1750 = vmatprep.subr.mxu0 0.0
  %1751 = vmatpush1.msra.mxu0 0.0
  %1752 = vmatprep.subr.mxu0 0.0
  %1753 = vmatpush1.msra.mxu0 0.0
  %1754 = vmatprep.subr.mxu0 0.0
  %1755 = vmatpush1.msra.mxu0 0.0
  %1756 = vmatprep.subr.mxu0 0.0
  %1757 = vmatpush1.msra.mxu0 0.0
  %1758 = vmatprep.subr.mxu0 0.0
  %1759 = vmatpush1.msra.mxu0 0.0
  %1760 = vmatprep.subr.mxu0 0.0
  %1761 = vmatpush1.msra.mxu0 0.0
  %1762 = vmatprep.subr.mxu0 0.0
  %1763 = vmatpush1.msra.mxu0 0.0
  %1764 = vmatprep.subr.mxu0 0.0
  %1765 = vmatpush1.msra.mxu0 0.0
  %1766 = vmatprep.subr.mxu0 0.0
  %1767 = vmatpush1.msra.mxu0 0.0
  %1768 = vmatprep.subr.mxu0 0.0
  %1769 = vmatpush1.msra.mxu0 0.0
  %1770 = vmatprep.subr.mxu0 0.0
  %1771 = vmatpush1.msra.mxu0 0.0
  %1772 = vmatprep.subr.mxu0 0.0
  %1773 = vmatpush1.msra.mxu0 0.0
  %1774 = vmatprep.mubr.f32.mxu0 0.0
  %1775 = vmatmul.mubr.f32.gmra.mrb[0].mxu0 %v1638
  %v1776 = vpop.f32.mrb[0].mxu0
  %v1777 = vadd.f32 0.0, %v1776
  %v1778 = vpop.f32.mrb[0].mxu0
  %v1779 = vadd.f32 0.0, %v1778
  %1780 = vdwg.mxu0
  %v1781 = vadd.f32 %v858, %v1706
  %v1782 = vadd.f32 %v860, %v1708
  %v1783 = vadd.f32 %v1125, %v1777
  %v1784 = vadd.f32 %v1127, %v1779
  %v1785 = vxor.u32 %v1781, 2147483648
  %v1786 = vmul.f32 %v1785, 1.442695
  %v1787 = vpow.pop %v1786
  %v1788 = vadd.f32 %v1787, 1.0
  %v1789 = vrcp.pop %v1788
  %v1790 = vmul.f32 1.0, %v1789
  %v1791 = vxor.u32 %v1782, 2147483648
  %v1792 = vmul.f32 %v1791, 1.442695
  %v1793 = vpow.pop %v1792
  %v1794 = vadd.f32 %v1793, 1.0
  %v1795 = vrcp.pop %v1794
  %v1796 = vmul.f32 1.0, %v1795
  %v1797 = vtanh.pop %v1783
  %v1798 = vxor.u32 %v1784, 2147483648
  %v1799 = vmul.f32 %v1798, 1.442695
  %v1800 = vpow.pop %v1799
  %v1801 = vadd.f32 %v1800, 1.0
  %v1802 = vrcp.pop %v1801
  %v1803 = vmul.f32 1.0, %v1802
  %v1804 = vmul.f32 %v1796, %v1636
  %v1805 = vmul.f32 %v1790, %v1797
  %v1806 = vadd.f32 %v1804, %v1805
  %v1807 = vtanh.pop %v1806
  %v1808 = vmul.f32 %v1803, %v1807
  %v1810 = vlaneseq
  %v1811 = vshrl.u32 %v1810, 7
  %v1812 = vsub.s32 0, %v1811
  %v1813 = vrot.slane %v560, %v1812
  %v1814 = vlaneseq
  %v1815 = vshrl.u32 %v1814, 7
  %v1816 = vsub.s32 1, %v1815
  %v1817 = vrot.slane %v560, %v1816
  %v1818 = vlaneseq
  %v1819 = vshrl.u32 %v1818, 7
  %v1820 = vsub.s32 2, %v1819
  %v1821 = vrot.slane %v560, %v1820
  %v1822 = vlaneseq
  %v1823 = vshrl.u32 %v1822, 7
  %v1824 = vsub.s32 3, %v1823
  %v1825 = vrot.slane %v560, %v1824
  %1830 = vmatprep.subr.mxu0 %v433
  %1831 = vmatpush1.msra.mxu0 %v432
  %1832 = vmatprep.subr.mxu0 %v437
  %1833 = vmatpush1.msra.mxu0 %v436
  %1834 = vmatprep.subr.mxu0 %v441
  %1835 = vmatpush1.msra.mxu0 %v440
  %1836 = vmatprep.subr.mxu0 %v445
  %1837 = vmatpush1.msra.mxu0 %v444
  %1838 = vmatprep.subr.mxu0 %v449
  %1839 = vmatpush1.msra.mxu0 %v448
  %1840 = vmatprep.subr.mxu0 %v453
  %1841 = vmatpush1.msra.mxu0 %v452
  %1842 = vmatprep.subr.mxu0 %v457
  %1843 = vmatpush1.msra.mxu0 %v456
  %1844 = vmatprep.subr.mxu0 %v461
  %1845 = vmatpush1.msra.mxu0 %v460
  %1846 = vmatprep.subr.mxu0 %v465
  %1847 = vmatpush1.msra.mxu0 %v464
  %1848 = vmatprep.subr.mxu0 %v469
  %1849 = vmatpush1.msra.mxu0 %v468
  %1850 = vmatprep.subr.mxu0 %v473
  %1851 = vmatpush1.msra.mxu0 %v472
  %1852 = vmatprep.subr.mxu0 %v477
  %1853 = vmatpush1.msra.mxu0 %v476
  %1854 = vmatprep.subr.mxu0 %v481
  %1855 = vmatpush1.msra.mxu0 %v480
  %1856 = vmatprep.subr.mxu0 %v485
  %1857 = vmatpush1.msra.mxu0 %v484
  %1858 = vmatprep.subr.mxu0 %v489
  %1859 = vmatpush1.msra.mxu0 %v488
  %1860 = vmatprep.subr.mxu0 %v493
  %1861 = vmatpush1.msra.mxu0 %v492
  %1862 = vmatprep.subr.mxu0 0.0
  %1863 = vmatpush1.msra.mxu0 0.0
  %1864 = vmatprep.subr.mxu0 0.0
  %1865 = vmatpush1.msra.mxu0 0.0
  %1866 = vmatprep.subr.mxu0 0.0
  %1867 = vmatpush1.msra.mxu0 0.0
  %1868 = vmatprep.subr.mxu0 0.0
  %1869 = vmatpush1.msra.mxu0 0.0
  %1870 = vmatprep.subr.mxu0 0.0
  %1871 = vmatpush1.msra.mxu0 0.0
  %1872 = vmatprep.subr.mxu0 0.0
  %1873 = vmatpush1.msra.mxu0 0.0
  %1874 = vmatprep.subr.mxu0 0.0
  %1875 = vmatpush1.msra.mxu0 0.0
  %1876 = vmatprep.subr.mxu0 0.0
  %1877 = vmatpush1.msra.mxu0 0.0
  %1878 = vmatprep.subr.mxu0 0.0
  %1879 = vmatpush1.msra.mxu0 0.0
  %1880 = vmatprep.subr.mxu0 0.0
  %1881 = vmatpush1.msra.mxu0 0.0
  %1882 = vmatprep.subr.mxu0 0.0
  %1883 = vmatpush1.msra.mxu0 0.0
  %1884 = vmatprep.subr.mxu0 0.0
  %1885 = vmatpush1.msra.mxu0 0.0
  %1886 = vmatprep.subr.mxu0 0.0
  %1887 = vmatpush1.msra.mxu0 0.0
  %1888 = vmatprep.subr.mxu0 0.0
  %1889 = vmatpush1.msra.mxu0 0.0
  %1890 = vmatprep.subr.mxu0 0.0
  %1891 = vmatpush1.msra.mxu0 0.0
  %1892 = vmatprep.subr.mxu0 0.0
  %1893 = vmatpush1.msra.mxu0 0.0
  %1894 = vmatprep.mubr.f32.mxu0 0.0
  %1895 = vmatmul.mubr.f32.gmra.mrb[0].mxu0 %v1298
  %v1896 = vpop.f32.mrb[0].mxu0
  %v1897 = vadd.f32 %v1813, %v1896
  %v1898 = vpop.f32.mrb[0].mxu0
  %v1899 = vadd.f32 %v1817, %v1898
  %1900 = vmatprep.mubr.f32.mxu0 0.0
  %1901 = vmatmul.mubr.f32.gmra.mrb[0].mxu0 %v1468
  %v1902 = vpop.f32.mrb[0].mxu0
  %v1903 = vadd.f32 %v1813, %v1902
  %v1904 = vpop.f32.mrb[0].mxu0
  %v1905 = vadd.f32 %v1817, %v1904
  %1906 = vmatprep.mubr.f32.mxu0 0.0
  %1907 = vmatmul.mubr.f32.gmra.mrb[0].mxu0 %v1638
  %v1908 = vpop.f32.mrb[0].mxu0
  %v1909 = vadd.f32 %v1813, %v1908
  %v1910 = vpop.f32.mrb[0].mxu0
  %v1911 = vadd.f32 %v1817, %v1910
  %1912 = vmatprep.mubr.f32.mxu0 0.0
  %1913 = vmatmul.mubr.f32.gmra.mrb[0].mxu0 %v1808
  %v1914 = vpop.f32.mrb[0].mxu0
  %v1915 = vadd.f32 %v1813, %v1914
  %v1916 = vpop.f32.mrb[0].mxu0
  %v1917 = vadd.f32 %v1817, %v1916
  %1918 = vdwg.mxu0
  %1919 = vmatprep.subr.mxu0 %v435
  %1920 = vmatpush1.msra.mxu0 %v434
  %1921 = vmatprep.subr.mxu0 %v439
  %1922 = vmatpush1.msra.mxu0 %v438
  %1923 = vmatprep.subr.mxu0 %v443
  %1924 = vmatpush1.msra.mxu0 %v442
  %1925 = vmatprep.subr.mxu0 %v447
  %1926 = vmatpush1.msra.mxu0 %v446
  %1927 = vmatprep.subr.mxu0 %v451
  %1928 = vmatpush1.msra.mxu0 %v450
  %1929 = vmatprep.subr.mxu0 %v455
  %1930 = vmatpush1.msra.mxu0 %v454
  %1931 = vmatprep.subr.mxu0 %v459
  %1932 = vmatpush1.msra.mxu0 %v458
  %1933 = vmatprep.subr.mxu0 %v463
  %1934 = vmatpush1.msra.mxu0 %v462
  %1935 = vmatprep.subr.mxu0 %v467
  %1936 = vmatpush1.msra.mxu0 %v466
  %1937 = vmatprep.subr.mxu0 %v471
  %1938 = vmatpush1.msra.mxu0 %v470
  %1939 = vmatprep.subr.mxu0 %v475
  %1940 = vmatpush1.msra.mxu0 %v474
  %1941 = vmatprep.subr.mxu0 %v479
  %1942 = vmatpush1.msra.mxu0 %v478
  %1943 = vmatprep.subr.mxu0 %v483
  %1944 = vmatpush1.msra.mxu0 %v482
  %1945 = vmatprep.subr.mxu0 %v487
  %1946 = vmatpush1.msra.mxu0 %v486
  %1947 = vmatprep.subr.mxu0 %v491
  %1948 = vmatpush1.msra.mxu0 %v490
  %1949 = vmatprep.subr.mxu0 %v495
  %1950 = vmatpush1.msra.mxu0 %v494
  %1951 = vmatprep.subr.mxu0 0.0
  %1952 = vmatpush1.msra.mxu0 0.0
  %1953 = vmatprep.subr.mxu0 0.0
  %1954 = vmatpush1.msra.mxu0 0.0
  %1955 = vmatprep.subr.mxu0 0.0
  %1956 = vmatpush1.msra.mxu0 0.0
  %1957 = vmatprep.subr.mxu0 0.0
  %1958 = vmatpush1.msra.mxu0 0.0
  %1959 = vmatprep.subr.mxu0 0.0
  %1960 = vmatpush1.msra.mxu0 0.0
  %1961 = vmatprep.subr.mxu0 0.0
  %1962 = vmatpush1.msra.mxu0 0.0
  %1963 = vmatprep.subr.mxu0 0.0
  %1964 = vmatpush1.msra.mxu0 0.0
  %1965 = vmatprep.subr.mxu0 0.0
  %1966 = vmatpush1.msra.mxu0 0.0
  %1967 = vmatprep.subr.mxu0 0.0
  %1968 = vmatpush1.msra.mxu0 0.0
  %1969 = vmatprep.subr.mxu0 0.0
  %1970 = vmatpush1.msra.mxu0 0.0
  %1971 = vmatprep.subr.mxu0 0.0
  %1972 = vmatpush1.msra.mxu0 0.0
  %1973 = vmatprep.subr.mxu0 0.0
  %1974 = vmatpush1.msra.mxu0 0.0
  %1975 = vmatprep.subr.mxu0 0.0
  %1976 = vmatpush1.msra.mxu0 0.0
  %1977 = vmatprep.subr.mxu0 0.0
  %1978 = vmatpush1.msra.mxu0 0.0
  %1979 = vmatprep.subr.mxu0 0.0
  %1980 = vmatpush1.msra.mxu0 0.0
  %1981 = vmatprep.subr.mxu0 0.0
  %1982 = vmatpush1.msra.mxu0 0.0
  %1983 = vmatprep.mubr.f32.mxu0 0.0
  %1984 = vmatmul.mubr.f32.gmra.mrb[0].mxu0 %v1298
  %v1985 = vpop.f32.mrb[0].mxu0
  %v1986 = vadd.f32 %v1821, %v1985
  %v1987 = vpop.f32.mrb[0].mxu0
  %v1988 = vadd.f32 %v1825, %v1987
  %1989 = vmatprep.mubr.f32.mxu0 0.0
  %1990 = vmatmul.mubr.f32.gmra.mrb[0].mxu0 %v1468
  %v1991 = vpop.f32.mrb[0].mxu0
  %v1992 = vadd.f32 %v1821, %v1991
  %v1993 = vpop.f32.mrb[0].mxu0
  %v1994 = vadd.f32 %v1825, %v1993
  %1995 = vmatprep.mubr.f32.mxu0 0.0
  %1996 = vmatmul.mubr.f32.gmra.mrb[0].mxu0 %v1638
  %v1997 = vpop.f32.mrb[0].mxu0
  %v1998 = vadd.f32 %v1821, %v1997
  %v1999 = vpop.f32.mrb[0].mxu0
  %v2000 = vadd.f32 %v1825, %v1999
  %2001 = vmatprep.mubr.f32.mxu0 0.0
  %2002 = vmatmul.mubr.f32.gmra.mrb[0].mxu0 %v1808
  %v2003 = vpop.f32.mrb[0].mxu0
  %v2004 = vadd.f32 %v1821, %v2003
  %v2005 = vpop.f32.mrb[0].mxu0
  %v2006 = vadd.f32 %v1825, %v2005
  %2007 = vdwg.mxu0
  %2008 = vmatprep.subr.mxu0 %v497
  %2009 = vmatpush1.msra.mxu0 %v496
  %2010 = vmatprep.subr.mxu0 %v501
  %2011 = vmatpush1.msra.mxu0 %v500
  %2012 = vmatprep.subr.mxu0 %v505
  %2013 = vmatpush1.msra.mxu0 %v504
  %2014 = vmatprep.subr.mxu0 %v509
  %2015 = vmatpush1.msra.mxu0 %v508
  %2016 = vmatprep.subr.mxu0 %v513
  %2017 = vmatpush1.msra.mxu0 %v512
  %2018 = vmatprep.subr.mxu0 %v517
  %2019 = vmatpush1.msra.mxu0 %v516
  %2020 = vmatprep.subr.mxu0 %v521
  %2021 = vmatpush1.msra.mxu0 %v520
  %2022 = vmatprep.subr.mxu0 %v525
  %2023 = vmatpush1.msra.mxu0 %v524
  %2024 = vmatprep.subr.mxu0 %v529
  %2025 = vmatpush1.msra.mxu0 %v528
  %2026 = vmatprep.subr.mxu0 %v533
  %2027 = vmatpush1.msra.mxu0 %v532
  %2028 = vmatprep.subr.mxu0 %v537
  %2029 = vmatpush1.msra.mxu0 %v536
  %2030 = vmatprep.subr.mxu0 %v541
  %2031 = vmatpush1.msra.mxu0 %v540
  %2032 = vmatprep.subr.mxu0 %v545
  %2033 = vmatpush1.msra.mxu0 %v544
  %2034 = vmatprep.subr.mxu0 %v549
  %2035 = vmatpush1.msra.mxu0 %v548
  %2036 = vmatprep.subr.mxu0 %v553
  %2037 = vmatpush1.msra.mxu0 %v552
  %2038 = vmatprep.subr.mxu0 %v557
  %2039 = vmatpush1.msra.mxu0 %v556
  %2040 = vmatprep.subr.mxu0 0.0
  %2041 = vmatpush1.msra.mxu0 0.0
  %2042 = vmatprep.subr.mxu0 0.0
  %2043 = vmatpush1.msra.mxu0 0.0
  %2044 = vmatprep.subr.mxu0 0.0
  %2045 = vmatpush1.msra.mxu0 0.0
  %2046 = vmatprep.subr.mxu0 0.0
  %2047 = vmatpush1.msra.mxu0 0.0
  %2048 = vmatprep.subr.mxu0 0.0
  %2049 = vmatpush1.msra.mxu0 0.0
  %2050 = vmatprep.subr.mxu0 0.0
  %2051 = vmatpush1.msra.mxu0 0.0
  %2052 = vmatprep.subr.mxu0 0.0
  %2053 = vmatpush1.msra.mxu0 0.0
  %2054 = vmatprep.subr.mxu0 0.0
  %2055 = vmatpush1.msra.mxu0 0.0
  %2056 = vmatprep.subr.mxu0 0.0
  %2057 = vmatpush1.msra.mxu0 0.0
  %2058 = vmatprep.subr.mxu0 0.0
  %2059 = vmatpush1.msra.mxu0 0.0
  %2060 = vmatprep.subr.mxu0 0.0
  %2061 = vmatpush1.msra.mxu0 0.0
  %2062 = vmatprep.subr.mxu0 0.0
  %2063 = vmatpush1.msra.mxu0 0.0
  %2064 = vmatprep.subr.mxu0 0.0
  %2065 = vmatpush1.msra.mxu0 0.0
  %2066 = vmatprep.subr.mxu0 0.0
  %2067 = vmatpush1.msra.mxu0 0.0
  %2068 = vmatprep.subr.mxu0 0.0
  %2069 = vmatpush1.msra.mxu0 0.0
  %2070 = vmatprep.subr.mxu0 0.0
  %2071 = vmatpush1.msra.mxu0 0.0
  %2072 = vmatprep.mubr.f32.mxu0 0.0
  %2073 = vmatmul.mubr.f32.gmra.mrb[0].mxu0 0.0
  %v2074 = vpop.f32.mrb[0].mxu0
  %v2075 = vadd.f32 0.0, %v2074
  %v2076 = vpop.f32.mrb[0].mxu0
  %v2077 = vadd.f32 0.0, %v2076
  %2078 = vdwg.mxu0
  %2079 = vmatprep.subr.mxu0 %v499
  %2080 = vmatpush1.msra.mxu0 %v498
  %2081 = vmatprep.subr.mxu0 %v503
  %2082 = vmatpush1.msra.mxu0 %v502
  %2083 = vmatprep.subr.mxu0 %v507
  %2084 = vmatpush1.msra.mxu0 %v506
  %2085 = vmatprep.subr.mxu0 %v511
  %2086 = vmatpush1.msra.mxu0 %v510
  %2087 = vmatprep.subr.mxu0 %v515
  %2088 = vmatpush1.msra.mxu0 %v514
  %2089 = vmatprep.subr.mxu0 %v519
  %2090 = vmatpush1.msra.mxu0 %v518
  %2091 = vmatprep.subr.mxu0 %v523
  %2092 = vmatpush1.msra.mxu0 %v522
  %2093 = vmatprep.subr.mxu0 %v527
  %2094 = vmatpush1.msra.mxu0 %v526
  %2095 = vmatprep.subr.mxu0 %v531
  %2096 = vmatpush1.msra.mxu0 %v530
  %2097 = vmatprep.subr.mxu0 %v535
  %2098 = vmatpush1.msra.mxu0 %v534
  %2099 = vmatprep.subr.mxu0 %v539
  %2100 = vmatpush1.msra.mxu0 %v538
  %2101 = vmatprep.subr.mxu0 %v543
  %2102 = vmatpush1.msra.mxu0 %v542
  %2103 = vmatprep.subr.mxu0 %v547
  %2104 = vmatpush1.msra.mxu0 %v546
  %2105 = vmatprep.subr.mxu0 %v551
  %2106 = vmatpush1.msra.mxu0 %v550
  %2107 = vmatprep.subr.mxu0 %v555
  %2108 = vmatpush1.msra.mxu0 %v554
  %2109 = vmatprep.subr.mxu0 %v559
  %2110 = vmatpush1.msra.mxu0 %v558
  %2111 = vmatprep.subr.mxu0 0.0
  %2112 = vmatpush1.msra.mxu0 0.0
  %2113 = vmatprep.subr.mxu0 0.0
  %2114 = vmatpush1.msra.mxu0 0.0
  %2115 = vmatprep.subr.mxu0 0.0
  %2116 = vmatpush1.msra.mxu0 0.0
  %2117 = vmatprep.subr.mxu0 0.0
  %2118 = vmatpush1.msra.mxu0 0.0
  %2119 = vmatprep.subr.mxu0 0.0
  %2120 = vmatpush1.msra.mxu0 0.0
  %2121 = vmatprep.subr.mxu0 0.0
  %2122 = vmatpush1.msra.mxu0 0.0
  %2123 = vmatprep.subr.mxu0 0.0
  %2124 = vmatpush1.msra.mxu0 0.0
  %2125 = vmatprep.subr.mxu0 0.0
  %2126 = vmatpush1.msra.mxu0 0.0
  %2127 = vmatprep.subr.mxu0 0.0
  %2128 = vmatpush1.msra.mxu0 0.0
  %2129 = vmatprep.subr.mxu0 0.0
  %2130 = vmatpush1.msra.mxu0 0.0
  %2131 = vmatprep.subr.mxu0 0.0
  %2132 = vmatpush1.msra.mxu0 0.0
  %2133 = vmatprep.subr.mxu0 0.0
  %2134 = vmatpush1.msra.mxu0 0.0
  %2135 = vmatprep.subr.mxu0 0.0
  %2136 = vmatpush1.msra.mxu0 0.0
  %2137 = vmatprep.subr.mxu0 0.0
  %2138 = vmatpush1.msra.mxu0 0.0
  %2139 = vmatprep.subr.mxu0 0.0
  %2140 = vmatpush1.msra.mxu0 0.0
  %2141 = vmatprep.subr.mxu0 0.0
  %2142 = vmatpush1.msra.mxu0 0.0
  %2143 = vmatprep.mubr.f32.mxu0 0.0
  %2144 = vmatmul.mubr.f32.gmra.mrb[0].mxu0 0.0
  %v2145 = vpop.f32.mrb[0].mxu0
  %v2146 = vadd.f32 0.0, %v2145
  %v2147 = vpop.f32.mrb[0].mxu0
  %v2148 = vadd.f32 0.0, %v2147
  %2149 = vdwg.mxu0
  %v2150 = vadd.f32 %v1897, %v2075
  %v2151 = vadd.f32 %v1899, %v2077
  %v2152 = vadd.f32 %v1986, %v2146
  %v2153 = vadd.f32 %v1988, %v2148
  %v2154 = vxor.u32 %v2150, 2147483648
  %v2155 = vmul.f32 %v2154, 1.442695
  %v2156 = vpow.pop %v2155
  %v2157 = vadd.f32 %v2156, 1.0
  %v2158 = vrcp.pop %v2157
  %v2159 = vmul.f32 1.0, %v2158
  %v2160 = vxor.u32 %v2151, 2147483648
  %v2161 = vmul.f32 %v2160, 1.442695
  %v2162 = vpow.pop %v2161
  %v2163 = vadd.f32 %v2162, 1.0
  %v2164 = vrcp.pop %v2163
  %v2165 = vmul.f32 1.0, %v2164
  %v2166 = vtanh.pop %v2152
  %v2167 = vxor.u32 %v2153, 2147483648
  %v2168 = vmul.f32 %v2167, 1.442695
  %v2169 = vpow.pop %v2168
  %v2170 = vadd.f32 %v2169, 1.0
  %v2171 = vrcp.pop %v2170
  %v2172 = vmul.f32 1.0, %v2171
  %v2173 = vmul.f32 %v2165, 0.0
  %v2174 = vmul.f32 %v2159, %v2166
  %v2175 = vadd.f32 %v2173, %v2174
  %v2176 = vtanh.pop %v2175
  %v2177 = vmul.f32 %v2172, %v2176
  %2178 = vmatprep.subr.mxu0 %v497
  %2179 = vmatpush1.msra.mxu0 %v496
  %2180 = vmatprep.subr.mxu0 %v501
  %2181 = vmatpush1.msra.mxu0 %v500
  %2182 = vmatprep.subr.mxu0 %v505
  %2183 = vmatpush1.msra.mxu0 %v504
  %2184 = vmatprep.subr.mxu0 %v509
  %2185 = vmatpush1.msra.mxu0 %v508
  %2186 = vmatprep.subr.mxu0 %v513
  %2187 = vmatpush1.msra.mxu0 %v512
  %2188 = vmatprep.subr.mxu0 %v517
  %2189 = vmatpush1.msra.mxu0 %v516
  %2190 = vmatprep.subr.mxu0 %v521
  %2191 = vmatpush1.msra.mxu0 %v520
  %2192 = vmatprep.subr.mxu0 %v525
  %2193 = vmatpush1.msra.mxu0 %v524
  %2194 = vmatprep.subr.mxu0 %v529
  %2195 = vmatpush1.msra.mxu0 %v528
  %2196 = vmatprep.subr.mxu0 %v533
  %2197 = vmatpush1.msra.mxu0 %v532
  %2198 = vmatprep.subr.mxu0 %v537
  %2199 = vmatpush1.msra.mxu0 %v536
  %2200 = vmatprep.subr.mxu0 %v541
  %2201 = vmatpush1.msra.mxu0 %v540
  %2202 = vmatprep.subr.mxu0 %v545
  %2203 = vmatpush1.msra.mxu0 %v544
  %2204 = vmatprep.subr.mxu0 %v549
  %2205 = vmatpush1.msra.mxu0 %v548
  %2206 = vmatprep.subr.mxu0 %v553
  %2207 = vmatpush1.msra.mxu0 %v552
  %2208 = vmatprep.subr.mxu0 %v557
  %2209 = vmatpush1.msra.mxu0 %v556
  %2210 = vmatprep.subr.mxu0 0.0
  %2211 = vmatpush1.msra.mxu0 0.0
  %2212 = vmatprep.subr.mxu0 0.0
  %2213 = vmatpush1.msra.mxu0 0.0
  %2214 = vmatprep.subr.mxu0 0.0
  %2215 = vmatpush1.msra.mxu0 0.0
  %2216 = vmatprep.subr.mxu0 0.0
  %2217 = vmatpush1.msra.mxu0 0.0
  %2218 = vmatprep.subr.mxu0 0.0
  %2219 = vmatpush1.msra.mxu0 0.0
  %2220 = vmatprep.subr.mxu0 0.0
  %2221 = vmatpush1.msra.mxu0 0.0
  %2222 = vmatprep.subr.mxu0 0.0
  %2223 = vmatpush1.msra.mxu0 0.0
  %2224 = vmatprep.subr.mxu0 0.0
  %2225 = vmatpush1.msra.mxu0 0.0
  %2226 = vmatprep.subr.mxu0 0.0
  %2227 = vmatpush1.msra.mxu0 0.0
  %2228 = vmatprep.subr.mxu0 0.0
  %2229 = vmatpush1.msra.mxu0 0.0
  %2230 = vmatprep.subr.mxu0 0.0
  %2231 = vmatpush1.msra.mxu0 0.0
  %2232 = vmatprep.subr.mxu0 0.0
  %2233 = vmatpush1.msra.mxu0 0.0
  %2234 = vmatprep.subr.mxu0 0.0
  %2235 = vmatpush1.msra.mxu0 0.0
  %2236 = vmatprep.subr.mxu0 0.0
  %2237 = vmatpush1.msra.mxu0 0.0
  %2238 = vmatprep.subr.mxu0 0.0
  %2239 = vmatpush1.msra.mxu0 0.0
  %2240 = vmatprep.subr.mxu0 0.0
  %2241 = vmatpush1.msra.mxu0 0.0
  %2242 = vmatprep.mubr.f32.mxu0 0.0
  %2243 = vmatmul.mubr.f32.gmra.mrb[0].mxu0 %v2177
  %v2244 = vpop.f32.mrb[0].mxu0
  %v2245 = vadd.f32 0.0, %v2244
  %v2246 = vpop.f32.mrb[0].mxu0
  %v2247 = vadd.f32 0.0, %v2246
  %2248 = vdwg.mxu0
  %2249 = vmatprep.subr.mxu0 %v499
  %2250 = vmatpush1.msra.mxu0 %v498
  %2251 = vmatprep.subr.mxu0 %v503
  %2252 = vmatpush1.msra.mxu0 %v502
  %2253 = vmatprep.subr.mxu0 %v507
  %2254 = vmatpush1.msra.mxu0 %v506
  %2255 = vmatprep.subr.mxu0 %v511
  %2256 = vmatpush1.msra.mxu0 %v510
  %2257 = vmatprep.subr.mxu0 %v515
  %2258 = vmatpush1.msra.mxu0 %v514
  %2259 = vmatprep.subr.mxu0 %v519
  %2260 = vmatpush1.msra.mxu0 %v518
  %2261 = vmatprep.subr.mxu0 %v523
  %2262 = vmatpush1.msra.mxu0 %v522
  %2263 = vmatprep.subr.mxu0 %v527
  %2264 = vmatpush1.msra.mxu0 %v526
  %2265 = vmatprep.subr.mxu0 %v531
  %2266 = vmatpush1.msra.mxu0 %v530
  %2267 = vmatprep.subr.mxu0 %v535
  %2268 = vmatpush1.msra.mxu0 %v534
  %2269 = vmatprep.subr.mxu0 %v539
  %2270 = vmatpush1.msra.mxu0 %v538
  %2271 = vmatprep.subr.mxu0 %v543
  %2272 = vmatpush1.msra.mxu0 %v542
  %2273 = vmatprep.subr.mxu0 %v547
  %2274 = vmatpush1.msra.mxu0 %v546
  %2275 = vmatprep.subr.mxu0 %v551
  %2276 = vmatpush1.msra.mxu0 %v550
  %2277 = vmatprep.subr.mxu0 %v555
  %2278 = vmatpush1.msra.mxu0 %v554
  %2279 = vmatprep.subr.mxu0 %v559
  %2280 = vmatpush1.msra.mxu0 %v558
  %2281 = vmatprep.subr.mxu0 0.0
  %2282 = vmatpush1.msra.mxu0 0.0
  %2283 = vmatprep.subr.mxu0 0.0
  %2284 = vmatpush1.msra.mxu0 0.0
  %2285 = vmatprep.subr.mxu0 0.0
  %2286 = vmatpush1.msra.mxu0 0.0
  %2287 = vmatprep.subr.mxu0 0.0
  %2288 = vmatpush1.msra.mxu0 0.0
  %2289 = vmatprep.subr.mxu0 0.0
  %2290 = vmatpush1.msra.mxu0 0.0
  %2291 = vmatprep.subr.mxu0 0.0
  %2292 = vmatpush1.msra.mxu0 0.0
  %2293 = vmatprep.subr.mxu0 0.0
  %2294 = vmatpush1.msra.mxu0 0.0
  %2295 = vmatprep.subr.mxu0 0.0
  %2296 = vmatpush1.msra.mxu0 0.0
  %2297 = vmatprep.subr.mxu0 0.0
  %2298 = vmatpush1.msra.mxu0 0.0
  %2299 = vmatprep.subr.mxu0 0.0
  %2300 = vmatpush1.msra.mxu0 0.0
  %2301 = vmatprep.subr.mxu0 0.0
  %2302 = vmatpush1.msra.mxu0 0.0
  %2303 = vmatprep.subr.mxu0 0.0
  %2304 = vmatpush1.msra.mxu0 0.0
  %2305 = vmatprep.subr.mxu0 0.0
  %2306 = vmatpush1.msra.mxu0 0.0
  %2307 = vmatprep.subr.mxu0 0.0
  %2308 = vmatpush1.msra.mxu0 0.0
  %2309 = vmatprep.subr.mxu0 0.0
  %2310 = vmatpush1.msra.mxu0 0.0
  %2311 = vmatprep.subr.mxu0 0.0
  %2312 = vmatpush1.msra.mxu0 0.0
  %2313 = vmatprep.mubr.f32.mxu0 0.0
  %2314 = vmatmul.mubr.f32.gmra.mrb[0].mxu0 %v2177
  %v2315 = vpop.f32.mrb[0].mxu0
  %v2316 = vadd.f32 0.0, %v2315
  %v2317 = vpop.f32.mrb[0].mxu0
  %v2318 = vadd.f32 0.0, %v2317
  %2319 = vdwg.mxu0
  %v2320 = vadd.f32 %v1903, %v2245
  %v2321 = vadd.f32 %v1905, %v2247
  %v2322 = vadd.f32 %v1992, %v2316
  %v2323 = vadd.f32 %v1994, %v2318
  %v2324 = vxor.u32 %v2320, 2147483648
  %v2325 = vmul.f32 %v2324, 1.442695
  %v2326 = vpow.pop %v2325
  %v2327 = vadd.f32 %v2326, 1.0
  %v2328 = vrcp.pop %v2327
  %v2329 = vmul.f32 1.0, %v2328
  %v2330 = vxor.u32 %v2321, 2147483648
  %v2331 = vmul.f32 %v2330, 1.442695
  %v2332 = vpow.pop %v2331
  %v2333 = vadd.f32 %v2332, 1.0
  %v2334 = vrcp.pop %v2333
  %v2335 = vmul.f32 1.0, %v2334
  %v2336 = vtanh.pop %v2322
  %v2337 = vxor.u32 %v2323, 2147483648
  %v2338 = vmul.f32 %v2337, 1.442695
  %v2339 = vpow.pop %v2338
  %v2340 = vadd.f32 %v2339, 1.0
  %v2341 = vrcp.pop %v2340
  %v2342 = vmul.f32 1.0, %v2341
  %v2343 = vmul.f32 %v2335, %v2175
  %v2344 = vmul.f32 %v2329, %v2336
  %v2345 = vadd.f32 %v2343, %v2344
  %v2346 = vtanh.pop %v2345
  %v2347 = vmul.f32 %v2342, %v2346
  %2348 = vmatprep.subr.mxu0 %v497
  %2349 = vmatpush1.msra.mxu0 %v496
  %2350 = vmatprep.subr.mxu0 %v501
  %2351 = vmatpush1.msra.mxu0 %v500
  %2352 = vmatprep.subr.mxu0 %v505
  %2353 = vmatpush1.msra.mxu0 %v504
  %2354 = vmatprep.subr.mxu0 %v509
  %2355 = vmatpush1.msra.mxu0 %v508
  %2356 = vmatprep.subr.mxu0 %v513
  %2357 = vmatpush1.msra.mxu0 %v512
  %2358 = vmatprep.subr.mxu0 %v517
  %2359 = vmatpush1.msra.mxu0 %v516
  %2360 = vmatprep.subr.mxu0 %v521
  %2361 = vmatpush1.msra.mxu0 %v520
  %2362 = vmatprep.subr.mxu0 %v525
  %2363 = vmatpush1.msra.mxu0 %v524
  %2364 = vmatprep.subr.mxu0 %v529
  %2365 = vmatpush1.msra.mxu0 %v528
  %2366 = vmatprep.subr.mxu0 %v533
  %2367 = vmatpush1.msra.mxu0 %v532
  %2368 = vmatprep.subr.mxu0 %v537
  %2369 = vmatpush1.msra.mxu0 %v536
  %2370 = vmatprep.subr.mxu0 %v541
  %2371 = vmatpush1.msra.mxu0 %v540
  %2372 = vmatprep.subr.mxu0 %v545
  %2373 = vmatpush1.msra.mxu0 %v544
  %2374 = vmatprep.subr.mxu0 %v549
  %2375 = vmatpush1.msra.mxu0 %v548
  %2376 = vmatprep.subr.mxu0 %v553
  %2377 = vmatpush1.msra.mxu0 %v552
  %2378 = vmatprep.subr.mxu0 %v557
  %2379 = vmatpush1.msra.mxu0 %v556
  %2380 = vmatprep.subr.mxu0 0.0
  %2381 = vmatpush1.msra.mxu0 0.0
  %2382 = vmatprep.subr.mxu0 0.0
  %2383 = vmatpush1.msra.mxu0 0.0
  %2384 = vmatprep.subr.mxu0 0.0
  %2385 = vmatpush1.msra.mxu0 0.0
  %2386 = vmatprep.subr.mxu0 0.0
  %2387 = vmatpush1.msra.mxu0 0.0
  %2388 = vmatprep.subr.mxu0 0.0
  %2389 = vmatpush1.msra.mxu0 0.0
  %2390 = vmatprep.subr.mxu0 0.0
  %2391 = vmatpush1.msra.mxu0 0.0
  %2392 = vmatprep.subr.mxu0 0.0
  %2393 = vmatpush1.msra.mxu0 0.0
  %2394 = vmatprep.subr.mxu0 0.0
  %2395 = vmatpush1.msra.mxu0 0.0
  %2396 = vmatprep.subr.mxu0 0.0
  %2397 = vmatpush1.msra.mxu0 0.0
  %2398 = vmatprep.subr.mxu0 0.0
  %2399 = vmatpush1.msra.mxu0 0.0
  %2400 = vmatprep.subr.mxu0 0.0
  %2401 = vmatpush1.msra.mxu0 0.0
  %2402 = vmatprep.subr.mxu0 0.0
  %2403 = vmatpush1.msra.mxu0 0.0
  %2404 = vmatprep.subr.mxu0 0.0
  %2405 = vmatpush1.msra.mxu0 0.0
  %2406 = vmatprep.subr.mxu0 0.0
  %2407 = vmatpush1.msra.mxu0 0.0
  %2408 = vmatprep.subr.mxu0 0.0
  %2409 = vmatpush1.msra.mxu0 0.0
  %2410 = vmatprep.subr.mxu0 0.0
  %2411 = vmatpush1.msra.mxu0 0.0
  %2412 = vmatprep.mubr.f32.mxu0 0.0
  %2413 = vmatmul.mubr.f32.gmra.mrb[0].mxu0 %v2347
  %v2414 = vpop.f32.mrb[0].mxu0
  %v2415 = vadd.f32 0.0, %v2414
  %v2416 = vpop.f32.mrb[0].mxu0
  %v2417 = vadd.f32 0.0, %v2416
  %2418 = vdwg.mxu0
  %2419 = vmatprep.subr.mxu0 %v499
  %2420 = vmatpush1.msra.mxu0 %v498
  %2421 = vmatprep.subr.mxu0 %v503
  %2422 = vmatpush1.msra.mxu0 %v502
  %2423 = vmatprep.subr.mxu0 %v507
  %2424 = vmatpush1.msra.mxu0 %v506
  %2425 = vmatprep.subr.mxu0 %v511
  %2426 = vmatpush1.msra.mxu0 %v510
  %2427 = vmatprep.subr.mxu0 %v515
  %2428 = vmatpush1.msra.mxu0 %v514
  %2429 = vmatprep.subr.mxu0 %v519
  %2430 = vmatpush1.msra.mxu0 %v518
  %2431 = vmatprep.subr.mxu0 %v523
  %2432 = vmatpush1.msra.mxu0 %v522
  %2433 = vmatprep.subr.mxu0 %v527
  %2434 = vmatpush1.msra.mxu0 %v526
  %2435 = vmatprep.subr.mxu0 %v531
  %2436 = vmatpush1.msra.mxu0 %v530
  %2437 = vmatprep.subr.mxu0 %v535
  %2438 = vmatpush1.msra.mxu0 %v534
  %2439 = vmatprep.subr.mxu0 %v539
  %2440 = vmatpush1.msra.mxu0 %v538
  %2441 = vmatprep.subr.mxu0 %v543
  %2442 = vmatpush1.msra.mxu0 %v542
  %2443 = vmatprep.subr.mxu0 %v547
  %2444 = vmatpush1.msra.mxu0 %v546
  %2445 = vmatprep.subr.mxu0 %v551
  %2446 = vmatpush1.msra.mxu0 %v550
  %2447 = vmatprep.subr.mxu0 %v555
  %2448 = vmatpush1.msra.mxu0 %v554
  %2449 = vmatprep.subr.mxu0 %v559
  %2450 = vmatpush1.msra.mxu0 %v558
  %2451 = vmatprep.subr.mxu0 0.0
  %2452 = vmatpush1.msra.mxu0 0.0
  %2453 = vmatprep.subr.mxu0 0.0
  %2454 = vmatpush1.msra.mxu0 0.0
  %2455 = vmatprep.subr.mxu0 0.0
  %2456 = vmatpush1.msra.mxu0 0.0
  %2457 = vmatprep.subr.mxu0 0.0
  %2458 = vmatpush1.msra.mxu0 0.0
  %2459 = vmatprep.subr.mxu0 0.0
  %2460 = vmatpush1.msra.mxu0 0.0
  %2461 = vmatprep.subr.mxu0 0.0
  %2462 = vmatpush1.msra.mxu0 0.0
  %2463 = vmatprep.subr.mxu0 0.0
  %2464 = vmatpush1.msra.mxu0 0.0
  %2465 = vmatprep.subr.mxu0 0.0
  %2466 = vmatpush1.msra.mxu0 0.0
  %2467 = vmatprep.subr.mxu0 0.0
  %2468 = vmatpush1.msra.mxu0 0.0
  %2469 = vmatprep.subr.mxu0 0.0
  %2470 = vmatpush1.msra.mxu0 0.0
  %2471 = vmatprep.subr.mxu0 0.0
  %2472 = vmatpush1.msra.mxu0 0.0
  %2473 = vmatprep.subr.mxu0 0.0
  %2474 = vmatpush1.msra.mxu0 0.0
  %2475 = vmatprep.subr.mxu0 0.0
  %2476 = vmatpush1.msra.mxu0 0.0
  %2477 = vmatprep.subr.mxu0 0.0
  %2478 = vmatpush1.msra.mxu0 0.0
  %2479 = vmatprep.subr.mxu0 0.0
  %2480 = vmatpush1.msra.mxu0 0.0
  %2481 = vmatprep.subr.mxu0 0.0
  %2482 = vmatpush1.msra.mxu0 0.0
  %2483 = vmatprep.mubr.f32.mxu0 0.0
  %2484 = vmatmul.mubr.f32.gmra.mrb[0].mxu0 %v2347
  %v2485 = vpop.f32.mrb[0].mxu0
  %v2486 = vadd.f32 0.0, %v2485
  %v2487 = vpop.f32.mrb[0].mxu0
  %v2488 = vadd.f32 0.0, %v2487
  %2489 = vdwg.mxu0
  %v2490 = vadd.f32 %v1909, %v2415
  %v2491 = vadd.f32 %v1911, %v2417
  %v2492 = vadd.f32 %v1998, %v2486
  %v2493 = vadd.f32 %v2000, %v2488
  %v2494 = vxor.u32 %v2490, 2147483648
  %v2495 = vmul.f32 %v2494, 1.442695
  %v2496 = vpow.pop %v2495
  %v2497 = vadd.f32 %v2496, 1.0
  %v2498 = vrcp.pop %v2497
  %v2499 = vmul.f32 1.0, %v2498
  %v2500 = vxor.u32 %v2491, 2147483648
  %v2501 = vmul.f32 %v2500, 1.442695
  %v2502 = vpow.pop %v2501
  %v2503 = vadd.f32 %v2502, 1.0
  %v2504 = vrcp.pop %v2503
  %v2505 = vmul.f32 1.0, %v2504
  %v2506 = vtanh.pop %v2492
  %v2507 = vxor.u32 %v2493, 2147483648
  %v2508 = vmul.f32 %v2507, 1.442695
  %v2509 = vpow.pop %v2508
  %v2510 = vadd.f32 %v2509, 1.0
  %v2511 = vrcp.pop %v2510
  %v2512 = vmul.f32 1.0, %v2511
  %v2513 = vmul.f32 %v2505, %v2345
  %v2514 = vmul.f32 %v2499, %v2506
  %v2515 = vadd.f32 %v2513, %v2514
  %v2516 = vtanh.pop %v2515
  %v2517 = vmul.f32 %v2512, %v2516
  %2518 = vmatprep.subr.mxu0 %v497
  %2519 = vmatpush1.msra.mxu0 %v496
  %2520 = vmatprep.subr.mxu0 %v501
  %2521 = vmatpush1.msra.mxu0 %v500
  %2522 = vmatprep.subr.mxu0 %v505
  %2523 = vmatpush1.msra.mxu0 %v504
  %2524 = vmatprep.subr.mxu0 %v509
  %2525 = vmatpush1.msra.mxu0 %v508
  %2526 = vmatprep.subr.mxu0 %v513
  %2527 = vmatpush1.msra.mxu0 %v512
  %2528 = vmatprep.subr.mxu0 %v517
  %2529 = vmatpush1.msra.mxu0 %v516
  %2530 = vmatprep.subr.mxu0 %v521
  %2531 = vmatpush1.msra.mxu0 %v520
  %2532 = vmatprep.subr.mxu0 %v525
  %2533 = vmatpush1.msra.mxu0 %v524
  %2534 = vmatprep.subr.mxu0 %v529
  %2535 = vmatpush1.msra.mxu0 %v528
  %2536 = vmatprep.subr.mxu0 %v533
  %2537 = vmatpush1.msra.mxu0 %v532
  %2538 = vmatprep.subr.mxu0 %v537
  %2539 = vmatpush1.msra.mxu0 %v536
  %2540 = vmatprep.subr.mxu0 %v541
  %2541 = vmatpush1.msra.mxu0 %v540
  %2542 = vmatprep.subr.mxu0 %v545
  %2543 = vmatpush1.msra.mxu0 %v544
  %2544 = vmatprep.subr.mxu0 %v549
  %2545 = vmatpush1.msra.mxu0 %v548
  %2546 = vmatprep.subr.mxu0 %v553
  %2547 = vmatpush1.msra.mxu0 %v552
  %2548 = vmatprep.subr.mxu0 %v557
  %2549 = vmatpush1.msra.mxu0 %v556
  %2550 = vmatprep.subr.mxu0 0.0
  %2551 = vmatpush1.msra.mxu0 0.0
  %2552 = vmatprep.subr.mxu0 0.0
  %2553 = vmatpush1.msra.mxu0 0.0
  %2554 = vmatprep.subr.mxu0 0.0
  %2555 = vmatpush1.msra.mxu0 0.0
  %2556 = vmatprep.subr.mxu0 0.0
  %2557 = vmatpush1.msra.mxu0 0.0
  %2558 = vmatprep.subr.mxu0 0.0
  %2559 = vmatpush1.msra.mxu0 0.0
  %2560 = vmatprep.subr.mxu0 0.0
  %2561 = vmatpush1.msra.mxu0 0.0
  %2562 = vmatprep.subr.mxu0 0.0
  %2563 = vmatpush1.msra.mxu0 0.0
  %2564 = vmatprep.subr.mxu0 0.0
  %2565 = vmatpush1.msra.mxu0 0.0
  %2566 = vmatprep.subr.mxu0 0.0
  %2567 = vmatpush1.msra.mxu0 0.0
  %2568 = vmatprep.subr.mxu0 0.0
  %2569 = vmatpush1.msra.mxu0 0.0
  %2570 = vmatprep.subr.mxu0 0.0
  %2571 = vmatpush1.msra.mxu0 0.0
  %2572 = vmatprep.subr.mxu0 0.0
  %2573 = vmatpush1.msra.mxu0 0.0
  %2574 = vmatprep.subr.mxu0 0.0
  %2575 = vmatpush1.msra.mxu0 0.0
  %2576 = vmatprep.subr.mxu0 0.0
  %2577 = vmatpush1.msra.mxu0 0.0
  %2578 = vmatprep.subr.mxu0 0.0
  %2579 = vmatpush1.msra.mxu0 0.0
  %2580 = vmatprep.subr.mxu0 0.0
  %2581 = vmatpush1.msra.mxu0 0.0
  %2582 = vmatprep.mubr.f32.mxu0 0.0
  %2583 = vmatmul.mubr.f32.gmra.mrb[0].mxu0 %v2517
  %v2584 = vpop.f32.mrb[0].mxu0
  %v2585 = vadd.f32 0.0, %v2584
  %v2586 = vpop.f32.mrb[0].mxu0
  %v2587 = vadd.f32 0.0, %v2586
  %2588 = vdwg.mxu0
  %2589 = vmatprep.subr.mxu0 %v499
  %2590 = vmatpush1.msra.mxu0 %v498
  %2591 = vmatprep.subr.mxu0 %v503
  %2592 = vmatpush1.msra.mxu0 %v502
  %2593 = vmatprep.subr.mxu0 %v507
  %2594 = vmatpush1.msra.mxu0 %v506
  %2595 = vmatprep.subr.mxu0 %v511
  %2596 = vmatpush1.msra.mxu0 %v510
  %2597 = vmatprep.subr.mxu0 %v515
  %2598 = vmatpush1.msra.mxu0 %v514
  %2599 = vmatprep.subr.mxu0 %v519
  %2600 = vmatpush1.msra.mxu0 %v518
  %2601 = vmatprep.subr.mxu0 %v523
  %2602 = vmatpush1.msra.mxu0 %v522
  %2603 = vmatprep.subr.mxu0 %v527
  %2604 = vmatpush1.msra.mxu0 %v526
  %2605 = vmatprep.subr.mxu0 %v531
  %2606 = vmatpush1.msra.mxu0 %v530
  %2607 = vmatprep.subr.mxu0 %v535
  %2608 = vmatpush1.msra.mxu0 %v534
  %2609 = vmatprep.subr.mxu0 %v539
  %2610 = vmatpush1.msra.mxu0 %v538
  %2611 = vmatprep.subr.mxu0 %v543
  %2612 = vmatpush1.msra.mxu0 %v542
  %2613 = vmatprep.subr.mxu0 %v547
  %2614 = vmatpush1.msra.mxu0 %v546
  %2615 = vmatprep.subr.mxu0 %v551
  %2616 = vmatpush1.msra.mxu0 %v550
  %2617 = vmatprep.subr.mxu0 %v555
  %2618 = vmatpush1.msra.mxu0 %v554
  %2619 = vmatprep.subr.mxu0 %v559
  %2620 = vmatpush1.msra.mxu0 %v558
  %2621 = vmatprep.subr.mxu0 0.0
  %2622 = vmatpush1.msra.mxu0 0.0
  %2623 = vmatprep.subr.mxu0 0.0
  %2624 = vmatpush1.msra.mxu0 0.0
  %2625 = vmatprep.subr.mxu0 0.0
  %2626 = vmatpush1.msra.mxu0 0.0
  %2627 = vmatprep.subr.mxu0 0.0
  %2628 = vmatpush1.msra.mxu0 0.0
  %2629 = vmatprep.subr.mxu0 0.0
  %2630 = vmatpush1.msra.mxu0 0.0
  %2631 = vmatprep.subr.mxu0 0.0
  %2632 = vmatpush1.msra.mxu0 0.0
  %2633 = vmatprep.subr.mxu0 0.0
  %2634 = vmatpush1.msra.mxu0 0.0
  %2635 = vmatprep.subr.mxu0 0.0
  %2636 = vmatpush1.msra.mxu0 0.0
  %2637 = vmatprep.subr.mxu0 0.0
  %2638 = vmatpush1.msra.mxu0 0.0
  %2639 = vmatprep.subr.mxu0 0.0
  %2640 = vmatpush1.msra.mxu0 0.0
  %2641 = vmatprep.subr.mxu0 0.0
  %2642 = vmatpush1.msra.mxu0 0.0
  %2643 = vmatprep.subr.mxu0 0.0
  %2644 = vmatpush1.msra.mxu0 0.0
  %2645 = vmatprep.subr.mxu0 0.0
  %2646 = vmatpush1.msra.mxu0 0.0
  %2647 = vmatprep.subr.mxu0 0.0
  %2648 = vmatpush1.msra.mxu0 0.0
  %2649 = vmatprep.subr.mxu0 0.0
  %2650 = vmatpush1.msra.mxu0 0.0
  %2651 = vmatprep.subr.mxu0 0.0
  %2652 = vmatpush1.msra.mxu0 0.0
  %2653 = vmatprep.mubr.f32.mxu0 0.0
  %2654 = vmatmul.mubr.f32.gmra.mrb[0].mxu0 %v2517
  %v2655 = vpop.f32.mrb[0].mxu0
  %v2656 = vadd.f32 0.0, %v2655
  %v2657 = vpop.f32.mrb[0].mxu0
  %v2658 = vadd.f32 0.0, %v2657
  %2659 = vdwg.mxu0
  %v2660 = vadd.f32 %v1915, %v2585
  %v2661 = vadd.f32 %v1917, %v2587
  %v2662 = vadd.f32 %v2004, %v2656
  %v2663 = vadd.f32 %v2006, %v2658
  %v2664 = vxor.u32 %v2660, 2147483648
  %v2665 = vmul.f32 %v2664, 1.442695
  %v2666 = vpow.pop %v2665
  %v2667 = vadd.f32 %v2666, 1.0
  %v2668 = vrcp.pop %v2667
  %v2669 = vmul.f32 1.0, %v2668
  %v2670 = vxor.u32 %v2661, 2147483648
  %v2671 = vmul.f32 %v2670, 1.442695
  %v2672 = vpow.pop %v2671
  %v2673 = vadd.f32 %v2672, 1.0
  %v2674 = vrcp.pop %v2673
  %v2675 = vmul.f32 1.0, %v2674
  %v2676 = vtanh.pop %v2662
  %v2677 = vxor.u32 %v2663, 2147483648
  %v2678 = vmul.f32 %v2677, 1.442695
  %v2679 = vpow.pop %v2678
  %v2680 = vadd.f32 %v2679, 1.0
  %v2681 = vrcp.pop %v2680
  %v2682 = vmul.f32 1.0, %v2681
  %v2683 = vmul.f32 %v2675, %v2515
  %v2684 = vmul.f32 %v2669, %v2676
  %v2685 = vadd.f32 %v2683, %v2684
  %v2686 = vtanh.pop %v2685
  %v2687 = vmul.f32 %v2682, %v2686
  %v2688 = vld [vmem:[%s1] sm:$0xff]
  %v2689 = vld [vmem:[%s1 + $0x8] sm:$0xff]
  %v2690 = vld [vmem:[%s1 + $0x10] sm:$0xff]
  %v2691 = vld [vmem:[%s1 + $0x18] sm:$0xff]
  %v2692 = vld [vmem:[%s1 + $0x20] sm:$0xff]
  %v2693 = vld [vmem:[%s1 + $0x28] sm:$0xff]
  %v2694 = vld [vmem:[%s1 + $0x30] sm:$0xff]
  %v2695 = vld [vmem:[%s1 + $0x38] sm:$0xff]
  %v2696 = vld [vmem:[%s1 + $0x40] sm:$0xff]
  %v2697 = vld [vmem:[%s1 + $0x48] sm:$0xff]
  %v2698 = vld [vmem:[%s1 + $0x50] sm:$0xff]
  %v2699 = vld [vmem:[%s1 + $0x58] sm:$0xff]
  %v2700 = vld [vmem:[%s1 + $0x60] sm:$0xff]
  %v2701 = vld [vmem:[%s1 + $0x68] sm:$0xff]
  %v2702 = vld [vmem:[%s1 + $0x70] sm:$0xff]
  %v2703 = vld [vmem:[%s1 + $0x78] sm:$0xff]
  %v2704 = vld [vmem:[%s1 + $0x80] sm:$0xff]
  %v2705 = vld [vmem:[%s1 + $0x88] sm:$0xff]
  %v2706 = vld [vmem:[%s1 + $0x90] sm:$0xff]
  %v2707 = vld [vmem:[%s1 + $0x98] sm:$0xff]
  %v2708 = vld [vmem:[%s8] sm:$0xff]
  %v2709 = vld [vmem:[%s8 + $0x8] sm:$0xff]
  %v2710 = vld [vmem:[%s8 + $0x10] sm:$0xff]
  %v2711 = vld [vmem:[%s8 + $0x18] sm:$0xff]
  %v2712 = vld [vmem:[%s8 + $0x20] sm:$0xff]
  %v2713 = vld [vmem:[%s8 + $0x28] sm:$0xff]
  %v2714 = vld [vmem:[%s8 + $0x30] sm:$0xff]
  %v2715 = vld [vmem:[%s8 + $0x38] sm:$0xff]
  %v2716 = vld [vmem:[%s8 + $0x40] sm:$0xff]
  %v2717 = vld [vmem:[%s8 + $0x48] sm:$0xff]
  %v2718 = vld [vmem:[%s8 + $0x50] sm:$0xff]
  %v2719 = vld [vmem:[%s8 + $0x58] sm:$0xff]
  %v2720 = vld [vmem:[%s8 + $0x60] sm:$0xff]
  %v2721 = vld [vmem:[%s8 + $0x68] sm:$0xff]
  %v2722 = vld [vmem:[%s8 + $0x70] sm:$0xff]
  %v2723 = vld [vmem:[%s8 + $0x78] sm:$0xff]
  %v2724 = vld [vmem:[%s8 + $0x80] sm:$0xff]
  %v2725 = vld [vmem:[%s8 + $0x88] sm:$0xff]
  %v2726 = vld [vmem:[%s8 + $0x90] sm:$0xff]
  %v2727 = vld [vmem:[%s8 + $0x98] sm:$0xff]
  %v2728 = vld [vmem:[%s8 + $0xa0] sm:$0xff]
  %v2729 = vld [vmem:[%s8 + $0xa8] sm:$0xff]
  %v2730 = vld [vmem:[%s8 + $0xb0] sm:$0xff]
  %v2731 = vld [vmem:[%s8 + $0xb8] sm:$0xff]
  %v2732 = vld [vmem:[%s8 + $0xc0] sm:$0xff]
  %v2733 = vld [vmem:[%s8 + $0xc8] sm:$0xff]
  %v2734 = vld [vmem:[%s8 + $0xd0] sm:$0xff]
  %v2735 = vld [vmem:[%s8 + $0xd8] sm:$0xff]
  %v2736 = vld [vmem:[%s8 + $0xe0] sm:$0xff]
  %v2737 = vld [vmem:[%s8 + $0xe8] sm:$0xff]
  %v2738 = vld [vmem:[%s8 + $0xf0] sm:$0xff]
  %v2739 = vld [vmem:[%s8 + $0xf8] sm:$0xff]
  %v2740 = vld [vmem:[%s8 + $0x100] sm:$0xff]
  %v2741 = vld [vmem:[%s8 + $0x108] sm:$0xff]
  %v2742 = vld [vmem:[%s8 + $0x110] sm:$0xff]
  %v2743 = vld [vmem:[%s8 + $0x118] sm:$0xff]
  %v2744 = vld [vmem:[%s8 + $0x120] sm:$0xff]
  %v2745 = vld [vmem:[%s8 + $0x128] sm:$0xff]
  %v2746 = vld [vmem:[%s8 + $0x130] sm:$0xff]
  %v2747 = vld [vmem:[%s8 + $0x138] sm:$0xff]
  %v2748 = vld [vmem:[%s8 + $0x140] sm:$0xff]
  %v2749 = vld [vmem:[%s8 + $0x148] sm:$0xff]
  %v2750 = vld [vmem:[%s8 + $0x150] sm:$0xff]
  %v2751 = vld [vmem:[%s8 + $0x158] sm:$0xff]
  %v2752 = vld [vmem:[%s8 + $0x160] sm:$0xff]
  %v2753 = vld [vmem:[%s8 + $0x168] sm:$0xff]
  %v2754 = vld [vmem:[%s8 + $0x170] sm:$0xff]
  %v2755 = vld [vmem:[%s8 + $0x178] sm:$0xff]
  %v2756 = vld [vmem:[%s8 + $0x180] sm:$0xff]
  %v2757 = vld [vmem:[%s8 + $0x188] sm:$0xff]
  %v2758 = vld [vmem:[%s8 + $0x190] sm:$0xff]
  %v2759 = vld [vmem:[%s8 + $0x198] sm:$0xff]
  %v2760 = vld [vmem:[%s8 + $0x1a0] sm:$0xff]
  %v2761 = vld [vmem:[%s8 + $0x1a8] sm:$0xff]
  %v2762 = vld [vmem:[%s8 + $0x1b0] sm:$0xff]
  %v2763 = vld [vmem:[%s8 + $0x1b8] sm:$0xff]
  %v2764 = vld [vmem:[%s8 + $0x1c0] sm:$0xff]
  %v2765 = vld [vmem:[%s8 + $0x1c8] sm:$0xff]
  %v2766 = vld [vmem:[%s8 + $0x1d0] sm:$0xff]
  %v2767 = vld [vmem:[%s8 + $0x1d8] sm:$0xff]
  %v2768 = vld [vmem:[%s8 + $0x1e0] sm:$0xff]
  %v2769 = vld [vmem:[%s8 + $0x1e8] sm:$0xff]
  %v2770 = vld [vmem:[%s8 + $0x1f0] sm:$0xff]
  %v2771 = vld [vmem:[%s8 + $0x1f8] sm:$0xff]
  %v2772 = vld [vmem:[%s8 + $0x200] sm:$0xff]
  %v2773 = vld [vmem:[%s8 + $0x208] sm:$0xff]
  %v2774 = vld [vmem:[%s8 + $0x210] sm:$0xff]
  %v2775 = vld [vmem:[%s8 + $0x218] sm:$0xff]
  %v2776 = vld [vmem:[%s8 + $0x220] sm:$0xff]
  %v2777 = vld [vmem:[%s8 + $0x228] sm:$0xff]
  %v2778 = vld [vmem:[%s8 + $0x230] sm:$0xff]
  %v2779 = vld [vmem:[%s8 + $0x238] sm:$0xff]
  %v2780 = vld [vmem:[%s8 + $0x240] sm:$0xff]
  %v2781 = vld [vmem:[%s8 + $0x248] sm:$0xff]
  %v2782 = vld [vmem:[%s8 + $0x250] sm:$0xff]
  %v2783 = vld [vmem:[%s8 + $0x258] sm:$0xff]
  %v2784 = vld [vmem:[%s8 + $0x260] sm:$0xff]
  %v2785 = vld [vmem:[%s8 + $0x268] sm:$0xff]
  %v2786 = vld [vmem:[%s8 + $0x270] sm:$0xff]
  %v2787 = vld [vmem:[%s8 + $0x278] sm:$0xff]
  %v2788 = vld [vmem:[%s8 + $0x280] sm:$0xff]
  %v2789 = vld [vmem:[%s8 + $0x288] sm:$0xff]
  %v2790 = vld [vmem:[%s8 + $0x290] sm:$0xff]
  %v2791 = vld [vmem:[%s8 + $0x298] sm:$0xff]
  %v2792 = vld [vmem:[%s8 + $0x2a0] sm:$0xff]
  %v2793 = vld [vmem:[%s8 + $0x2a8] sm:$0xff]
  %v2794 = vld [vmem:[%s8 + $0x2b0] sm:$0xff]
  %v2795 = vld [vmem:[%s8 + $0x2b8] sm:$0xff]
  %v2796 = vld [vmem:[%s8 + $0x2c0] sm:$0xff]
  %v2797 = vld [vmem:[%s8 + $0x2c8] sm:$0xff]
  %v2798 = vld [vmem:[%s8 + $0x2d0] sm:$0xff]
  %v2799 = vld [vmem:[%s8 + $0x2d8] sm:$0xff]
  %v2800 = vld [vmem:[%s8 + $0x2e0] sm:$0xff]
  %v2801 = vld [vmem:[%s8 + $0x2e8] sm:$0xff]
  %v2802 = vld [vmem:[%s8 + $0x2f0] sm:$0xff]
  %v2803 = vld [vmem:[%s8 + $0x2f8] sm:$0xff]
  %v2804 = vld [vmem:[%s8 + $0x300] sm:$0xff]
  %v2805 = vld [vmem:[%s8 + $0x308] sm:$0xff]
  %v2806 = vld [vmem:[%s8 + $0x310] sm:$0xff]
  %v2807 = vld [vmem:[%s8 + $0x318] sm:$0xff]
  %v2808 = vld [vmem:[%s8 + $0x320] sm:$0xff]
  %v2809 = vld [vmem:[%s8 + $0x328] sm:$0xff]
  %v2810 = vld [vmem:[%s8 + $0x330] sm:$0xff]
  %v2811 = vld [vmem:[%s8 + $0x338] sm:$0xff]
  %v2812 = vld [vmem:[%s8 + $0x340] sm:$0xff]
  %v2813 = vld [vmem:[%s8 + $0x348] sm:$0xff]
  %v2814 = vld [vmem:[%s8 + $0x350] sm:$0xff]
  %v2815 = vld [vmem:[%s8 + $0x358] sm:$0xff]
  %v2816 = vld [vmem:[%s8 + $0x360] sm:$0xff]
  %v2817 = vld [vmem:[%s8 + $0x368] sm:$0xff]
  %v2818 = vld [vmem:[%s8 + $0x370] sm:$0xff]
  %v2819 = vld [vmem:[%s8 + $0x378] sm:$0xff]
  %v2820 = vld [vmem:[%s8 + $0x380] sm:$0xff]
  %v2821 = vld [vmem:[%s8 + $0x388] sm:$0xff]
  %v2822 = vld [vmem:[%s8 + $0x390] sm:$0xff]
  %v2823 = vld [vmem:[%s8 + $0x398] sm:$0xff]
  %v2824 = vld [vmem:[%s8 + $0x3a0] sm:$0xff]
  %v2825 = vld [vmem:[%s8 + $0x3a8] sm:$0xff]
  %v2826 = vld [vmem:[%s8 + $0x3b0] sm:$0xff]
  %v2827 = vld [vmem:[%s8 + $0x3b8] sm:$0xff]
  %v2828 = vld [vmem:[%s8 + $0x3c0] sm:$0xff]
  %v2829 = vld [vmem:[%s8 + $0x3c8] sm:$0xff]
  %v2830 = vld [vmem:[%s8 + $0x3d0] sm:$0xff]
  %v2831 = vld [vmem:[%s8 + $0x3d8] sm:$0xff]
  %v2832 = vld [vmem:[%s8 + $0x3e0] sm:$0xff]
  %v2833 = vld [vmem:[%s8 + $0x3e8] sm:$0xff]
  %v2834 = vld [vmem:[%s8 + $0x3f0] sm:$0xff]
  %v2835 = vld [vmem:[%s8 + $0x3f8] sm:$0xff]
  %v2836 = vld [vmem:[%s8 + $0x400] sm:$0xff]
  %v2837 = vld [vmem:[%s8 + $0x408] sm:$0xff]
  %v2838 = vld [vmem:[%s8 + $0x410] sm:$0xff]
  %v2839 = vld [vmem:[%s8 + $0x418] sm:$0xff]
  %v2840 = vld [vmem:[%s8 + $0x420] sm:$0xff]
  %v2841 = vld [vmem:[%s8 + $0x428] sm:$0xff]
  %v2842 = vld [vmem:[%s8 + $0x430] sm:$0xff]
  %v2843 = vld [vmem:[%s8 + $0x438] sm:$0xff]
  %v2844 = vld [vmem:[%s8 + $0x440] sm:$0xff]
  %v2845 = vld [vmem:[%s8 + $0x448] sm:$0xff]
  %v2846 = vld [vmem:[%s8 + $0x450] sm:$0xff]
  %v2847 = vld [vmem:[%s8 + $0x458] sm:$0xff]
  %v2848 = vld [vmem:[%s8 + $0x460] sm:$0xff]
  %v2849 = vld [vmem:[%s8 + $0x468] sm:$0xff]
  %v2850 = vld [vmem:[%s8 + $0x470] sm:$0xff]
  %v2851 = vld [vmem:[%s8 + $0x478] sm:$0xff]
  %v2852 = vld [vmem:[%s8 + $0x480] sm:$0xff]
  %v2853 = vld [vmem:[%s8 + $0x488] sm:$0xff]
  %v2854 = vld [vmem:[%s8 + $0x490] sm:$0xff]
  %v2855 = vld [vmem:[%s8 + $0x498] sm:$0xff]
  %v2856 = vld [vmem:[%s8 + $0x4a0] sm:$0xff]
  %v2857 = vld [vmem:[%s8 + $0x4a8] sm:$0xff]
  %v2858 = vld [vmem:[%s8 + $0x4b0] sm:$0xff]
  %v2859 = vld [vmem:[%s8 + $0x4b8] sm:$0xff]
  %v2860 = vld [vmem:[%s8 + $0x4c0] sm:$0xff]
  %v2861 = vld [vmem:[%s8 + $0x4c8] sm:$0xff]
  %v2862 = vld [vmem:[%s8 + $0x4d0] sm:$0xff]
  %v2863 = vld [vmem:[%s8 + $0x4d8] sm:$0xff]
  %v2864 = vld [vmem:[%s8 + $0x4e0] sm:$0xff]
  %v2865 = vld [vmem:[%s8 + $0x4e8] sm:$0xff]
  %v2866 = vld [vmem:[%s8 + $0x4f0] sm:$0xff]
  %v2867 = vld [vmem:[%s8 + $0x4f8] sm:$0xff]
  %v2868 = vld [vmem:[%s8 + $0x500] sm:$0xff]
  %v2869 = vld [vmem:[%s8 + $0x508] sm:$0xff]
  %v2870 = vld [vmem:[%s8 + $0x510] sm:$0xff]
  %v2871 = vld [vmem:[%s8 + $0x518] sm:$0xff]
  %v2872 = vld [vmem:[%s8 + $0x520] sm:$0xff]
  %v2873 = vld [vmem:[%s8 + $0x528] sm:$0xff]
  %v2874 = vld [vmem:[%s8 + $0x530] sm:$0xff]
  %v2875 = vld [vmem:[%s8 + $0x538] sm:$0xff]
  %v2876 = vld [vmem:[%s8 + $0x540] sm:$0xff]
  %v2877 = vld [vmem:[%s8 + $0x548] sm:$0xff]
  %v2878 = vld [vmem:[%s8 + $0x550] sm:$0xff]
  %v2879 = vld [vmem:[%s8 + $0x558] sm:$0xff]
  %v2880 = vld [vmem:[%s8 + $0x560] sm:$0xff]
  %v2881 = vld [vmem:[%s8 + $0x568] sm:$0xff]
  %v2882 = vld [vmem:[%s8 + $0x570] sm:$0xff]
  %v2883 = vld [vmem:[%s8 + $0x578] sm:$0xff]
  %v2884 = vld [vmem:[%s8 + $0x580] sm:$0xff]
  %v2885 = vld [vmem:[%s8 + $0x588] sm:$0xff]
  %v2886 = vld [vmem:[%s8 + $0x590] sm:$0xff]
  %v2887 = vld [vmem:[%s8 + $0x598] sm:$0xff]
  %v2888 = vld [vmem:[%s8 + $0x5a0] sm:$0xff]
  %v2889 = vld [vmem:[%s8 + $0x5a8] sm:$0xff]
  %v2890 = vld [vmem:[%s8 + $0x5b0] sm:$0xff]
  %v2891 = vld [vmem:[%s8 + $0x5b8] sm:$0xff]
  %v2892 = vld [vmem:[%s8 + $0x5c0] sm:$0xff]
  %v2893 = vld [vmem:[%s8 + $0x5c8] sm:$0xff]
  %v2894 = vld [vmem:[%s8 + $0x5d0] sm:$0xff]
  %v2895 = vld [vmem:[%s8 + $0x5d8] sm:$0xff]
  %v2896 = vld [vmem:[%s8 + $0x5e0] sm:$0xff]
  %v2897 = vld [vmem:[%s8 + $0x5e8] sm:$0xff]
  %v2898 = vld [vmem:[%s8 + $0x5f0] sm:$0xff]
  %v2899 = vld [vmem:[%s8 + $0x5f8] sm:$0xff]
  %v2900 = vld [vmem:[%s8 + $0x600] sm:$0xff]
  %v2901 = vld [vmem:[%s8 + $0x608] sm:$0xff]
  %v2902 = vld [vmem:[%s8 + $0x610] sm:$0xff]
  %v2903 = vld [vmem:[%s8 + $0x618] sm:$0xff]
  %v2904 = vld [vmem:[%s8 + $0x620] sm:$0xff]
  %v2905 = vld [vmem:[%s8 + $0x628] sm:$0xff]
  %v2906 = vld [vmem:[%s8 + $0x630] sm:$0xff]
  %v2907 = vld [vmem:[%s8 + $0x638] sm:$0xff]
  %v2908 = vld [vmem:[%s8 + $0x640] sm:$0xff]
  %v2909 = vld [vmem:[%s8 + $0x648] sm:$0xff]
  %v2910 = vld [vmem:[%s8 + $0x650] sm:$0xff]
  %v2911 = vld [vmem:[%s8 + $0x658] sm:$0xff]
  %v2912 = vld [vmem:[%s8 + $0x660] sm:$0xff]
  %v2913 = vld [vmem:[%s8 + $0x668] sm:$0xff]
  %v2914 = vld [vmem:[%s8 + $0x670] sm:$0xff]
  %v2915 = vld [vmem:[%s8 + $0x678] sm:$0xff]
  %v2916 = vld [vmem:[%s8 + $0x680] sm:$0xff]
  %v2917 = vld [vmem:[%s8 + $0x688] sm:$0xff]
  %v2918 = vld [vmem:[%s8 + $0x690] sm:$0xff]
  %v2919 = vld [vmem:[%s8 + $0x698] sm:$0xff]
  %v2920 = vld [vmem:[%s8 + $0x6a0] sm:$0xff]
  %v2921 = vld [vmem:[%s8 + $0x6a8] sm:$0xff]
  %v2922 = vld [vmem:[%s8 + $0x6b0] sm:$0xff]
  %v2923 = vld [vmem:[%s8 + $0x6b8] sm:$0xff]
  %v2924 = vld [vmem:[%s8 + $0x6c0] sm:$0xff]
  %v2925 = vld [vmem:[%s8 + $0x6c8] sm:$0xff]
  %v2926 = vld [vmem:[%s8 + $0x6d0] sm:$0xff]
  %v2927 = vld [vmem:[%s8 + $0x6d8] sm:$0xff]
  %v2928 = vld [vmem:[%s8 + $0x6e0] sm:$0xff]
  %v2929 = vld [vmem:[%s8 + $0x6e8] sm:$0xff]
  %v2930 = vld [vmem:[%s8 + $0x6f0] sm:$0xff]
  %v2931 = vld [vmem:[%s8 + $0x6f8] sm:$0xff]
  %v2932 = vld [vmem:[%s8 + $0x700] sm:$0xff]
  %v2933 = vld [vmem:[%s8 + $0x708] sm:$0xff]
  %v2934 = vld [vmem:[%s8 + $0x710] sm:$0xff]
  %v2935 = vld [vmem:[%s8 + $0x718] sm:$0xff]
  %v2936 = vld [vmem:[%s8 + $0x720] sm:$0xff]
  %v2937 = vld [vmem:[%s8 + $0x728] sm:$0xff]
  %v2938 = vld [vmem:[%s8 + $0x730] sm:$0xff]
  %v2939 = vld [vmem:[%s8 + $0x738] sm:$0xff]
  %v2940 = vld [vmem:[%s8 + $0x740] sm:$0xff]
  %v2941 = vld [vmem:[%s8 + $0x748] sm:$0xff]
  %v2942 = vld [vmem:[%s8 + $0x750] sm:$0xff]
  %v2943 = vld [vmem:[%s8 + $0x758] sm:$0xff]
  %v2944 = vld [vmem:[%s8 + $0x760] sm:$0xff]
  %v2945 = vld [vmem:[%s8 + $0x768] sm:$0xff]
  %v2946 = vld [vmem:[%s8 + $0x770] sm:$0xff]
  %v2947 = vld [vmem:[%s8 + $0x778] sm:$0xff]
  %v2948 = vld [vmem:[%s8 + $0x780] sm:$0xff]
  %v2949 = vld [vmem:[%s8 + $0x788] sm:$0xff]
  %v2950 = vld [vmem:[%s8 + $0x790] sm:$0xff]
  %v2951 = vld [vmem:[%s8 + $0x798] sm:$0xff]
  %v2952 = vld [vmem:[%s8 + $0x7a0] sm:$0xff]
  %v2953 = vld [vmem:[%s8 + $0x7a8] sm:$0xff]
  %v2954 = vld [vmem:[%s8 + $0x7b0] sm:$0xff]
  %v2955 = vld [vmem:[%s8 + $0x7b8] sm:$0xff]
  %v2956 = vld [vmem:[%s8 + $0x7c0] sm:$0xff]
  %v2957 = vld [vmem:[%s8 + $0x7c8] sm:$0xff]
  %v2958 = vld [vmem:[%s8 + $0x7d0] sm:$0xff]
  %v2959 = vld [vmem:[%s8 + $0x7d8] sm:$0xff]
  %v2960 = vld [vmem:[%s8 + $0x7e0] sm:$0xff]
  %v2961 = vld [vmem:[%s8 + $0x7e8] sm:$0xff]
  %v2962 = vld [vmem:[%s8 + $0x7f0] sm:$0xff]
  %v2963 = vld [vmem:[%s8 + $0x7f8] sm:$0xff]
  %v2964 = vld [vmem:[%s8 + $0x800] sm:$0xff]
  %v2965 = vld [vmem:[%s8 + $0x808] sm:$0xff]
  %v2966 = vld [vmem:[%s8 + $0x810] sm:$0xff]
  %v2967 = vld [vmem:[%s8 + $0x818] sm:$0xff]
  %v2968 = vld [vmem:[%s8 + $0x820] sm:$0xff]
  %v2969 = vld [vmem:[%s8 + $0x828] sm:$0xff]
  %v2970 = vld [vmem:[%s8 + $0x830] sm:$0xff]
  %v2971 = vld [vmem:[%s8 + $0x838] sm:$0xff]
  %v2972 = vld [vmem:[%s8 + $0x840] sm:$0xff]
  %v2973 = vld [vmem:[%s8 + $0x848] sm:$0xff]
  %v2974 = vld [vmem:[%s8 + $0x850] sm:$0xff]
  %v2975 = vld [vmem:[%s8 + $0x858] sm:$0xff]
  %v2976 = vld [vmem:[%s8 + $0x860] sm:$0xff]
  %v2977 = vld [vmem:[%s8 + $0x868] sm:$0xff]
  %v2978 = vld [vmem:[%s8 + $0x870] sm:$0xff]
  %v2979 = vld [vmem:[%s8 + $0x878] sm:$0xff]
  %v2980 = vld [vmem:[%s8 + $0x880] sm:$0xff]
  %v2981 = vld [vmem:[%s8 + $0x888] sm:$0xff]
  %v2982 = vld [vmem:[%s8 + $0x890] sm:$0xff]
  %v2983 = vld [vmem:[%s8 + $0x898] sm:$0xff]
  %v2984 = vld [vmem:[%s8 + $0x8a0] sm:$0xff]
  %v2985 = vld [vmem:[%s8 + $0x8a8] sm:$0xff]
  %v2986 = vld [vmem:[%s8 + $0x8b0] sm:$0xff]
  %v2987 = vld [vmem:[%s8 + $0x8b8] sm:$0xff]
  %v2988 = vld [vmem:[%s8 + $0x8c0] sm:$0xff]
  %v2989 = vld [vmem:[%s8 + $0x8c8] sm:$0xff]
  %v2990 = vld [vmem:[%s8 + $0x8d0] sm:$0xff]
  %v2991 = vld [vmem:[%s8 + $0x8d8] sm:$0xff]
  %v2992 = vld [vmem:[%s8 + $0x8e0] sm:$0xff]
  %v2993 = vld [vmem:[%s8 + $0x8e8] sm:$0xff]
  %v2994 = vld [vmem:[%s8 + $0x8f0] sm:$0xff]
  %v2995 = vld [vmem:[%s8 + $0x8f8] sm:$0xff]
  %v2996 = vld [vmem:[%s9] sm:$0xff]
  %v2997 = vld [vmem:[%s9 + $0x8] sm:$0xff]
  %v2998 = vld [vmem:[%s9 + $0x10] sm:$0xff]
  %v2999 = vld [vmem:[%s9 + $0x18] sm:$0xff]
  %v3000 = vld [vmem:[%s9 + $0x20] sm:$0xff]
  %v3001 = vld [vmem:[%s9 + $0x28] sm:$0xff]
  %v3002 = vld [vmem:[%s9 + $0x30] sm:$0xff]
  %v3003 = vld [vmem:[%s9 + $0x38] sm:$0xff]
  %v3004 = vld [vmem:[%s9 + $0x40] sm:$0xff]
  %v3005 = vld [vmem:[%s9 + $0x48] sm:$0xff]
  %v3006 = vld [vmem:[%s9 + $0x50] sm:$0xff]
  %v3007 = vld [vmem:[%s9 + $0x58] sm:$0xff]
  %v3008 = vld [vmem:[%s9 + $0x60] sm:$0xff]
  %v3009 = vld [vmem:[%s9 + $0x68] sm:$0xff]
  %v3010 = vld [vmem:[%s9 + $0x70] sm:$0xff]
  %v3011 = vld [vmem:[%s9 + $0x78] sm:$0xff]
  %v3012 = vld [vmem:[%s9 + $0x80] sm:$0xff]
  %v3013 = vld [vmem:[%s9 + $0x88] sm:$0xff]
  %v3014 = vld [vmem:[%s9 + $0x90] sm:$0xff]
  %v3015 = vld [vmem:[%s9 + $0x98] sm:$0xff]
  %v3016 = vld [vmem:[%s9 + $0xa0] sm:$0xff]
  %v3017 = vld [vmem:[%s9 + $0xa8] sm:$0xff]
  %v3018 = vld [vmem:[%s9 + $0xb0] sm:$0xff]
  %v3019 = vld [vmem:[%s9 + $0xb8] sm:$0xff]
  %v3020 = vld [vmem:[%s9 + $0xc0] sm:$0xff]
  %v3021 = vld [vmem:[%s9 + $0xc8] sm:$0xff]
  %v3022 = vld [vmem:[%s9 + $0xd0] sm:$0xff]
  %v3023 = vld [vmem:[%s9 + $0xd8] sm:$0xff]
  %v3024 = vld [vmem:[%s9 + $0xe0] sm:$0xff]
  %v3025 = vld [vmem:[%s9 + $0xe8] sm:$0xff]
  %v3026 = vld [vmem:[%s9 + $0xf0] sm:$0xff]
  %v3027 = vld [vmem:[%s9 + $0xf8] sm:$0xff]
  %v3028 = vld [vmem:[%s9 + $0x100] sm:$0xff]
  %v3029 = vld [vmem:[%s9 + $0x108] sm:$0xff]
  %v3030 = vld [vmem:[%s9 + $0x110] sm:$0xff]
  %v3031 = vld [vmem:[%s9 + $0x118] sm:$0xff]
  %v3032 = vld [vmem:[%s9 + $0x120] sm:$0xff]
  %v3033 = vld [vmem:[%s9 + $0x128] sm:$0xff]
  %v3034 = vld [vmem:[%s9 + $0x130] sm:$0xff]
  %v3035 = vld [vmem:[%s9 + $0x138] sm:$0xff]
  %v3036 = vld [vmem:[%s9 + $0x140] sm:$0xff]
  %v3037 = vld [vmem:[%s9 + $0x148] sm:$0xff]
  %v3038 = vld [vmem:[%s9 + $0x150] sm:$0xff]
  %v3039 = vld [vmem:[%s9 + $0x158] sm:$0xff]
  %v3040 = vld [vmem:[%s9 + $0x160] sm:$0xff]
  %v3041 = vld [vmem:[%s9 + $0x168] sm:$0xff]
  %v3042 = vld [vmem:[%s9 + $0x170] sm:$0xff]
  %v3043 = vld [vmem:[%s9 + $0x178] sm:$0xff]
  %v3044 = vld [vmem:[%s9 + $0x180] sm:$0xff]
  %v3045 = vld [vmem:[%s9 + $0x188] sm:$0xff]
  %v3046 = vld [vmem:[%s9 + $0x190] sm:$0xff]
  %v3047 = vld [vmem:[%s9 + $0x198] sm:$0xff]
  %v3048 = vld [vmem:[%s9 + $0x1a0] sm:$0xff]
  %v3049 = vld [vmem:[%s9 + $0x1a8] sm:$0xff]
  %v3050 = vld [vmem:[%s9 + $0x1b0] sm:$0xff]
  %v3051 = vld [vmem:[%s9 + $0x1b8] sm:$0xff]
  %v3052 = vld [vmem:[%s9 + $0x1c0] sm:$0xff]
  %v3053 = vld [vmem:[%s9 + $0x1c8] sm:$0xff]
  %v3054 = vld [vmem:[%s9 + $0x1d0] sm:$0xff]
  %v3055 = vld [vmem:[%s9 + $0x1d8] sm:$0xff]
  %v3056 = vld [vmem:[%s9 + $0x1e0] sm:$0xff]
  %v3057 = vld [vmem:[%s9 + $0x1e8] sm:$0xff]
  %v3058 = vld [vmem:[%s9 + $0x1f0] sm:$0xff]
  %v3059 = vld [vmem:[%s9 + $0x1f8] sm:$0xff]
  %v3060 = vld [vmem:[%s10] sm:$0xf]
  %v3061 = vld [vmem:[%s11] sm:$0xff]
  %v3062 = vld [vmem:[%s11 + $0x8] sm:$0xff]
  %v3063 = vld [vmem:[%s11 + $0x10] sm:$0xff]
  %v3064 = vld [vmem:[%s11 + $0x18] sm:$0xff]
  %v3065 = vld [vmem:[%s11 + $0x20] sm:$0xff]
  %v3066 = vld [vmem:[%s11 + $0x28] sm:$0xff]
  %v3067 = vld [vmem:[%s11 + $0x30] sm:$0xff]
  %v3068 = vld [vmem:[%s11 + $0x38] sm:$0xff]
  %v3069 = vld [vmem:[%s11 + $0x40] sm:$0xff]
  %v3070 = vld [vmem:[%s11 + $0x48] sm:$0xff]
  %v3071 = vld [vmem:[%s11 + $0x50] sm:$0xff]
  %v3072 = vld [vmem:[%s11 + $0x58] sm:$0xff]
  %v3073 = vld [vmem:[%s11 + $0x60] sm:$0xff]
  %v3074 = vld [vmem:[%s11 + $0x68] sm:$0xff]
  %v3075 = vld [vmem:[%s11 + $0x70] sm:$0xff]
  %v3076 = vld [vmem:[%s11 + $0x78] sm:$0xff]
  %v3077 = vld [vmem:[%s11 + $0x80] sm:$0xff]
  %v3078 = vld [vmem:[%s11 + $0x88] sm:$0xff]
  %v3079 = vld [vmem:[%s11 + $0x90] sm:$0xff]
  %v3080 = vld [vmem:[%s11 + $0x98] sm:$0xff]
  %v3081 = vld [vmem:[%s11 + $0xa0] sm:$0xff]
  %v3082 = vld [vmem:[%s11 + $0xa8] sm:$0xff]
  %v3083 = vld [vmem:[%s11 + $0xb0] sm:$0xff]
  %v3084 = vld [vmem:[%s11 + $0xb8] sm:$0xff]
  %v3085 = vld [vmem:[%s11 + $0xc0] sm:$0xff]
  %v3086 = vld [vmem:[%s11 + $0xc8] sm:$0xff]
  %v3087 = vld [vmem:[%s11 + $0xd0] sm:$0xff]
  %v3088 = vld [vmem:[%s11 + $0xd8] sm:$0xff]
  %v3089 = vld [vmem:[%s11 + $0xe0] sm:$0xff]
  %v3090 = vld [vmem:[%s11 + $0xe8] sm:$0xff]
  %v3091 = vld [vmem:[%s11 + $0xf0] sm:$0xff]
  %v3092 = vld [vmem:[%s11 + $0xf8] sm:$0xff]
  %v3093 = vld [vmem:[%s11 + $0x100] sm:$0xff]
  %v3094 = vld [vmem:[%s11 + $0x108] sm:$0xff]
  %v3095 = vld [vmem:[%s11 + $0x110] sm:$0xff]
  %v3096 = vld [vmem:[%s11 + $0x118] sm:$0xff]
  %v3097 = vld [vmem:[%s11 + $0x120] sm:$0xff]
  %v3098 = vld [vmem:[%s11 + $0x128] sm:$0xff]
  %v3099 = vld [vmem:[%s11 + $0x130] sm:$0xff]
  %v3100 = vld [vmem:[%s11 + $0x138] sm:$0xff]
  %v3101 = vld [vmem:[%s11 + $0x140] sm:$0xff]
  %v3102 = vld [vmem:[%s11 + $0x148] sm:$0xff]
  %v3103 = vld [vmem:[%s11 + $0x150] sm:$0xff]
  %v3104 = vld [vmem:[%s11 + $0x158] sm:$0xff]
  %v3105 = vld [vmem:[%s11 + $0x160] sm:$0xff]
  %v3106 = vld [vmem:[%s11 + $0x168] sm:$0xff]
  %v3107 = vld [vmem:[%s11 + $0x170] sm:$0xff]
  %v3108 = vld [vmem:[%s11 + $0x178] sm:$0xff]
  %v3109 = vld [vmem:[%s11 + $0x180] sm:$0xff]
  %v3110 = vld [vmem:[%s11 + $0x188] sm:$0xff]
  %v3111 = vld [vmem:[%s11 + $0x190] sm:$0xff]
  %v3112 = vld [vmem:[%s11 + $0x198] sm:$0xff]
  %v3113 = vld [vmem:[%s11 + $0x1a0] sm:$0xff]
  %v3114 = vld [vmem:[%s11 + $0x1a8] sm:$0xff]
  %v3115 = vld [vmem:[%s11 + $0x1b0] sm:$0xff]
  %v3116 = vld [vmem:[%s11 + $0x1b8] sm:$0xff]
  %v3117 = vld [vmem:[%s11 + $0x1c0] sm:$0xff]
  %v3118 = vld [vmem:[%s11 + $0x1c8] sm:$0xff]
  %v3119 = vld [vmem:[%s11 + $0x1d0] sm:$0xff]
  %v3120 = vld [vmem:[%s11 + $0x1d8] sm:$0xff]
  %v3121 = vld [vmem:[%s11 + $0x1e0] sm:$0xff]
  %v3122 = vld [vmem:[%s11 + $0x1e8] sm:$0xff]
  %v3123 = vld [vmem:[%s11 + $0x1f0] sm:$0xff]
  %v3124 = vld [vmem:[%s11 + $0x1f8] sm:$0xff]
  %v3125 = vld [vmem:[%s12] sm:$0xff]
  %v3126 = vld [vmem:[%s12 + $0x8] sm:$0xff]
  %v3127 = vld [vmem:[%s12 + $0x10] sm:$0xff]
  %v3128 = vld [vmem:[%s12 + $0x18] sm:$0xff]
  %v3129 = vld [vmem:[%s12 + $0x20] sm:$0xff]
  %v3130 = vld [vmem:[%s12 + $0x28] sm:$0xff]
  %v3131 = vld [vmem:[%s12 + $0x30] sm:$0xff]
  %v3132 = vld [vmem:[%s12 + $0x38] sm:$0xff]
  %v3133 = vld [vmem:[%s12 + $0x40] sm:$0xff]
  %v3134 = vld [vmem:[%s12 + $0x48] sm:$0xff]
  %v3135 = vld [vmem:[%s12 + $0x50] sm:$0xff]
  %v3136 = vld [vmem:[%s12 + $0x58] sm:$0xff]
  %v3137 = vld [vmem:[%s12 + $0x60] sm:$0xff]
  %v3138 = vld [vmem:[%s12 + $0x68] sm:$0xff]
  %v3139 = vld [vmem:[%s12 + $0x70] sm:$0xff]
  %v3140 = vld [vmem:[%s12 + $0x78] sm:$0xff]
  %v3141 = vld [vmem:[%s12 + $0x80] sm:$0xff]
  %v3142 = vld [vmem:[%s12 + $0x88] sm:$0xff]
  %v3143 = vld [vmem:[%s12 + $0x90] sm:$0xff]
  %v3144 = vld [vmem:[%s12 + $0x98] sm:$0xff]
  %v3145 = vld [vmem:[%s12 + $0xa0] sm:$0xff]
  %v3146 = vld [vmem:[%s12 + $0xa8] sm:$0xff]
  %v3147 = vld [vmem:[%s12 + $0xb0] sm:$0xff]
  %v3148 = vld [vmem:[%s12 + $0xb8] sm:$0xff]
  %v3149 = vld [vmem:[%s12 + $0xc0] sm:$0xff]
  %v3150 = vld [vmem:[%s12 + $0xc8] sm:$0xff]
  %v3151 = vld [vmem:[%s12 + $0xd0] sm:$0xff]
  %v3152 = vld [vmem:[%s12 + $0xd8] sm:$0xff]
  %v3153 = vld [vmem:[%s12 + $0xe0] sm:$0xff]
  %v3154 = vld [vmem:[%s12 + $0xe8] sm:$0xff]
  %v3155 = vld [vmem:[%s12 + $0xf0] sm:$0xff]
  %v3156 = vld [vmem:[%s12 + $0xf8] sm:$0xff]
  %v3157 = vld [vmem:[%s12 + $0x100] sm:$0xff]
  %v3158 = vld [vmem:[%s12 + $0x108] sm:$0xff]
  %v3159 = vld [vmem:[%s12 + $0x110] sm:$0xff]
  %v3160 = vld [vmem:[%s12 + $0x118] sm:$0xff]
  %v3161 = vld [vmem:[%s12 + $0x120] sm:$0xff]
  %v3162 = vld [vmem:[%s12 + $0x128] sm:$0xff]
  %v3163 = vld [vmem:[%s12 + $0x130] sm:$0xff]
  %v3164 = vld [vmem:[%s12 + $0x138] sm:$0xff]
  %v3165 = vld [vmem:[%s12 + $0x140] sm:$0xff]
  %v3166 = vld [vmem:[%s12 + $0x148] sm:$0xff]
  %v3167 = vld [vmem:[%s12 + $0x150] sm:$0xff]
  %v3168 = vld [vmem:[%s12 + $0x158] sm:$0xff]
  %v3169 = vld [vmem:[%s12 + $0x160] sm:$0xff]
  %v3170 = vld [vmem:[%s12 + $0x168] sm:$0xff]
  %v3171 = vld [vmem:[%s12 + $0x170] sm:$0xff]
  %v3172 = vld [vmem:[%s12 + $0x178] sm:$0xff]
  %v3173 = vld [vmem:[%s12 + $0x180] sm:$0xff]
  %v3174 = vld [vmem:[%s12 + $0x188] sm:$0xff]
  %v3175 = vld [vmem:[%s12 + $0x190] sm:$0xff]
  %v3176 = vld [vmem:[%s12 + $0x198] sm:$0xff]
  %v3177 = vld [vmem:[%s12 + $0x1a0] sm:$0xff]
  %v3178 = vld [vmem:[%s12 + $0x1a8] sm:$0xff]
  %v3179 = vld [vmem:[%s12 + $0x1b0] sm:$0xff]
  %v3180 = vld [vmem:[%s12 + $0x1b8] sm:$0xff]
  %v3181 = vld [vmem:[%s12 + $0x1c0] sm:$0xff]
  %v3182 = vld [vmem:[%s12 + $0x1c8] sm:$0xff]
  %v3183 = vld [vmem:[%s12 + $0x1d0] sm:$0xff]
  %v3184 = vld [vmem:[%s12 + $0x1d8] sm:$0xff]
  %v3185 = vld [vmem:[%s12 + $0x1e0] sm:$0xff]
  %v3186 = vld [vmem:[%s12 + $0x1e8] sm:$0xff]
  %v3187 = vld [vmem:[%s12 + $0x1f0] sm:$0xff]
  %v3188 = vld [vmem:[%s12 + $0x1f8] sm:$0xff]
  %v3189 = vld [vmem:[%s13] sm:$0xf]
  %v3191 = vlaneseq
  %v3192 = vshrl.u32 %v3191, 7
  %v3193 = vsub.s32 0, %v3192
  %v3194 = vrot.slane %v3060, %v3193
  %v3195 = vlaneseq
  %v3196 = vshrl.u32 %v3195, 7
  %v3197 = vsub.s32 1, %v3196
  %v3198 = vrot.slane %v3060, %v3197
  %v3199 = vlaneseq
  %v3200 = vshrl.u32 %v3199, 7
  %v3201 = vsub.s32 2, %v3200
  %v3202 = vrot.slane %v3060, %v3201
  %v3203 = vlaneseq
  %v3204 = vshrl.u32 %v3203, 7
  %v3205 = vsub.s32 3, %v3204
  %v3206 = vrot.slane %v3060, %v3205
  %v3212 = vsel %vm582, %v2692, 0
  %v3215 = vsel %vm582, %v2697, 0
  %v3218 = vsel %vm582, %v2702, 0
  %v3221 = vsel %vm582, %v2707, 0
  %3223 = vmatprep.subr.mxu0 %v2709
  %3224 = vmatpush1.msra.mxu0 %v2708
  %3225 = vmatprep.subr.mxu0 %v2713
  %3226 = vmatpush1.msra.mxu0 %v2712
  %3227 = vmatprep.subr.mxu0 %v2717
  %3228 = vmatpush1.msra.mxu0 %v2716
  %3229 = vmatprep.subr.mxu0 %v2721
  %3230 = vmatpush1.msra.mxu0 %v2720
  %3231 = vmatprep.subr.mxu0 %v2725
  %3232 = vmatpush1.msra.mxu0 %v2724
  %3233 = vmatprep.subr.mxu0 %v2729
  %3234 = vmatpush1.msra.mxu0 %v2728
  %3235 = vmatprep.subr.mxu0 %v2733
  %3236 = vmatpush1.msra.mxu0 %v2732
  %3237 = vmatprep.subr.mxu0 %v2737
  %3238 = vmatpush1.msra.mxu0 %v2736
  %3239 = vmatprep.subr.mxu0 %v2741
  %3240 = vmatpush1.msra.mxu0 %v2740
  %3241 = vmatprep.subr.mxu0 %v2745
  %3242 = vmatpush1.msra.mxu0 %v2744
  %3243 = vmatprep.subr.mxu0 %v2749
  %3244 = vmatpush1.msra.mxu0 %v2748
  %3245 = vmatprep.subr.mxu0 %v2753
  %3246 = vmatpush1.msra.mxu0 %v2752
  %3247 = vmatprep.subr.mxu0 %v2757
  %3248 = vmatpush1.msra.mxu0 %v2756
  %3249 = vmatprep.subr.mxu0 %v2761
  %3250 = vmatpush1.msra.mxu0 %v2760
  %3251 = vmatprep.subr.mxu0 %v2765
  %3252 = vmatpush1.msra.mxu0 %v2764
  %3253 = vmatprep.subr.mxu0 %v2769
  %3254 = vmatpush1.msra.mxu0 %v2768
  %3255 = vmatprep.subr.mxu0 %v2773
  %3256 = vmatpush1.msra.mxu0 %v2772
  %3257 = vmatprep.subr.mxu0 %v2777
  %3258 = vmatpush1.msra.mxu0 %v2776
  %3259 = vmatprep.subr.mxu0 %v2781
  %3260 = vmatpush1.msra.mxu0 %v2780
  %3261 = vmatprep.subr.mxu0 %v2785
  %3262 = vmatpush1.msra.mxu0 %v2784
  %3263 = vmatprep.subr.mxu0 %v2789
  %3264 = vmatpush1.msra.mxu0 %v2788
  %3265 = vmatprep.subr.mxu0 %v2793
  %3266 = vmatpush1.msra.mxu0 %v2792
  %3267 = vmatprep.subr.mxu0 %v2797
  %3268 = vmatpush1.msra.mxu0 %v2796
  %3269 = vmatprep.subr.mxu0 %v2801
  %3270 = vmatpush1.msra.mxu0 %v2800
  %3271 = vmatprep.subr.mxu0 %v2805
  %3272 = vmatpush1.msra.mxu0 %v2804
  %3273 = vmatprep.subr.mxu0 %v2809
  %3274 = vmatpush1.msra.mxu0 %v2808
  %3275 = vmatprep.subr.mxu0 %v2813
  %3276 = vmatpush1.msra.mxu0 %v2812
  %3277 = vmatprep.subr.mxu0 %v2817
  %3278 = vmatpush1.msra.mxu0 %v2816
  %3279 = vmatprep.subr.mxu0 %v2821
  %3280 = vmatpush1.msra.mxu0 %v2820
  %3281 = vmatprep.subr.mxu0 %v2825
  %3282 = vmatpush1.msra.mxu0 %v2824
  %3283 = vmatprep.subr.mxu0 %v2829
  %3284 = vmatpush1.msra.mxu0 %v2828
  %3285 = vmatprep.subr.mxu0 %v2833
  %3286 = vmatpush1.msra.mxu0 %v2832
  %3287 = vmatprep.mubr.f32.mxu0 %v2689
  %3288 = vmatmul.mubr.f32.gmra.mrb[0].mxu0 %v2688
  %v3289 = vpop.f32.mrb[0].mxu0
  %v3290 = vadd.f32 %v3194, %v3289
  %v3291 = vpop.f32.mrb[0].mxu0
  %v3292 = vadd.f32 %v3198, %v3291
  %3293 = vmatprep.mubr.f32.mxu0 %v2694
  %3294 = vmatmul.mubr.f32.gmra.mrb[0].mxu0 %v2693
  %v3295 = vpop.f32.mrb[0].mxu0
  %v3296 = vadd.f32 %v3194, %v3295
  %v3297 = vpop.f32.mrb[0].mxu0
  %v3298 = vadd.f32 %v3198, %v3297
  %3299 = vmatprep.mubr.f32.mxu0 %v2699
  %3300 = vmatmul.mubr.f32.gmra.mrb[0].mxu0 %v2698
  %v3301 = vpop.f32.mrb[0].mxu0
  %v3302 = vadd.f32 %v3194, %v3301
  %v3303 = vpop.f32.mrb[0].mxu0
  %v3304 = vadd.f32 %v3198, %v3303
  %3305 = vmatprep.mubr.f32.mxu0 %v2704
  %3306 = vmatmul.mubr.f32.gmra.mrb[0].mxu0 %v2703
  %v3307 = vpop.f32.mrb[0].mxu0
  %v3308 = vadd.f32 %v3194, %v3307
  %v3309 = vpop.f32.mrb[0].mxu0
  %v3310 = vadd.f32 %v3198, %v3309
  %3311 = vdwg.mxu0
  %3312 = vmatprep.subr.mxu0 %v2837
  %3313 = vmatpush1.msra.mxu0 %v2836
  %3314 = vmatprep.subr.mxu0 %v2841
  %3315 = vmatpush1.msra.mxu0 %v2840
  %3316 = vmatprep.subr.mxu0 %v2845
  %3317 = vmatpush1.msra.mxu0 %v2844
  %3318 = vmatprep.subr.mxu0 %v2849
  %3319 = vmatpush1.msra.mxu0 %v2848
  %3320 = vmatprep.subr.mxu0 %v2853
  %3321 = vmatpush1.msra.mxu0 %v2852
  %3322 = vmatprep.subr.mxu0 %v2857
  %3323 = vmatpush1.msra.mxu0 %v2856
  %3324 = vmatprep.subr.mxu0 %v2861
  %3325 = vmatpush1.msra.mxu0 %v2860
  %3326 = vmatprep.subr.mxu0 %v2865
  %3327 = vmatpush1.msra.mxu0 %v2864
  %3328 = vmatprep.subr.mxu0 %v2869
  %3329 = vmatpush1.msra.mxu0 %v2868
  %3330 = vmatprep.subr.mxu0 %v2873
  %3331 = vmatpush1.msra.mxu0 %v2872
  %3332 = vmatprep.subr.mxu0 %v2877
  %3333 = vmatpush1.msra.mxu0 %v2876
  %3334 = vmatprep.subr.mxu0 %v2881
  %3335 = vmatpush1.msra.mxu0 %v2880
  %3336 = vmatprep.subr.mxu0 %v2885
  %3337 = vmatpush1.msra.mxu0 %v2884
  %3338 = vmatprep.subr.mxu0 %v2889
  %3339 = vmatpush1.msra.mxu0 %v2888
  %3340 = vmatprep.subr.mxu0 %v2893
  %3341 = vmatpush1.msra.mxu0 %v2892
  %3342 = vmatprep.subr.mxu0 %v2897
  %3343 = vmatpush1.msra.mxu0 %v2896
  %3344 = vmatprep.subr.mxu0 %v2901
  %3345 = vmatpush1.msra.mxu0 %v2900
  %3346 = vmatprep.subr.mxu0 %v2905
  %3347 = vmatpush1.msra.mxu0 %v2904
  %3348 = vmatprep.subr.mxu0 %v2909
  %3349 = vmatpush1.msra.mxu0 %v2908
  %3350 = vmatprep.subr.mxu0 %v2913
  %3351 = vmatpush1.msra.mxu0 %v2912
  %3352 = vmatprep.subr.mxu0 %v2917
  %3353 = vmatpush1.msra.mxu0 %v2916
  %3354 = vmatprep.subr.mxu0 %v2921
  %3355 = vmatpush1.msra.mxu0 %v2920
  %3356 = vmatprep.subr.mxu0 %v2925
  %3357 = vmatpush1.msra.mxu0 %v2924
  %3358 = vmatprep.subr.mxu0 %v2929
  %3359 = vmatpush1.msra.mxu0 %v2928
  %3360 = vmatprep.subr.mxu0 %v2933
  %3361 = vmatpush1.msra.mxu0 %v2932
  %3362 = vmatprep.subr.mxu0 %v2937
  %3363 = vmatpush1.msra.mxu0 %v2936
  %3364 = vmatprep.subr.mxu0 %v2941
  %3365 = vmatpush1.msra.mxu0 %v2940
  %3366 = vmatprep.subr.mxu0 %v2945
  %3367 = vmatpush1.msra.mxu0 %v2944
  %3368 = vmatprep.subr.mxu0 %v2949
  %3369 = vmatpush1.msra.mxu0 %v2948
  %3370 = vmatprep.subr.mxu0 %v2953
  %3371 = vmatpush1.msra.mxu0 %v2952
  %3372 = vmatprep.subr.mxu0 %v2957
  %3373 = vmatpush1.msra.mxu0 %v2956
  %3374 = vmatprep.subr.mxu0 %v2961
  %3375 = vmatpush1.msra.mxu0 %v2960
  %3376 = vmatprep.mubr.f32.mxu0 %v2691
  %3377 = vmatmul.mubr.f32.gmra.mrb[0].mxu0 %v2690
  %v3378 = vpop.f32.mrb[0].mxu0
  %v3379 = vadd.f32 %v3290, %v3378
  %v3380 = vpop.f32.mrb[0].mxu0
  %v3381 = vadd.f32 %v3292, %v3380
  %3382 = vmatprep.mubr.f32.mxu0 %v2696
  %3383 = vmatmul.mubr.f32.gmra.mrb[0].mxu0 %v2695
  %v3384 = vpop.f32.mrb[0].mxu0
  %v3385 = vadd.f32 %v3296, %v3384
  %v3386 = vpop.f32.mrb[0].mxu0
  %v3387 = vadd.f32 %v3298, %v3386
  %3388 = vmatprep.mubr.f32.mxu0 %v2701
  %3389 = vmatmul.mubr.f32.gmra.mrb[0].mxu0 %v2700
  %v3390 = vpop.f32.mrb[0].mxu0
  %v3391 = vadd.f32 %v3302, %v3390
  %v3392 = vpop.f32.mrb[0].mxu0
  %v3393 = vadd.f32 %v3304, %v3392
  %3394 = vmatprep.mubr.f32.mxu0 %v2706
  %3395 = vmatmul.mubr.f32.gmra.mrb[0].mxu0 %v2705
  %v3396 = vpop.f32.mrb[0].mxu0
  %v3397 = vadd.f32 %v3308, %v3396
  %v3398 = vpop.f32.mrb[0].mxu0
  %v3399 = vadd.f32 %v3310, %v3398
  %3400 = vdwg.mxu0
  %3401 = vmatprep.subr.mxu0 %v2965
  %3402 = vmatpush1.msra.mxu0 %v2964
  %3403 = vmatprep.subr.mxu0 %v2969
  %3404 = vmatpush1.msra.mxu0 %v2968
  %3405 = vmatprep.subr.mxu0 %v2973
  %3406 = vmatpush1.msra.mxu0 %v2972
  %3407 = vmatprep.subr.mxu0 %v2977
  %3408 = vmatpush1.msra.mxu0 %v2976
  %3409 = vmatprep.subr.mxu0 %v2981
  %3410 = vmatpush1.msra.mxu0 %v2980
  %3411 = vmatprep.subr.mxu0 %v2985
  %3412 = vmatpush1.msra.mxu0 %v2984
  %3413 = vmatprep.subr.mxu0 %v2989
  %3414 = vmatpush1.msra.mxu0 %v2988
  %3415 = vmatprep.subr.mxu0 %v2993
  %3416 = vmatpush1.msra.mxu0 %v2992
  %3417 = vmatprep.subr.mxu0 0.0
  %3418 = vmatpush1.msra.mxu0 0.0
  %3419 = vmatprep.subr.mxu0 0.0
  %3420 = vmatpush1.msra.mxu0 0.0
  %3421 = vmatprep.subr.mxu0 0.0
  %3422 = vmatpush1.msra.mxu0 0.0
  %3423 = vmatprep.subr.mxu0 0.0
  %3424 = vmatpush1.msra.mxu0 0.0
  %3425 = vmatprep.subr.mxu0 0.0
  %3426 = vmatpush1.msra.mxu0 0.0
  %3427 = vmatprep.subr.mxu0 0.0
  %3428 = vmatpush1.msra.mxu0 0.0
  %3429 = vmatprep.subr.mxu0 0.0
  %3430 = vmatpush1.msra.mxu0 0.0
  %3431 = vmatprep.subr.mxu0 0.0
  %3432 = vmatpush1.msra.mxu0 0.0
  %3433 = vmatprep.subr.mxu0 0.0
  %3434 = vmatpush1.msra.mxu0 0.0
  %3435 = vmatprep.subr.mxu0 0.0
  %3436 = vmatpush1.msra.mxu0 0.0
  %3437 = vmatprep.subr.mxu0 0.0
  %3438 = vmatpush1.msra.mxu0 0.0
  %3439 = vmatprep.subr.mxu0 0.0
  %3440 = vmatpush1.msra.mxu0 0.0
  %3441 = vmatprep.subr.mxu0 0.0
  %3442 = vmatpush1.msra.mxu0 0.0
  %3443 = vmatprep.subr.mxu0 0.0
  %3444 = vmatpush1.msra.mxu0 0.0
  %3445 = vmatprep.subr.mxu0 0.0
  %3446 = vmatpush1.msra.mxu0 0.0
  %3447 = vmatprep.subr.mxu0 0.0
  %3448 = vmatpush1.msra.mxu0 0.0
  %3449 = vmatprep.subr.mxu0 0.0
  %3450 = vmatpush1.msra.mxu0 0.0
  %3451 = vmatprep.subr.mxu0 0.0
  %3452 = vmatpush1.msra.mxu0 0.0
  %3453 = vmatprep.subr.mxu0 0.0
  %3454 = vmatpush1.msra.mxu0 0.0
  %3455 = vmatprep.subr.mxu0 0.0
  %3456 = vmatpush1.msra.mxu0 0.0
  %3457 = vmatprep.subr.mxu0 0.0
  %3458 = vmatpush1.msra.mxu0 0.0
  %3459 = vmatprep.subr.mxu0 0.0
  %3460 = vmatpush1.msra.mxu0 0.0
  %3461 = vmatprep.subr.mxu0 0.0
  %3462 = vmatpush1.msra.mxu0 0.0
  %3463 = vmatprep.subr.mxu0 0.0
  %3464 = vmatpush1.msra.mxu0 0.0
  %3465 = vmatprep.mubr.f32.mxu0 0.0
  %3466 = vmatmul.mubr.f32.gmra.mrb[0].mxu0 %v3212
  %v3467 = vpop.f32.mrb[0].mxu0
  %v3468 = vadd.f32 %v3379, %v3467
  %v3469 = vpop.f32.mrb[0].mxu0
  %v3470 = vadd.f32 %v3381, %v3469
  %3471 = vmatprep.mubr.f32.mxu0 0.0
  %3472 = vmatmul.mubr.f32.gmra.mrb[0].mxu0 %v3215
  %v3473 = vpop.f32.mrb[0].mxu0
  %v3474 = vadd.f32 %v3385, %v3473
  %v3475 = vpop.f32.mrb[0].mxu0
  %v3476 = vadd.f32 %v3387, %v3475
  %3477 = vmatprep.mubr.f32.mxu0 0.0
  %3478 = vmatmul.mubr.f32.gmra.mrb[0].mxu0 %v3218
  %v3479 = vpop.f32.mrb[0].mxu0
  %v3480 = vadd.f32 %v3391, %v3479
  %v3481 = vpop.f32.mrb[0].mxu0
  %v3482 = vadd.f32 %v3393, %v3481
  %3483 = vmatprep.mubr.f32.mxu0 0.0
  %3484 = vmatmul.mubr.f32.gmra.mrb[0].mxu0 %v3221
  %v3485 = vpop.f32.mrb[0].mxu0
  %v3486 = vadd.f32 %v3397, %v3485
  %v3487 = vpop.f32.mrb[0].mxu0
  %v3488 = vadd.f32 %v3399, %v3487
  %3489 = vdwg.mxu0
  %3490 = vmatprep.subr.mxu0 %v2711
  %3491 = vmatpush1.msra.mxu0 %v2710
  %3492 = vmatprep.subr.mxu0 %v2715
  %3493 = vmatpush1.msra.mxu0 %v2714
  %3494 = vmatprep.subr.mxu0 %v2719
  %3495 = vmatpush1.msra.mxu0 %v2718
  %3496 = vmatprep.subr.mxu0 %v2723
  %3497 = vmatpush1.msra.mxu0 %v2722
  %3498 = vmatprep.subr.mxu0 %v2727
  %3499 = vmatpush1.msra.mxu0 %v2726
  %3500 = vmatprep.subr.mxu0 %v2731
  %3501 = vmatpush1.msra.mxu0 %v2730
  %3502 = vmatprep.subr.mxu0 %v2735
  %3503 = vmatpush1.msra.mxu0 %v2734
  %3504 = vmatprep.subr.mxu0 %v2739
  %3505 = vmatpush1.msra.mxu0 %v2738
  %3506 = vmatprep.subr.mxu0 %v2743
  %3507 = vmatpush1.msra.mxu0 %v2742
  %3508 = vmatprep.subr.mxu0 %v2747
  %3509 = vmatpush1.msra.mxu0 %v2746
  %3510 = vmatprep.subr.mxu0 %v2751
  %3511 = vmatpush1.msra.mxu0 %v2750
  %3512 = vmatprep.subr.mxu0 %v2755
  %3513 = vmatpush1.msra.mxu0 %v2754
  %3514 = vmatprep.subr.mxu0 %v2759
  %3515 = vmatpush1.msra.mxu0 %v2758
  %3516 = vmatprep.subr.mxu0 %v2763
  %3517 = vmatpush1.msra.mxu0 %v2762
  %3518 = vmatprep.subr.mxu0 %v2767
  %3519 = vmatpush1.msra.mxu0 %v2766
  %3520 = vmatprep.subr.mxu0 %v2771
  %3521 = vmatpush1.msra.mxu0 %v2770
  %3522 = vmatprep.subr.mxu0 %v2775
  %3523 = vmatpush1.msra.mxu0 %v2774
  %3524 = vmatprep.subr.mxu0 %v2779
  %3525 = vmatpush1.msra.mxu0 %v2778
  %3526 = vmatprep.subr.mxu0 %v2783
  %3527 = vmatpush1.msra.mxu0 %v2782
  %3528 = vmatprep.subr.mxu0 %v2787
  %3529 = vmatpush1.msra.mxu0 %v2786
  %3530 = vmatprep.subr.mxu0 %v2791
  %3531 = vmatpush1.msra.mxu0 %v2790
  %3532 = vmatprep.subr.mxu0 %v2795
  %3533 = vmatpush1.msra.mxu0 %v2794
  %3534 = vmatprep.subr.mxu0 %v2799
  %3535 = vmatpush1.msra.mxu0 %v2798
  %3536 = vmatprep.subr.mxu0 %v2803
  %3537 = vmatpush1.msra.mxu0 %v2802
  %3538 = vmatprep.subr.mxu0 %v2807
  %3539 = vmatpush1.msra.mxu0 %v2806
  %3540 = vmatprep.subr.mxu0 %v2811
  %3541 = vmatpush1.msra.mxu0 %v2810
  %3542 = vmatprep.subr.mxu0 %v2815
  %3543 = vmatpush1.msra.mxu0 %v2814
  %3544 = vmatprep.subr.mxu0 %v2819
  %3545 = vmatpush1.msra.mxu0 %v2818
  %3546 = vmatprep.subr.mxu0 %v2823
  %3547 = vmatpush1.msra.mxu0 %v2822
  %3548 = vmatprep.subr.mxu0 %v2827
  %3549 = vmatpush1.msra.mxu0 %v2826
  %3550 = vmatprep.subr.mxu0 %v2831
  %3551 = vmatpush1.msra.mxu0 %v2830
  %3552 = vmatprep.subr.mxu0 %v2835
  %3553 = vmatpush1.msra.mxu0 %v2834
  %3554 = vmatprep.mubr.f32.mxu0 %v2689
  %3555 = vmatmul.mubr.f32.gmra.mrb[0].mxu0 %v2688
  %v3556 = vpop.f32.mrb[0].mxu0
  %v3557 = vadd.f32 %v3202, %v3556
  %v3558 = vpop.f32.mrb[0].mxu0
  %v3559 = vadd.f32 %v3206, %v3558
  %3560 = vmatprep.mubr.f32.mxu0 %v2694
  %3561 = vmatmul.mubr.f32.gmra.mrb[0].mxu0 %v2693
  %v3562 = vpop.f32.mrb[0].mxu0
  %v3563 = vadd.f32 %v3202, %v3562
  %v3564 = vpop.f32.mrb[0].mxu0
  %v3565 = vadd.f32 %v3206, %v3564
  %3566 = vmatprep.mubr.f32.mxu0 %v2699
  %3567 = vmatmul.mubr.f32.gmra.mrb[0].mxu0 %v2698
  %v3568 = vpop.f32.mrb[0].mxu0
  %v3569 = vadd.f32 %v3202, %v3568
  %v3570 = vpop.f32.mrb[0].mxu0
  %v3571 = vadd.f32 %v3206, %v3570
  %3572 = vmatprep.mubr.f32.mxu0 %v2704
  %3573 = vmatmul.mubr.f32.gmra.mrb[0].mxu0 %v2703
  %v3574 = vpop.f32.mrb[0].mxu0
  %v3575 = vadd.f32 %v3202, %v3574
  %v3576 = vpop.f32.mrb[0].mxu0
  %v3577 = vadd.f32 %v3206, %v3576
  %3578 = vdwg.mxu0
  %3579 = vmatprep.subr.mxu0 %v2839
  %3580 = vmatpush1.msra.mxu0 %v2838
  %3581 = vmatprep.subr.mxu0 %v2843
  %3582 = vmatpush1.msra.mxu0 %v2842
  %3583 = vmatprep.subr.mxu0 %v2847
  %3584 = vmatpush1.msra.mxu0 %v2846
  %3585 = vmatprep.subr.mxu0 %v2851
  %3586 = vmatpush1.msra.mxu0 %v2850
  %3587 = vmatprep.subr.mxu0 %v2855
  %3588 = vmatpush1.msra.mxu0 %v2854
  %3589 = vmatprep.subr.mxu0 %v2859
  %3590 = vmatpush1.msra.mxu0 %v2858
  %3591 = vmatprep.subr.mxu0 %v2863
  %3592 = vmatpush1.msra.mxu0 %v2862
  %3593 = vmatprep.subr.mxu0 %v2867
  %3594 = vmatpush1.msra.mxu0 %v2866
  %3595 = vmatprep.subr.mxu0 %v2871
  %3596 = vmatpush1.msra.mxu0 %v2870
  %3597 = vmatprep.subr.mxu0 %v2875
  %3598 = vmatpush1.msra.mxu0 %v2874
  %3599 = vmatprep.subr.mxu0 %v2879
  %3600 = vmatpush1.msra.mxu0 %v2878
  %3601 = vmatprep.subr.mxu0 %v2883
  %3602 = vmatpush1.msra.mxu0 %v2882
  %3603 = vmatprep.subr.mxu0 %v2887
  %3604 = vmatpush1.msra.mxu0 %v2886
  %3605 = vmatprep.subr.mxu0 %v2891
  %3606 = vmatpush1.msra.mxu0 %v2890
  %3607 = vmatprep.subr.mxu0 %v2895
  %3608 = vmatpush1.msra.mxu0 %v2894
  %3609 = vmatprep.subr.mxu0 %v2899
  %3610 = vmatpush1.msra.mxu0 %v2898
  %3611 = vmatprep.subr.mxu0 %v2903
  %3612 = vmatpush1.msra.mxu0 %v2902
  %3613 = vmatprep.subr.mxu0 %v2907
  %3614 = vmatpush1.msra.mxu0 %v2906
  %3615 = vmatprep.subr.mxu0 %v2911
  %3616 = vmatpush1.msra.mxu0 %v2910
  %3617 = vmatprep.subr.mxu0 %v2915
  %3618 = vmatpush1.msra.mxu0 %v2914
  %3619 = vmatprep.subr.mxu0 %v2919
  %3620 = vmatpush1.msra.mxu0 %v2918
  %3621 = vmatprep.subr.mxu0 %v2923
  %3622 = vmatpush1.msra.mxu0 %v2922
  %3623 = vmatprep.subr.mxu0 %v2927
  %3624 = vmatpush1.msra.mxu0 %v2926
  %3625 = vmatprep.subr.mxu0 %v2931
  %3626 = vmatpush1.msra.mxu0 %v2930
  %3627 = vmatprep.subr.mxu0 %v2935
  %3628 = vmatpush1.msra.mxu0 %v2934
  %3629 = vmatprep.subr.mxu0 %v2939
  %3630 = vmatpush1.msra.mxu0 %v2938
  %3631 = vmatprep.subr.mxu0 %v2943
  %3632 = vmatpush1.msra.mxu0 %v2942
  %3633 = vmatprep.subr.mxu0 %v2947
  %3634 = vmatpush1.msra.mxu0 %v2946
  %3635 = vmatprep.subr.mxu0 %v2951
  %3636 = vmatpush1.msra.mxu0 %v2950
  %3637 = vmatprep.subr.mxu0 %v2955
  %3638 = vmatpush1.msra.mxu0 %v2954
  %3639 = vmatprep.subr.mxu0 %v2959
  %3640 = vmatpush1.msra.mxu0 %v2958
  %3641 = vmatprep.subr.mxu0 %v2963
  %3642 = vmatpush1.msra.mxu0 %v2962
  %3643 = vmatprep.mubr.f32.mxu0 %v2691
  %3644 = vmatmul.mubr.f32.gmra.mrb[0].mxu0 %v2690
  %v3645 = vpop.f32.mrb[0].mxu0
  %v3646 = vadd.f32 %v3557, %v3645
  %v3647 = vpop.f32.mrb[0].mxu0
  %v3648 = vadd.f32 %v3559, %v3647
  %3649 = vmatprep.mubr.f32.mxu0 %v2696
  %3650 = vmatmul.mubr.f32.gmra.mrb[0].mxu0 %v2695
  %v3651 = vpop.f32.mrb[0].mxu0
  %v3652 = vadd.f32 %v3563, %v3651
  %v3653 = vpop.f32.mrb[0].mxu0
  %v3654 = vadd.f32 %v3565, %v3653
  %3655 = vmatprep.mubr.f32.mxu0 %v2701
  %3656 = vmatmul.mubr.f32.gmra.mrb[0].mxu0 %v2700
  %v3657 = vpop.f32.mrb[0].mxu0
  %v3658 = vadd.f32 %v3569, %v3657
  %v3659 = vpop.f32.mrb[0].mxu0
  %v3660 = vadd.f32 %v3571, %v3659
  %3661 = vmatprep.mubr.f32.mxu0 %v2706
  %3662 = vmatmul.mubr.f32.gmra.mrb[0].mxu0 %v2705
  %v3663 = vpop.f32.mrb[0].mxu0
  %v3664 = vadd.f32 %v3575, %v3663
  %v3665 = vpop.f32.mrb[0].mxu0
  %v3666 = vadd.f32 %v3577, %v3665
  %3667 = vdwg.mxu0
  %3668 = vmatprep.subr.mxu0 %v2967
  %3669 = vmatpush1.msra.mxu0 %v2966
  %3670 = vmatprep.subr.mxu0 %v2971
  %3671 = vmatpush1.msra.mxu0 %v2970
  %3672 = vmatprep.subr.mxu0 %v2975
  %3673 = vmatpush1.msra.mxu0 %v2974
  %3674 = vmatprep.subr.mxu0 %v2979
  %3675 = vmatpush1.msra.mxu0 %v2978
  %3676 = vmatprep.subr.mxu0 %v2983
  %3677 = vmatpush1.msra.mxu0 %v2982
  %3678 = vmatprep.subr.mxu0 %v2987
  %3679 = vmatpush1.msra.mxu0 %v2986
  %3680 = vmatprep.subr.mxu0 %v2991
  %3681 = vmatpush1.msra.mxu0 %v2990
  %3682 = vmatprep.subr.mxu0 %v2995
  %3683 = vmatpush1.msra.mxu0 %v2994
  %3684 = vmatprep.subr.mxu0 0.0
  %3685 = vmatpush1.msra.mxu0 0.0
  %3686 = vmatprep.subr.mxu0 0.0
  %3687 = vmatpush1.msra.mxu0 0.0
  %3688 = vmatprep.subr.mxu0 0.0
  %3689 = vmatpush1.msra.mxu0 0.0
  %3690 = vmatprep.subr.mxu0 0.0
  %3691 = vmatpush1.msra.mxu0 0.0
  %3692 = vmatprep.subr.mxu0 0.0
  %3693 = vmatpush1.msra.mxu0 0.0
  %3694 = vmatprep.subr.mxu0 0.0
  %3695 = vmatpush1.msra.mxu0 0.0
  %3696 = vmatprep.subr.mxu0 0.0
  %3697 = vmatpush1.msra.mxu0 0.0
  %3698 = vmatprep.subr.mxu0 0.0
  %3699 = vmatpush1.msra.mxu0 0.0
  %3700 = vmatprep.subr.mxu0 0.0
  %3701 = vmatpush1.msra.mxu0 0.0
  %3702 = vmatprep.subr.mxu0 0.0
  %3703 = vmatpush1.msra.mxu0 0.0
  %3704 = vmatprep.subr.mxu0 0.0
  %3705 = vmatpush1.msra.mxu0 0.0
  %3706 = vmatprep.subr.mxu0 0.0
  %3707 = vmatpush1.msra.mxu0 0.0
  %3708 = vmatprep.subr.mxu0 0.0
  %3709 = vmatpush1.msra.mxu0 0.0
  %3710 = vmatprep.subr.mxu0 0.0
  %3711 = vmatpush1.msra.mxu0 0.0
  %3712 = vmatprep.subr.mxu0 0.0
  %3713 = vmatpush1.msra.mxu0 0.0
  %3714 = vmatprep.subr.mxu0 0.0
  %3715 = vmatpush1.msra.mxu0 0.0
  %3716 = vmatprep.subr.mxu0 0.0
  %3717 = vmatpush1.msra.mxu0 0.0
  %3718 = vmatprep.subr.mxu0 0.0
  %3719 = vmatpush1.msra.mxu0 0.0
  %3720 = vmatprep.subr.mxu0 0.0
  %3721 = vmatpush1.msra.mxu0 0.0
  %3722 = vmatprep.subr.mxu0 0.0
  %3723 = vmatpush1.msra.mxu0 0.0
  %3724 = vmatprep.subr.mxu0 0.0
  %3725 = vmatpush1.msra.mxu0 0.0
  %3726 = vmatprep.subr.mxu0 0.0
  %3727 = vmatpush1.msra.mxu0 0.0
  %3728 = vmatprep.subr.mxu0 0.0
  %3729 = vmatpush1.msra.mxu0 0.0
  %3730 = vmatprep.subr.mxu0 0.0
  %3731 = vmatpush1.msra.mxu0 0.0
  %3732 = vmatprep.mubr.f32.mxu0 0.0
  %3733 = vmatmul.mubr.f32.gmra.mrb[0].mxu0 %v3212
  %v3734 = vpop.f32.mrb[0].mxu0
  %v3735 = vadd.f32 %v3646, %v3734
  %v3736 = vpop.f32.mrb[0].mxu0
  %v3737 = vadd.f32 %v3648, %v3736
  %3738 = vmatprep.mubr.f32.mxu0 0.0
  %3739 = vmatmul.mubr.f32.gmra.mrb[0].mxu0 %v3215
  %v3740 = vpop.f32.mrb[0].mxu0
  %v3741 = vadd.f32 %v3652, %v3740
  %v3742 = vpop.f32.mrb[0].mxu0
  %v3743 = vadd.f32 %v3654, %v3742
  %3744 = vmatprep.mubr.f32.mxu0 0.0
  %3745 = vmatmul.mubr.f32.gmra.mrb[0].mxu0 %v3218
  %v3746 = vpop.f32.mrb[0].mxu0
  %v3747 = vadd.f32 %v3658, %v3746
  %v3748 = vpop.f32.mrb[0].mxu0
  %v3749 = vadd.f32 %v3660, %v3748
  %3750 = vmatprep.mubr.f32.mxu0 0.0
  %3751 = vmatmul.mubr.f32.gmra.mrb[0].mxu0 %v3221
  %v3752 = vpop.f32.mrb[0].mxu0
  %v3753 = vadd.f32 %v3664, %v3752
  %v3754 = vpop.f32.mrb[0].mxu0
  %v3755 = vadd.f32 %v3666, %v3754
  %3756 = vdwg.mxu0
  %3757 = vmatprep.subr.mxu0 %v2997
  %3758 = vmatpush1.msra.mxu0 %v2996
  %3759 = vmatprep.subr.mxu0 %v3001
  %3760 = vmatpush1.msra.mxu0 %v3000
  %3761 = vmatprep.subr.mxu0 %v3005
  %3762 = vmatpush1.msra.mxu0 %v3004
  %3763 = vmatprep.subr.mxu0 %v3009
  %3764 = vmatpush1.msra.mxu0 %v3008
  %3765 = vmatprep.subr.mxu0 %v3013
  %3766 = vmatpush1.msra.mxu0 %v3012
  %3767 = vmatprep.subr.mxu0 %v3017
  %3768 = vmatpush1.msra.mxu0 %v3016
  %3769 = vmatprep.subr.mxu0 %v3021
  %3770 = vmatpush1.msra.mxu0 %v3020
  %3771 = vmatprep.subr.mxu0 %v3025
  %3772 = vmatpush1.msra.mxu0 %v3024
  %3773 = vmatprep.subr.mxu0 %v3029
  %3774 = vmatpush1.msra.mxu0 %v3028
  %3775 = vmatprep.subr.mxu0 %v3033
  %3776 = vmatpush1.msra.mxu0 %v3032
  %3777 = vmatprep.subr.mxu0 %v3037
  %3778 = vmatpush1.msra.mxu0 %v3036
  %3779 = vmatprep.subr.mxu0 %v3041
  %3780 = vmatpush1.msra.mxu0 %v3040
  %3781 = vmatprep.subr.mxu0 %v3045
  %3782 = vmatpush1.msra.mxu0 %v3044
  %3783 = vmatprep.subr.mxu0 %v3049
  %3784 = vmatpush1.msra.mxu0 %v3048
  %3785 = vmatprep.subr.mxu0 %v3053
  %3786 = vmatpush1.msra.mxu0 %v3052
  %3787 = vmatprep.subr.mxu0 %v3057
  %3788 = vmatpush1.msra.mxu0 %v3056
  %3789 = vmatprep.subr.mxu0 0.0
  %3790 = vmatpush1.msra.mxu0 0.0
  %3791 = vmatprep.subr.mxu0 0.0
  %3792 = vmatpush1.msra.mxu0 0.0
  %3793 = vmatprep.subr.mxu0 0.0
  %3794 = vmatpush1.msra.mxu0 0.0
  %3795 = vmatprep.subr.mxu0 0.0
  %3796 = vmatpush1.msra.mxu0 0.0
  %3797 = vmatprep.subr.mxu0 0.0
  %3798 = vmatpush1.msra.mxu0 0.0
  %3799 = vmatprep.subr.mxu0 0.0
  %3800 = vmatpush1.msra.mxu0 0.0
  %3801 = vmatprep.subr.mxu0 0.0
  %3802 = vmatpush1.msra.mxu0 0.0
  %3803 = vmatprep.subr.mxu0 0.0
  %3804 = vmatpush1.msra.mxu0 0.0
  %3805 = vmatprep.subr.mxu0 0.0
  %3806 = vmatpush1.msra.mxu0 0.0
  %3807 = vmatprep.subr.mxu0 0.0
  %3808 = vmatpush1.msra.mxu0 0.0
  %3809 = vmatprep.subr.mxu0 0.0
  %3810 = vmatpush1.msra.mxu0 0.0
  %3811 = vmatprep.subr.mxu0 0.0
  %3812 = vmatpush1.msra.mxu0 0.0
  %3813 = vmatprep.subr.mxu0 0.0
  %3814 = vmatpush1.msra.mxu0 0.0
  %3815 = vmatprep.subr.mxu0 0.0
  %3816 = vmatpush1.msra.mxu0 0.0
  %3817 = vmatprep.subr.mxu0 0.0
  %3818 = vmatpush1.msra.mxu0 0.0
  %3819 = vmatprep.subr.mxu0 0.0
  %3820 = vmatpush1.msra.mxu0 0.0
  %3821 = vmatprep.mubr.f32.mxu0 0.0
  %3822 = vmatmul.mubr.f32.gmra.mrb[0].mxu0 %v1808
  %v3823 = vpop.f32.mrb[0].mxu0
  %v3824 = vadd.f32 0.0, %v3823
  %v3825 = vpop.f32.mrb[0].mxu0
  %v3826 = vadd.f32 0.0, %v3825
  %3827 = vdwg.mxu0
  %3828 = vmatprep.subr.mxu0 %v2999
  %3829 = vmatpush1.msra.mxu0 %v2998
  %3830 = vmatprep.subr.mxu0 %v3003
  %3831 = vmatpush1.msra.mxu0 %v3002
  %3832 = vmatprep.subr.mxu0 %v3007
  %3833 = vmatpush1.msra.mxu0 %v3006
  %3834 = vmatprep.subr.mxu0 %v3011
  %3835 = vmatpush1.msra.mxu0 %v3010
  %3836 = vmatprep.subr.mxu0 %v3015
  %3837 = vmatpush1.msra.mxu0 %v3014
  %3838 = vmatprep.subr.mxu0 %v3019
  %3839 = vmatpush1.msra.mxu0 %v3018
  %3840 = vmatprep.subr.mxu0 %v3023
  %3841 = vmatpush1.msra.mxu0 %v3022
  %3842 = vmatprep.subr.mxu0 %v3027
  %3843 = vmatpush1.msra.mxu0 %v3026
  %3844 = vmatprep.subr.mxu0 %v3031
  %3845 = vmatpush1.msra.mxu0 %v3030
  %3846 = vmatprep.subr.mxu0 %v3035
  %3847 = vmatpush1.msra.mxu0 %v3034
  %3848 = vmatprep.subr.mxu0 %v3039
  %3849 = vmatpush1.msra.mxu0 %v3038
  %3850 = vmatprep.subr.mxu0 %v3043
  %3851 = vmatpush1.msra.mxu0 %v3042
  %3852 = vmatprep.subr.mxu0 %v3047
  %3853 = vmatpush1.msra.mxu0 %v3046
  %3854 = vmatprep.subr.mxu0 %v3051
  %3855 = vmatpush1.msra.mxu0 %v3050
  %3856 = vmatprep.subr.mxu0 %v3055
  %3857 = vmatpush1.msra.mxu0 %v3054
  %3858 = vmatprep.subr.mxu0 %v3059
  %3859 = vmatpush1.msra.mxu0 %v3058
  %3860 = vmatprep.subr.mxu0 0.0
  %3861 = vmatpush1.msra.mxu0 0.0
  %3862 = vmatprep.subr.mxu0 0.0
  %3863 = vmatpush1.msra.mxu0 0.0
  %3864 = vmatprep.subr.mxu0 0.0
  %3865 = vmatpush1.msra.mxu0 0.0
  %3866 = vmatprep.subr.mxu0 0.0
  %3867 = vmatpush1.msra.mxu0 0.0
  %3868 = vmatprep.subr.mxu0 0.0
  %3869 = vmatpush1.msra.mxu0 0.0
  %3870 = vmatprep.subr.mxu0 0.0
  %3871 = vmatpush1.msra.mxu0 0.0
  %3872 = vmatprep.subr.mxu0 0.0
  %3873 = vmatpush1.msra.mxu0 0.0
  %3874 = vmatprep.subr.mxu0 0.0
  %3875 = vmatpush1.msra.mxu0 0.0
  %3876 = vmatprep.subr.mxu0 0.0
  %3877 = vmatpush1.msra.mxu0 0.0
  %3878 = vmatprep.subr.mxu0 0.0
  %3879 = vmatpush1.msra.mxu0 0.0
  %3880 = vmatprep.subr.mxu0 0.0
  %3881 = vmatpush1.msra.mxu0 0.0
  %3882 = vmatprep.subr.mxu0 0.0
  %3883 = vmatpush1.msra.mxu0 0.0
  %3884 = vmatprep.subr.mxu0 0.0
  %3885 = vmatpush1.msra.mxu0 0.0
  %3886 = vmatprep.subr.mxu0 0.0
  %3887 = vmatpush1.msra.mxu0 0.0
  %3888 = vmatprep.subr.mxu0 0.0
  %3889 = vmatpush1.msra.mxu0 0.0
  %3890 = vmatprep.subr.mxu0 0.0
  %3891 = vmatpush1.msra.mxu0 0.0
  %3892 = vmatprep.mubr.f32.mxu0 0.0
  %3893 = vmatmul.mubr.f32.gmra.mrb[0].mxu0 %v1808
  %v3894 = vpop.f32.mrb[0].mxu0
  %v3895 = vadd.f32 0.0, %v3894
  %v3896 = vpop.f32.mrb[0].mxu0
  %v3897 = vadd.f32 0.0, %v3896
  %3898 = vdwg.mxu0
  %v3899 = vadd.f32 %v3468, %v3824
  %v3900 = vadd.f32 %v3470, %v3826
  %v3901 = vadd.f32 %v3735, %v3895
  %v3902 = vadd.f32 %v3737, %v3897
  %v3903 = vxor.u32 %v3899, 2147483648
  %v3904 = vmul.f32 %v3903, 1.442695
  %v3905 = vpow.pop %v3904
  %v3906 = vadd.f32 %v3905, 1.0
  %v3907 = vrcp.pop %v3906
  %v3908 = vmul.f32 1.0, %v3907
  %v3909 = vxor.u32 %v3900, 2147483648
  %v3910 = vmul.f32 %v3909, 1.442695
  %v3911 = vpow.pop %v3910
  %v3912 = vadd.f32 %v3911, 1.0
  %v3913 = vrcp.pop %v3912
  %v3914 = vmul.f32 1.0, %v3913
  %v3915 = vtanh.pop %v3901
  %v3916 = vxor.u32 %v3902, 2147483648
  %v3917 = vmul.f32 %v3916, 1.442695
  %v3918 = vpow.pop %v3917
  %v3919 = vadd.f32 %v3918, 1.0
  %v3920 = vrcp.pop %v3919
  %v3921 = vmul.f32 1.0, %v3920
  %v3922 = vmul.f32 %v3914, %v1806
  %v3923 = vmul.f32 %v3908, %v3915
  %v3924 = vadd.f32 %v3922, %v3923
  %v3925 = vtanh.pop %v3924
  %v3926 = vmul.f32 %v3921, %v3925
  %3927 = vmatprep.subr.mxu0 %v2997
  %3928 = vmatpush1.msra.mxu0 %v2996
  %3929 = vmatprep.subr.mxu0 %v3001
  %3930 = vmatpush1.msra.mxu0 %v3000
  %3931 = vmatprep.subr.mxu0 %v3005
  %3932 = vmatpush1.msra.mxu0 %v3004
  %3933 = vmatprep.subr.mxu0 %v3009
  %3934 = vmatpush1.msra.mxu0 %v3008
  %3935 = vmatprep.subr.mxu0 %v3013
  %3936 = vmatpush1.msra.mxu0 %v3012
  %3937 = vmatprep.subr.mxu0 %v3017
  %3938 = vmatpush1.msra.mxu0 %v3016
  %3939 = vmatprep.subr.mxu0 %v3021
  %3940 = vmatpush1.msra.mxu0 %v3020
  %3941 = vmatprep.subr.mxu0 %v3025
  %3942 = vmatpush1.msra.mxu0 %v3024
  %3943 = vmatprep.subr.mxu0 %v3029
  %3944 = vmatpush1.msra.mxu0 %v3028
  %3945 = vmatprep.subr.mxu0 %v3033
  %3946 = vmatpush1.msra.mxu0 %v3032
  %3947 = vmatprep.subr.mxu0 %v3037
  %3948 = vmatpush1.msra.mxu0 %v3036
  %3949 = vmatprep.subr.mxu0 %v3041
  %3950 = vmatpush1.msra.mxu0 %v3040
  %3951 = vmatprep.subr.mxu0 %v3045
  %3952 = vmatpush1.msra.mxu0 %v3044
  %3953 = vmatprep.subr.mxu0 %v3049
  %3954 = vmatpush1.msra.mxu0 %v3048
  %3955 = vmatprep.subr.mxu0 %v3053
  %3956 = vmatpush1.msra.mxu0 %v3052
  %3957 = vmatprep.subr.mxu0 %v3057
  %3958 = vmatpush1.msra.mxu0 %v3056
  %3959 = vmatprep.subr.mxu0 0.0
  %3960 = vmatpush1.msra.mxu0 0.0
  %3961 = vmatprep.subr.mxu0 0.0
  %3962 = vmatpush1.msra.mxu0 0.0
  %3963 = vmatprep.subr.mxu0 0.0
  %3964 = vmatpush1.msra.mxu0 0.0
  %3965 = vmatprep.subr.mxu0 0.0
  %3966 = vmatpush1.msra.mxu0 0.0
  %3967 = vmatprep.subr.mxu0 0.0
  %3968 = vmatpush1.msra.mxu0 0.0
  %3969 = vmatprep.subr.mxu0 0.0
  %3970 = vmatpush1.msra.mxu0 0.0
  %3971 = vmatprep.subr.mxu0 0.0
  %3972 = vmatpush1.msra.mxu0 0.0
  %3973 = vmatprep.subr.mxu0 0.0
  %3974 = vmatpush1.msra.mxu0 0.0
  %3975 = vmatprep.subr.mxu0 0.0
  %3976 = vmatpush1.msra.mxu0 0.0
  %3977 = vmatprep.subr.mxu0 0.0
  %3978 = vmatpush1.msra.mxu0 0.0
  %3979 = vmatprep.subr.mxu0 0.0
  %3980 = vmatpush1.msra.mxu0 0.0
  %3981 = vmatprep.subr.mxu0 0.0
  %3982 = vmatpush1.msra.mxu0 0.0
  %3983 = vmatprep.subr.mxu0 0.0
  %3984 = vmatpush1.msra.mxu0 0.0
  %3985 = vmatprep.subr.mxu0 0.0
  %3986 = vmatpush1.msra.mxu0 0.0
  %3987 = vmatprep.subr.mxu0 0.0
  %3988 = vmatpush1.msra.mxu0 0.0
  %3989 = vmatprep.subr.mxu0 0.0
  %3990 = vmatpush1.msra.mxu0 0.0
  %3991 = vmatprep.mubr.f32.mxu0 0.0
  %3992 = vmatmul.mubr.f32.gmra.mrb[0].mxu0 %v3926
  %v3993 = vpop.f32.mrb[0].mxu0
  %v3994 = vadd.f32 0.0, %v3993
  %v3995 = vpop.f32.mrb[0].mxu0
  %v3996 = vadd.f32 0.0, %v3995
  %3997 = vdwg.mxu0
  %3998 = vmatprep.subr.mxu0 %v2999
  %3999 = vmatpush1.msra.mxu0 %v2998
  %4000 = vmatprep.subr.mxu0 %v3003
  %4001 = vmatpush1.msra.mxu0 %v3002
  %4002 = vmatprep.subr.mxu0 %v3007
  %4003 = vmatpush1.msra.mxu0 %v3006
  %4004 = vmatprep.subr.mxu0 %v3011
  %4005 = vmatpush1.msra.mxu0 %v3010
  %4006 = vmatprep.subr.mxu0 %v3015
  %4007 = vmatpush1.msra.mxu0 %v3014
  %4008 = vmatprep.subr.mxu0 %v3019
  %4009 = vmatpush1.msra.mxu0 %v3018
  %4010 = vmatprep.subr.mxu0 %v3023
  %4011 = vmatpush1.msra.mxu0 %v3022
  %4012 = vmatprep.subr.mxu0 %v3027
  %4013 = vmatpush1.msra.mxu0 %v3026
  %4014 = vmatprep.subr.mxu0 %v3031
  %4015 = vmatpush1.msra.mxu0 %v3030
  %4016 = vmatprep.subr.mxu0 %v3035
  %4017 = vmatpush1.msra.mxu0 %v3034
  %4018 = vmatprep.subr.mxu0 %v3039
  %4019 = vmatpush1.msra.mxu0 %v3038
  %4020 = vmatprep.subr.mxu0 %v3043
  %4021 = vmatpush1.msra.mxu0 %v3042
  %4022 = vmatprep.subr.mxu0 %v3047
  %4023 = vmatpush1.msra.mxu0 %v3046
  %4024 = vmatprep.subr.mxu0 %v3051
  %4025 = vmatpush1.msra.mxu0 %v3050
  %4026 = vmatprep.subr.mxu0 %v3055
  %4027 = vmatpush1.msra.mxu0 %v3054
  %4028 = vmatprep.subr.mxu0 %v3059
  %4029 = vmatpush1.msra.mxu0 %v3058
  %4030 = vmatprep.subr.mxu0 0.0
  %4031 = vmatpush1.msra.mxu0 0.0
  %4032 = vmatprep.subr.mxu0 0.0
  %4033 = vmatpush1.msra.mxu0 0.0
  %4034 = vmatprep.subr.mxu0 0.0
  %4035 = vmatpush1.msra.mxu0 0.0
  %4036 = vmatprep.subr.mxu0 0.0
  %4037 = vmatpush1.msra.mxu0 0.0
  %4038 = vmatprep.subr.mxu0 0.0
  %4039 = vmatpush1.msra.mxu0 0.0
  %4040 = vmatprep.subr.mxu0 0.0
  %4041 = vmatpush1.msra.mxu0 0.0
  %4042 = vmatprep.subr.mxu0 0.0
  %4043 = vmatpush1.msra.mxu0 0.0
  %4044 = vmatprep.subr.mxu0 0.0
  %4045 = vmatpush1.msra.mxu0 0.0
  %4046 = vmatprep.subr.mxu0 0.0
  %4047 = vmatpush1.msra.mxu0 0.0
  %4048 = vmatprep.subr.mxu0 0.0
  %4049 = vmatpush1.msra.mxu0 0.0
  %4050 = vmatprep.subr.mxu0 0.0
  %4051 = vmatpush1.msra.mxu0 0.0
  %4052 = vmatprep.subr.mxu0 0.0
  %4053 = vmatpush1.msra.mxu0 0.0
  %4054 = vmatprep.subr.mxu0 0.0
  %4055 = vmatpush1.msra.mxu0 0.0
  %4056 = vmatprep.subr.mxu0 0.0
  %4057 = vmatpush1.msra.mxu0 0.0
  %4058 = vmatprep.subr.mxu0 0.0
  %4059 = vmatpush1.msra.mxu0 0.0
  %4060 = vmatprep.subr.mxu0 0.0
  %4061 = vmatpush1.msra.mxu0 0.0
  %4062 = vmatprep.mubr.f32.mxu0 0.0
  %4063 = vmatmul.mubr.f32.gmra.mrb[0].mxu0 %v3926
  %v4064 = vpop.f32.mrb[0].mxu0
  %v4065 = vadd.f32 0.0, %v4064
  %v4066 = vpop.f32.mrb[0].mxu0
  %v4067 = vadd.f32 0.0, %v4066
  %4068 = vdwg.mxu0
  %v4069 = vadd.f32 %v3474, %v3994
  %v4070 = vadd.f32 %v3476, %v3996
  %v4071 = vadd.f32 %v3741, %v4065
  %v4072 = vadd.f32 %v3743, %v4067
  %v4073 = vxor.u32 %v4069, 2147483648
  %v4074 = vmul.f32 %v4073, 1.442695
  %v4075 = vpow.pop %v4074
  %v4076 = vadd.f32 %v4075, 1.0
  %v4077 = vrcp.pop %v4076
  %v4078 = vmul.f32 1.0, %v4077
  %v4079 = vxor.u32 %v4070, 2147483648
  %v4080 = vmul.f32 %v4079, 1.442695
  %v4081 = vpow.pop %v4080
  %v4082 = vadd.f32 %v4081, 1.0
  %v4083 = vrcp.pop %v4082
  %v4084 = vmul.f32 1.0, %v4083
  %v4085 = vtanh.pop %v4071
  %v4086 = vxor.u32 %v4072, 2147483648
  %v4087 = vmul.f32 %v4086, 1.442695
  %v4088 = vpow.pop %v4087
  %v4089 = vadd.f32 %v4088, 1.0
  %v4090 = vrcp.pop %v4089
  %v4091 = vmul.f32 1.0, %v4090
  %v4092 = vmul.f32 %v4084, %v3924
  %v4093 = vmul.f32 %v4078, %v4085
  %v4094 = vadd.f32 %v4092, %v4093
  %v4095 = vtanh.pop %v4094
  %v4096 = vmul.f32 %v4091, %v4095
  %4097 = vmatprep.subr.mxu0 %v2997
  %4098 = vmatpush1.msra.mxu0 %v2996
  %4099 = vmatprep.subr.mxu0 %v3001
  %4100 = vmatpush1.msra.mxu0 %v3000
  %4101 = vmatprep.subr.mxu0 %v3005
  %4102 = vmatpush1.msra.mxu0 %v3004
  %4103 = vmatprep.subr.mxu0 %v3009
  %4104 = vmatpush1.msra.mxu0 %v3008
  %4105 = vmatprep.subr.mxu0 %v3013
  %4106 = vmatpush1.msra.mxu0 %v3012
  %4107 = vmatprep.subr.mxu0 %v3017
  %4108 = vmatpush1.msra.mxu0 %v3016
  %4109 = vmatprep.subr.mxu0 %v3021
  %4110 = vmatpush1.msra.mxu0 %v3020
  %4111 = vmatprep.subr.mxu0 %v3025
  %4112 = vmatpush1.msra.mxu0 %v3024
  %4113 = vmatprep.subr.mxu0 %v3029
  %4114 = vmatpush1.msra.mxu0 %v3028
  %4115 = vmatprep.subr.mxu0 %v3033
  %4116 = vmatpush1.msra.mxu0 %v3032
  %4117 = vmatprep.subr.mxu0 %v3037
  %4118 = vmatpush1.msra.mxu0 %v3036
  %4119 = vmatprep.subr.mxu0 %v3041
  %4120 = vmatpush1.msra.mxu0 %v3040
  %4121 = vmatprep.subr.mxu0 %v3045
  %4122 = vmatpush1.msra.mxu0 %v3044
  %4123 = vmatprep.subr.mxu0 %v3049
  %4124 = vmatpush1.msra.mxu0 %v3048
  %4125 = vmatprep.subr.mxu0 %v3053
  %4126 = vmatpush1.msra.mxu0 %v3052
  %4127 = vmatprep.subr.mxu0 %v3057
  %4128 = vmatpush1.msra.mxu0 %v3056
  %4129 = vmatprep.subr.mxu0 0.0
  %4130 = vmatpush1.msra.mxu0 0.0
  %4131 = vmatprep.subr.mxu0 0.0
  %4132 = vmatpush1.msra.mxu0 0.0
  %4133 = vmatprep.subr.mxu0 0.0
  %4134 = vmatpush1.msra.mxu0 0.0
  %4135 = vmatprep.subr.mxu0 0.0
  %4136 = vmatpush1.msra.mxu0 0.0
  %4137 = vmatprep.subr.mxu0 0.0
  %4138 = vmatpush1.msra.mxu0 0.0
  %4139 = vmatprep.subr.mxu0 0.0
  %4140 = vmatpush1.msra.mxu0 0.0
  %4141 = vmatprep.subr.mxu0 0.0
  %4142 = vmatpush1.msra.mxu0 0.0
  %4143 = vmatprep.subr.mxu0 0.0
  %4144 = vmatpush1.msra.mxu0 0.0
  %4145 = vmatprep.subr.mxu0 0.0
  %4146 = vmatpush1.msra.mxu0 0.0
  %4147 = vmatprep.subr.mxu0 0.0
  %4148 = vmatpush1.msra.mxu0 0.0
  %4149 = vmatprep.subr.mxu0 0.0
  %4150 = vmatpush1.msra.mxu0 0.0
  %4151 = vmatprep.subr.mxu0 0.0
  %4152 = vmatpush1.msra.mxu0 0.0
  %4153 = vmatprep.subr.mxu0 0.0
  %4154 = vmatpush1.msra.mxu0 0.0
  %4155 = vmatprep.subr.mxu0 0.0
  %4156 = vmatpush1.msra.mxu0 0.0
  %4157 = vmatprep.subr.mxu0 0.0
  %4158 = vmatpush1.msra.mxu0 0.0
  %4159 = vmatprep.subr.mxu0 0.0
  %4160 = vmatpush1.msra.mxu0 0.0
  %4161 = vmatprep.mubr.f32.mxu0 0.0
  %4162 = vmatmul.mubr.f32.gmra.mrb[0].mxu0 %v4096
  %v4163 = vpop.f32.mrb[0].mxu0
  %v4164 = vadd.f32 0.0, %v4163
  %v4165 = vpop.f32.mrb[0].mxu0
  %v4166 = vadd.f32 0.0, %v4165
  %4167 = vdwg.mxu0
  %4168 = vmatprep.subr.mxu0 %v2999
  %4169 = vmatpush1.msra.mxu0 %v2998
  %4170 = vmatprep.subr.mxu0 %v3003
  %4171 = vmatpush1.msra.mxu0 %v3002
  %4172 = vmatprep.subr.mxu0 %v3007
  %4173 = vmatpush1.msra.mxu0 %v3006
  %4174 = vmatprep.subr.mxu0 %v3011
  %4175 = vmatpush1.msra.mxu0 %v3010
  %4176 = vmatprep.subr.mxu0 %v3015
  %4177 = vmatpush1.msra.mxu0 %v3014
  %4178 = vmatprep.subr.mxu0 %v3019
  %4179 = vmatpush1.msra.mxu0 %v3018
  %4180 = vmatprep.subr.mxu0 %v3023
  %4181 = vmatpush1.msra.mxu0 %v3022
  %4182 = vmatprep.subr.mxu0 %v3027
  %4183 = vmatpush1.msra.mxu0 %v3026
  %4184 = vmatprep.subr.mxu0 %v3031
  %4185 = vmatpush1.msra.mxu0 %v3030
  %4186 = vmatprep.subr.mxu0 %v3035
  %4187 = vmatpush1.msra.mxu0 %v3034
  %4188 = vmatprep.subr.mxu0 %v3039
  %4189 = vmatpush1.msra.mxu0 %v3038
  %4190 = vmatprep.subr.mxu0 %v3043
  %4191 = vmatpush1.msra.mxu0 %v3042
  %4192 = vmatprep.subr.mxu0 %v3047
  %4193 = vmatpush1.msra.mxu0 %v3046
  %4194 = vmatprep.subr.mxu0 %v3051
  %4195 = vmatpush1.msra.mxu0 %v3050
  %4196 = vmatprep.subr.mxu0 %v3055
  %4197 = vmatpush1.msra.mxu0 %v3054
  %4198 = vmatprep.subr.mxu0 %v3059
  %4199 = vmatpush1.msra.mxu0 %v3058
  %4200 = vmatprep.subr.mxu0 0.0
  %4201 = vmatpush1.msra.mxu0 0.0
  %4202 = vmatprep.subr.mxu0 0.0
  %4203 = vmatpush1.msra.mxu0 0.0
  %4204 = vmatprep.subr.mxu0 0.0
  %4205 = vmatpush1.msra.mxu0 0.0
  %4206 = vmatprep.subr.mxu0 0.0
  %4207 = vmatpush1.msra.mxu0 0.0
  %4208 = vmatprep.subr.mxu0 0.0
  %4209 = vmatpush1.msra.mxu0 0.0
  %4210 = vmatprep.subr.mxu0 0.0
  %4211 = vmatpush1.msra.mxu0 0.0
  %4212 = vmatprep.subr.mxu0 0.0
  %4213 = vmatpush1.msra.mxu0 0.0
  %4214 = vmatprep.subr.mxu0 0.0
  %4215 = vmatpush1.msra.mxu0 0.0
  %4216 = vmatprep.subr.mxu0 0.0
  %4217 = vmatpush1.msra.mxu0 0.0
  %4218 = vmatprep.subr.mxu0 0.0
  %4219 = vmatpush1.msra.mxu0 0.0
  %4220 = vmatprep.subr.mxu0 0.0
  %4221 = vmatpush1.msra.mxu0 0.0
  %4222 = vmatprep.subr.mxu0 0.0
  %4223 = vmatpush1.msra.mxu0 0.0
  %4224 = vmatprep.subr.mxu0 0.0
  %4225 = vmatpush1.msra.mxu0 0.0
  %4226 = vmatprep.subr.mxu0 0.0
  %4227 = vmatpush1.msra.mxu0 0.0
  %4228 = vmatprep.subr.mxu0 0.0
  %4229 = vmatpush1.msra.mxu0 0.0
  %4230 = vmatprep.subr.mxu0 0.0
  %4231 = vmatpush1.msra.mxu0 0.0
  %4232 = vmatprep.mubr.f32.mxu0 0.0
  %4233 = vmatmul.mubr.f32.gmra.mrb[0].mxu0 %v4096
  %v4234 = vpop.f32.mrb[0].mxu0
  %v4235 = vadd.f32 0.0, %v4234
  %v4236 = vpop.f32.mrb[0].mxu0
  %v4237 = vadd.f32 0.0, %v4236
  %4238 = vdwg.mxu0
  %v4239 = vadd.f32 %v3480, %v4164
  %v4240 = vadd.f32 %v3482, %v4166
  %v4241 = vadd.f32 %v3747, %v4235
  %v4242 = vadd.f32 %v3749, %v4237
  %v4243 = vxor.u32 %v4239, 2147483648
  %v4244 = vmul.f32 %v4243, 1.442695
  %v4245 = vpow.pop %v4244
  %v4246 = vadd.f32 %v4245, 1.0
  %v4247 = vrcp.pop %v4246
  %v4248 = vmul.f32 1.0, %v4247
  %v4249 = vxor.u32 %v4240, 2147483648
  %v4250 = vmul.f32 %v4249, 1.442695
  %v4251 = vpow.pop %v4250
  %v4252 = vadd.f32 %v4251, 1.0
  %v4253 = vrcp.pop %v4252
  %v4254 = vmul.f32 1.0, %v4253
  %v4255 = vtanh.pop %v4241
  %v4256 = vxor.u32 %v4242, 2147483648
  %v4257 = vmul.f32 %v4256, 1.442695
  %v4258 = vpow.pop %v4257
  %v4259 = vadd.f32 %v4258, 1.0
  %v4260 = vrcp.pop %v4259
  %v4261 = vmul.f32 1.0, %v4260
  %v4262 = vmul.f32 %v4254, %v4094
  %v4263 = vmul.f32 %v4248, %v4255
  %v4264 = vadd.f32 %v4262, %v4263
  %v4265 = vtanh.pop %v4264
  %v4266 = vmul.f32 %v4261, %v4265
  %4267 = vmatprep.subr.mxu0 %v2997
  %4268 = vmatpush1.msra.mxu0 %v2996
  %4269 = vmatprep.subr.mxu0 %v3001
  %4270 = vmatpush1.msra.mxu0 %v3000
  %4271 = vmatprep.subr.mxu0 %v3005
  %4272 = vmatpush1.msra.mxu0 %v3004
  %4273 = vmatprep.subr.mxu0 %v3009
  %4274 = vmatpush1.msra.mxu0 %v3008
  %4275 = vmatprep.subr.mxu0 %v3013
  %4276 = vmatpush1.msra.mxu0 %v3012
  %4277 = vmatprep.subr.mxu0 %v3017
  %4278 = vmatpush1.msra.mxu0 %v3016
  %4279 = vmatprep.subr.mxu0 %v3021
  %4280 = vmatpush1.msra.mxu0 %v3020
  %4281 = vmatprep.subr.mxu0 %v3025
  %4282 = vmatpush1.msra.mxu0 %v3024
  %4283 = vmatprep.subr.mxu0 %v3029
  %4284 = vmatpush1.msra.mxu0 %v3028
  %4285 = vmatprep.subr.mxu0 %v3033
  %4286 = vmatpush1.msra.mxu0 %v3032
  %4287 = vmatprep.subr.mxu0 %v3037
  %4288 = vmatpush1.msra.mxu0 %v3036
  %4289 = vmatprep.subr.mxu0 %v3041
  %4290 = vmatpush1.msra.mxu0 %v3040
  %4291 = vmatprep.subr.mxu0 %v3045
  %4292 = vmatpush1.msra.mxu0 %v3044
  %4293 = vmatprep.subr.mxu0 %v3049
  %4294 = vmatpush1.msra.mxu0 %v3048
  %4295 = vmatprep.subr.mxu0 %v3053
  %4296 = vmatpush1.msra.mxu0 %v3052
  %4297 = vmatprep.subr.mxu0 %v3057
  %4298 = vmatpush1.msra.mxu0 %v3056
  %4299 = vmatprep.subr.mxu0 0.0
  %4300 = vmatpush1.msra.mxu0 0.0
  %4301 = vmatprep.subr.mxu0 0.0
  %4302 = vmatpush1.msra.mxu0 0.0
  %4303 = vmatprep.subr.mxu0 0.0
  %4304 = vmatpush1.msra.mxu0 0.0
  %4305 = vmatprep.subr.mxu0 0.0
  %4306 = vmatpush1.msra.mxu0 0.0
  %4307 = vmatprep.subr.mxu0 0.0
  %4308 = vmatpush1.msra.mxu0 0.0
  %4309 = vmatprep.subr.mxu0 0.0
  %4310 = vmatpush1.msra.mxu0 0.0
  %4311 = vmatprep.subr.mxu0 0.0
  %4312 = vmatpush1.msra.mxu0 0.0
  %4313 = vmatprep.subr.mxu0 0.0
  %4314 = vmatpush1.msra.mxu0 0.0
  %4315 = vmatprep.subr.mxu0 0.0
  %4316 = vmatpush1.msra.mxu0 0.0
  %4317 = vmatprep.subr.mxu0 0.0
  %4318 = vmatpush1.msra.mxu0 0.0
  %4319 = vmatprep.subr.mxu0 0.0
  %4320 = vmatpush1.msra.mxu0 0.0
  %4321 = vmatprep.subr.mxu0 0.0
  %4322 = vmatpush1.msra.mxu0 0.0
  %4323 = vmatprep.subr.mxu0 0.0
  %4324 = vmatpush1.msra.mxu0 0.0
  %4325 = vmatprep.subr.mxu0 0.0
  %4326 = vmatpush1.msra.mxu0 0.0
  %4327 = vmatprep.subr.mxu0 0.0
  %4328 = vmatpush1.msra.mxu0 0.0
  %4329 = vmatprep.subr.mxu0 0.0
  %4330 = vmatpush1.msra.mxu0 0.0
  %4331 = vmatprep.mubr.f32.mxu0 0.0
  %4332 = vmatmul.mubr.f32.gmra.mrb[0].mxu0 %v4266
  %v4333 = vpop.f32.mrb[0].mxu0
  %v4334 = vadd.f32 0.0, %v4333
  %v4335 = vpop.f32.mrb[0].mxu0
  %v4336 = vadd.f32 0.0, %v4335
  %4337 = vdwg.mxu0
  %4338 = vmatprep.subr.mxu0 %v2999
  %4339 = vmatpush1.msra.mxu0 %v2998
  %4340 = vmatprep.subr.mxu0 %v3003
  %4341 = vmatpush1.msra.mxu0 %v3002
  %4342 = vmatprep.subr.mxu0 %v3007
  %4343 = vmatpush1.msra.mxu0 %v3006
  %4344 = vmatprep.subr.mxu0 %v3011
  %4345 = vmatpush1.msra.mxu0 %v3010
  %4346 = vmatprep.subr.mxu0 %v3015
  %4347 = vmatpush1.msra.mxu0 %v3014
  %4348 = vmatprep.subr.mxu0 %v3019
  %4349 = vmatpush1.msra.mxu0 %v3018
  %4350 = vmatprep.subr.mxu0 %v3023
  %4351 = vmatpush1.msra.mxu0 %v3022
  %4352 = vmatprep.subr.mxu0 %v3027
  %4353 = vmatpush1.msra.mxu0 %v3026
  %4354 = vmatprep.subr.mxu0 %v3031
  %4355 = vmatpush1.msra.mxu0 %v3030
  %4356 = vmatprep.subr.mxu0 %v3035
  %4357 = vmatpush1.msra.mxu0 %v3034
  %4358 = vmatprep.subr.mxu0 %v3039
  %4359 = vmatpush1.msra.mxu0 %v3038
  %4360 = vmatprep.subr.mxu0 %v3043
  %4361 = vmatpush1.msra.mxu0 %v3042
  %4362 = vmatprep.subr.mxu0 %v3047
  %4363 = vmatpush1.msra.mxu0 %v3046
  %4364 = vmatprep.subr.mxu0 %v3051
  %4365 = vmatpush1.msra.mxu0 %v3050
  %4366 = vmatprep.subr.mxu0 %v3055
  %4367 = vmatpush1.msra.mxu0 %v3054
  %4368 = vmatprep.subr.mxu0 %v3059
  %4369 = vmatpush1.msra.mxu0 %v3058
  %4370 = vmatprep.subr.mxu0 0.0
  %4371 = vmatpush1.msra.mxu0 0.0
  %4372 = vmatprep.subr.mxu0 0.0
  %4373 = vmatpush1.msra.mxu0 0.0
  %4374 = vmatprep.subr.mxu0 0.0
  %4375 = vmatpush1.msra.mxu0 0.0
  %4376 = vmatprep.subr.mxu0 0.0
  %4377 = vmatpush1.msra.mxu0 0.0
  %4378 = vmatprep.subr.mxu0 0.0
  %4379 = vmatpush1.msra.mxu0 0.0
  %4380 = vmatprep.subr.mxu0 0.0
  %4381 = vmatpush1.msra.mxu0 0.0
  %4382 = vmatprep.subr.mxu0 0.0
  %4383 = vmatpush1.msra.mxu0 0.0
  %4384 = vmatprep.subr.mxu0 0.0
  %4385 = vmatpush1.msra.mxu0 0.0
  %4386 = vmatprep.subr.mxu0 0.0
  %4387 = vmatpush1.msra.mxu0 0.0
  %4388 = vmatprep.subr.mxu0 0.0
  %4389 = vmatpush1.msra.mxu0 0.0
  %4390 = vmatprep.subr.mxu0 0.0
  %4391 = vmatpush1.msra.mxu0 0.0
  %4392 = vmatprep.subr.mxu0 0.0
  %4393 = vmatpush1.msra.mxu0 0.0
  %4394 = vmatprep.subr.mxu0 0.0
  %4395 = vmatpush1.msra.mxu0 0.0
  %4396 = vmatprep.subr.mxu0 0.0
  %4397 = vmatpush1.msra.mxu0 0.0
  %4398 = vmatprep.subr.mxu0 0.0
  %4399 = vmatpush1.msra.mxu0 0.0
  %4400 = vmatprep.subr.mxu0 0.0
  %4401 = vmatpush1.msra.mxu0 0.0
  %4402 = vmatprep.mubr.f32.mxu0 0.0
  %4403 = vmatmul.mubr.f32.gmra.mrb[0].mxu0 %v4266
  %v4404 = vpop.f32.mrb[0].mxu0
  %v4405 = vadd.f32 0.0, %v4404
  %v4406 = vpop.f32.mrb[0].mxu0
  %v4407 = vadd.f32 0.0, %v4406
  %4408 = vdwg.mxu0
  %v4409 = vadd.f32 %v3486, %v4334
  %v4410 = vadd.f32 %v3488, %v4336
  %v4411 = vadd.f32 %v3753, %v4405
  %v4412 = vadd.f32 %v3755, %v4407
  %v4413 = vxor.u32 %v4409, 2147483648
  %v4414 = vmul.f32 %v4413, 1.442695
  %v4415 = vpow.pop %v4414
  %v4416 = vadd.f32 %v4415, 1.0
  %v4417 = vrcp.pop %v4416
  %v4418 = vmul.f32 1.0, %v4417
  %v4419 = vxor.u32 %v4410, 2147483648
  %v4420 = vmul.f32 %v4419, 1.442695
  %v4421 = vpow.pop %v4420
  %v4422 = vadd.f32 %v4421, 1.0
  %v4423 = vrcp.pop %v4422
  %v4424 = vmul.f32 1.0, %v4423
  %v4425 = vtanh.pop %v4411
  %v4426 = vxor.u32 %v4412, 2147483648
  %v4427 = vmul.f32 %v4426, 1.442695
  %v4428 = vpow.pop %v4427
  %v4429 = vadd.f32 %v4428, 1.0
  %v4430 = vrcp.pop %v4429
  %v4431 = vmul.f32 1.0, %v4430
  %v4432 = vmul.f32 %v4424, %v4264
  %v4433 = vmul.f32 %v4418, %v4425
  %v4434 = vadd.f32 %v4432, %v4433
  %v4435 = vtanh.pop %v4434
  %v4436 = vmul.f32 %v4431, %v4435
  %v4438 = vlaneseq
  %v4439 = vshrl.u32 %v4438, 7
  %v4440 = vsub.s32 0, %v4439
  %v4441 = vrot.slane %v3189, %v4440
  %v4442 = vlaneseq
  %v4443 = vshrl.u32 %v4442, 7
  %v4444 = vsub.s32 1, %v4443
  %v4445 = vrot.slane %v3189, %v4444
  %v4446 = vlaneseq
  %v4447 = vshrl.u32 %v4446, 7
  %v4448 = vsub.s32 2, %v4447
  %v4449 = vrot.slane %v3189, %v4448
  %v4450 = vlaneseq
  %v4451 = vshrl.u32 %v4450, 7
  %v4452 = vsub.s32 3, %v4451
  %v4453 = vrot.slane %v3189, %v4452
  %4458 = vmatprep.subr.mxu0 %v3062
  %4459 = vmatpush1.msra.mxu0 %v3061
  %4460 = vmatprep.subr.mxu0 %v3066
  %4461 = vmatpush1.msra.mxu0 %v3065
  %4462 = vmatprep.subr.mxu0 %v3070
  %4463 = vmatpush1.msra.mxu0 %v3069
  %4464 = vmatprep.subr.mxu0 %v3074
  %4465 = vmatpush1.msra.mxu0 %v3073
  %4466 = vmatprep.subr.mxu0 %v3078
  %4467 = vmatpush1.msra.mxu0 %v3077
  %4468 = vmatprep.subr.mxu0 %v3082
  %4469 = vmatpush1.msra.mxu0 %v3081
  %4470 = vmatprep.subr.mxu0 %v3086
  %4471 = vmatpush1.msra.mxu0 %v3085
  %4472 = vmatprep.subr.mxu0 %v3090
  %4473 = vmatpush1.msra.mxu0 %v3089
  %4474 = vmatprep.subr.mxu0 %v3094
  %4475 = vmatpush1.msra.mxu0 %v3093
  %4476 = vmatprep.subr.mxu0 %v3098
  %4477 = vmatpush1.msra.mxu0 %v3097
  %4478 = vmatprep.subr.mxu0 %v3102
  %4479 = vmatpush1.msra.mxu0 %v3101
  %4480 = vmatprep.subr.mxu0 %v3106
  %4481 = vmatpush1.msra.mxu0 %v3105
  %4482 = vmatprep.subr.mxu0 %v3110
  %4483 = vmatpush1.msra.mxu0 %v3109
  %4484 = vmatprep.subr.mxu0 %v3114
  %4485 = vmatpush1.msra.mxu0 %v3113
  %4486 = vmatprep.subr.mxu0 %v3118
  %4487 = vmatpush1.msra.mxu0 %v3117
  %4488 = vmatprep.subr.mxu0 %v3122
  %4489 = vmatpush1.msra.mxu0 %v3121
  %4490 = vmatprep.subr.mxu0 0.0
  %4491 = vmatpush1.msra.mxu0 0.0
  %4492 = vmatprep.subr.mxu0 0.0
  %4493 = vmatpush1.msra.mxu0 0.0
  %4494 = vmatprep.subr.mxu0 0.0
  %4495 = vmatpush1.msra.mxu0 0.0
  %4496 = vmatprep.subr.mxu0 0.0
  %4497 = vmatpush1.msra.mxu0 0.0
  %4498 = vmatprep.subr.mxu0 0.0
  %4499 = vmatpush1.msra.mxu0 0.0
  %4500 = vmatprep.subr.mxu0 0.0
  %4501 = vmatpush1.msra.mxu0 0.0
  %4502 = vmatprep.subr.mxu0 0.0
  %4503 = vmatpush1.msra.mxu0 0.0
  %4504 = vmatprep.subr.mxu0 0.0
  %4505 = vmatpush1.msra.mxu0 0.0
  %4506 = vmatprep.subr.mxu0 0.0
  %4507 = vmatpush1.msra.mxu0 0.0
  %4508 = vmatprep.subr.mxu0 0.0
  %4509 = vmatpush1.msra.mxu0 0.0
  %4510 = vmatprep.subr.mxu0 0.0
  %4511 = vmatpush1.msra.mxu0 0.0
  %4512 = vmatprep.subr.mxu0 0.0
  %4513 = vmatpush1.msra.mxu0 0.0
  %4514 = vmatprep.subr.mxu0 0.0
  %4515 = vmatpush1.msra.mxu0 0.0
  %4516 = vmatprep.subr.mxu0 0.0
  %4517 = vmatpush1.msra.mxu0 0.0
  %4518 = vmatprep.subr.mxu0 0.0
  %4519 = vmatpush1.msra.mxu0 0.0
  %4520 = vmatprep.subr.mxu0 0.0
  %4521 = vmatpush1.msra.mxu0 0.0
  %4522 = vmatprep.mubr.f32.mxu0 0.0
  %4523 = vmatmul.mubr.f32.gmra.mrb[0].mxu0 %v3926
  %v4524 = vpop.f32.mrb[0].mxu0
  %v4525 = vadd.f32 %v4441, %v4524
  %v4526 = vpop.f32.mrb[0].mxu0
  %v4527 = vadd.f32 %v4445, %v4526
  %4528 = vmatprep.mubr.f32.mxu0 0.0
  %4529 = vmatmul.mubr.f32.gmra.mrb[0].mxu0 %v4096
  %v4530 = vpop.f32.mrb[0].mxu0
  %v4531 = vadd.f32 %v4441, %v4530
  %v4532 = vpop.f32.mrb[0].mxu0
  %v4533 = vadd.f32 %v4445, %v4532
  %4534 = vmatprep.mubr.f32.mxu0 0.0
  %4535 = vmatmul.mubr.f32.gmra.mrb[0].mxu0 %v4266
  %v4536 = vpop.f32.mrb[0].mxu0
  %v4537 = vadd.f32 %v4441, %v4536
  %v4538 = vpop.f32.mrb[0].mxu0
  %v4539 = vadd.f32 %v4445, %v4538
  %4540 = vmatprep.mubr.f32.mxu0 0.0
  %4541 = vmatmul.mubr.f32.gmra.mrb[0].mxu0 %v4436
  %v4542 = vpop.f32.mrb[0].mxu0
  %v4543 = vadd.f32 %v4441, %v4542
  %v4544 = vpop.f32.mrb[0].mxu0
  %v4545 = vadd.f32 %v4445, %v4544
  %4546 = vdwg.mxu0
  %4547 = vmatprep.subr.mxu0 %v3064
  %4548 = vmatpush1.msra.mxu0 %v3063
  %4549 = vmatprep.subr.mxu0 %v3068
  %4550 = vmatpush1.msra.mxu0 %v3067
  %4551 = vmatprep.subr.mxu0 %v3072
  %4552 = vmatpush1.msra.mxu0 %v3071
  %4553 = vmatprep.subr.mxu0 %v3076
  %4554 = vmatpush1.msra.mxu0 %v3075
  %4555 = vmatprep.subr.mxu0 %v3080
  %4556 = vmatpush1.msra.mxu0 %v3079
  %4557 = vmatprep.subr.mxu0 %v3084
  %4558 = vmatpush1.msra.mxu0 %v3083
  %4559 = vmatprep.subr.mxu0 %v3088
  %4560 = vmatpush1.msra.mxu0 %v3087
  %4561 = vmatprep.subr.mxu0 %v3092
  %4562 = vmatpush1.msra.mxu0 %v3091
  %4563 = vmatprep.subr.mxu0 %v3096
  %4564 = vmatpush1.msra.mxu0 %v3095
  %4565 = vmatprep.subr.mxu0 %v3100
  %4566 = vmatpush1.msra.mxu0 %v3099
  %4567 = vmatprep.subr.mxu0 %v3104
  %4568 = vmatpush1.msra.mxu0 %v3103
  %4569 = vmatprep.subr.mxu0 %v3108
  %4570 = vmatpush1.msra.mxu0 %v3107
  %4571 = vmatprep.subr.mxu0 %v3112
  %4572 = vmatpush1.msra.mxu0 %v3111
  %4573 = vmatprep.subr.mxu0 %v3116
  %4574 = vmatpush1.msra.mxu0 %v3115
  %4575 = vmatprep.subr.mxu0 %v3120
  %4576 = vmatpush1.msra.mxu0 %v3119
  %4577 = vmatprep.subr.mxu0 %v3124
  %4578 = vmatpush1.msra.mxu0 %v3123
  %4579 = vmatprep.subr.mxu0 0.0
  %4580 = vmatpush1.msra.mxu0 0.0
  %4581 = vmatprep.subr.mxu0 0.0
  %4582 = vmatpush1.msra.mxu0 0.0
  %4583 = vmatprep.subr.mxu0 0.0
  %4584 = vmatpush1.msra.mxu0 0.0
  %4585 = vmatprep.subr.mxu0 0.0
  %4586 = vmatpush1.msra.mxu0 0.0
  %4587 = vmatprep.subr.mxu0 0.0
  %4588 = vmatpush1.msra.mxu0 0.0
  %4589 = vmatprep.subr.mxu0 0.0
  %4590 = vmatpush1.msra.mxu0 0.0
  %4591 = vmatprep.subr.mxu0 0.0
  %4592 = vmatpush1.msra.mxu0 0.0
  %4593 = vmatprep.subr.mxu0 0.0
  %4594 = vmatpush1.msra.mxu0 0.0
  %4595 = vmatprep.subr.mxu0 0.0
  %4596 = vmatpush1.msra.mxu0 0.0
  %4597 = vmatprep.subr.mxu0 0.0
  %4598 = vmatpush1.msra.mxu0 0.0
  %4599 = vmatprep.subr.mxu0 0.0
  %4600 = vmatpush1.msra.mxu0 0.0
  %4601 = vmatprep.subr.mxu0 0.0
  %4602 = vmatpush1.msra.mxu0 0.0
  %4603 = vmatprep.subr.mxu0 0.0
  %4604 = vmatpush1.msra.mxu0 0.0
  %4605 = vmatprep.subr.mxu0 0.0
  %4606 = vmatpush1.msra.mxu0 0.0
  %4607 = vmatprep.subr.mxu0 0.0
  %4608 = vmatpush1.msra.mxu0 0.0
  %4609 = vmatprep.subr.mxu0 0.0
  %4610 = vmatpush1.msra.mxu0 0.0
  %4611 = vmatprep.mubr.f32.mxu0 0.0
  %4612 = vmatmul.mubr.f32.gmra.mrb[0].mxu0 %v3926
  %v4613 = vpop.f32.mrb[0].mxu0
  %v4614 = vadd.f32 %v4449, %v4613
  %v4615 = vpop.f32.mrb[0].mxu0
  %v4616 = vadd.f32 %v4453, %v4615
  %4617 = vmatprep.mubr.f32.mxu0 0.0
  %4618 = vmatmul.mubr.f32.gmra.mrb[0].mxu0 %v4096
  %v4619 = vpop.f32.mrb[0].mxu0
  %v4620 = vadd.f32 %v4449, %v4619
  %v4621 = vpop.f32.mrb[0].mxu0
  %v4622 = vadd.f32 %v4453, %v4621
  %4623 = vmatprep.mubr.f32.mxu0 0.0
  %4624 = vmatmul.mubr.f32.gmra.mrb[0].mxu0 %v4266
  %v4625 = vpop.f32.mrb[0].mxu0
  %v4626 = vadd.f32 %v4449, %v4625
  %v4627 = vpop.f32.mrb[0].mxu0
  %v4628 = vadd.f32 %v4453, %v4627
  %4629 = vmatprep.mubr.f32.mxu0 0.0
  %4630 = vmatmul.mubr.f32.gmra.mrb[0].mxu0 %v4436
  %v4631 = vpop.f32.mrb[0].mxu0
  %v4632 = vadd.f32 %v4449, %v4631
  %v4633 = vpop.f32.mrb[0].mxu0
  %v4634 = vadd.f32 %v4453, %v4633
  %4635 = vdwg.mxu0
  %4636 = vmatprep.subr.mxu0 %v3126
  %4637 = vmatpush1.msra.mxu0 %v3125
  %4638 = vmatprep.subr.mxu0 %v3130
  %4639 = vmatpush1.msra.mxu0 %v3129
  %4640 = vmatprep.subr.mxu0 %v3134
  %4641 = vmatpush1.msra.mxu0 %v3133
  %4642 = vmatprep.subr.mxu0 %v3138
  %4643 = vmatpush1.msra.mxu0 %v3137
  %4644 = vmatprep.subr.mxu0 %v3142
  %4645 = vmatpush1.msra.mxu0 %v3141
  %4646 = vmatprep.subr.mxu0 %v3146
  %4647 = vmatpush1.msra.mxu0 %v3145
  %4648 = vmatprep.subr.mxu0 %v3150
  %4649 = vmatpush1.msra.mxu0 %v3149
  %4650 = vmatprep.subr.mxu0 %v3154
  %4651 = vmatpush1.msra.mxu0 %v3153
  %4652 = vmatprep.subr.mxu0 %v3158
  %4653 = vmatpush1.msra.mxu0 %v3157
  %4654 = vmatprep.subr.mxu0 %v3162
  %4655 = vmatpush1.msra.mxu0 %v3161
  %4656 = vmatprep.subr.mxu0 %v3166
  %4657 = vmatpush1.msra.mxu0 %v3165
  %4658 = vmatprep.subr.mxu0 %v3170
  %4659 = vmatpush1.msra.mxu0 %v3169
  %4660 = vmatprep.subr.mxu0 %v3174
  %4661 = vmatpush1.msra.mxu0 %v3173
  %4662 = vmatprep.subr.mxu0 %v3178
  %4663 = vmatpush1.msra.mxu0 %v3177
  %4664 = vmatprep.subr.mxu0 %v3182
  %4665 = vmatpush1.msra.mxu0 %v3181
  %4666 = vmatprep.subr.mxu0 %v3186
  %4667 = vmatpush1.msra.mxu0 %v3185
  %4668 = vmatprep.subr.mxu0 0.0
  %4669 = vmatpush1.msra.mxu0 0.0
  %4670 = vmatprep.subr.mxu0 0.0
  %4671 = vmatpush1.msra.mxu0 0.0
  %4672 = vmatprep.subr.mxu0 0.0
  %4673 = vmatpush1.msra.mxu0 0.0
  %4674 = vmatprep.subr.mxu0 0.0
  %4675 = vmatpush1.msra.mxu0 0.0
  %4676 = vmatprep.subr.mxu0 0.0
  %4677 = vmatpush1.msra.mxu0 0.0
  %4678 = vmatprep.subr.mxu0 0.0
  %4679 = vmatpush1.msra.mxu0 0.0
  %4680 = vmatprep.subr.mxu0 0.0
  %4681 = vmatpush1.msra.mxu0 0.0
  %4682 = vmatprep.subr.mxu0 0.0
  %4683 = vmatpush1.msra.mxu0 0.0
  %4684 = vmatprep.subr.mxu0 0.0
  %4685 = vmatpush1.msra.mxu0 0.0
  %4686 = vmatprep.subr.mxu0 0.0
  %4687 = vmatpush1.msra.mxu0 0.0
  %4688 = vmatprep.subr.mxu0 0.0
  %4689 = vmatpush1.msra.mxu0 0.0
  %4690 = vmatprep.subr.mxu0 0.0
  %4691 = vmatpush1.msra.mxu0 0.0
  %4692 = vmatprep.subr.mxu0 0.0
  %4693 = vmatpush1.msra.mxu0 0.0
  %4694 = vmatprep.subr.mxu0 0.0
  %4695 = vmatpush1.msra.mxu0 0.0
  %4696 = vmatprep.subr.mxu0 0.0
  %4697 = vmatpush1.msra.mxu0 0.0
  %4698 = vmatprep.subr.mxu0 0.0
  %4699 = vmatpush1.msra.mxu0 0.0
  %4700 = vmatprep.mubr.f32.mxu0 0.0
  %4701 = vmatmul.mubr.f32.gmra.mrb[0].mxu0 %v2687
  %v4702 = vpop.f32.mrb[0].mxu0
  %v4703 = vadd.f32 0.0, %v4702
  %v4704 = vpop.f32.mrb[0].mxu0
  %v4705 = vadd.f32 0.0, %v4704
  %4706 = vdwg.mxu0
  %4707 = vmatprep.subr.mxu0 %v3128
  %4708 = vmatpush1.msra.mxu0 %v3127
  %4709 = vmatprep.subr.mxu0 %v3132
  %4710 = vmatpush1.msra.mxu0 %v3131
  %4711 = vmatprep.subr.mxu0 %v3136
  %4712 = vmatpush1.msra.mxu0 %v3135
  %4713 = vmatprep.subr.mxu0 %v3140
  %4714 = vmatpush1.msra.mxu0 %v3139
  %4715 = vmatprep.subr.mxu0 %v3144
  %4716 = vmatpush1.msra.mxu0 %v3143
  %4717 = vmatprep.subr.mxu0 %v3148
  %4718 = vmatpush1.msra.mxu0 %v3147
  %4719 = vmatprep.subr.mxu0 %v3152
  %4720 = vmatpush1.msra.mxu0 %v3151
  %4721 = vmatprep.subr.mxu0 %v3156
  %4722 = vmatpush1.msra.mxu0 %v3155
  %4723 = vmatprep.subr.mxu0 %v3160
  %4724 = vmatpush1.msra.mxu0 %v3159
  %4725 = vmatprep.subr.mxu0 %v3164
  %4726 = vmatpush1.msra.mxu0 %v3163
  %4727 = vmatprep.subr.mxu0 %v3168
  %4728 = vmatpush1.msra.mxu0 %v3167
  %4729 = vmatprep.subr.mxu0 %v3172
  %4730 = vmatpush1.msra.mxu0 %v3171
  %4731 = vmatprep.subr.mxu0 %v3176
  %4732 = vmatpush1.msra.mxu0 %v3175
  %4733 = vmatprep.subr.mxu0 %v3180
  %4734 = vmatpush1.msra.mxu0 %v3179
  %4735 = vmatprep.subr.mxu0 %v3184
  %4736 = vmatpush1.msra.mxu0 %v3183
  %4737 = vmatprep.subr.mxu0 %v3188
  %4738 = vmatpush1.msra.mxu0 %v3187
  %4739 = vmatprep.subr.mxu0 0.0
  %4740 = vmatpush1.msra.mxu0 0.0
  %4741 = vmatprep.subr.mxu0 0.0
  %4742 = vmatpush1.msra.mxu0 0.0
  %4743 = vmatprep.subr.mxu0 0.0
  %4744 = vmatpush1.msra.mxu0 0.0
  %4745 = vmatprep.subr.mxu0 0.0
  %4746 = vmatpush1.msra.mxu0 0.0
  %4747 = vmatprep.subr.mxu0 0.0
  %4748 = vmatpush1.msra.mxu0 0.0
  %4749 = vmatprep.subr.mxu0 0.0
  %4750 = vmatpush1.msra.mxu0 0.0
  %4751 = vmatprep.subr.mxu0 0.0
  %4752 = vmatpush1.msra.mxu0 0.0
  %4753 = vmatprep.subr.mxu0 0.0
  %4754 = vmatpush1.msra.mxu0 0.0
  %4755 = vmatprep.subr.mxu0 0.0
  %4756 = vmatpush1.msra.mxu0 0.0
  %4757 = vmatprep.subr.mxu0 0.0
  %4758 = vmatpush1.msra.mxu0 0.0
  %4759 = vmatprep.subr.mxu0 0.0
  %4760 = vmatpush1.msra.mxu0 0.0
  %4761 = vmatprep.subr.mxu0 0.0
  %4762 = vmatpush1.msra.mxu0 0.0
  %4763 = vmatprep.subr.mxu0 0.0
  %4764 = vmatpush1.msra.mxu0 0.0
  %4765 = vmatprep.subr.mxu0 0.0
  %4766 = vmatpush1.msra.mxu0 0.0
  %4767 = vmatprep.subr.mxu0 0.0
  %4768 = vmatpush1.msra.mxu0 0.0
  %4769 = vmatprep.subr.mxu0 0.0
  %4770 = vmatpush1.msra.mxu0 0.0
  %4771 = vmatprep.mubr.f32.mxu0 0.0
  %4772 = vmatmul.mubr.f32.gmra.mrb[0].mxu0 %v2687
  %v4773 = vpop.f32.mrb[0].mxu0
  %v4774 = vadd.f32 0.0, %v4773
  %v4775 = vpop.f32.mrb[0].mxu0
  %v4776 = vadd.f32 0.0, %v4775
  %4777 = vdwg.mxu0
  %v4778 = vadd.f32 %v4525, %v4703
  %v4779 = vadd.f32 %v4527, %v4705
  %v4780 = vadd.f32 %v4614, %v4774
  %v4781 = vadd.f32 %v4616, %v4776
  %v4782 = vxor.u32 %v4778, 2147483648
  %v4783 = vmul.f32 %v4782, 1.442695
  %v4784 = vpow.pop %v4783
  %v4785 = vadd.f32 %v4784, 1.0
  %v4786 = vrcp.pop %v4785
  %v4787 = vmul.f32 1.0, %v4786
  %v4788 = vxor.u32 %v4779, 2147483648
  %v4789 = vmul.f32 %v4788, 1.442695
  %v4790 = vpow.pop %v4789
  %v4791 = vadd.f32 %v4790, 1.0
  %v4792 = vrcp.pop %v4791
  %v4793 = vmul.f32 1.0, %v4792
  %v4794 = vtanh.pop %v4780
  %v4795 = vxor.u32 %v4781, 2147483648
  %v4796 = vmul.f32 %v4795, 1.442695
  %v4797 = vpow.pop %v4796
  %v4798 = vadd.f32 %v4797, 1.0
  %v4799 = vrcp.pop %v4798
  %v4800 = vmul.f32 1.0, %v4799
  %v4801 = vmul.f32 %v4793, %v2685
  %v4802 = vmul.f32 %v4787, %v4794
  %v4803 = vadd.f32 %v4801, %v4802
  %v4804 = vtanh.pop %v4803
  %v4805 = vmul.f32 %v4800, %v4804
  %4806 = vmatprep.subr.mxu0 %v3126
  %4807 = vmatpush1.msra.mxu0 %v3125
  %4808 = vmatprep.subr.mxu0 %v3130
  %4809 = vmatpush1.msra.mxu0 %v3129
  %4810 = vmatprep.subr.mxu0 %v3134
  %4811 = vmatpush1.msra.mxu0 %v3133
  %4812 = vmatprep.subr.mxu0 %v3138
  %4813 = vmatpush1.msra.mxu0 %v3137
  %4814 = vmatprep.subr.mxu0 %v3142
  %4815 = vmatpush1.msra.mxu0 %v3141
  %4816 = vmatprep.subr.mxu0 %v3146
  %4817 = vmatpush1.msra.mxu0 %v3145
  %4818 = vmatprep.subr.mxu0 %v3150
  %4819 = vmatpush1.msra.mxu0 %v3149
  %4820 = vmatprep.subr.mxu0 %v3154
  %4821 = vmatpush1.msra.mxu0 %v3153
  %4822 = vmatprep.subr.mxu0 %v3158
  %4823 = vmatpush1.msra.mxu0 %v3157
  %4824 = vmatprep.subr.mxu0 %v3162
  %4825 = vmatpush1.msra.mxu0 %v3161
  %4826 = vmatprep.subr.mxu0 %v3166
  %4827 = vmatpush1.msra.mxu0 %v3165
  %4828 = vmatprep.subr.mxu0 %v3170
  %4829 = vmatpush1.msra.mxu0 %v3169
  %4830 = vmatprep.subr.mxu0 %v3174
  %4831 = vmatpush1.msra.mxu0 %v3173
  %4832 = vmatprep.subr.mxu0 %v3178
  %4833 = vmatpush1.msra.mxu0 %v3177
  %4834 = vmatprep.subr.mxu0 %v3182
  %4835 = vmatpush1.msra.mxu0 %v3181
  %4836 = vmatprep.subr.mxu0 %v3186
  %4837 = vmatpush1.msra.mxu0 %v3185
  %4838 = vmatprep.subr.mxu0 0.0
  %4839 = vmatpush1.msra.mxu0 0.0
  %4840 = vmatprep.subr.mxu0 0.0
  %4841 = vmatpush1.msra.mxu0 0.0
  %4842 = vmatprep.subr.mxu0 0.0
  %4843 = vmatpush1.msra.mxu0 0.0
  %4844 = vmatprep.subr.mxu0 0.0
  %4845 = vmatpush1.msra.mxu0 0.0
  %4846 = vmatprep.subr.mxu0 0.0
  %4847 = vmatpush1.msra.mxu0 0.0
  %4848 = vmatprep.subr.mxu0 0.0
  %4849 = vmatpush1.msra.mxu0 0.0
  %4850 = vmatprep.subr.mxu0 0.0
  %4851 = vmatpush1.msra.mxu0 0.0
  %4852 = vmatprep.subr.mxu0 0.0
  %4853 = vmatpush1.msra.mxu0 0.0
  %4854 = vmatprep.subr.mxu0 0.0
  %4855 = vmatpush1.msra.mxu0 0.0
  %4856 = vmatprep.subr.mxu0 0.0
  %4857 = vmatpush1.msra.mxu0 0.0
  %4858 = vmatprep.subr.mxu0 0.0
  %4859 = vmatpush1.msra.mxu0 0.0
  %4860 = vmatprep.subr.mxu0 0.0
  %4861 = vmatpush1.msra.mxu0 0.0
  %4862 = vmatprep.subr.mxu0 0.0
  %4863 = vmatpush1.msra.mxu0 0.0
  %4864 = vmatprep.subr.mxu0 0.0
  %4865 = vmatpush1.msra.mxu0 0.0
  %4866 = vmatprep.subr.mxu0 0.0
  %4867 = vmatpush1.msra.mxu0 0.0
  %4868 = vmatprep.subr.mxu0 0.0
  %4869 = vmatpush1.msra.mxu0 0.0
  %4870 = vmatprep.mubr.f32.mxu0 0.0
  %4871 = vmatmul.mubr.f32.gmra.mrb[0].mxu0 %v4805
  %v4872 = vpop.f32.mrb[0].mxu0
  %v4873 = vadd.f32 0.0, %v4872
  %v4874 = vpop.f32.mrb[0].mxu0
  %v4875 = vadd.f32 0.0, %v4874
  %4876 = vdwg.mxu0
  %4877 = vmatprep.subr.mxu0 %v3128
  %4878 = vmatpush1.msra.mxu0 %v3127
  %4879 = vmatprep.subr.mxu0 %v3132
  %4880 = vmatpush1.msra.mxu0 %v3131
  %4881 = vmatprep.subr.mxu0 %v3136
  %4882 = vmatpush1.msra.mxu0 %v3135
  %4883 = vmatprep.subr.mxu0 %v3140
  %4884 = vmatpush1.msra.mxu0 %v3139
  %4885 = vmatprep.subr.mxu0 %v3144
  %4886 = vmatpush1.msra.mxu0 %v3143
  %4887 = vmatprep.subr.mxu0 %v3148
  %4888 = vmatpush1.msra.mxu0 %v3147
  %4889 = vmatprep.subr.mxu0 %v3152
  %4890 = vmatpush1.msra.mxu0 %v3151
  %4891 = vmatprep.subr.mxu0 %v3156
  %4892 = vmatpush1.msra.mxu0 %v3155
  %4893 = vmatprep.subr.mxu0 %v3160
  %4894 = vmatpush1.msra.mxu0 %v3159
  %4895 = vmatprep.subr.mxu0 %v3164
  %4896 = vmatpush1.msra.mxu0 %v3163
  %4897 = vmatprep.subr.mxu0 %v3168
  %4898 = vmatpush1.msra.mxu0 %v3167
  %4899 = vmatprep.subr.mxu0 %v3172
  %4900 = vmatpush1.msra.mxu0 %v3171
  %4901 = vmatprep.subr.mxu0 %v3176
  %4902 = vmatpush1.msra.mxu0 %v3175
  %4903 = vmatprep.subr.mxu0 %v3180
  %4904 = vmatpush1.msra.mxu0 %v3179
  %4905 = vmatprep.subr.mxu0 %v3184
  %4906 = vmatpush1.msra.mxu0 %v3183
  %4907 = vmatprep.subr.mxu0 %v3188
  %4908 = vmatpush1.msra.mxu0 %v3187
  %4909 = vmatprep.subr.mxu0 0.0
  %4910 = vmatpush1.msra.mxu0 0.0
  %4911 = vmatprep.subr.mxu0 0.0
  %4912 = vmatpush1.msra.mxu0 0.0
  %4913 = vmatprep.subr.mxu0 0.0
  %4914 = vmatpush1.msra.mxu0 0.0
  %4915 = vmatprep.subr.mxu0 0.0
  %4916 = vmatpush1.msra.mxu0 0.0
  %4917 = vmatprep.subr.mxu0 0.0
  %4918 = vmatpush1.msra.mxu0 0.0
  %4919 = vmatprep.subr.mxu0 0.0
  %4920 = vmatpush1.msra.mxu0 0.0
  %4921 = vmatprep.subr.mxu0 0.0
  %4922 = vmatpush1.msra.mxu0 0.0
  %4923 = vmatprep.subr.mxu0 0.0
  %4924 = vmatpush1.msra.mxu0 0.0
  %4925 = vmatprep.subr.mxu0 0.0
  %4926 = vmatpush1.msra.mxu0 0.0
  %4927 = vmatprep.subr.mxu0 0.0
  %4928 = vmatpush1.msra.mxu0 0.0
  %4929 = vmatprep.subr.mxu0 0.0
  %4930 = vmatpush1.msra.mxu0 0.0
  %4931 = vmatprep.subr.mxu0 0.0
  %4932 = vmatpush1.msra.mxu0 0.0
  %4933 = vmatprep.subr.mxu0 0.0
  %4934 = vmatpush1.msra.mxu0 0.0
  %4935 = vmatprep.subr.mxu0 0.0
  %4936 = vmatpush1.msra.mxu0 0.0
  %4937 = vmatprep.subr.mxu0 0.0
  %4938 = vmatpush1.msra.mxu0 0.0
  %4939 = vmatprep.subr.mxu0 0.0
  %4940 = vmatpush1.msra.mxu0 0.0
  %4941 = vmatprep.mubr.f32.mxu0 0.0
  %4942 = vmatmul.mubr.f32.gmra.mrb[0].mxu0 %v4805
  %v4943 = vpop.f32.mrb[0].mxu0
  %v4944 = vadd.f32 0.0, %v4943
  %v4945 = vpop.f32.mrb[0].mxu0
  %v4946 = vadd.f32 0.0, %v4945
  %4947 = vdwg.mxu0
  %v4948 = vadd.f32 %v4531, %v4873
  %v4949 = vadd.f32 %v4533, %v4875
  %v4950 = vadd.f32 %v4620, %v4944
  %v4951 = vadd.f32 %v4622, %v4946
  %v4952 = vxor.u32 %v4948, 2147483648
  %v4953 = vmul.f32 %v4952, 1.442695
  %v4954 = vpow.pop %v4953
  %v4955 = vadd.f32 %v4954, 1.0
  %v4956 = vrcp.pop %v4955
  %v4957 = vmul.f32 1.0, %v4956
  %v4958 = vxor.u32 %v4949, 2147483648
  %v4959 = vmul.f32 %v4958, 1.442695
  %v4960 = vpow.pop %v4959
  %v4961 = vadd.f32 %v4960, 1.0
  %v4962 = vrcp.pop %v4961
  %v4963 = vmul.f32 1.0, %v4962
  %v4964 = vtanh.pop %v4950
  %v4965 = vxor.u32 %v4951, 2147483648
  %v4966 = vmul.f32 %v4965, 1.442695
  %v4967 = vpow.pop %v4966
  %v4968 = vadd.f32 %v4967, 1.0
  %v4969 = vrcp.pop %v4968
  %v4970 = vmul.f32 1.0, %v4969
  %v4971 = vmul.f32 %v4963, %v4803
  %v4972 = vmul.f32 %v4957, %v4964
  %v4973 = vadd.f32 %v4971, %v4972
  %v4974 = vtanh.pop %v4973
  %v4975 = vmul.f32 %v4970, %v4974
  %4976 = vmatprep.subr.mxu0 %v3126
  %4977 = vmatpush1.msra.mxu0 %v3125
  %4978 = vmatprep.subr.mxu0 %v3130
  %4979 = vmatpush1.msra.mxu0 %v3129
  %4980 = vmatprep.subr.mxu0 %v3134
  %4981 = vmatpush1.msra.mxu0 %v3133
  %4982 = vmatprep.subr.mxu0 %v3138
  %4983 = vmatpush1.msra.mxu0 %v3137
  %4984 = vmatprep.subr.mxu0 %v3142
  %4985 = vmatpush1.msra.mxu0 %v3141
  %4986 = vmatprep.subr.mxu0 %v3146
  %4987 = vmatpush1.msra.mxu0 %v3145
  %4988 = vmatprep.subr.mxu0 %v3150
  %4989 = vmatpush1.msra.mxu0 %v3149
  %4990 = vmatprep.subr.mxu0 %v3154
  %4991 = vmatpush1.msra.mxu0 %v3153
  %4992 = vmatprep.subr.mxu0 %v3158
  %4993 = vmatpush1.msra.mxu0 %v3157
  %4994 = vmatprep.subr.mxu0 %v3162
  %4995 = vmatpush1.msra.mxu0 %v3161
  %4996 = vmatprep.subr.mxu0 %v3166
  %4997 = vmatpush1.msra.mxu0 %v3165
  %4998 = vmatprep.subr.mxu0 %v3170
  %4999 = vmatpush1.msra.mxu0 %v3169
  %5000 = vmatprep.subr.mxu0 %v3174
  %5001 = vmatpush1.msra.mxu0 %v3173
  %5002 = vmatprep.subr.mxu0 %v3178
  %5003 = vmatpush1.msra.mxu0 %v3177
  %5004 = vmatprep.subr.mxu0 %v3182
  %5005 = vmatpush1.msra.mxu0 %v3181
  %5006 = vmatprep.subr.mxu0 %v3186
  %5007 = vmatpush1.msra.mxu0 %v3185
  %5008 = vmatprep.subr.mxu0 0.0
  %5009 = vmatpush1.msra.mxu0 0.0
  %5010 = vmatprep.subr.mxu0 0.0
  %5011 = vmatpush1.msra.mxu0 0.0
  %5012 = vmatprep.subr.mxu0 0.0
  %5013 = vmatpush1.msra.mxu0 0.0
  %5014 = vmatprep.subr.mxu0 0.0
  %5015 = vmatpush1.msra.mxu0 0.0
  %5016 = vmatprep.subr.mxu0 0.0
  %5017 = vmatpush1.msra.mxu0 0.0
  %5018 = vmatprep.subr.mxu0 0.0
  %5019 = vmatpush1.msra.mxu0 0.0
  %5020 = vmatprep.subr.mxu0 0.0
  %5021 = vmatpush1.msra.mxu0 0.0
  %5022 = vmatprep.subr.mxu0 0.0
  %5023 = vmatpush1.msra.mxu0 0.0
  %5024 = vmatprep.subr.mxu0 0.0
  %5025 = vmatpush1.msra.mxu0 0.0
  %5026 = vmatprep.subr.mxu0 0.0
  %5027 = vmatpush1.msra.mxu0 0.0
  %5028 = vmatprep.subr.mxu0 0.0
  %5029 = vmatpush1.msra.mxu0 0.0
  %5030 = vmatprep.subr.mxu0 0.0
  %5031 = vmatpush1.msra.mxu0 0.0
  %5032 = vmatprep.subr.mxu0 0.0
  %5033 = vmatpush1.msra.mxu0 0.0
  %5034 = vmatprep.subr.mxu0 0.0
  %5035 = vmatpush1.msra.mxu0 0.0
  %5036 = vmatprep.subr.mxu0 0.0
  %5037 = vmatpush1.msra.mxu0 0.0
  %5038 = vmatprep.subr.mxu0 0.0
  %5039 = vmatpush1.msra.mxu0 0.0
  %5040 = vmatprep.mubr.f32.mxu0 0.0
  %5041 = vmatmul.mubr.f32.gmra.mrb[0].mxu0 %v4975
  %v5042 = vpop.f32.mrb[0].mxu0
  %v5043 = vadd.f32 0.0, %v5042
  %v5044 = vpop.f32.mrb[0].mxu0
  %v5045 = vadd.f32 0.0, %v5044
  %5046 = vdwg.mxu0
  %5047 = vmatprep.subr.mxu0 %v3128
  %5048 = vmatpush1.msra.mxu0 %v3127
  %5049 = vmatprep.subr.mxu0 %v3132
  %5050 = vmatpush1.msra.mxu0 %v3131
  %5051 = vmatprep.subr.mxu0 %v3136
  %5052 = vmatpush1.msra.mxu0 %v3135
  %5053 = vmatprep.subr.mxu0 %v3140
  %5054 = vmatpush1.msra.mxu0 %v3139
  %5055 = vmatprep.subr.mxu0 %v3144
  %5056 = vmatpush1.msra.mxu0 %v3143
  %5057 = vmatprep.subr.mxu0 %v3148
  %5058 = vmatpush1.msra.mxu0 %v3147
  %5059 = vmatprep.subr.mxu0 %v3152
  %5060 = vmatpush1.msra.mxu0 %v3151
  %5061 = vmatprep.subr.mxu0 %v3156
  %5062 = vmatpush1.msra.mxu0 %v3155
  %5063 = vmatprep.subr.mxu0 %v3160
  %5064 = vmatpush1.msra.mxu0 %v3159
  %5065 = vmatprep.subr.mxu0 %v3164
  %5066 = vmatpush1.msra.mxu0 %v3163
  %5067 = vmatprep.subr.mxu0 %v3168
  %5068 = vmatpush1.msra.mxu0 %v3167
  %5069 = vmatprep.subr.mxu0 %v3172
  %5070 = vmatpush1.msra.mxu0 %v3171
  %5071 = vmatprep.subr.mxu0 %v3176
  %5072 = vmatpush1.msra.mxu0 %v3175
  %5073 = vmatprep.subr.mxu0 %v3180
  %5074 = vmatpush1.msra.mxu0 %v3179
  %5075 = vmatprep.subr.mxu0 %v3184
  %5076 = vmatpush1.msra.mxu0 %v3183
  %5077 = vmatprep.subr.mxu0 %v3188
  %5078 = vmatpush1.msra.mxu0 %v3187
  %5079 = vmatprep.subr.mxu0 0.0
  %5080 = vmatpush1.msra.mxu0 0.0
  %5081 = vmatprep.subr.mxu0 0.0
  %5082 = vmatpush1.msra.mxu0 0.0
  %5083 = vmatprep.subr.mxu0 0.0
  %5084 = vmatpush1.msra.mxu0 0.0
  %5085 = vmatprep.subr.mxu0 0.0
  %5086 = vmatpush1.msra.mxu0 0.0
  %5087 = vmatprep.subr.mxu0 0.0
  %5088 = vmatpush1.msra.mxu0 0.0
  %5089 = vmatprep.subr.mxu0 0.0
  %5090 = vmatpush1.msra.mxu0 0.0
  %5091 = vmatprep.subr.mxu0 0.0
  %5092 = vmatpush1.msra.mxu0 0.0
  %5093 = vmatprep.subr.mxu0 0.0
  %5094 = vmatpush1.msra.mxu0 0.0
  %5095 = vmatprep.subr.mxu0 0.0
  %5096 = vmatpush1.msra.mxu0 0.0
  %5097 = vmatprep.subr.mxu0 0.0
  %5098 = vmatpush1.msra.mxu0 0.0
  %5099 = vmatprep.subr.mxu0 0.0
  %5100 = vmatpush1.msra.mxu0 0.0
  %5101 = vmatprep.subr.mxu0 0.0
  %5102 = vmatpush1.msra.mxu0 0.0
  %5103 = vmatprep.subr.mxu0 0.0
  %5104 = vmatpush1.msra.mxu0 0.0
  %5105 = vmatprep.subr.mxu0 0.0
  %5106 = vmatpush1.msra.mxu0 0.0
  %5107 = vmatprep.subr.mxu0 0.0
  %5108 = vmatpush1.msra.mxu0 0.0
  %5109 = vmatprep.subr.mxu0 0.0
  %5110 = vmatpush1.msra.mxu0 0.0
  %5111 = vmatprep.mubr.f32.mxu0 0.0
  %5112 = vmatmul.mubr.f32.gmra.mrb[0].mxu0 %v4975
  %v5113 = vpop.f32.mrb[0].mxu0
  %v5114 = vadd.f32 0.0, %v5113
  %v5115 = vpop.f32.mrb[0].mxu0
  %v5116 = vadd.f32 0.0, %v5115
  %5117 = vdwg.mxu0
  %v5118 = vadd.f32 %v4537, %v5043
  %v5119 = vadd.f32 %v4539, %v5045
  %v5120 = vadd.f32 %v4626, %v5114
  %v5121 = vadd.f32 %v4628, %v5116
  %v5122 = vxor.u32 %v5118, 2147483648
  %v5123 = vmul.f32 %v5122, 1.442695
  %v5124 = vpow.pop %v5123
  %v5125 = vadd.f32 %v5124, 1.0
  %v5126 = vrcp.pop %v5125
  %v5127 = vmul.f32 1.0, %v5126
  %v5128 = vxor.u32 %v5119, 2147483648
  %v5129 = vmul.f32 %v5128, 1.442695
  %v5130 = vpow.pop %v5129
  %v5131 = vadd.f32 %v5130, 1.0
  %v5132 = vrcp.pop %v5131
  %v5133 = vmul.f32 1.0, %v5132
  %v5134 = vtanh.pop %v5120
  %v5135 = vxor.u32 %v5121, 2147483648
  %v5136 = vmul.f32 %v5135, 1.442695
  %v5137 = vpow.pop %v5136
  %v5138 = vadd.f32 %v5137, 1.0
  %v5139 = vrcp.pop %v5138
  %v5140 = vmul.f32 1.0, %v5139
  %v5141 = vmul.f32 %v5133, %v4973
  %v5142 = vmul.f32 %v5127, %v5134
  %v5143 = vadd.f32 %v5141, %v5142
  %v5144 = vtanh.pop %v5143
  %v5145 = vmul.f32 %v5140, %v5144
  %5146 = vmatprep.subr.mxu0 %v3126
  %5147 = vmatpush1.msra.mxu0 %v3125
  %5148 = vmatprep.subr.mxu0 %v3130
  %5149 = vmatpush1.msra.mxu0 %v3129
  %5150 = vmatprep.subr.mxu0 %v3134
  %5151 = vmatpush1.msra.mxu0 %v3133
  %5152 = vmatprep.subr.mxu0 %v3138
  %5153 = vmatpush1.msra.mxu0 %v3137
  %5154 = vmatprep.subr.mxu0 %v3142
  %5155 = vmatpush1.msra.mxu0 %v3141
  %5156 = vmatprep.subr.mxu0 %v3146
  %5157 = vmatpush1.msra.mxu0 %v3145
  %5158 = vmatprep.subr.mxu0 %v3150
  %5159 = vmatpush1.msra.mxu0 %v3149
  %5160 = vmatprep.subr.mxu0 %v3154
  %5161 = vmatpush1.msra.mxu0 %v3153
  %5162 = vmatprep.subr.mxu0 %v3158
  %5163 = vmatpush1.msra.mxu0 %v3157
  %5164 = vmatprep.subr.mxu0 %v3162
  %5165 = vmatpush1.msra.mxu0 %v3161
  %5166 = vmatprep.subr.mxu0 %v3166
  %5167 = vmatpush1.msra.mxu0 %v3165
  %5168 = vmatprep.subr.mxu0 %v3170
  %5169 = vmatpush1.msra.mxu0 %v3169
  %5170 = vmatprep.subr.mxu0 %v3174
  %5171 = vmatpush1.msra.mxu0 %v3173
  %5172 = vmatprep.subr.mxu0 %v3178
  %5173 = vmatpush1.msra.mxu0 %v3177
  %5174 = vmatprep.subr.mxu0 %v3182
  %5175 = vmatpush1.msra.mxu0 %v3181
  %5176 = vmatprep.subr.mxu0 %v3186
  %5177 = vmatpush1.msra.mxu0 %v3185
  %5178 = vmatprep.subr.mxu0 0.0
  %5179 = vmatpush1.msra.mxu0 0.0
  %5180 = vmatprep.subr.mxu0 0.0
  %5181 = vmatpush1.msra.mxu0 0.0
  %5182 = vmatprep.subr.mxu0 0.0
  %5183 = vmatpush1.msra.mxu0 0.0
  %5184 = vmatprep.subr.mxu0 0.0
  %5185 = vmatpush1.msra.mxu0 0.0
  %5186 = vmatprep.subr.mxu0 0.0
  %5187 = vmatpush1.msra.mxu0 0.0
  %5188 = vmatprep.subr.mxu0 0.0
  %5189 = vmatpush1.msra.mxu0 0.0
  %5190 = vmatprep.subr.mxu0 0.0
  %5191 = vmatpush1.msra.mxu0 0.0
  %5192 = vmatprep.subr.mxu0 0.0
  %5193 = vmatpush1.msra.mxu0 0.0
  %5194 = vmatprep.subr.mxu0 0.0
  %5195 = vmatpush1.msra.mxu0 0.0
  %5196 = vmatprep.subr.mxu0 0.0
  %5197 = vmatpush1.msra.mxu0 0.0
  %5198 = vmatprep.subr.mxu0 0.0
  %5199 = vmatpush1.msra.mxu0 0.0
  %5200 = vmatprep.subr.mxu0 0.0
  %5201 = vmatpush1.msra.mxu0 0.0
  %5202 = vmatprep.subr.mxu0 0.0
  %5203 = vmatpush1.msra.mxu0 0.0
  %5204 = vmatprep.subr.mxu0 0.0
  %5205 = vmatpush1.msra.mxu0 0.0
  %5206 = vmatprep.subr.mxu0 0.0
  %5207 = vmatpush1.msra.mxu0 0.0
  %5208 = vmatprep.subr.mxu0 0.0
  %5209 = vmatpush1.msra.mxu0 0.0
  %5210 = vmatprep.mubr.f32.mxu0 0.0
  %5211 = vmatmul.mubr.f32.gmra.mrb[0].mxu0 %v5145
  %v5212 = vpop.f32.mrb[0].mxu0
  %v5213 = vadd.f32 0.0, %v5212
  %v5214 = vpop.f32.mrb[0].mxu0
  %v5215 = vadd.f32 0.0, %v5214
  %5216 = vdwg.mxu0
  %5217 = vmatprep.subr.mxu0 %v3128
  %5218 = vmatpush1.msra.mxu0 %v3127
  %5219 = vmatprep.subr.mxu0 %v3132
  %5220 = vmatpush1.msra.mxu0 %v3131
  %5221 = vmatprep.subr.mxu0 %v3136
  %5222 = vmatpush1.msra.mxu0 %v3135
  %5223 = vmatprep.subr.mxu0 %v3140
  %5224 = vmatpush1.msra.mxu0 %v3139
  %5225 = vmatprep.subr.mxu0 %v3144
  %5226 = vmatpush1.msra.mxu0 %v3143
  %5227 = vmatprep.subr.mxu0 %v3148
  %5228 = vmatpush1.msra.mxu0 %v3147
  %5229 = vmatprep.subr.mxu0 %v3152
  %5230 = vmatpush1.msra.mxu0 %v3151
  %5231 = vmatprep.subr.mxu0 %v3156
  %5232 = vmatpush1.msra.mxu0 %v3155
  %5233 = vmatprep.subr.mxu0 %v3160
  %5234 = vmatpush1.msra.mxu0 %v3159
  %5235 = vmatprep.subr.mxu0 %v3164
  %5236 = vmatpush1.msra.mxu0 %v3163
  %5237 = vmatprep.subr.mxu0 %v3168
  %5238 = vmatpush1.msra.mxu0 %v3167
  %5239 = vmatprep.subr.mxu0 %v3172
  %5240 = vmatpush1.msra.mxu0 %v3171
  %5241 = vmatprep.subr.mxu0 %v3176
  %5242 = vmatpush1.msra.mxu0 %v3175
  %5243 = vmatprep.subr.mxu0 %v3180
  %5244 = vmatpush1.msra.mxu0 %v3179
  %5245 = vmatprep.subr.mxu0 %v3184
  %5246 = vmatpush1.msra.mxu0 %v3183
  %5247 = vmatprep.subr.mxu0 %v3188
  %5248 = vmatpush1.msra.mxu0 %v3187
  %5249 = vmatprep.subr.mxu0 0.0
  %5250 = vmatpush1.msra.mxu0 0.0
  %5251 = vmatprep.subr.mxu0 0.0
  %5252 = vmatpush1.msra.mxu0 0.0
  %5253 = vmatprep.subr.mxu0 0.0
  %5254 = vmatpush1.msra.mxu0 0.0
  %5255 = vmatprep.subr.mxu0 0.0
  %5256 = vmatpush1.msra.mxu0 0.0
  %5257 = vmatprep.subr.mxu0 0.0
  %5258 = vmatpush1.msra.mxu0 0.0
  %5259 = vmatprep.subr.mxu0 0.0
  %5260 = vmatpush1.msra.mxu0 0.0
  %5261 = vmatprep.subr.mxu0 0.0
  %5262 = vmatpush1.msra.mxu0 0.0
  %5263 = vmatprep.subr.mxu0 0.0
  %5264 = vmatpush1.msra.mxu0 0.0
  %5265 = vmatprep.subr.mxu0 0.0
  %5266 = vmatpush1.msra.mxu0 0.0
  %5267 = vmatprep.subr.mxu0 0.0
  %5268 = vmatpush1.msra.mxu0 0.0
  %5269 = vmatprep.subr.mxu0 0.0
  %5270 = vmatpush1.msra.mxu0 0.0
  %5271 = vmatprep.subr.mxu0 0.0
  %5272 = vmatpush1.msra.mxu0 0.0
  %5273 = vmatprep.subr.mxu0 0.0
  %5274 = vmatpush1.msra.mxu0 0.0
  %5275 = vmatprep.subr.mxu0 0.0
  %5276 = vmatpush1.msra.mxu0 0.0
  %5277 = vmatprep.subr.mxu0 0.0
  %5278 = vmatpush1.msra.mxu0 0.0
  %5279 = vmatprep.subr.mxu0 0.0
  %5280 = vmatpush1.msra.mxu0 0.0
  %5281 = vmatprep.mubr.f32.mxu0 0.0
  %5282 = vmatmul.mubr.f32.gmra.mrb[0].mxu0 %v5145
  %v5283 = vpop.f32.mrb[0].mxu0
  %v5284 = vadd.f32 0.0, %v5283
  %v5285 = vpop.f32.mrb[0].mxu0
  %v5286 = vadd.f32 0.0, %v5285
  %5287 = vdwg.mxu0
  %v5288 = vadd.f32 %v4543, %v5213
  %v5289 = vadd.f32 %v4545, %v5215
  %v5290 = vadd.f32 %v4632, %v5284
  %v5291 = vadd.f32 %v4634, %v5286
  %v5292 = vxor.u32 %v5288, 2147483648
  %v5293 = vmul.f32 %v5292, 1.442695
  %v5294 = vpow.pop %v5293
  %v5295 = vadd.f32 %v5294, 1.0
  %v5296 = vrcp.pop %v5295
  %v5297 = vmul.f32 1.0, %v5296
  %v5298 = vxor.u32 %v5289, 2147483648
  %v5299 = vmul.f32 %v5298, 1.442695
  %v5300 = vpow.pop %v5299
  %v5301 = vadd.f32 %v5300, 1.0
  %v5302 = vrcp.pop %v5301
  %v5303 = vmul.f32 1.0, %v5302
  %v5304 = vtanh.pop %v5290
  %v5305 = vxor.u32 %v5291, 2147483648
  %v5306 = vmul.f32 %v5305, 1.442695
  %v5307 = vpow.pop %v5306
  %v5308 = vadd.f32 %v5307, 1.0
  %v5309 = vrcp.pop %v5308
  %v5310 = vmul.f32 1.0, %v5309
  %v5311 = vmul.f32 %v5303, %v5143
  %v5312 = vmul.f32 %v5297, %v5304
  %v5313 = vadd.f32 %v5311, %v5312
  %v5314 = vtanh.pop %v5313
  %v5315 = vmul.f32 %v5310, %v5314
  %v5316 = vld [vmem:[%s14] sm:$0xff]
  %v5317 = vld [vmem:[%s14 + $0x8] sm:$0xff]
  %v5318 = vld [vmem:[%s14 + $0x10] sm:$0xff]
  %v5319 = vld [vmem:[%s14 + $0x18] sm:$0xff]
  %v5320 = vld [vmem:[%s14 + $0x20] sm:$0xff]
  %v5321 = vld [vmem:[%s14 + $0x28] sm:$0xff]
  %v5322 = vld [vmem:[%s14 + $0x30] sm:$0xff]
  %v5323 = vld [vmem:[%s14 + $0x38] sm:$0xff]
  %v5324 = vld [vmem:[%s14 + $0x40] sm:$0xff]
  %v5325 = vld [vmem:[%s14 + $0x48] sm:$0xff]
  %v5326 = vld [vmem:[%s14 + $0x50] sm:$0xff]
  %v5327 = vld [vmem:[%s14 + $0x58] sm:$0xff]
  %v5328 = vld [vmem:[%s14 + $0x60] sm:$0xff]
  %v5329 = vld [vmem:[%s14 + $0x68] sm:$0xff]
  %v5330 = vld [vmem:[%s14 + $0x70] sm:$0xff]
  %v5331 = vld [vmem:[%s14 + $0x78] sm:$0xff]
  %v5332 = vld [vmem:[%s14 + $0x80] sm:$0xff]
  %v5333 = vld [vmem:[%s14 + $0x88] sm:$0xff]
  %v5334 = vld [vmem:[%s14 + $0x90] sm:$0xff]
  %v5335 = vld [vmem:[%s14 + $0x98] sm:$0xff]
  %v5336 = vld [vmem:[%s14 + $0xa0] sm:$0xff]
  %v5337 = vld [vmem:[%s14 + $0xa8] sm:$0xff]
  %v5338 = vld [vmem:[%s14 + $0xb0] sm:$0xff]
  %v5339 = vld [vmem:[%s14 + $0xb8] sm:$0xff]
  %v5340 = vld [vmem:[%s14 + $0xc0] sm:$0xff]
  %v5341 = vld [vmem:[%s14 + $0xc8] sm:$0xff]
  %v5342 = vld [vmem:[%s14 + $0xd0] sm:$0xff]
  %v5343 = vld [vmem:[%s14 + $0xd8] sm:$0xff]
  %v5344 = vld [vmem:[%s14 + $0xe0] sm:$0xff]
  %v5345 = vld [vmem:[%s14 + $0xe8] sm:$0xff]
  %v5346 = vld [vmem:[%s14 + $0xf0] sm:$0xff]
  %v5347 = vld [vmem:[%s14 + $0xf8] sm:$0xff]
  %v5348 = vld [vmem:[%s14 + $0x100] sm:$0xff]
  %v5349 = vld [vmem:[%s14 + $0x108] sm:$0xff]
  %v5350 = vld [vmem:[%s14 + $0x110] sm:$0xff]
  %v5351 = vld [vmem:[%s14 + $0x118] sm:$0xff]
  %v5352 = vld [vmem:[%s14 + $0x120] sm:$0xff]
  %v5353 = vld [vmem:[%s14 + $0x128] sm:$0xff]
  %v5354 = vld [vmem:[%s14 + $0x130] sm:$0xff]
  %v5355 = vld [vmem:[%s14 + $0x138] sm:$0xff]
  %v5356 = vld [vmem:[%s14 + $0x140] sm:$0xff]
  %v5357 = vld [vmem:[%s14 + $0x148] sm:$0xff]
  %v5358 = vld [vmem:[%s14 + $0x150] sm:$0xff]
  %v5359 = vld [vmem:[%s14 + $0x158] sm:$0xff]
  %v5360 = vld [vmem:[%s14 + $0x160] sm:$0xff]
  %v5361 = vld [vmem:[%s14 + $0x168] sm:$0xff]
  %v5362 = vld [vmem:[%s14 + $0x170] sm:$0xff]
  %v5363 = vld [vmem:[%s14 + $0x178] sm:$0xff]
  %v5364 = vld [vmem:[%s14 + $0x180] sm:$0xff]
  %v5365 = vld [vmem:[%s14 + $0x188] sm:$0xff]
  %v5366 = vld [vmem:[%s14 + $0x190] sm:$0xff]
  %v5367 = vld [vmem:[%s14 + $0x198] sm:$0xff]
  %v5368 = vld [vmem:[%s14 + $0x1a0] sm:$0xff]
  %v5369 = vld [vmem:[%s14 + $0x1a8] sm:$0xff]
  %v5370 = vld [vmem:[%s14 + $0x1b0] sm:$0xff]
  %v5371 = vld [vmem:[%s14 + $0x1b8] sm:$0xff]
  %v5372 = vld [vmem:[%s14 + $0x1c0] sm:$0xff]
  %v5373 = vld [vmem:[%s14 + $0x1c8] sm:$0xff]
  %v5374 = vld [vmem:[%s14 + $0x1d0] sm:$0xff]
  %v5375 = vld [vmem:[%s14 + $0x1d8] sm:$0xff]
  %v5376 = vld [vmem:[%s14 + $0x1e0] sm:$0xff]
  %v5377 = vld [vmem:[%s14 + $0x1e8] sm:$0xff]
  %v5378 = vld [vmem:[%s14 + $0x1f0] sm:$0xff]
  %v5379 = vld [vmem:[%s14 + $0x1f8] sm:$0xff]
  %v5380 = vld [vmem:[%s14 + $0x200] sm:$0xff]
  %v5381 = vld [vmem:[%s14 + $0x208] sm:$0xff]
  %v5382 = vld [vmem:[%s14 + $0x210] sm:$0xff]
  %v5383 = vld [vmem:[%s14 + $0x218] sm:$0xff]
  %v5384 = vld [vmem:[%s14 + $0x220] sm:$0xff]
  %v5385 = vld [vmem:[%s14 + $0x228] sm:$0xff]
  %v5386 = vld [vmem:[%s14 + $0x230] sm:$0xff]
  %v5387 = vld [vmem:[%s14 + $0x238] sm:$0xff]
  %v5388 = vld [vmem:[%s14 + $0x240] sm:$0xff]
  %v5389 = vld [vmem:[%s14 + $0x248] sm:$0xff]
  %v5390 = vld [vmem:[%s14 + $0x250] sm:$0xff]
  %v5391 = vld [vmem:[%s14 + $0x258] sm:$0xff]
  %v5392 = vld [vmem:[%s14 + $0x260] sm:$0xff]
  %v5393 = vld [vmem:[%s14 + $0x268] sm:$0xff]
  %v5394 = vld [vmem:[%s14 + $0x270] sm:$0xff]
  %v5395 = vld [vmem:[%s14 + $0x278] sm:$0xff]
  %v5396 = vld [vmem:[%s14 + $0x280] sm:$0xff]
  %v5397 = vld [vmem:[%s14 + $0x288] sm:$0xff]
  %v5398 = vld [vmem:[%s14 + $0x290] sm:$0xff]
  %v5399 = vld [vmem:[%s14 + $0x298] sm:$0xff]
  %v5400 = vld [vmem:[%s14 + $0x2a0] sm:$0xff]
  %v5401 = vld [vmem:[%s14 + $0x2a8] sm:$0xff]
  %v5402 = vld [vmem:[%s14 + $0x2b0] sm:$0xff]
  %v5403 = vld [vmem:[%s14 + $0x2b8] sm:$0xff]
  %v5404 = vld [vmem:[%s14 + $0x2c0] sm:$0xff]
  %v5405 = vld [vmem:[%s14 + $0x2c8] sm:$0xff]
  %v5406 = vld [vmem:[%s14 + $0x2d0] sm:$0xff]
  %v5407 = vld [vmem:[%s14 + $0x2d8] sm:$0xff]
  %v5408 = vld [vmem:[%s14 + $0x2e0] sm:$0xff]
  %v5409 = vld [vmem:[%s14 + $0x2e8] sm:$0xff]
  %v5410 = vld [vmem:[%s14 + $0x2f0] sm:$0xff]
  %v5411 = vld [vmem:[%s14 + $0x2f8] sm:$0xff]
  %v5412 = vld [vmem:[%s14 + $0x300] sm:$0xff]
  %v5413 = vld [vmem:[%s14 + $0x308] sm:$0xff]
  %v5414 = vld [vmem:[%s14 + $0x310] sm:$0xff]
  %v5415 = vld [vmem:[%s14 + $0x318] sm:$0xff]
  %v5416 = vld [vmem:[%s14 + $0x320] sm:$0xff]
  %v5417 = vld [vmem:[%s14 + $0x328] sm:$0xff]
  %v5418 = vld [vmem:[%s14 + $0x330] sm:$0xff]
  %v5419 = vld [vmem:[%s14 + $0x338] sm:$0xff]
  %v5420 = vld [vmem:[%s14 + $0x340] sm:$0xff]
  %v5421 = vld [vmem:[%s14 + $0x348] sm:$0xff]
  %v5422 = vld [vmem:[%s14 + $0x350] sm:$0xff]
  %v5423 = vld [vmem:[%s14 + $0x358] sm:$0xff]
  %v5424 = vld [vmem:[%s14 + $0x360] sm:$0xff]
  %v5425 = vld [vmem:[%s14 + $0x368] sm:$0xff]
  %v5426 = vld [vmem:[%s14 + $0x370] sm:$0xff]
  %v5427 = vld [vmem:[%s14 + $0x378] sm:$0xff]
  %v5428 = vld [vmem:[%s14 + $0x380] sm:$0xff]
  %v5429 = vld [vmem:[%s14 + $0x388] sm:$0xff]
  %v5430 = vld [vmem:[%s14 + $0x390] sm:$0xff]
  %v5431 = vld [vmem:[%s14 + $0x398] sm:$0xff]
  %v5432 = vld [vmem:[%s14 + $0x3a0] sm:$0xff]
  %v5433 = vld [vmem:[%s14 + $0x3a8] sm:$0xff]
  %v5434 = vld [vmem:[%s14 + $0x3b0] sm:$0xff]
  %v5435 = vld [vmem:[%s14 + $0x3b8] sm:$0xff]
  %v5436 = vld [vmem:[%s14 + $0x3c0] sm:$0xff]
  %v5437 = vld [vmem:[%s14 + $0x3c8] sm:$0xff]
  %v5438 = vld [vmem:[%s14 + $0x3d0] sm:$0xff]
  %v5439 = vld [vmem:[%s14 + $0x3d8] sm:$0xff]
  %v5440 = vld [vmem:[%s14 + $0x3e0] sm:$0xff]
  %v5441 = vld [vmem:[%s14 + $0x3e8] sm:$0xff]
  %v5442 = vld [vmem:[%s14 + $0x3f0] sm:$0xff]
  %v5443 = vld [vmem:[%s14 + $0x3f8] sm:$0xff]
  %v5444 = vld [vmem:[%s15] sm:$0xf]
  %v5446 = vlaneseq
  %v5447 = vshrl.u32 %v5446, 7
  %v5448 = vsub.s32 0, %v5447
  %v5449 = vrot.slane %v5444, %v5448
  %v5450 = vlaneseq
  %v5451 = vshrl.u32 %v5450, 7
  %v5452 = vsub.s32 1, %v5451
  %v5453 = vrot.slane %v5444, %v5452
  %v5454 = vlaneseq
  %v5455 = vshrl.u32 %v5454, 7
  %v5456 = vsub.s32 2, %v5455
  %v5457 = vrot.slane %v5444, %v5456
  %v5458 = vlaneseq
  %v5459 = vshrl.u32 %v5458, 7
  %v5460 = vsub.s32 3, %v5459
  %v5461 = vrot.slane %v5444, %v5460
  %5466 = vmatprep.subr.mxu0 %v5317
  %5467 = vmatpush1.msra.mxu0 %v5316
  %5468 = vmatprep.subr.mxu0 %v5321
  %5469 = vmatpush1.msra.mxu0 %v5320
  %5470 = vmatprep.subr.mxu0 %v5325
  %5471 = vmatpush1.msra.mxu0 %v5324
  %5472 = vmatprep.subr.mxu0 %v5329
  %5473 = vmatpush1.msra.mxu0 %v5328
  %5474 = vmatprep.subr.mxu0 %v5333
  %5475 = vmatpush1.msra.mxu0 %v5332
  %5476 = vmatprep.subr.mxu0 %v5337
  %5477 = vmatpush1.msra.mxu0 %v5336
  %5478 = vmatprep.subr.mxu0 %v5341
  %5479 = vmatpush1.msra.mxu0 %v5340
  %5480 = vmatprep.subr.mxu0 %v5345
  %5481 = vmatpush1.msra.mxu0 %v5344
  %5482 = vmatprep.subr.mxu0 %v5349
  %5483 = vmatpush1.msra.mxu0 %v5348
  %5484 = vmatprep.subr.mxu0 %v5353
  %5485 = vmatpush1.msra.mxu0 %v5352
  %5486 = vmatprep.subr.mxu0 %v5357
  %5487 = vmatpush1.msra.mxu0 %v5356
  %5488 = vmatprep.subr.mxu0 %v5361
  %5489 = vmatpush1.msra.mxu0 %v5360
  %5490 = vmatprep.subr.mxu0 %v5365
  %5491 = vmatpush1.msra.mxu0 %v5364
  %5492 = vmatprep.subr.mxu0 %v5369
  %5493 = vmatpush1.msra.mxu0 %v5368
  %5494 = vmatprep.subr.mxu0 %v5373
  %5495 = vmatpush1.msra.mxu0 %v5372
  %5496 = vmatprep.subr.mxu0 %v5377
  %5497 = vmatpush1.msra.mxu0 %v5376
  %5498 = vmatprep.subr.mxu0 %v5381
  %5499 = vmatpush1.msra.mxu0 %v5380
  %5500 = vmatprep.subr.mxu0 %v5385
  %5501 = vmatpush1.msra.mxu0 %v5384
  %5502 = vmatprep.subr.mxu0 %v5389
  %5503 = vmatpush1.msra.mxu0 %v5388
  %5504 = vmatprep.subr.mxu0 %v5393
  %5505 = vmatpush1.msra.mxu0 %v5392
  %5506 = vmatprep.subr.mxu0 %v5397
  %5507 = vmatpush1.msra.mxu0 %v5396
  %5508 = vmatprep.subr.mxu0 %v5401
  %5509 = vmatpush1.msra.mxu0 %v5400
  %5510 = vmatprep.subr.mxu0 %v5405
  %5511 = vmatpush1.msra.mxu0 %v5404
  %5512 = vmatprep.subr.mxu0 %v5409
  %5513 = vmatpush1.msra.mxu0 %v5408
  %5514 = vmatprep.subr.mxu0 %v5413
  %5515 = vmatpush1.msra.mxu0 %v5412
  %5516 = vmatprep.subr.mxu0 %v5417
  %5517 = vmatpush1.msra.mxu0 %v5416
  %5518 = vmatprep.subr.mxu0 %v5421
  %5519 = vmatpush1.msra.mxu0 %v5420
  %5520 = vmatprep.subr.mxu0 %v5425
  %5521 = vmatpush1.msra.mxu0 %v5424
  %5522 = vmatprep.subr.mxu0 %v5429
  %5523 = vmatpush1.msra.mxu0 %v5428
  %5524 = vmatprep.subr.mxu0 %v5433
  %5525 = vmatpush1.msra.mxu0 %v5432
  %5526 = vmatprep.subr.mxu0 %v5437
  %5527 = vmatpush1.msra.mxu0 %v5436
  %5528 = vmatprep.subr.mxu0 %v5441
  %5529 = vmatpush1.msra.mxu0 %v5440
  %5530 = vmatprep.mubr.f32.mxu0 %v2687
  %5531 = vmatmul.mubr.f32.gmra.mrb[0].mxu0 %v5315
  %v5532 = vpop.f32.mrb[0].mxu0
  %v5533 = vadd.f32 %v5449, %v5532
  %v5534 = vpop.f32.mrb[0].mxu0
  %v5535 = vadd.f32 %v5453, %v5534
  %5536 = vdwg.mxu0
  %5537 = vmatprep.subr.mxu0 %v5319
  %5538 = vmatpush1.msra.mxu0 %v5318
  %5539 = vmatprep.subr.mxu0 %v5323
  %5540 = vmatpush1.msra.mxu0 %v5322
  %5541 = vmatprep.subr.mxu0 %v5327
  %5542 = vmatpush1.msra.mxu0 %v5326
  %5543 = vmatprep.subr.mxu0 %v5331
  %5544 = vmatpush1.msra.mxu0 %v5330
  %5545 = vmatprep.subr.mxu0 %v5335
  %5546 = vmatpush1.msra.mxu0 %v5334
  %5547 = vmatprep.subr.mxu0 %v5339
  %5548 = vmatpush1.msra.mxu0 %v5338
  %5549 = vmatprep.subr.mxu0 %v5343
  %5550 = vmatpush1.msra.mxu0 %v5342
  %5551 = vmatprep.subr.mxu0 %v5347
  %5552 = vmatpush1.msra.mxu0 %v5346
  %5553 = vmatprep.subr.mxu0 %v5351
  %5554 = vmatpush1.msra.mxu0 %v5350
  %5555 = vmatprep.subr.mxu0 %v5355
  %5556 = vmatpush1.msra.mxu0 %v5354
  %5557 = vmatprep.subr.mxu0 %v5359
  %5558 = vmatpush1.msra.mxu0 %v5358
  %5559 = vmatprep.subr.mxu0 %v5363
  %5560 = vmatpush1.msra.mxu0 %v5362
  %5561 = vmatprep.subr.mxu0 %v5367
  %5562 = vmatpush1.msra.mxu0 %v5366
  %5563 = vmatprep.subr.mxu0 %v5371
  %5564 = vmatpush1.msra.mxu0 %v5370
  %5565 = vmatprep.subr.mxu0 %v5375
  %5566 = vmatpush1.msra.mxu0 %v5374
  %5567 = vmatprep.subr.mxu0 %v5379
  %5568 = vmatpush1.msra.mxu0 %v5378
  %5569 = vmatprep.subr.mxu0 %v5383
  %5570 = vmatpush1.msra.mxu0 %v5382
  %5571 = vmatprep.subr.mxu0 %v5387
  %5572 = vmatpush1.msra.mxu0 %v5386
  %5573 = vmatprep.subr.mxu0 %v5391
  %5574 = vmatpush1.msra.mxu0 %v5390
  %5575 = vmatprep.subr.mxu0 %v5395
  %5576 = vmatpush1.msra.mxu0 %v5394
  %5577 = vmatprep.subr.mxu0 %v5399
  %5578 = vmatpush1.msra.mxu0 %v5398
  %5579 = vmatprep.subr.mxu0 %v5403
  %5580 = vmatpush1.msra.mxu0 %v5402
  %5581 = vmatprep.subr.mxu0 %v5407
  %5582 = vmatpush1.msra.mxu0 %v5406
  %5583 = vmatprep.subr.mxu0 %v5411
  %5584 = vmatpush1.msra.mxu0 %v5410
  %5585 = vmatprep.subr.mxu0 %v5415
  %5586 = vmatpush1.msra.mxu0 %v5414
  %5587 = vmatprep.subr.mxu0 %v5419
  %5588 = vmatpush1.msra.mxu0 %v5418
  %5589 = vmatprep.subr.mxu0 %v5423
  %5590 = vmatpush1.msra.mxu0 %v5422
  %5591 = vmatprep.subr.mxu0 %v5427
  %5592 = vmatpush1.msra.mxu0 %v5426
  %5593 = vmatprep.subr.mxu0 %v5431
  %5594 = vmatpush1.msra.mxu0 %v5430
  %5595 = vmatprep.subr.mxu0 %v5435
  %5596 = vmatpush1.msra.mxu0 %v5434
  %5597 = vmatprep.subr.mxu0 %v5439
  %5598 = vmatpush1.msra.mxu0 %v5438
  %5599 = vmatprep.subr.mxu0 %v5443
  %5600 = vmatpush1.msra.mxu0 %v5442
  %5601 = vmatprep.mubr.f32.mxu0 %v2687
  %5602 = vmatmul.mubr.f32.gmra.mrb[0].mxu0 %v5315
  %v5603 = vpop.f32.mrb[0].mxu0
  %v5604 = vadd.f32 %v5457, %v5603
  %v5605 = vpop.f32.mrb[0].mxu0
  %v5606 = vadd.f32 %v5461, %v5605
  %5607 = vdwg.mxu0
  %v5608 = vmax.f32 %v5533, 0.0
  %v5609 = vmax.f32 %v5535, 0.0
  %v5610 = vmax.f32 %v5604, 0.0
  %v5611 = vmax.f32 %v5606, 0.0
  %v5612 = vld [vmem:[%s16] sm:$0xff]
  %v5613 = vld [vmem:[%s16 + $0x8] sm:$0xff]
  %v5614 = vld [vmem:[%s16 + $0x10] sm:$0xff]
  %v5615 = vld [vmem:[%s16 + $0x18] sm:$0xff]
  %v5616 = vld [vmem:[%s16 + $0x20] sm:$0xff]
  %v5617 = vld [vmem:[%s16 + $0x28] sm:$0xff]
  %v5618 = vld [vmem:[%s16 + $0x30] sm:$0xff]
  %v5619 = vld [vmem:[%s16 + $0x38] sm:$0xff]
  %v5620 = vld [vmem:[%s16 + $0x40] sm:$0xff]
  %v5621 = vld [vmem:[%s16 + $0x48] sm:$0xff]
  %v5622 = vld [vmem:[%s16 + $0x50] sm:$0xff]
  %v5623 = vld [vmem:[%s16 + $0x58] sm:$0xff]
  %v5624 = vld [vmem:[%s16 + $0x60] sm:$0xff]
  %v5625 = vld [vmem:[%s16 + $0x68] sm:$0xff]
  %v5626 = vld [vmem:[%s16 + $0x70] sm:$0xff]
  %v5627 = vld [vmem:[%s16 + $0x78] sm:$0xff]
  %v5628 = vld [vmem:[%s16 + $0x80] sm:$0xff]
  %v5629 = vld [vmem:[%s16 + $0x88] sm:$0xff]
  %v5630 = vld [vmem:[%s16 + $0x90] sm:$0xff]
  %v5631 = vld [vmem:[%s16 + $0x98] sm:$0xff]
  %v5632 = vld [vmem:[%s16 + $0xa0] sm:$0xff]
  %v5633 = vld [vmem:[%s16 + $0xa8] sm:$0xff]
  %v5634 = vld [vmem:[%s16 + $0xb0] sm:$0xff]
  %v5635 = vld [vmem:[%s16 + $0xb8] sm:$0xff]
  %v5636 = vld [vmem:[%s16 + $0xc0] sm:$0xff]
  %v5637 = vld [vmem:[%s16 + $0xc8] sm:$0xff]
  %v5638 = vld [vmem:[%s16 + $0xd0] sm:$0xff]
  %v5639 = vld [vmem:[%s16 + $0xd8] sm:$0xff]
  %v5640 = vld [vmem:[%s16 + $0xe0] sm:$0xff]
  %v5641 = vld [vmem:[%s16 + $0xe8] sm:$0xff]
  %v5642 = vld [vmem:[%s16 + $0xf0] sm:$0xff]
  %v5643 = vld [vmem:[%s16 + $0xf8] sm:$0xff]
  %v5644 = vld [vmem:[%s16 + $0x100] sm:$0xff]
  %v5645 = vld [vmem:[%s16 + $0x108] sm:$0xff]
  %v5646 = vld [vmem:[%s16 + $0x110] sm:$0xff]
  %v5647 = vld [vmem:[%s16 + $0x118] sm:$0xff]
  %v5648 = vld [vmem:[%s16 + $0x120] sm:$0xff]
  %v5649 = vld [vmem:[%s16 + $0x128] sm:$0xff]
  %v5650 = vld [vmem:[%s16 + $0x130] sm:$0xff]
  %v5651 = vld [vmem:[%s16 + $0x138] sm:$0xff]
  %v5652 = vld [vmem:[%s16 + $0x140] sm:$0xff]
  %v5653 = vld [vmem:[%s16 + $0x148] sm:$0xff]
  %v5654 = vld [vmem:[%s16 + $0x150] sm:$0xff]
  %v5655 = vld [vmem:[%s16 + $0x158] sm:$0xff]
  %v5656 = vld [vmem:[%s16 + $0x160] sm:$0xff]
  %v5657 = vld [vmem:[%s16 + $0x168] sm:$0xff]
  %v5658 = vld [vmem:[%s16 + $0x170] sm:$0xff]
  %v5659 = vld [vmem:[%s16 + $0x178] sm:$0xff]
  %v5660 = vld [vmem:[%s16 + $0x180] sm:$0xff]
  %v5661 = vld [vmem:[%s16 + $0x188] sm:$0xff]
  %v5662 = vld [vmem:[%s16 + $0x190] sm:$0xff]
  %v5663 = vld [vmem:[%s16 + $0x198] sm:$0xff]
  %v5664 = vld [vmem:[%s16 + $0x1a0] sm:$0xff]
  %v5665 = vld [vmem:[%s16 + $0x1a8] sm:$0xff]
  %v5666 = vld [vmem:[%s16 + $0x1b0] sm:$0xff]
  %v5667 = vld [vmem:[%s16 + $0x1b8] sm:$0xff]
  %v5668 = vld [vmem:[%s16 + $0x1c0] sm:$0xff]
  %v5669 = vld [vmem:[%s16 + $0x1c8] sm:$0xff]
  %v5670 = vld [vmem:[%s16 + $0x1d0] sm:$0xff]
  %v5671 = vld [vmem:[%s16 + $0x1d8] sm:$0xff]
  %v5672 = vld [vmem:[%s16 + $0x1e0] sm:$0xff]
  %v5673 = vld [vmem:[%s16 + $0x1e8] sm:$0xff]
  %v5674 = vld [vmem:[%s16 + $0x1f0] sm:$0xff]
  %v5675 = vld [vmem:[%s16 + $0x1f8] sm:$0xff]
  %v5676 = vld [vmem:[%s17] sm:$0x1]
  %v5678 = vlaneseq
  %v5679 = vshrl.u32 %v5678, 7
  %v5680 = vsub.s32 0, %v5679
  %v5681 = vrot.slane %v5676, %v5680
  %5683 = vmatprep.subr.mxu0 0.0
  %5684 = vmatpush1.msra.mxu0 %v5612
  %5685 = vmatprep.subr.mxu0 0.0
  %5686 = vmatpush1.msra.mxu0 %v5613
  %5687 = vmatprep.subr.mxu0 0.0
  %5688 = vmatpush1.msra.mxu0 %v5614
  %5689 = vmatprep.subr.mxu0 0.0
  %5690 = vmatpush1.msra.mxu0 %v5615
  %5691 = vmatprep.subr.mxu0 0.0
  %5692 = vmatpush1.msra.mxu0 %v5616
  %5693 = vmatprep.subr.mxu0 0.0
  %5694 = vmatpush1.msra.mxu0 %v5617
  %5695 = vmatprep.subr.mxu0 0.0
  %5696 = vmatpush1.msra.mxu0 %v5618
  %5697 = vmatprep.subr.mxu0 0.0
  %5698 = vmatpush1.msra.mxu0 %v5619
  %5699 = vmatprep.subr.mxu0 0.0
  %5700 = vmatpush1.msra.mxu0 %v5620
  %5701 = vmatprep.subr.mxu0 0.0
  %5702 = vmatpush1.msra.mxu0 %v5621
  %5703 = vmatprep.subr.mxu0 0.0
  %5704 = vmatpush1.msra.mxu0 %v5622
  %5705 = vmatprep.subr.mxu0 0.0
  %5706 = vmatpush1.msra.mxu0 %v5623
  %5707 = vmatprep.subr.mxu0 0.0
  %5708 = vmatpush1.msra.mxu0 %v5624
  %5709 = vmatprep.subr.mxu0 0.0
  %5710 = vmatpush1.msra.mxu0 %v5625
  %5711 = vmatprep.subr.mxu0 0.0
  %5712 = vmatpush1.msra.mxu0 %v5626
  %5713 = vmatprep.subr.mxu0 0.0
  %5714 = vmatpush1.msra.mxu0 %v5627
  %5715 = vmatprep.subr.mxu0 0.0
  %5716 = vmatpush1.msra.mxu0 %v5628
  %5717 = vmatprep.subr.mxu0 0.0
  %5718 = vmatpush1.msra.mxu0 %v5629
  %5719 = vmatprep.subr.mxu0 0.0
  %5720 = vmatpush1.msra.mxu0 %v5630
  %5721 = vmatprep.subr.mxu0 0.0
  %5722 = vmatpush1.msra.mxu0 %v5631
  %5723 = vmatprep.subr.mxu0 0.0
  %5724 = vmatpush1.msra.mxu0 %v5632
  %5725 = vmatprep.subr.mxu0 0.0
  %5726 = vmatpush1.msra.mxu0 %v5633
  %5727 = vmatprep.subr.mxu0 0.0
  %5728 = vmatpush1.msra.mxu0 %v5634
  %5729 = vmatprep.subr.mxu0 0.0
  %5730 = vmatpush1.msra.mxu0 %v5635
  %5731 = vmatprep.subr.mxu0 0.0
  %5732 = vmatpush1.msra.mxu0 %v5636
  %5733 = vmatprep.subr.mxu0 0.0
  %5734 = vmatpush1.msra.mxu0 %v5637
  %5735 = vmatprep.subr.mxu0 0.0
  %5736 = vmatpush1.msra.mxu0 %v5638
  %5737 = vmatprep.subr.mxu0 0.0
  %5738 = vmatpush1.msra.mxu0 %v5639
  %5739 = vmatprep.subr.mxu0 0.0
  %5740 = vmatpush1.msra.mxu0 %v5640
  %5741 = vmatprep.subr.mxu0 0.0
  %5742 = vmatpush1.msra.mxu0 %v5641
  %5743 = vmatprep.subr.mxu0 0.0
  %5744 = vmatpush1.msra.mxu0 %v5642
  %5745 = vmatprep.subr.mxu0 0.0
  %5746 = vmatpush1.msra.mxu0 %v5643
  %5747 = vmatprep.mubr.f32.mxu0 %v5609
  %5748 = vmatmul.mubr.f32.gmra.mrb[0].mxu0 %v5608
  %v5749 = vpop.f32.mrb[0].mxu0
  %v5750 = vadd.f32 %v5681, %v5749
  %v5751 = vpop.f32.mrb[0].mxu0
  %5752 = vdwg.mxu0
  %5753 = vmatprep.subr.mxu0 0.0
  %5754 = vmatpush1.msra.mxu0 %v5644
  %5755 = vmatprep.subr.mxu0 0.0
  %5756 = vmatpush1.msra.mxu0 %v5645
  %5757 = vmatprep.subr.mxu0 0.0
  %5758 = vmatpush1.msra.mxu0 %v5646
  %5759 = vmatprep.subr.mxu0 0.0
  %5760 = vmatpush1.msra.mxu0 %v5647
  %5761 = vmatprep.subr.mxu0 0.0
  %5762 = vmatpush1.msra.mxu0 %v5648
  %5763 = vmatprep.subr.mxu0 0.0
  %5764 = vmatpush1.msra.mxu0 %v5649
  %5765 = vmatprep.subr.mxu0 0.0
  %5766 = vmatpush1.msra.mxu0 %v5650
  %5767 = vmatprep.subr.mxu0 0.0
  %5768 = vmatpush1.msra.mxu0 %v5651
  %5769 = vmatprep.subr.mxu0 0.0
  %5770 = vmatpush1.msra.mxu0 %v5652
  %5771 = vmatprep.subr.mxu0 0.0
  %5772 = vmatpush1.msra.mxu0 %v5653
  %5773 = vmatprep.subr.mxu0 0.0
  %5774 = vmatpush1.msra.mxu0 %v5654
  %5775 = vmatprep.subr.mxu0 0.0
  %5776 = vmatpush1.msra.mxu0 %v5655
  %5777 = vmatprep.subr.mxu0 0.0
  %5778 = vmatpush1.msra.mxu0 %v5656
  %5779 = vmatprep.subr.mxu0 0.0
  %5780 = vmatpush1.msra.mxu0 %v5657
  %5781 = vmatprep.subr.mxu0 0.0
  %5782 = vmatpush1.msra.mxu0 %v5658
  %5783 = vmatprep.subr.mxu0 0.0
  %5784 = vmatpush1.msra.mxu0 %v5659
  %5785 = vmatprep.subr.mxu0 0.0
  %5786 = vmatpush1.msra.mxu0 %v5660
  %5787 = vmatprep.subr.mxu0 0.0
  %5788 = vmatpush1.msra.mxu0 %v5661
  %5789 = vmatprep.subr.mxu0 0.0
  %5790 = vmatpush1.msra.mxu0 %v5662
  %5791 = vmatprep.subr.mxu0 0.0
  %5792 = vmatpush1.msra.mxu0 %v5663
  %5793 = vmatprep.subr.mxu0 0.0
  %5794 = vmatpush1.msra.mxu0 %v5664
  %5795 = vmatprep.subr.mxu0 0.0
  %5796 = vmatpush1.msra.mxu0 %v5665
  %5797 = vmatprep.subr.mxu0 0.0
  %5798 = vmatpush1.msra.mxu0 %v5666
  %5799 = vmatprep.subr.mxu0 0.0
  %5800 = vmatpush1.msra.mxu0 %v5667
  %5801 = vmatprep.subr.mxu0 0.0
  %5802 = vmatpush1.msra.mxu0 %v5668
  %5803 = vmatprep.subr.mxu0 0.0
  %5804 = vmatpush1.msra.mxu0 %v5669
  %5805 = vmatprep.subr.mxu0 0.0
  %5806 = vmatpush1.msra.mxu0 %v5670
  %5807 = vmatprep.subr.mxu0 0.0
  %5808 = vmatpush1.msra.mxu0 %v5671
  %5809 = vmatprep.subr.mxu0 0.0
  %5810 = vmatpush1.msra.mxu0 %v5672
  %5811 = vmatprep.subr.mxu0 0.0
  %5812 = vmatpush1.msra.mxu0 %v5673
  %5813 = vmatprep.subr.mxu0 0.0
  %5814 = vmatpush1.msra.mxu0 %v5674
  %5815 = vmatprep.subr.mxu0 0.0
  %5816 = vmatpush1.msra.mxu0 %v5675
  %5817 = vmatprep.mubr.f32.mxu0 %v5611
  %5818 = vmatmul.mubr.f32.gmra.mrb[0].mxu0 %v5610
  %v5819 = vpop.f32.mrb[0].mxu0
  %v5820 = vadd.f32 %v5750, %v5819
  %v5821 = vpop.f32.mrb[0].mxu0
  %5822 = vdwg.mxu0
  %vm5823 = vcmask 130048
  %5824 = vst.msk [vmem:[%s18] sm:$0xff] %vm5823, %v5820
  // Predicated region
  $region74: #{nature_cnn_forward.9} parent=0 // pred_check
    _
  $region75: #{nature_cnn_forward.9} parent=0 // pred_check_branch
    %5826 = sbr.rel (0) target = $region77
  $region76: #{nature_cnn_forward.9} parent=0 // pred_region
    _
  $region77: #{nature_cnn_forward.9} parent=0 // pred_fallthru
    _
  // Predicated region
  $region78: #{nature_cnn_forward.9} parent=0 // pred_check
    _
  $region79: #{nature_cnn_forward.9} parent=0 // pred_check_branch
    %5828 = sbr.rel (0) target = $region81
  $region80: #{nature_cnn_forward.9} parent=0 // pred_region
    _
  $region81: #{nature_cnn_forward.9} parent=0 // pred_fallthru
    _

</llo_original>
